<compile_context>
chip_gen: v7x
topology: tpu7x:2x2x1
jax: 0.10.0
libtpu: 0.0.40
codegen_flags: <defaults>
</compile_context>

<pallas_src>
import functools
import numpy as np

import jax
import jax.numpy as jnp
from jax.experimental import pallas as pl
from jax.experimental.pallas import tpu as pltpu

# ----------------------------- problem sizes --------------------------------
IMG = 64                    # H = W of input image
IN_CH = 3                   # image channels
PATCH = 8                   # patch size
GRID = IMG // PATCH         # 8
N_SPATIAL = GRID * GRID     # 64 image tokens
PATCH_DIM = IN_CH * PATCH * PATCH   # 192
EMB = 32                    # embedding / transformer width
MLP = 64                    # MLP hidden width
N_PTS = 2                   # prompt points per image
N_TOK = 3 + N_PTS + 1       # iou/mask/cls tokens + points + pad point = 6
N_CLS = 4                   # classes for cls_predictions head
LOWRES = 4 * GRID           # SAM low-res mask resolution (32)
HEAD_W = 128                # lane-dense width of the fused hyp|iou|cls head
B = 2                       # batch

_ATTN_SCALE = 1.0 / float(np.sqrt(EMB))


# ============================ fused Pallas kernel ============================
def _sam_fused_kernel(
        x_ref, tok_ref,
        pe_ref, kupT_ref,
        patch_w, patch_b,
        vqkv_w, vqkv_b, vo_w, vo_b, vm1_w, vm1_b, vm2_w, vm2_b,
        t2i_q_w, t2i_q_b, kq_w, kq_b, t2i_v_w, t2i_v_b, t2i_o_w, t2i_o_b,
        dm1_w, dm1_b, dm2_w, dm2_b,
        i2t_kv_w, i2t_kv_b, i2t_o_w, i2t_o_b,
        head_w, head_b, hyp2_w, hyp2_b,
        mask_ref, head_out_ref):
    CB = tok_ref.shape[0]      # images handled in this grid step (static)

    def lin(x, w, b=None, relu=False):
        y = jnp.dot(x, w[...], preferred_element_type=jnp.float32)
        if b is not None:
            y = y + b[...]
        if relu:
            y = jnp.maximum(y, 0.0)
        return y

    def attn(q, k, v):
        # contract last dims of q and k directly (no explicit transpose of k)
        s = jax.lax.dot_general(q, k, (((1,), (1,)), ((), ())),
                                preferred_element_type=jnp.float32) * _ATTN_SCALE
        s = s - jnp.max(s, axis=-1, keepdims=True)
        p = jnp.exp(s)
        p = p * pl.reciprocal(jnp.sum(p, axis=-1, keepdims=True), approx=True)
        return jnp.dot(p, v, preferred_element_type=jnp.float32)

    # -------- image encoder (patch embed + 1 ViT block), stacked over CB ----
    x = x_ref[...]                                     # [CB*64, 192]
    emb = lin(x, patch_w, patch_b)                     # [CB*64, 32]
    qkv = lin(emb, vqkv_w, vqkv_b)                     # [CB*64, 96] fused QKV
    q = qkv[:, 0 * EMB:1 * EMB]
    k = qkv[:, 1 * EMB:2 * EMB]
    v = qkv[:, 2 * EMB:3 * EMB]
    a_parts = []
    for i in range(CB):                                # self-attention per image
        sl = slice(i * N_SPATIAL, (i + 1) * N_SPATIAL)
        a_parts.append(attn(q[sl], k[sl], v[sl]))
    a_out = a_parts[0] if CB == 1 else jnp.concatenate(a_parts, axis=0)
    t = emb + lin(a_out, vo_w, vo_b)
    # vm2 bias has the "no-mask" dense prompt embedding folded in -> this is src
    src = t + lin(lin(t, vm1_w, vm1_b, relu=True), vm2_w, vm2_b)   # [CB*64, 32]

    # -------- mask decoder, src-side projections stacked over CB ------------
    srcpos = src + pe_ref[...]                         # [CB*64, 32] (PE pre-tiled)
    kq = lin(srcpos, kq_w, kq_b)                       # [CB*64, 64] = t2i_k | i2t_q
    v1 = lin(src, t2i_v_w, t2i_v_b)                    # [CB*64, 32]

    m_rows = []
    for i in range(CB):
        sl = slice(i * N_SPATIAL, (i + 1) * N_SPATIAL)
        tk = tok_ref[i]                                # [6, 32]

        # tokens -> image cross attention
        q1 = lin(tk, t2i_q_w, t2i_q_b)                 # [6, 32]
        tk = tk + lin(attn(q1, kq[sl, 0:EMB], v1[sl]), t2i_o_w, t2i_o_b)
        tk = tk + lin(lin(tk, dm1_w, dm1_b, relu=True), dm2_w, dm2_b)

        # image -> tokens cross attention (fused K|V projection of tokens)
        kv2 = lin(tk, i2t_kv_w, i2t_kv_b)              # [6, 64]
        src_i = src[sl] + lin(
            attn(kq[sl, EMB:2 * EMB], kv2[:, 0:EMB], kv2[:, EMB:2 * EMB]),
            i2t_o_w, i2t_o_b)                          # [64, 32]

        # fused heads: cols [0:32]=hyp1, [32]=iou, [33:37]=cls, rest zero-padded
        head_all = lin(tk, head_w, head_b)             # [6, 128] lane-dense
        hyp = lin(jnp.maximum(head_all[:, 0:EMB], 0.0), hyp2_w, hyp2_b)   # [6, 32]

        # hypernetwork low-res mask, flattened to a [1, 64] row (mask token = row 1)
        m_rows.append(jax.lax.dot_general(
            hyp[1:2, :], src_i, (((1,), (1,)), ((), ())),
            preferred_element_type=jnp.float32))

        # packed per-image head output: row 0 = iou-token row, row 1 = cls-token row
        head_out_ref[i] = jnp.concatenate([head_all[0:1, :], head_all[2:3, :]],
                                          axis=0)      # [2, 128]

    # -------- bilinear upsample: one bf16 matmul vs pre-transposed kron ------
    m_all = m_rows[0] if CB == 1 else jnp.concatenate(m_rows, axis=0)   # [CB, 64]
    up = jnp.dot(m_all.astype(jnp.bfloat16), kupT_ref[...],
                 preferred_element_type=jnp.float32)                    # [CB, 4096]
    for i in range(CB):
        mask_ref[i] = up[i:i + 1, :]


def _images_per_step(batch):
    """Whole batch in one grid step on single-TC chips (v5e/v6e); split across
    the two TensorCores on v7x when the batch divides evenly."""
    try:
        kind = jax.devices()[0].device_kind.lower()
    except Exception:
        kind = ""
    two_tc = "7" in kind          # v7x has 2 TensorCores per chip
    if two_tc and batch >= 2 and batch % 2 == 0:
        return batch // 2
    return batch


def sam_fused_call(x2d, tokens, consts, cb):
    Bn = tokens.shape[0]
    steps = Bn // cb

    in_specs = [
        pl.BlockSpec((cb * N_SPATIAL, PATCH_DIM), lambda b: (b, 0)),
        pl.BlockSpec((cb, N_TOK, EMB), lambda b: (b, 0, 0)),
    ] + [pl.BlockSpec(c.shape, lambda b: (0, 0)) for c in consts]  # VMEM-resident weights
    # TODO(synk): pipeline_mode=pl.Buffered(1) on the resident constants would halve
    # their static double-buffer reservation; not binding at this model size.

    out_shape = (
        jax.ShapeDtypeStruct((Bn, 1, IMG * IMG), jnp.float32),   # flat masks
        jax.ShapeDtypeStruct((Bn, 2, HEAD_W), jnp.float32),      # packed iou/cls rows
    )
    out_specs = (
        pl.BlockSpec((cb, 1, IMG * IMG), lambda b: (b, 0, 0)),
        pl.BlockSpec((cb, 2, HEAD_W), lambda b: (b, 0, 0)),
    )
    return pl.pallas_call(
        _sam_fused_kernel,
        grid=(steps,),
        out_shape=out_shape,
        in_specs=in_specs,
        out_specs=out_specs,
        compiler_params=pltpu.CompilerParams(dimension_semantics=("parallel",)),
    )(x2d, tokens, *consts)


# ======================= bilinear interpolation (offline) ====================
def bilinear_matrix(out_size, in_size):
    """Row-stochastic matrix A s.t. A @ x == F.interpolate(x, align_corners=False)."""
    A = np.zeros((out_size, in_size), np.float32)
    scale = in_size / out_size
    for o in range(out_size):
        x = (o + 0.5) * scale - 0.5
        x = max(x, 0.0)
        x0 = min(int(np.floor(x)), in_size - 1)
        x1 = min(x0 + 1, in_size - 1)
        w1 = x - x0
        A[o, x0] += 1.0 - w1
        A[o, x1] += w1
    return A


# ============================ parameter init =================================
def init_params(key):
    def nrm(k, shape, s=0.02):
        return s * jax.random.normal(k, shape, jnp.float32)

    keys = iter(jax.random.split(key, 64))
    p = {}
    # image encoder (patch embed + 1 ViT block)
    p["patch_w"] = nrm(next(keys), (PATCH_DIM, EMB))
    p["patch_b"] = jnp.zeros((EMB,), jnp.float32)
    for n in ["vq", "vk", "vv", "vo"]:
        p[f"{n}_w"] = nrm(next(keys), (EMB, EMB))
        p[f"{n}_b"] = jnp.zeros((EMB,), jnp.float32)
    p["vm1_w"] = nrm(next(keys), (EMB, MLP)); p["vm1_b"] = jnp.zeros((MLP,), jnp.float32)
    p["vm2_w"] = nrm(next(keys), (MLP, EMB)); p["vm2_b"] = jnp.zeros((EMB,), jnp.float32)
    # prompt encoder
    p["pe_gauss"] = jax.random.normal(next(keys), (2, EMB // 2), jnp.float32)
    p["pt_pos"] = nrm(next(keys), (EMB,))
    p["pt_neg"] = nrm(next(keys), (EMB,))
    p["not_a_point"] = nrm(next(keys), (EMB,))
    p["no_mask"] = nrm(next(keys), (EMB,))
    # mask decoder
    p["iou_token"] = nrm(next(keys), (1, EMB))
    p["mask_token"] = nrm(next(keys), (1, EMB))
    p["cls_token"] = nrm(next(keys), (1, EMB))
    for n in ["t2i_q", "t2i_k", "t2i_v", "t2i_o", "i2t_q", "i2t_k", "i2t_v", "i2t_o"]:
        p[f"{n}_w"] = nrm(next(keys), (EMB, EMB))
        p[f"{n}_b"] = jnp.zeros((EMB,), jnp.float32)
    p["dm1_w"] = nrm(next(keys), (EMB, MLP)); p["dm1_b"] = jnp.zeros((MLP,), jnp.float32)
    p["dm2_w"] = nrm(next(keys), (MLP, EMB)); p["dm2_b"] = jnp.zeros((EMB,), jnp.float32)
    p["hyp1_w"] = nrm(next(keys), (EMB, EMB)); p["hyp1_b"] = jnp.zeros((EMB,), jnp.float32)
    p["hyp2_w"] = nrm(next(keys), (EMB, EMB)); p["hyp2_b"] = jnp.zeros((EMB,), jnp.float32)
    p["iou_w"] = nrm(next(keys), (EMB, 1)); p["iou_b"] = jnp.zeros((1,), jnp.float32)
    p["cls_w"] = nrm(next(keys), (EMB, N_CLS)); p["cls_b"] = jnp.zeros((N_CLS,), jnp.float32)
    return p


# ===================== prompt encoder / dense PE (tiny, jnp) =================
def get_dense_pe(p):
    ys = (jnp.arange(GRID, dtype=jnp.float32) + 0.5) / GRID
    xs = (jnp.arange(GRID, dtype=jnp.float32) + 0.5) / GRID
    gy, gx = jnp.meshgrid(ys, xs, indexing="ij")
    coords = jnp.stack([gx.reshape(-1), gy.reshape(-1)], axis=-1)    # (x, y) order
    c = 2.0 * coords - 1.0
    proj = 2.0 * np.pi * (c @ p["pe_gauss"])                         # K=2: plain jnp
    return jnp.concatenate([jnp.sin(proj), jnp.cos(proj)], axis=-1)  # [64, EMB]


def prompt_encoder_batched(pts, labels, p):
    """pts:[B,N,2] (x,y) pixel coords, labels:[B,N] in {0,1}. Boxes/masks are None."""
    Bn = pts.shape[0]
    pad_pt = jnp.zeros((Bn, 1, 2), jnp.float32)
    pad_lb = -jnp.ones((Bn, 1), jnp.int32)
    pts = jnp.concatenate([pts.astype(jnp.float32), pad_pt], axis=1) + 0.5
    labels = jnp.concatenate([labels.astype(jnp.int32), pad_lb], axis=1)
    coords01 = pts / jnp.array([float(IMG), float(IMG)], jnp.float32)
    c = 2.0 * coords01 - 1.0
    proj = 2.0 * np.pi * jnp.einsum("bnc,cd->bnd", c, p["pe_gauss"])
    pe = jnp.concatenate([jnp.sin(proj), jnp.cos(proj)], axis=-1)    # [B, N+1, EMB]
    lb = labels[..., None]
    emb = jnp.where(lb == -1, p["not_a_point"][None, None, :], pe)
    emb = emb + jnp.where(lb == 0, p["pt_neg"][None, None, :], 0.0)
    emb = emb + jnp.where(lb == 1, p["pt_pos"][None, None, :], 0.0)
    return emb                                                       # [B, N+1, EMB]


# ====================== kernel-resident constants (fused) ====================
def build_kernel_consts(p, cb):
    # compose the two bilinear passes offline (A_full = A_img @ A_low); the whole
    # upsample is one matmul against kron(A_full, A_full), pre-TRANSPOSED so the
    # kernel runs a canonical [CB,64]@[64,4096] with a lane-dense 4096 output.
    A_low = bilinear_matrix(LOWRES, GRID)            # [32, 8]
    A_img = bilinear_matrix(IMG, LOWRES)             # [64, 32]
    A_full = A_img @ A_low                           # [64, 8]
    kupT = jnp.asarray(np.kron(A_full, A_full).T, jnp.bfloat16)   # [64, H*W], bf16
    # TODO(synk): for large IMG use the separable form A_full @ M2d @ A_full.T
    # instead of the kron constant (kron is fine at 64x64).

    dense_pe = get_dense_pe(p)                       # [64, EMB]
    pe_tiled = jnp.tile(dense_pe, (cb, 1))           # [cb*64, EMB] (stacked images)

    r = lambda b: b.reshape(1, -1)

    # fused head weight: cols [0:EMB]=hyp1, [EMB]=iou, [EMB+1:EMB+1+N_CLS]=cls, rest 0
    head_w = jnp.zeros((EMB, HEAD_W), jnp.float32)
    head_w = head_w.at[:, 0:EMB].set(p["hyp1_w"])
    head_w = head_w.at[:, EMB:EMB + 1].set(p["iou_w"])
    head_w = head_w.at[:, EMB + 1:EMB + 1 + N_CLS].set(p["cls_w"])
    head_b = jnp.zeros((1, HEAD_W), jnp.float32)
    head_b = head_b.at[0, 0:EMB].set(p["hyp1_b"])
    head_b = head_b.at[0, EMB].set(p["iou_b"][0])
    head_b = head_b.at[0, EMB + 1:EMB + 1 + N_CLS].set(p["cls_b"])

    return [
        pe_tiled, kupT,
        p["patch_w"], r(p["patch_b"]),
        jnp.concatenate([p["vq_w"], p["vk_w"], p["vv_w"]], axis=1),          # [32, 96]
        r(jnp.concatenate([p["vq_b"], p["vk_b"], p["vv_b"]], axis=0)),       # [1, 96]
        p["vo_w"], r(p["vo_b"]),
        p["vm1_w"], r(p["vm1_b"]),
        p["vm2_w"], r(p["vm2_b"] + p["no_mask"]),      # fold no-mask dense embedding
        p["t2i_q_w"], r(p["t2i_q_b"]),
        jnp.concatenate([p["t2i_k_w"], p["i2t_q_w"]], axis=1),               # [32, 64]
        r(jnp.concatenate([p["t2i_k_b"], p["i2t_q_b"]], axis=0)),            # [1, 64]
        p["t2i_v_w"], r(p["t2i_v_b"]),
        p["t2i_o_w"], r(p["t2i_o_b"]),
        p["dm1_w"], r(p["dm1_b"]),
        p["dm2_w"], r(p["dm2_b"]),
        jnp.concatenate([p["i2t_k_w"], p["i2t_v_w"]], axis=1),               # [32, 64]
        r(jnp.concatenate([p["i2t_k_b"], p["i2t_v_b"]], axis=0)),            # [1, 64]
        p["i2t_o_w"], r(p["i2t_o_b"]),
        head_w, head_b,
        p["hyp2_w"], r(p["hyp2_b"]),
    ]


# =================================== forward =================================
def forward(images, point_coords, point_labels, p):
    """Mirrors Model.forward: returns (pred_masks, ious, cats) lists over batch."""
    Bn, C, H, W = images.shape
    assert H == IMG and W == IMG and C == IN_CH

    # patch extraction (pure relayout, XLA level) -> stacked [B*64, 192]
    x = images.astype(jnp.float32).reshape(Bn, C, GRID, PATCH, GRID, PATCH)
    x = x.transpose(0, 2, 4, 1, 3, 5).reshape(Bn * N_SPATIAL, PATCH_DIM)

    # prompt encoder (sparse point embeddings) + decoder tokens, batched
    sparse = prompt_encoder_batched(point_coords, point_labels, p)      # [B, 3, EMB]
    tok3 = jnp.concatenate([p["iou_token"], p["mask_token"], p["cls_token"]], axis=0)
    tokens = jnp.concatenate(
        [jnp.broadcast_to(tok3[None], (Bn,) + tok3.shape), sparse], axis=1)  # [B, 6, EMB]

    cb = _images_per_step(Bn)
    consts = build_kernel_consts(p, cb)
    mask_flat, head_out = sam_fused_call(x, tokens, consts, cb)

    masks = mask_flat.reshape(Bn, 1, H, W)                   # free metadata reshape
    pred_masks = [masks[b] for b in range(Bn)]               # each [1, H, W]
    ious = [head_out[b, 0:1, EMB:EMB + 1] for b in range(Bn)]              # [1, 1]
    cats = [head_out[b, 1:2, EMB + 1:EMB + 1 + N_CLS] for b in range(Bn)]  # [1, N_CLS]
    return pred_masks, ious, cats


# ================================== main =====================================
if __name__ == "__main__":
    key = jax.random.PRNGKey(0)
    k_par, k_img, k_pts = jax.random.split(key, 3)

    params = init_params(k_par)
    images = jax.random.normal(k_img, (B, IN_CH, IMG, IMG), jnp.float32)
    point_coords = jax.random.uniform(k_pts, (B, N_PTS, 2), jnp.float32,
                                      minval=0.0, maxval=float(IMG - 1))
    point_labels = jnp.array([[1, 0]] * B, jnp.int32)

    fwd = jax.jit(functools.partial(forward, p=params))
    pred_masks, ious, cats = fwd(images, point_coords, point_labels)
    jax.block_until_ready((pred_masks, ious, cats))

    assert len(pred_masks) == B and pred_masks[0].shape == (1, IMG, IMG)
    assert ious[0].shape == (1, 1) and cats[0].shape == (1, N_CLS)
    print("KERNEL_OK")
</pallas_src>

<mosaic_0001>
module attributes {stable_mosaic.version = 11 : i64} {
  func.func @_sam_fused_kernel(%arg0: i32, %arg1: memref<128x192xf32, #tpu.memory_space<vmem>>, %arg2: memref<2x6x32xf32, #tpu.memory_space<vmem>>, %arg3: memref<128x32xf32, #tpu.memory_space<vmem>>, %arg4: memref<64x4096xbf16, #tpu.memory_space<vmem>>, %arg5: memref<192x32xf32, #tpu.memory_space<vmem>>, %arg6: memref<1x32xf32, #tpu.memory_space<vmem>>, %arg7: memref<32x96xf32, #tpu.memory_space<vmem>>, %arg8: memref<1x96xf32, #tpu.memory_space<vmem>>, %arg9: memref<32x32xf32, #tpu.memory_space<vmem>>, %arg10: memref<1x32xf32, #tpu.memory_space<vmem>>, %arg11: memref<32x64xf32, #tpu.memory_space<vmem>>, %arg12: memref<1x64xf32, #tpu.memory_space<vmem>>, %arg13: memref<64x32xf32, #tpu.memory_space<vmem>>, %arg14: memref<1x32xf32, #tpu.memory_space<vmem>>, %arg15: memref<32x32xf32, #tpu.memory_space<vmem>>, %arg16: memref<1x32xf32, #tpu.memory_space<vmem>>, %arg17: memref<32x64xf32, #tpu.memory_space<vmem>>, %arg18: memref<1x64xf32, #tpu.memory_space<vmem>>, %arg19: memref<32x32xf32, #tpu.memory_space<vmem>>, %arg20: memref<1x32xf32, #tpu.memory_space<vmem>>, %arg21: memref<32x32xf32, #tpu.memory_space<vmem>>, %arg22: memref<1x32xf32, #tpu.memory_space<vmem>>, %arg23: memref<32x64xf32, #tpu.memory_space<vmem>>, %arg24: memref<1x64xf32, #tpu.memory_space<vmem>>, %arg25: memref<64x32xf32, #tpu.memory_space<vmem>>, %arg26: memref<1x32xf32, #tpu.memory_space<vmem>>, %arg27: memref<32x64xf32, #tpu.memory_space<vmem>>, %arg28: memref<1x64xf32, #tpu.memory_space<vmem>>, %arg29: memref<32x32xf32, #tpu.memory_space<vmem>>, %arg30: memref<1x32xf32, #tpu.memory_space<vmem>>, %arg31: memref<32x128xf32, #tpu.memory_space<vmem>>, %arg32: memref<1x128xf32, #tpu.memory_space<vmem>>, %arg33: memref<32x32xf32, #tpu.memory_space<vmem>>, %arg34: memref<1x32xf32, #tpu.memory_space<vmem>>, %arg35: memref<2x1x4096xf32, #tpu.memory_space<vmem>>, %arg36: memref<2x2x128xf32, #tpu.memory_space<vmem>>) attributes {dimension_semantics = [#tpu.dimension_semantics<parallel>], iteration_bounds = array<i64: 1>, scalar_prefetch = 0 : i64, scratch_operands = 0 : i64, tpu.core_type = #tpu.core_type<tc>, window_params = [{transform_indices = @transform_0, window_bounds = array<i64: 128, 192>}, {transform_indices = @transform_1, window_bounds = array<i64: 2, 6, 32>}, {pipeline_mode = #tpu.pipeline_mode<synchronous>, transform_indices = @transform_2, window_bounds = array<i64: 128, 32>}, {pipeline_mode = #tpu.pipeline_mode<synchronous>, transform_indices = @transform_3, window_bounds = array<i64: 64, 4096>}, {pipeline_mode = #tpu.pipeline_mode<synchronous>, transform_indices = @transform_4, window_bounds = array<i64: 192, 32>}, {pipeline_mode = #tpu.pipeline_mode<synchronous>, transform_indices = @transform_5, window_bounds = array<i64: 1, 32>}, {pipeline_mode = #tpu.pipeline_mode<synchronous>, transform_indices = @transform_6, window_bounds = array<i64: 32, 96>}, {pipeline_mode = #tpu.pipeline_mode<synchronous>, transform_indices = @transform_7, window_bounds = array<i64: 1, 96>}, {pipeline_mode = #tpu.pipeline_mode<synchronous>, transform_indices = @transform_8, window_bounds = array<i64: 32, 32>}, {pipeline_mode = #tpu.pipeline_mode<synchronous>, transform_indices = @transform_9, window_bounds = array<i64: 1, 32>}, {pipeline_mode = #tpu.pipeline_mode<synchronous>, transform_indices = @transform_10, window_bounds = array<i64: 32, 64>}, {pipeline_mode = #tpu.pipeline_mode<synchronous>, transform_indices = @transform_11, window_bounds = array<i64: 1, 64>}, {pipeline_mode = #tpu.pipeline_mode<synchronous>, transform_indices = @transform_12, window_bounds = array<i64: 64, 32>}, {pipeline_mode = #tpu.pipeline_mode<synchronous>, transform_indices = @transform_13, window_bounds = array<i64: 1, 32>}, {pipeline_mode = #tpu.pipeline_mode<synchronous>, transform_indices = @transform_14, window_bounds = array<i64: 32, 32>}, {pipeline_mode = #tpu.pipeline_mode<synchronous>, transform_indices = @transform_15, window_bounds = array<i64: 1, 32>}, {pipeline_mode = #tpu.pipeline_mode<synchronous>, transform_indices = @transform_16, window_bounds = array<i64: 32, 64>}, {pipeline_mode = #tpu.pipeline_mode<synchronous>, transform_indices = @transform_17, window_bounds = array<i64: 1, 64>}, {pipeline_mode = #tpu.pipeline_mode<synchronous>, transform_indices = @transform_18, window_bounds = array<i64: 32, 32>}, {pipeline_mode = #tpu.pipeline_mode<synchronous>, transform_indices = @transform_19, window_bounds = array<i64: 1, 32>}, {pipeline_mode = #tpu.pipeline_mode<synchronous>, transform_indices = @transform_20, window_bounds = array<i64: 32, 32>}, {pipeline_mode = #tpu.pipeline_mode<synchronous>, transform_indices = @transform_21, window_bounds = array<i64: 1, 32>}, {pipeline_mode = #tpu.pipeline_mode<synchronous>, transform_indices = @transform_22, window_bounds = array<i64: 32, 64>}, {pipeline_mode = #tpu.pipeline_mode<synchronous>, transform_indices = @transform_23, window_bounds = array<i64: 1, 64>}, {pipeline_mode = #tpu.pipeline_mode<synchronous>, transform_indices = @transform_24, window_bounds = array<i64: 64, 32>}, {pipeline_mode = #tpu.pipeline_mode<synchronous>, transform_indices = @transform_25, window_bounds = array<i64: 1, 32>}, {pipeline_mode = #tpu.pipeline_mode<synchronous>, transform_indices = @transform_26, window_bounds = array<i64: 32, 64>}, {pipeline_mode = #tpu.pipeline_mode<synchronous>, transform_indices = @transform_27, window_bounds = array<i64: 1, 64>}, {pipeline_mode = #tpu.pipeline_mode<synchronous>, transform_indices = @transform_28, window_bounds = array<i64: 32, 32>}, {pipeline_mode = #tpu.pipeline_mode<synchronous>, transform_indices = @transform_29, window_bounds = array<i64: 1, 32>}, {pipeline_mode = #tpu.pipeline_mode<synchronous>, transform_indices = @transform_30, window_bounds = array<i64: 32, 128>}, {pipeline_mode = #tpu.pipeline_mode<synchronous>, transform_indices = @transform_31, window_bounds = array<i64: 1, 128>}, {pipeline_mode = #tpu.pipeline_mode<synchronous>, transform_indices = @transform_32, window_bounds = array<i64: 32, 32>}, {pipeline_mode = #tpu.pipeline_mode<synchronous>, transform_indices = @transform_33, window_bounds = array<i64: 1, 32>}, {transform_indices = @transform_34, window_bounds = array<i64: 2, 1, 4096>}, {transform_indices = @transform_35, window_bounds = array<i64: 2, 2, 128>}]} {
    %c0 = arith.constant 0 : index
    %c0_0 = arith.constant 0 : index
    %0 = vector.load %arg1[%c0, %c0_0] : memref<128x192xf32, #tpu.memory_space<vmem>>, vector<128x192xf32>
    %c0_1 = arith.constant 0 : index
    %c0_2 = arith.constant 0 : index
    %1 = vector.load %arg5[%c0_1, %c0_2] : memref<192x32xf32, #tpu.memory_space<vmem>>, vector<192x32xf32>
    %cst = arith.constant dense<0.000000e+00> : vector<128x32xf32>
    %2 = tpu.matmul %0, %1, %cst {dimension_numbers = #tpu.dot_dimension_numbers<[1], [0], [0], [1], [0, 0, 1, 1], [], []>} : vector<128x192xf32>, vector<192x32xf32>, vector<128x32xf32> -> vector<128x32xf32>
    %c0_3 = arith.constant 0 : index
    %c0_4 = arith.constant 0 : index
    %3 = vector.load %arg6[%c0_3, %c0_4] : memref<1x32xf32, #tpu.memory_space<vmem>>, vector<1x32xf32>
    %4 = vector.broadcast %3 : vector<1x32xf32> to vector<128x32xf32>
    %5 = arith.addf %2, %4 : vector<128x32xf32>
    %c0_5 = arith.constant 0 : index
    %c0_6 = arith.constant 0 : index
    %6 = vector.load %arg7[%c0_5, %c0_6] : memref<32x96xf32, #tpu.memory_space<vmem>>, vector<32x96xf32>
    %cst_7 = arith.constant dense<0.000000e+00> : vector<128x96xf32>
    %7 = tpu.matmul %5, %6, %cst_7 {dimension_numbers = #tpu.dot_dimension_numbers<[1], [0], [0], [1], [0, 0, 1, 1], [], []>} : vector<128x32xf32>, vector<32x96xf32>, vector<128x96xf32> -> vector<128x96xf32>
    %c0_8 = arith.constant 0 : index
    %c0_9 = arith.constant 0 : index
    %8 = vector.load %arg8[%c0_8, %c0_9] : memref<1x96xf32, #tpu.memory_space<vmem>>, vector<1x96xf32>
    %9 = vector.broadcast %8 : vector<1x96xf32> to vector<128x96xf32>
    %10 = arith.addf %7, %9 : vector<128x96xf32>
    %11 = vector.extract_strided_slice %10 {offsets = [0, 0], sizes = [128, 32], strides = [1, 1]} : vector<128x96xf32> to vector<128x32xf32>
    %12 = vector.extract_strided_slice %10 {offsets = [0, 32], sizes = [128, 32], strides = [1, 1]} : vector<128x96xf32> to vector<128x32xf32>
    %13 = vector.extract_strided_slice %10 {offsets = [0, 64], sizes = [128, 32], strides = [1, 1]} : vector<128x96xf32> to vector<128x32xf32>
    %14 = vector.extract_strided_slice %11 {offsets = [0, 0], sizes = [64, 32], strides = [1, 1]} : vector<128x32xf32> to vector<64x32xf32>
    %15 = vector.extract_strided_slice %12 {offsets = [0, 0], sizes = [64, 32], strides = [1, 1]} : vector<128x32xf32> to vector<64x32xf32>
    %16 = vector.extract_strided_slice %13 {offsets = [0, 0], sizes = [64, 32], strides = [1, 1]} : vector<128x32xf32> to vector<64x32xf32>
    %cst_10 = arith.constant dense<0.000000e+00> : vector<64x64xf32>
    %17 = tpu.matmul %14, %15, %cst_10 {dimension_numbers = #tpu.dot_dimension_numbers<[1], [1], [0], [0], [0, 0, 1, 0], [], []>} : vector<64x32xf32>, vector<64x32xf32>, vector<64x64xf32> -> vector<64x64xf32>
    %cst_11 = arith.constant 0.176776692 : f32
    %18 = vector.broadcast %cst_11 : f32 to vector<64x64xf32>
    %19 = arith.mulf %17, %18 : vector<64x64xf32>
    %cst_12 = arith.constant dense<0xFF800000> : vector<64xf32>
    %20 = vector.multi_reduction <maximumf>, %19, %cst_12 [1] : vector<64x64xf32> to vector<64xf32>
    %21 = vector.shape_cast %20 : vector<64xf32> to vector<64x1xf32>
    %22 = vector.broadcast %21 : vector<64x1xf32> to vector<64x64xf32>
    %23 = arith.subf %19, %22 : vector<64x64xf32>
    %24 = math.exp %23 : vector<64x64xf32>
    %cst_13 = arith.constant dense<0.000000e+00> : vector<64xf32>
    %25 = vector.multi_reduction <add>, %24, %cst_13 [1] : vector<64x64xf32> to vector<64xf32>
    %26 = vector.shape_cast %25 : vector<64xf32> to vector<64x1xf32>
    %27 = tpu.reciprocal %26 {approx = true} : vector<64x1xf32> -> vector<64x1xf32>
    %28 = vector.broadcast %27 : vector<64x1xf32> to vector<64x64xf32>
    %29 = arith.mulf %24, %28 : vector<64x64xf32>
    %cst_14 = arith.constant dense<0.000000e+00> : vector<64x32xf32>
    %30 = tpu.matmul %29, %16, %cst_14 {dimension_numbers = #tpu.dot_dimension_numbers<[1], [0], [0], [1], [0, 0, 1, 1], [], []>} : vector<64x64xf32>, vector<64x32xf32>, vector<64x32xf32> -> vector<64x32xf32>
    %31 = vector.extract_strided_slice %11 {offsets = [64, 0], sizes = [64, 32], strides = [1, 1]} : vector<128x32xf32> to vector<64x32xf32>
    %32 = vector.extract_strided_slice %12 {offsets = [64, 0], sizes = [64, 32], strides = [1, 1]} : vector<128x32xf32> to vector<64x32xf32>
    %33 = vector.extract_strided_slice %13 {offsets = [64, 0], sizes = [64, 32], strides = [1, 1]} : vector<128x32xf32> to vector<64x32xf32>
    %cst_15 = arith.constant dense<0.000000e+00> : vector<64x64xf32>
    %34 = tpu.matmul %31, %32, %cst_15 {dimension_numbers = #tpu.dot_dimension_numbers<[1], [1], [0], [0], [0, 0, 1, 0], [], []>} : vector<64x32xf32>, vector<64x32xf32>, vector<64x64xf32> -> vector<64x64xf32>
    %cst_16 = arith.constant 0.176776692 : f32
    %35 = vector.broadcast %cst_16 : f32 to vector<64x64xf32>
    %36 = arith.mulf %34, %35 : vector<64x64xf32>
    %cst_17 = arith.constant dense<0xFF800000> : vector<64xf32>
    %37 = vector.multi_reduction <maximumf>, %36, %cst_17 [1] : vector<64x64xf32> to vector<64xf32>
    %38 = vector.shape_cast %37 : vector<64xf32> to vector<64x1xf32>
    %39 = vector.broadcast %38 : vector<64x1xf32> to vector<64x64xf32>
    %40 = arith.subf %36, %39 : vector<64x64xf32>
    %41 = math.exp %40 : vector<64x64xf32>
    %cst_18 = arith.constant dense<0.000000e+00> : vector<64xf32>
    %42 = vector.multi_reduction <add>, %41, %cst_18 [1] : vector<64x64xf32> to vector<64xf32>
    %43 = vector.shape_cast %42 : vector<64xf32> to vector<64x1xf32>
    %44 = tpu.reciprocal %43 {approx = true} : vector<64x1xf32> -> vector<64x1xf32>
    %45 = vector.broadcast %44 : vector<64x1xf32> to vector<64x64xf32>
    %46 = arith.mulf %41, %45 : vector<64x64xf32>
    %cst_19 = arith.constant dense<0.000000e+00> : vector<64x32xf32>
    %47 = tpu.matmul %46, %33, %cst_19 {dimension_numbers = #tpu.dot_dimension_numbers<[1], [0], [0], [1], [0, 0, 1, 1], [], []>} : vector<64x64xf32>, vector<64x32xf32>, vector<64x32xf32> -> vector<64x32xf32>
    %48 = tpu.concatenate %30, %47 in 0 : vector<64x32xf32>, vector<64x32xf32> -> vector<128x32xf32>
    %c0_20 = arith.constant 0 : index
    %c0_21 = arith.constant 0 : index
    %49 = vector.load %arg9[%c0_20, %c0_21] : memref<32x32xf32, #tpu.memory_space<vmem>>, vector<32x32xf32>
    %cst_22 = arith.constant dense<0.000000e+00> : vector<128x32xf32>
    %50 = tpu.matmul %48, %49, %cst_22 {dimension_numbers = #tpu.dot_dimension_numbers<[1], [0], [0], [1], [0, 0, 1, 1], [], []>} : vector<128x32xf32>, vector<32x32xf32>, vector<128x32xf32> -> vector<128x32xf32>
    %c0_23 = arith.constant 0 : index
    %c0_24 = arith.constant 0 : index
    %51 = vector.load %arg10[%c0_23, %c0_24] : memref<1x32xf32, #tpu.memory_space<vmem>>, vector<1x32xf32>
    %52 = vector.broadcast %51 : vector<1x32xf32> to vector<128x32xf32>
    %53 = arith.addf %50, %52 : vector<128x32xf32>
    %54 = arith.addf %5, %53 : vector<128x32xf32>
    %c0_25 = arith.constant 0 : index
    %c0_26 = arith.constant 0 : index
    %55 = vector.load %arg11[%c0_25, %c0_26] : memref<32x64xf32, #tpu.memory_space<vmem>>, vector<32x64xf32>
    %cst_27 = arith.constant dense<0.000000e+00> : vector<128x64xf32>
    %56 = tpu.matmul %54, %55, %cst_27 {dimension_numbers = #tpu.dot_dimension_numbers<[1], [0], [0], [1], [0, 0, 1, 1], [], []>} : vector<128x32xf32>, vector<32x64xf32>, vector<128x64xf32> -> vector<128x64xf32>
    %c0_28 = arith.constant 0 : index
    %c0_29 = arith.constant 0 : index
    %57 = vector.load %arg12[%c0_28, %c0_29] : memref<1x64xf32, #tpu.memory_space<vmem>>, vector<1x64xf32>
    %58 = vector.broadcast %57 : vector<1x64xf32> to vector<128x64xf32>
    %59 = arith.addf %56, %58 : vector<128x64xf32>
    %cst_30 = arith.constant 0.000000e+00 : f32
    %60 = vector.broadcast %cst_30 : f32 to vector<128x64xf32>
    %61 = arith.maximumf %59, %60 : vector<128x64xf32>
    %c0_31 = arith.constant 0 : index
    %c0_32 = arith.constant 0 : index
    %62 = vector.load %arg13[%c0_31, %c0_32] : memref<64x32xf32, #tpu.memory_space<vmem>>, vector<64x32xf32>
    %cst_33 = arith.constant dense<0.000000e+00> : vector<128x32xf32>
    %63 = tpu.matmul %61, %62, %cst_33 {dimension_numbers = #tpu.dot_dimension_numbers<[1], [0], [0], [1], [0, 0, 1, 1], [], []>} : vector<128x64xf32>, vector<64x32xf32>, vector<128x32xf32> -> vector<128x32xf32>
    %c0_34 = arith.constant 0 : index
    %c0_35 = arith.constant 0 : index
    %64 = vector.load %arg14[%c0_34, %c0_35] : memref<1x32xf32, #tpu.memory_space<vmem>>, vector<1x32xf32>
    %65 = vector.broadcast %64 : vector<1x32xf32> to vector<128x32xf32>
    %66 = arith.addf %63, %65 : vector<128x32xf32>
    %67 = arith.addf %54, %66 : vector<128x32xf32>
    %c0_36 = arith.constant 0 : index
    %c0_37 = arith.constant 0 : index
    %68 = vector.load %arg3[%c0_36, %c0_37] : memref<128x32xf32, #tpu.memory_space<vmem>>, vector<128x32xf32>
    %69 = arith.addf %67, %68 : vector<128x32xf32>
    %c0_38 = arith.constant 0 : index
    %c0_39 = arith.constant 0 : index
    %70 = vector.load %arg17[%c0_38, %c0_39] : memref<32x64xf32, #tpu.memory_space<vmem>>, vector<32x64xf32>
    %cst_40 = arith.constant dense<0.000000e+00> : vector<128x64xf32>
    %71 = tpu.matmul %69, %70, %cst_40 {dimension_numbers = #tpu.dot_dimension_numbers<[1], [0], [0], [1], [0, 0, 1, 1], [], []>} : vector<128x32xf32>, vector<32x64xf32>, vector<128x64xf32> -> vector<128x64xf32>
    %c0_41 = arith.constant 0 : index
    %c0_42 = arith.constant 0 : index
    %72 = vector.load %arg18[%c0_41, %c0_42] : memref<1x64xf32, #tpu.memory_space<vmem>>, vector<1x64xf32>
    %73 = vector.broadcast %72 : vector<1x64xf32> to vector<128x64xf32>
    %74 = arith.addf %71, %73 : vector<128x64xf32>
    %c0_43 = arith.constant 0 : index
    %c0_44 = arith.constant 0 : index
    %75 = vector.load %arg19[%c0_43, %c0_44] : memref<32x32xf32, #tpu.memory_space<vmem>>, vector<32x32xf32>
    %cst_45 = arith.constant dense<0.000000e+00> : vector<128x32xf32>
    %76 = tpu.matmul %67, %75, %cst_45 {dimension_numbers = #tpu.dot_dimension_numbers<[1], [0], [0], [1], [0, 0, 1, 1], [], []>} : vector<128x32xf32>, vector<32x32xf32>, vector<128x32xf32> -> vector<128x32xf32>
    %c0_46 = arith.constant 0 : index
    %c0_47 = arith.constant 0 : index
    %77 = vector.load %arg20[%c0_46, %c0_47] : memref<1x32xf32, #tpu.memory_space<vmem>>, vector<1x32xf32>
    %78 = vector.broadcast %77 : vector<1x32xf32> to vector<128x32xf32>
    %79 = arith.addf %76, %78 : vector<128x32xf32>
    %c0_48 = arith.constant 0 : index
    %c0_49 = arith.constant 0 : index
    %c0_50 = arith.constant 0 : index
    %80 = vector.load %arg2[%c0_48, %c0_49, %c0_50] : memref<2x6x32xf32, #tpu.memory_space<vmem>>, vector<1x6x32xf32>
    %81 = vector.shape_cast %80 : vector<1x6x32xf32> to vector<6x32xf32>
    %c0_51 = arith.constant 0 : index
    %c0_52 = arith.constant 0 : index
    %82 = vector.load %arg15[%c0_51, %c0_52] : memref<32x32xf32, #tpu.memory_space<vmem>>, vector<32x32xf32>
    %cst_53 = arith.constant dense<0.000000e+00> : vector<6x32xf32>
    %83 = tpu.matmul %81, %82, %cst_53 {dimension_numbers = #tpu.dot_dimension_numbers<[1], [0], [0], [1], [0, 0, 1, 1], [], []>} : vector<6x32xf32>, vector<32x32xf32>, vector<6x32xf32> -> vector<6x32xf32>
    %c0_54 = arith.constant 0 : index
    %c0_55 = arith.constant 0 : index
    %84 = vector.load %arg16[%c0_54, %c0_55] : memref<1x32xf32, #tpu.memory_space<vmem>>, vector<1x32xf32>
    %85 = vector.broadcast %84 : vector<1x32xf32> to vector<6x32xf32>
    %86 = arith.addf %83, %85 : vector<6x32xf32>
    %87 = vector.extract_strided_slice %74 {offsets = [0, 0], sizes = [64, 32], strides = [1, 1]} : vector<128x64xf32> to vector<64x32xf32>
    %88 = vector.extract_strided_slice %79 {offsets = [0, 0], sizes = [64, 32], strides = [1, 1]} : vector<128x32xf32> to vector<64x32xf32>
    %cst_56 = arith.constant dense<0.000000e+00> : vector<6x64xf32>
    %89 = tpu.matmul %86, %87, %cst_56 {dimension_numbers = #tpu.dot_dimension_numbers<[1], [1], [0], [0], [0, 0, 1, 0], [], []>} : vector<6x32xf32>, vector<64x32xf32>, vector<6x64xf32> -> vector<6x64xf32>
    %cst_57 = arith.constant 0.176776692 : f32
    %90 = vector.broadcast %cst_57 : f32 to vector<6x64xf32>
    %91 = arith.mulf %89, %90 : vector<6x64xf32>
    %cst_58 = arith.constant dense<0xFF800000> : vector<6xf32>
    %92 = vector.multi_reduction <maximumf>, %91, %cst_58 [1] : vector<6x64xf32> to vector<6xf32>
    %93 = vector.shape_cast %92 : vector<6xf32> to vector<6x1xf32>
    %94 = vector.broadcast %93 : vector<6x1xf32> to vector<6x64xf32>
    %95 = arith.subf %91, %94 : vector<6x64xf32>
    %96 = math.exp %95 : vector<6x64xf32>
    %cst_59 = arith.constant dense<0.000000e+00> : vector<6xf32>
    %97 = vector.multi_reduction <add>, %96, %cst_59 [1] : vector<6x64xf32> to vector<6xf32>
    %98 = vector.shape_cast %97 : vector<6xf32> to vector<6x1xf32>
    %99 = tpu.reciprocal %98 {approx = true} : vector<6x1xf32> -> vector<6x1xf32>
    %100 = vector.broadcast %99 : vector<6x1xf32> to vector<6x64xf32>
    %101 = arith.mulf %96, %100 : vector<6x64xf32>
    %cst_60 = arith.constant dense<0.000000e+00> : vector<6x32xf32>
    %102 = tpu.matmul %101, %88, %cst_60 {dimension_numbers = #tpu.dot_dimension_numbers<[1], [0], [0], [1], [0, 0, 1, 1], [], []>} : vector<6x64xf32>, vector<64x32xf32>, vector<6x32xf32> -> vector<6x32xf32>
    %c0_61 = arith.constant 0 : index
    %c0_62 = arith.constant 0 : index
    %103 = vector.load %arg21[%c0_61, %c0_62] : memref<32x32xf32, #tpu.memory_space<vmem>>, vector<32x32xf32>
    %cst_63 = arith.constant dense<0.000000e+00> : vector<6x32xf32>
    %104 = tpu.matmul %102, %103, %cst_63 {dimension_numbers = #tpu.dot_dimension_numbers<[1], [0], [0], [1], [0, 0, 1, 1], [], []>} : vector<6x32xf32>, vector<32x32xf32>, vector<6x32xf32> -> vector<6x32xf32>
    %c0_64 = arith.constant 0 : index
    %c0_65 = arith.constant 0 : index
    %105 = vector.load %arg22[%c0_64, %c0_65] : memref<1x32xf32, #tpu.memory_space<vmem>>, vector<1x32xf32>
    %106 = vector.broadcast %105 : vector<1x32xf32> to vector<6x32xf32>
    %107 = arith.addf %104, %106 : vector<6x32xf32>
    %108 = arith.addf %81, %107 : vector<6x32xf32>
    %c0_66 = arith.constant 0 : index
    %c0_67 = arith.constant 0 : index
    %109 = vector.load %arg23[%c0_66, %c0_67] : memref<32x64xf32, #tpu.memory_space<vmem>>, vector<32x64xf32>
    %cst_68 = arith.constant dense<0.000000e+00> : vector<6x64xf32>
    %110 = tpu.matmul %108, %109, %cst_68 {dimension_numbers = #tpu.dot_dimension_numbers<[1], [0], [0], [1], [0, 0, 1, 1], [], []>} : vector<6x32xf32>, vector<32x64xf32>, vector<6x64xf32> -> vector<6x64xf32>
    %c0_69 = arith.constant 0 : index
    %c0_70 = arith.constant 0 : index
    %111 = vector.load %arg24[%c0_69, %c0_70] : memref<1x64xf32, #tpu.memory_space<vmem>>, vector<1x64xf32>
    %112 = vector.broadcast %111 : vector<1x64xf32> to vector<6x64xf32>
    %113 = arith.addf %110, %112 : vector<6x64xf32>
    %cst_71 = arith.constant 0.000000e+00 : f32
    %114 = vector.broadcast %cst_71 : f32 to vector<6x64xf32>
    %115 = arith.maximumf %113, %114 : vector<6x64xf32>
    %c0_72 = arith.constant 0 : index
    %c0_73 = arith.constant 0 : index
    %116 = vector.load %arg25[%c0_72, %c0_73] : memref<64x32xf32, #tpu.memory_space<vmem>>, vector<64x32xf32>
    %cst_74 = arith.constant dense<0.000000e+00> : vector<6x32xf32>
    %117 = tpu.matmul %115, %116, %cst_74 {dimension_numbers = #tpu.dot_dimension_numbers<[1], [0], [0], [1], [0, 0, 1, 1], [], []>} : vector<6x64xf32>, vector<64x32xf32>, vector<6x32xf32> -> vector<6x32xf32>
    %c0_75 = arith.constant 0 : index
    %c0_76 = arith.constant 0 : index
    %118 = vector.load %arg26[%c0_75, %c0_76] : memref<1x32xf32, #tpu.memory_space<vmem>>, vector<1x32xf32>
    %119 = vector.broadcast %118 : vector<1x32xf32> to vector<6x32xf32>
    %120 = arith.addf %117, %119 : vector<6x32xf32>
    %121 = arith.addf %108, %120 : vector<6x32xf32>
    %c0_77 = arith.constant 0 : index
    %c0_78 = arith.constant 0 : index
    %122 = vector.load %arg27[%c0_77, %c0_78] : memref<32x64xf32, #tpu.memory_space<vmem>>, vector<32x64xf32>
    %cst_79 = arith.constant dense<0.000000e+00> : vector<6x64xf32>
    %123 = tpu.matmul %121, %122, %cst_79 {dimension_numbers = #tpu.dot_dimension_numbers<[1], [0], [0], [1], [0, 0, 1, 1], [], []>} : vector<6x32xf32>, vector<32x64xf32>, vector<6x64xf32> -> vector<6x64xf32>
    %c0_80 = arith.constant 0 : index
    %c0_81 = arith.constant 0 : index
    %124 = vector.load %arg28[%c0_80, %c0_81] : memref<1x64xf32, #tpu.memory_space<vmem>>, vector<1x64xf32>
    %125 = vector.broadcast %124 : vector<1x64xf32> to vector<6x64xf32>
    %126 = arith.addf %123, %125 : vector<6x64xf32>
    %127 = vector.extract_strided_slice %67 {offsets = [0, 0], sizes = [64, 32], strides = [1, 1]} : vector<128x32xf32> to vector<64x32xf32>
    %128 = vector.extract_strided_slice %74 {offsets = [0, 32], sizes = [64, 32], strides = [1, 1]} : vector<128x64xf32> to vector<64x32xf32>
    %129 = vector.extract_strided_slice %126 {offsets = [0, 0], sizes = [6, 32], strides = [1, 1]} : vector<6x64xf32> to vector<6x32xf32>
    %130 = vector.extract_strided_slice %126 {offsets = [0, 32], sizes = [6, 32], strides = [1, 1]} : vector<6x64xf32> to vector<6x32xf32>
    %cst_82 = arith.constant dense<0.000000e+00> : vector<64x6xf32>
    %131 = tpu.matmul %128, %129, %cst_82 {dimension_numbers = #tpu.dot_dimension_numbers<[1], [1], [0], [0], [0, 0, 1, 0], [], []>} : vector<64x32xf32>, vector<6x32xf32>, vector<64x6xf32> -> vector<64x6xf32>
    %cst_83 = arith.constant 0.176776692 : f32
    %132 = vector.broadcast %cst_83 : f32 to vector<64x6xf32>
    %133 = arith.mulf %131, %132 : vector<64x6xf32>
    %cst_84 = arith.constant dense<0xFF800000> : vector<64xf32>
    %134 = vector.multi_reduction <maximumf>, %133, %cst_84 [1] : vector<64x6xf32> to vector<64xf32>
    %135 = vector.shape_cast %134 : vector<64xf32> to vector<64x1xf32>
    %136 = vector.broadcast %135 : vector<64x1xf32> to vector<64x6xf32>
    %137 = arith.subf %133, %136 : vector<64x6xf32>
    %138 = math.exp %137 : vector<64x6xf32>
    %cst_85 = arith.constant dense<0.000000e+00> : vector<64xf32>
    %139 = vector.multi_reduction <add>, %138, %cst_85 [1] : vector<64x6xf32> to vector<64xf32>
    %140 = vector.shape_cast %139 : vector<64xf32> to vector<64x1xf32>
    %141 = tpu.reciprocal %140 {approx = true} : vector<64x1xf32> -> vector<64x1xf32>
    %142 = vector.broadcast %141 : vector<64x1xf32> to vector<64x6xf32>
    %143 = arith.mulf %138, %142 : vector<64x6xf32>
    %cst_86 = arith.constant dense<0.000000e+00> : vector<64x32xf32>
    %144 = tpu.matmul %143, %130, %cst_86 {dimension_numbers = #tpu.dot_dimension_numbers<[1], [0], [0], [1], [0, 0, 1, 1], [], []>} : vector<64x6xf32>, vector<6x32xf32>, vector<64x32xf32> -> vector<64x32xf32>
    %c0_87 = arith.constant 0 : index
    %c0_88 = arith.constant 0 : index
    %145 = vector.load %arg29[%c0_87, %c0_88] : memref<32x32xf32, #tpu.memory_space<vmem>>, vector<32x32xf32>
    %cst_89 = arith.constant dense<0.000000e+00> : vector<64x32xf32>
    %146 = tpu.matmul %144, %145, %cst_89 {dimension_numbers = #tpu.dot_dimension_numbers<[1], [0], [0], [1], [0, 0, 1, 1], [], []>} : vector<64x32xf32>, vector<32x32xf32>, vector<64x32xf32> -> vector<64x32xf32>
    %c0_90 = arith.constant 0 : index
    %c0_91 = arith.constant 0 : index
    %147 = vector.load %arg30[%c0_90, %c0_91] : memref<1x32xf32, #tpu.memory_space<vmem>>, vector<1x32xf32>
    %148 = vector.broadcast %147 : vector<1x32xf32> to vector<64x32xf32>
    %149 = arith.addf %146, %148 : vector<64x32xf32>
    %150 = arith.addf %127, %149 : vector<64x32xf32>
    %c0_92 = arith.constant 0 : index
    %c0_93 = arith.constant 0 : index
    %151 = vector.load %arg31[%c0_92, %c0_93] : memref<32x128xf32, #tpu.memory_space<vmem>>, vector<32x128xf32>
    %cst_94 = arith.constant dense<0.000000e+00> : vector<6x128xf32>
    %152 = tpu.matmul %121, %151, %cst_94 {dimension_numbers = #tpu.dot_dimension_numbers<[1], [0], [0], [1], [0, 0, 1, 1], [], []>} : vector<6x32xf32>, vector<32x128xf32>, vector<6x128xf32> -> vector<6x128xf32>
    %c0_95 = arith.constant 0 : index
    %c0_96 = arith.constant 0 : index
    %153 = vector.load %arg32[%c0_95, %c0_96] : memref<1x128xf32, #tpu.memory_space<vmem>>, vector<1x128xf32>
    %154 = vector.broadcast %153 : vector<1x128xf32> to vector<6x128xf32>
    %155 = arith.addf %152, %154 : vector<6x128xf32>
    %156 = vector.extract_strided_slice %155 {offsets = [0, 0], sizes = [6, 32], strides = [1, 1]} : vector<6x128xf32> to vector<6x32xf32>
    %cst_97 = arith.constant 0.000000e+00 : f32
    %157 = vector.broadcast %cst_97 : f32 to vector<6x32xf32>
    %158 = arith.maximumf %156, %157 : vector<6x32xf32>
    %c0_98 = arith.constant 0 : index
    %c0_99 = arith.constant 0 : index
    %159 = vector.load %arg33[%c0_98, %c0_99] : memref<32x32xf32, #tpu.memory_space<vmem>>, vector<32x32xf32>
    %cst_100 = arith.constant dense<0.000000e+00> : vector<6x32xf32>
    %160 = tpu.matmul %158, %159, %cst_100 {dimension_numbers = #tpu.dot_dimension_numbers<[1], [0], [0], [1], [0, 0, 1, 1], [], []>} : vector<6x32xf32>, vector<32x32xf32>, vector<6x32xf32> -> vector<6x32xf32>
    %c0_101 = arith.constant 0 : index
    %c0_102 = arith.constant 0 : index
    %161 = vector.load %arg34[%c0_101, %c0_102] : memref<1x32xf32, #tpu.memory_space<vmem>>, vector<1x32xf32>
    %162 = vector.broadcast %161 : vector<1x32xf32> to vector<6x32xf32>
    %163 = arith.addf %160, %162 : vector<6x32xf32>
    %164 = vector.extract_strided_slice %163 {offsets = [1, 0], sizes = [1, 32], strides = [1, 1]} : vector<6x32xf32> to vector<1x32xf32>
    %cst_103 = arith.constant dense<0.000000e+00> : vector<1x64xf32>
    %165 = tpu.matmul %164, %150, %cst_103 {dimension_numbers = #tpu.dot_dimension_numbers<[1], [1], [0], [0], [0, 0, 1, 0], [], []>} : vector<1x32xf32>, vector<64x32xf32>, vector<1x64xf32> -> vector<1x64xf32>
    %166 = vector.extract_strided_slice %155 {offsets = [0, 0], sizes = [1, 128], strides = [1, 1]} : vector<6x128xf32> to vector<1x128xf32>
    %167 = vector.extract_strided_slice %155 {offsets = [2, 0], sizes = [1, 128], strides = [1, 1]} : vector<6x128xf32> to vector<1x128xf32>
    %168 = tpu.concatenate %166, %167 in 0 : vector<1x128xf32>, vector<1x128xf32> -> vector<2x128xf32>
    %c0_104 = arith.constant 0 : index
    %c0_105 = arith.constant 0 : index
    %c0_106 = arith.constant 0 : index
    %169 = vector.load %arg36[%c0_104, %c0_105, %c0_106] : memref<2x2x128xf32, #tpu.memory_space<vmem>>, vector<1x2x128xf32>
    %170 = vector.shape_cast %169 : vector<1x2x128xf32> to vector<2x128xf32>
    %171 = vector.shape_cast %168 : vector<2x128xf32> to vector<1x2x128xf32>
    tpu.vector_store %arg36[%c0_104, %c0_105, %c0_106], %171 {strides = array<i32>} : memref<2x2x128xf32, #tpu.memory_space<vmem>>, vector<1x2x128xf32>,
    %c1 = arith.constant 1 : index
    %c0_107 = arith.constant 0 : index
    %c0_108 = arith.constant 0 : index
    %172 = vector.load %arg2[%c1, %c0_107, %c0_108] : memref<2x6x32xf32, #tpu.memory_space<vmem>>, vector<1x6x32xf32>
    %173 = vector.shape_cast %172 : vector<1x6x32xf32> to vector<6x32xf32>
    %c0_109 = arith.constant 0 : index
    %c0_110 = arith.constant 0 : index
    %174 = vector.load %arg15[%c0_109, %c0_110] : memref<32x32xf32, #tpu.memory_space<vmem>>, vector<32x32xf32>
    %cst_111 = arith.constant dense<0.000000e+00> : vector<6x32xf32>
    %175 = tpu.matmul %173, %174, %cst_111 {dimension_numbers = #tpu.dot_dimension_numbers<[1], [0], [0], [1], [0, 0, 1, 1], [], []>} : vector<6x32xf32>, vector<32x32xf32>, vector<6x32xf32> -> vector<6x32xf32>
    %c0_112 = arith.constant 0 : index
    %c0_113 = arith.constant 0 : index
    %176 = vector.load %arg16[%c0_112, %c0_113] : memref<1x32xf32, #tpu.memory_space<vmem>>, vector<1x32xf32>
    %177 = vector.broadcast %176 : vector<1x32xf32> to vector<6x32xf32>
    %178 = arith.addf %175, %177 : vector<6x32xf32>
    %179 = vector.extract_strided_slice %74 {offsets = [64, 0], sizes = [64, 32], strides = [1, 1]} : vector<128x64xf32> to vector<64x32xf32>
    %180 = vector.extract_strided_slice %79 {offsets = [64, 0], sizes = [64, 32], strides = [1, 1]} : vector<128x32xf32> to vector<64x32xf32>
    %cst_114 = arith.constant dense<0.000000e+00> : vector<6x64xf32>
    %181 = tpu.matmul %178, %179, %cst_114 {dimension_numbers = #tpu.dot_dimension_numbers<[1], [1], [0], [0], [0, 0, 1, 0], [], []>} : vector<6x32xf32>, vector<64x32xf32>, vector<6x64xf32> -> vector<6x64xf32>
    %cst_115 = arith.constant 0.176776692 : f32
    %182 = vector.broadcast %cst_115 : f32 to vector<6x64xf32>
    %183 = arith.mulf %181, %182 : vector<6x64xf32>
    %cst_116 = arith.constant dense<0xFF800000> : vector<6xf32>
    %184 = vector.multi_reduction <maximumf>, %183, %cst_116 [1] : vector<6x64xf32> to vector<6xf32>
    %185 = vector.shape_cast %184 : vector<6xf32> to vector<6x1xf32>
    %186 = vector.broadcast %185 : vector<6x1xf32> to vector<6x64xf32>
    %187 = arith.subf %183, %186 : vector<6x64xf32>
    %188 = math.exp %187 : vector<6x64xf32>
    %cst_117 = arith.constant dense<0.000000e+00> : vector<6xf32>
    %189 = vector.multi_reduction <add>, %188, %cst_117 [1] : vector<6x64xf32> to vector<6xf32>
    %190 = vector.shape_cast %189 : vector<6xf32> to vector<6x1xf32>
    %191 = tpu.reciprocal %190 {approx = true} : vector<6x1xf32> -> vector<6x1xf32>
    %192 = vector.broadcast %191 : vector<6x1xf32> to vector<6x64xf32>
    %193 = arith.mulf %188, %192 : vector<6x64xf32>
    %cst_118 = arith.constant dense<0.000000e+00> : vector<6x32xf32>
    %194 = tpu.matmul %193, %180, %cst_118 {dimension_numbers = #tpu.dot_dimension_numbers<[1], [0], [0], [1], [0, 0, 1, 1], [], []>} : vector<6x64xf32>, vector<64x32xf32>, vector<6x32xf32> -> vector<6x32xf32>
    %c0_119 = arith.constant 0 : index
    %c0_120 = arith.constant 0 : index
    %195 = vector.load %arg21[%c0_119, %c0_120] : memref<32x32xf32, #tpu.memory_space<vmem>>, vector<32x32xf32>
    %cst_121 = arith.constant dense<0.000000e+00> : vector<6x32xf32>
    %196 = tpu.matmul %194, %195, %cst_121 {dimension_numbers = #tpu.dot_dimension_numbers<[1], [0], [0], [1], [0, 0, 1, 1], [], []>} : vector<6x32xf32>, vector<32x32xf32>, vector<6x32xf32> -> vector<6x32xf32>
    %c0_122 = arith.constant 0 : index
    %c0_123 = arith.constant 0 : index
    %197 = vector.load %arg22[%c0_122, %c0_123] : memref<1x32xf32, #tpu.memory_space<vmem>>, vector<1x32xf32>
    %198 = vector.broadcast %197 : vector<1x32xf32> to vector<6x32xf32>
    %199 = arith.addf %196, %198 : vector<6x32xf32>
    %200 = arith.addf %173, %199 : vector<6x32xf32>
    %c0_124 = arith.constant 0 : index
    %c0_125 = arith.constant 0 : index
    %201 = vector.load %arg23[%c0_124, %c0_125] : memref<32x64xf32, #tpu.memory_space<vmem>>, vector<32x64xf32>
    %cst_126 = arith.constant dense<0.000000e+00> : vector<6x64xf32>
    %202 = tpu.matmul %200, %201, %cst_126 {dimension_numbers = #tpu.dot_dimension_numbers<[1], [0], [0], [1], [0, 0, 1, 1], [], []>} : vector<6x32xf32>, vector<32x64xf32>, vector<6x64xf32> -> vector<6x64xf32>
    %c0_127 = arith.constant 0 : index
    %c0_128 = arith.constant 0 : index
    %203 = vector.load %arg24[%c0_127, %c0_128] : memref<1x64xf32, #tpu.memory_space<vmem>>, vector<1x64xf32>
    %204 = vector.broadcast %203 : vector<1x64xf32> to vector<6x64xf32>
    %205 = arith.addf %202, %204 : vector<6x64xf32>
    %cst_129 = arith.constant 0.000000e+00 : f32
    %206 = vector.broadcast %cst_129 : f32 to vector<6x64xf32>
    %207 = arith.maximumf %205, %206 : vector<6x64xf32>
    %c0_130 = arith.constant 0 : index
    %c0_131 = arith.constant 0 : index
    %208 = vector.load %arg25[%c0_130, %c0_131] : memref<64x32xf32, #tpu.memory_space<vmem>>, vector<64x32xf32>
    %cst_132 = arith.constant dense<0.000000e+00> : vector<6x32xf32>
    %209 = tpu.matmul %207, %208, %cst_132 {dimension_numbers = #tpu.dot_dimension_numbers<[1], [0], [0], [1], [0, 0, 1, 1], [], []>} : vector<6x64xf32>, vector<64x32xf32>, vector<6x32xf32> -> vector<6x32xf32>
    %c0_133 = arith.constant 0 : index
    %c0_134 = arith.constant 0 : index
    %210 = vector.load %arg26[%c0_133, %c0_134] : memref<1x32xf32, #tpu.memory_space<vmem>>, vector<1x32xf32>
    %211 = vector.broadcast %210 : vector<1x32xf32> to vector<6x32xf32>
    %212 = arith.addf %209, %211 : vector<6x32xf32>
    %213 = arith.addf %200, %212 : vector<6x32xf32>
    %c0_135 = arith.constant 0 : index
    %c0_136 = arith.constant 0 : index
    %214 = vector.load %arg27[%c0_135, %c0_136] : memref<32x64xf32, #tpu.memory_space<vmem>>, vector<32x64xf32>
    %cst_137 = arith.constant dense<0.000000e+00> : vector<6x64xf32>
    %215 = tpu.matmul %213, %214, %cst_137 {dimension_numbers = #tpu.dot_dimension_numbers<[1], [0], [0], [1], [0, 0, 1, 1], [], []>} : vector<6x32xf32>, vector<32x64xf32>, vector<6x64xf32> -> vector<6x64xf32>
    %c0_138 = arith.constant 0 : index
    %c0_139 = arith.constant 0 : index
    %216 = vector.load %arg28[%c0_138, %c0_139] : memref<1x64xf32, #tpu.memory_space<vmem>>, vector<1x64xf32>
    %217 = vector.broadcast %216 : vector<1x64xf32> to vector<6x64xf32>
    %218 = arith.addf %215, %217 : vector<6x64xf32>
    %219 = vector.extract_strided_slice %67 {offsets = [64, 0], sizes = [64, 32], strides = [1, 1]} : vector<128x32xf32> to vector<64x32xf32>
    %220 = vector.extract_strided_slice %74 {offsets = [64, 32], sizes = [64, 32], strides = [1, 1]} : vector<128x64xf32> to vector<64x32xf32>
    %221 = vector.extract_strided_slice %218 {offsets = [0, 0], sizes = [6, 32], strides = [1, 1]} : vector<6x64xf32> to vector<6x32xf32>
    %222 = vector.extract_strided_slice %218 {offsets = [0, 32], sizes = [6, 32], strides = [1, 1]} : vector<6x64xf32> to vector<6x32xf32>
    %cst_140 = arith.constant dense<0.000000e+00> : vector<64x6xf32>
    %223 = tpu.matmul %220, %221, %cst_140 {dimension_numbers = #tpu.dot_dimension_numbers<[1], [1], [0], [0], [0, 0, 1, 0], [], []>} : vector<64x32xf32>, vector<6x32xf32>, vector<64x6xf32> -> vector<64x6xf32>
    %cst_141 = arith.constant 0.176776692 : f32
    %224 = vector.broadcast %cst_141 : f32 to vector<64x6xf32>
    %225 = arith.mulf %223, %224 : vector<64x6xf32>
    %cst_142 = arith.constant dense<0xFF800000> : vector<64xf32>
    %226 = vector.multi_reduction <maximumf>, %225, %cst_142 [1] : vector<64x6xf32> to vector<64xf32>
    %227 = vector.shape_cast %226 : vector<64xf32> to vector<64x1xf32>
    %228 = vector.broadcast %227 : vector<64x1xf32> to vector<64x6xf32>
    %229 = arith.subf %225, %228 : vector<64x6xf32>
    %230 = math.exp %229 : vector<64x6xf32>
    %cst_143 = arith.constant dense<0.000000e+00> : vector<64xf32>
    %231 = vector.multi_reduction <add>, %230, %cst_143 [1] : vector<64x6xf32> to vector<64xf32>
    %232 = vector.shape_cast %231 : vector<64xf32> to vector<64x1xf32>
    %233 = tpu.reciprocal %232 {approx = true} : vector<64x1xf32> -> vector<64x1xf32>
    %234 = vector.broadcast %233 : vector<64x1xf32> to vector<64x6xf32>
    %235 = arith.mulf %230, %234 : vector<64x6xf32>
    %cst_144 = arith.constant dense<0.000000e+00> : vector<64x32xf32>
    %236 = tpu.matmul %235, %222, %cst_144 {dimension_numbers = #tpu.dot_dimension_numbers<[1], [0], [0], [1], [0, 0, 1, 1], [], []>} : vector<64x6xf32>, vector<6x32xf32>, vector<64x32xf32> -> vector<64x32xf32>
    %c0_145 = arith.constant 0 : index
    %c0_146 = arith.constant 0 : index
    %237 = vector.load %arg29[%c0_145, %c0_146] : memref<32x32xf32, #tpu.memory_space<vmem>>, vector<32x32xf32>
    %cst_147 = arith.constant dense<0.000000e+00> : vector<64x32xf32>
    %238 = tpu.matmul %236, %237, %cst_147 {dimension_numbers = #tpu.dot_dimension_numbers<[1], [0], [0], [1], [0, 0, 1, 1], [], []>} : vector<64x32xf32>, vector<32x32xf32>, vector<64x32xf32> -> vector<64x32xf32>
    %c0_148 = arith.constant 0 : index
    %c0_149 = arith.constant 0 : index
    %239 = vector.load %arg30[%c0_148, %c0_149] : memref<1x32xf32, #tpu.memory_space<vmem>>, vector<1x32xf32>
    %240 = vector.broadcast %239 : vector<1x32xf32> to vector<64x32xf32>
    %241 = arith.addf %238, %240 : vector<64x32xf32>
    %242 = arith.addf %219, %241 : vector<64x32xf32>
    %c0_150 = arith.constant 0 : index
    %c0_151 = arith.constant 0 : index
    %243 = vector.load %arg31[%c0_150, %c0_151] : memref<32x128xf32, #tpu.memory_space<vmem>>, vector<32x128xf32>
    %cst_152 = arith.constant dense<0.000000e+00> : vector<6x128xf32>
    %244 = tpu.matmul %213, %243, %cst_152 {dimension_numbers = #tpu.dot_dimension_numbers<[1], [0], [0], [1], [0, 0, 1, 1], [], []>} : vector<6x32xf32>, vector<32x128xf32>, vector<6x128xf32> -> vector<6x128xf32>
    %c0_153 = arith.constant 0 : index
    %c0_154 = arith.constant 0 : index
    %245 = vector.load %arg32[%c0_153, %c0_154] : memref<1x128xf32, #tpu.memory_space<vmem>>, vector<1x128xf32>
    %246 = vector.broadcast %245 : vector<1x128xf32> to vector<6x128xf32>
    %247 = arith.addf %244, %246 : vector<6x128xf32>
    %248 = vector.extract_strided_slice %247 {offsets = [0, 0], sizes = [6, 32], strides = [1, 1]} : vector<6x128xf32> to vector<6x32xf32>
    %cst_155 = arith.constant 0.000000e+00 : f32
    %249 = vector.broadcast %cst_155 : f32 to vector<6x32xf32>
    %250 = arith.maximumf %248, %249 : vector<6x32xf32>
    %c0_156 = arith.constant 0 : index
    %c0_157 = arith.constant 0 : index
    %251 = vector.load %arg33[%c0_156, %c0_157] : memref<32x32xf32, #tpu.memory_space<vmem>>, vector<32x32xf32>
    %cst_158 = arith.constant dense<0.000000e+00> : vector<6x32xf32>
    %252 = tpu.matmul %250, %251, %cst_158 {dimension_numbers = #tpu.dot_dimension_numbers<[1], [0], [0], [1], [0, 0, 1, 1], [], []>} : vector<6x32xf32>, vector<32x32xf32>, vector<6x32xf32> -> vector<6x32xf32>
    %c0_159 = arith.constant 0 : index
    %c0_160 = arith.constant 0 : index
    %253 = vector.load %arg34[%c0_159, %c0_160] : memref<1x32xf32, #tpu.memory_space<vmem>>, vector<1x32xf32>
    %254 = vector.broadcast %253 : vector<1x32xf32> to vector<6x32xf32>
    %255 = arith.addf %252, %254 : vector<6x32xf32>
    %256 = vector.extract_strided_slice %255 {offsets = [1, 0], sizes = [1, 32], strides = [1, 1]} : vector<6x32xf32> to vector<1x32xf32>
    %cst_161 = arith.constant dense<0.000000e+00> : vector<1x64xf32>
    %257 = tpu.matmul %256, %242, %cst_161 {dimension_numbers = #tpu.dot_dimension_numbers<[1], [1], [0], [0], [0, 0, 1, 0], [], []>} : vector<1x32xf32>, vector<64x32xf32>, vector<1x64xf32> -> vector<1x64xf32>
    %258 = vector.extract_strided_slice %247 {offsets = [0, 0], sizes = [1, 128], strides = [1, 1]} : vector<6x128xf32> to vector<1x128xf32>
    %259 = vector.extract_strided_slice %247 {offsets = [2, 0], sizes = [1, 128], strides = [1, 1]} : vector<6x128xf32> to vector<1x128xf32>
    %260 = tpu.concatenate %258, %259 in 0 : vector<1x128xf32>, vector<1x128xf32> -> vector<2x128xf32>
    %c1_162 = arith.constant 1 : index
    %c0_163 = arith.constant 0 : index
    %c0_164 = arith.constant 0 : index
    %261 = vector.load %arg36[%c1_162, %c0_163, %c0_164] : memref<2x2x128xf32, #tpu.memory_space<vmem>>, vector<1x2x128xf32>
    %262 = vector.shape_cast %261 : vector<1x2x128xf32> to vector<2x128xf32>
    %263 = vector.shape_cast %260 : vector<2x128xf32> to vector<1x2x128xf32>
    tpu.vector_store %arg36[%c1_162, %c0_163, %c0_164], %263 {strides = array<i32>} : memref<2x2x128xf32, #tpu.memory_space<vmem>>, vector<1x2x128xf32>,
    %264 = tpu.concatenate %165, %257 in 0 : vector<1x64xf32>, vector<1x64xf32> -> vector<2x64xf32>
    %265 = arith.truncf %264 : vector<2x64xf32> to vector<2x64xbf16>
    %c0_165 = arith.constant 0 : index
    %c0_166 = arith.constant 0 : index
    %266 = vector.load %arg4[%c0_165, %c0_166] : memref<64x4096xbf16, #tpu.memory_space<vmem>>, vector<64x4096xbf16>
    %cst_167 = arith.constant dense<0.000000e+00> : vector<2x4096xf32>
    %267 = tpu.matmul %265, %266, %cst_167 {dimension_numbers = #tpu.dot_dimension_numbers<[1], [0], [0], [1], [0, 0, 1, 1], [], []>} : vector<2x64xbf16>, vector<64x4096xbf16>, vector<2x4096xf32> -> vector<2x4096xf32>
    %268 = vector.extract_strided_slice %267 {offsets = [0, 0], sizes = [1, 4096], strides = [1, 1]} : vector<2x4096xf32> to vector<1x4096xf32>
    %c0_168 = arith.constant 0 : index
    %c0_169 = arith.constant 0 : index
    %c0_170 = arith.constant 0 : index
    %269 = vector.load %arg35[%c0_168, %c0_169, %c0_170] : memref<2x1x4096xf32, #tpu.memory_space<vmem>>, vector<1x1x4096xf32>
    %270 = vector.shape_cast %269 : vector<1x1x4096xf32> to vector<1x4096xf32>
    %271 = vector.shape_cast %268 : vector<1x4096xf32> to vector<1x1x4096xf32>
    tpu.vector_store %arg35[%c0_168, %c0_169, %c0_170], %271 {strides = array<i32>} : memref<2x1x4096xf32, #tpu.memory_space<vmem>>, vector<1x1x4096xf32>,
    %272 = vector.extract_strided_slice %267 {offsets = [1, 0], sizes = [1, 4096], strides = [1, 1]} : vector<2x4096xf32> to vector<1x4096xf32>
    %c1_171 = arith.constant 1 : index
    %c0_172 = arith.constant 0 : index
    %c0_173 = arith.constant 0 : index
    %273 = vector.load %arg35[%c1_171, %c0_172, %c0_173] : memref<2x1x4096xf32, #tpu.memory_space<vmem>>, vector<1x1x4096xf32>
    %274 = vector.shape_cast %273 : vector<1x1x4096xf32> to vector<1x4096xf32>
    %275 = vector.shape_cast %272 : vector<1x4096xf32> to vector<1x1x4096xf32>
    tpu.vector_store %arg35[%c1_171, %c0_172, %c0_173], %275 {strides = array<i32>} : memref<2x1x4096xf32, #tpu.memory_space<vmem>>, vector<1x1x4096xf32>,
    return
  }
  func.func @transform_0(%arg0: i32) -> (i32, i32) {
    %c0_i32 = arith.constant 0 : i32
    %c0_i32_0 = arith.constant 0 : i32
    return %arg0, %c0_i32 : i32, i32
  }
  func.func @transform_1(%arg0: i32) -> (i32, i32, i32) {
    %c0_i32 = arith.constant 0 : i32
    %c0_i32_0 = arith.constant 0 : i32
    %c0_i32_1 = arith.constant 0 : i32
    return %arg0, %c0_i32, %c0_i32_0 : i32, i32, i32
  }
  func.func @transform_2(%arg0: i32) -> (i32, i32) {
    %c0_i32 = arith.constant 0 : i32
    %c0_i32_0 = arith.constant 0 : i32
    %c0_i32_1 = arith.constant 0 : i32
    return %c0_i32, %c0_i32_0 : i32, i32
  }
  func.func @transform_3(%arg0: i32) -> (i32, i32) {
    %c0_i32 = arith.constant 0 : i32
    %c0_i32_0 = arith.constant 0 : i32
    %c0_i32_1 = arith.constant 0 : i32
    return %c0_i32, %c0_i32_0 : i32, i32
  }
  func.func @transform_4(%arg0: i32) -> (i32, i32) {
    %c0_i32 = arith.constant 0 : i32
    %c0_i32_0 = arith.constant 0 : i32
    %c0_i32_1 = arith.constant 0 : i32
    return %c0_i32, %c0_i32_0 : i32, i32
  }
  func.func @transform_5(%arg0: i32) -> (i32, i32) {
    %c0_i32 = arith.constant 0 : i32
    %c0_i32_0 = arith.constant 0 : i32
    %c0_i32_1 = arith.constant 0 : i32
    return %c0_i32, %c0_i32_0 : i32, i32
  }
  func.func @transform_6(%arg0: i32) -> (i32, i32) {
    %c0_i32 = arith.constant 0 : i32
    %c0_i32_0 = arith.constant 0 : i32
    %c0_i32_1 = arith.constant 0 : i32
    return %c0_i32, %c0_i32_0 : i32, i32
  }
  func.func @transform_7(%arg0: i32) -> (i32, i32) {
    %c0_i32 = arith.constant 0 : i32
    %c0_i32_0 = arith.constant 0 : i32
    %c0_i32_1 = arith.constant 0 : i32
    return %c0_i32, %c0_i32_0 : i32, i32
  }
  func.func @transform_8(%arg0: i32) -> (i32, i32) {
    %c0_i32 = arith.constant 0 : i32
    %c0_i32_0 = arith.constant 0 : i32
    %c0_i32_1 = arith.constant 0 : i32
    return %c0_i32, %c0_i32_0 : i32, i32
  }
  func.func @transform_9(%arg0: i32) -> (i32, i32) {
    %c0_i32 = arith.constant 0 : i32
    %c0_i32_0 = arith.constant 0 : i32
    %c0_i32_1 = arith.constant 0 : i32
    return %c0_i32, %c0_i32_0 : i32, i32
  }
  func.func @transform_10(%arg0: i32) -> (i32, i32) {
    %c0_i32 = arith.constant 0 : i32
    %c0_i32_0 = arith.constant 0 : i32
    %c0_i32_1 = arith.constant 0 : i32
    return %c0_i32, %c0_i32_0 : i32, i32
  }
  func.func @transform_11(%arg0: i32) -> (i32, i32) {
    %c0_i32 = arith.constant 0 : i32
    %c0_i32_0 = arith.constant 0 : i32
    %c0_i32_1 = arith.constant 0 : i32
    return %c0_i32, %c0_i32_0 : i32, i32
  }
  func.func @transform_12(%arg0: i32) -> (i32, i32) {
    %c0_i32 = arith.constant 0 : i32
    %c0_i32_0 = arith.constant 0 : i32
    %c0_i32_1 = arith.constant 0 : i32
    return %c0_i32, %c0_i32_0 : i32, i32
  }
  func.func @transform_13(%arg0: i32) -> (i32, i32) {
    %c0_i32 = arith.constant 0 : i32
    %c0_i32_0 = arith.constant 0 : i32
    %c0_i32_1 = arith.constant 0 : i32
    return %c0_i32, %c0_i32_0 : i32, i32
  }
  func.func @transform_14(%arg0: i32) -> (i32, i32) {
    %c0_i32 = arith.constant 0 : i32
    %c0_i32_0 = arith.constant 0 : i32
    %c0_i32_1 = arith.constant 0 : i32
    return %c0_i32, %c0_i32_0 : i32, i32
  }
  func.func @transform_15(%arg0: i32) -> (i32, i32) {
    %c0_i32 = arith.constant 0 : i32
    %c0_i32_0 = arith.constant 0 : i32
    %c0_i32_1 = arith.constant 0 : i32
    return %c0_i32, %c0_i32_0 : i32, i32
  }
  func.func @transform_16(%arg0: i32) -> (i32, i32) {
    %c0_i32 = arith.constant 0 : i32
    %c0_i32_0 = arith.constant 0 : i32
    %c0_i32_1 = arith.constant 0 : i32
    return %c0_i32, %c0_i32_0 : i32, i32
  }
  func.func @transform_17(%arg0: i32) -> (i32, i32) {
    %c0_i32 = arith.constant 0 : i32
    %c0_i32_0 = arith.constant 0 : i32
    %c0_i32_1 = arith.constant 0 : i32
    return %c0_i32, %c0_i32_0 : i32, i32
  }
  func.func @transform_18(%arg0: i32) -> (i32, i32) {
    %c0_i32 = arith.constant 0 : i32
    %c0_i32_0 = arith.constant 0 : i32
    %c0_i32_1 = arith.constant 0 : i32
    return %c0_i32, %c0_i32_0 : i32, i32
  }
  func.func @transform_19(%arg0: i32) -> (i32, i32) {
    %c0_i32 = arith.constant 0 : i32
    %c0_i32_0 = arith.constant 0 : i32
    %c0_i32_1 = arith.constant 0 : i32
    return %c0_i32, %c0_i32_0 : i32, i32
  }
  func.func @transform_20(%arg0: i32) -> (i32, i32) {
    %c0_i32 = arith.constant 0 : i32
    %c0_i32_0 = arith.constant 0 : i32
    %c0_i32_1 = arith.constant 0 : i32
    return %c0_i32, %c0_i32_0 : i32, i32
  }
  func.func @transform_21(%arg0: i32) -> (i32, i32) {
    %c0_i32 = arith.constant 0 : i32
    %c0_i32_0 = arith.constant 0 : i32
    %c0_i32_1 = arith.constant 0 : i32
    return %c0_i32, %c0_i32_0 : i32, i32
  }
  func.func @transform_22(%arg0: i32) -> (i32, i32) {
    %c0_i32 = arith.constant 0 : i32
    %c0_i32_0 = arith.constant 0 : i32
    %c0_i32_1 = arith.constant 0 : i32
    return %c0_i32, %c0_i32_0 : i32, i32
  }
  func.func @transform_23(%arg0: i32) -> (i32, i32) {
    %c0_i32 = arith.constant 0 : i32
    %c0_i32_0 = arith.constant 0 : i32
    %c0_i32_1 = arith.constant 0 : i32
    return %c0_i32, %c0_i32_0 : i32, i32
  }
  func.func @transform_24(%arg0: i32) -> (i32, i32) {
    %c0_i32 = arith.constant 0 : i32
    %c0_i32_0 = arith.constant 0 : i32
    %c0_i32_1 = arith.constant 0 : i32
    return %c0_i32, %c0_i32_0 : i32, i32
  }
  func.func @transform_25(%arg0: i32) -> (i32, i32) {
    %c0_i32 = arith.constant 0 : i32
    %c0_i32_0 = arith.constant 0 : i32
    %c0_i32_1 = arith.constant 0 : i32
    return %c0_i32, %c0_i32_0 : i32, i32
  }
  func.func @transform_26(%arg0: i32) -> (i32, i32) {
    %c0_i32 = arith.constant 0 : i32
    %c0_i32_0 = arith.constant 0 : i32
    %c0_i32_1 = arith.constant 0 : i32
    return %c0_i32, %c0_i32_0 : i32, i32
  }
  func.func @transform_27(%arg0: i32) -> (i32, i32) {
    %c0_i32 = arith.constant 0 : i32
    %c0_i32_0 = arith.constant 0 : i32
    %c0_i32_1 = arith.constant 0 : i32
    return %c0_i32, %c0_i32_0 : i32, i32
  }
  func.func @transform_28(%arg0: i32) -> (i32, i32) {
    %c0_i32 = arith.constant 0 : i32
    %c0_i32_0 = arith.constant 0 : i32
    %c0_i32_1 = arith.constant 0 : i32
    return %c0_i32, %c0_i32_0 : i32, i32
  }
  func.func @transform_29(%arg0: i32) -> (i32, i32) {
    %c0_i32 = arith.constant 0 : i32
    %c0_i32_0 = arith.constant 0 : i32
    %c0_i32_1 = arith.constant 0 : i32
    return %c0_i32, %c0_i32_0 : i32, i32
  }
  func.func @transform_30(%arg0: i32) -> (i32, i32) {
    %c0_i32 = arith.constant 0 : i32
    %c0_i32_0 = arith.constant 0 : i32
    %c0_i32_1 = arith.constant 0 : i32
    return %c0_i32, %c0_i32_0 : i32, i32
  }
  func.func @transform_31(%arg0: i32) -> (i32, i32) {
    %c0_i32 = arith.constant 0 : i32
    %c0_i32_0 = arith.constant 0 : i32
    %c0_i32_1 = arith.constant 0 : i32
    return %c0_i32, %c0_i32_0 : i32, i32
  }
  func.func @transform_32(%arg0: i32) -> (i32, i32) {
    %c0_i32 = arith.constant 0 : i32
    %c0_i32_0 = arith.constant 0 : i32
    %c0_i32_1 = arith.constant 0 : i32
    return %c0_i32, %c0_i32_0 : i32, i32
  }
  func.func @transform_33(%arg0: i32) -> (i32, i32) {
    %c0_i32 = arith.constant 0 : i32
    %c0_i32_0 = arith.constant 0 : i32
    %c0_i32_1 = arith.constant 0 : i32
    return %c0_i32, %c0_i32_0 : i32, i32
  }
  func.func @transform_34(%arg0: i32) -> (i32, i32, i32) {
    %c0_i32 = arith.constant 0 : i32
    %c0_i32_0 = arith.constant 0 : i32
    %c0_i32_1 = arith.constant 0 : i32
    return %arg0, %c0_i32, %c0_i32_0 : i32, i32, i32
  }
  func.func @transform_35(%arg0: i32) -> (i32, i32, i32) {
    %c0_i32 = arith.constant 0 : i32
    %c0_i32_0 = arith.constant 0 : i32
    %c0_i32_1 = arith.constant 0 : i32
    return %arg0, %c0_i32, %c0_i32_0 : i32, i32, i32
  }
}

</mosaic_0001>

<llo_original>
// kernel: squeeze.6
$region0: #{squeeze.6}
  %s0 = inlined_call_operand.vmem [shape: f32[4096], index: 0, kind: input, shape index: {}]
  %s1 = inlined_call_operand.hbm [shape: f32[1,64,64], index: 1, kind: output, shape index: {}]
  $region1: #{squeeze.6} parent=0
    #allocation0 [shape = 'u8[32768]{0}', space=vmem, size = 0x8000, scoped, tag = 'operand span for operand 1']
    #allocation1 [shape = 's32[1]{0}', space=sflag, size = 0x4, scoped, tag = 'scoped memory for squeeze.6']
    %2 = vsyncpa [#allocation1], 0
    %v3 = vld [vmem:[%s0] sm:$0xff]
    %vm4 = vcmask 523264
    %5 = vst.msk [vmem:[#allocation0] ss:$2 sm:$0xff] %vm4, %v3
    %s6 = scalar_lea.vmem %s0, 8
    %v7 = vld [vmem:[%s6] sm:$0xff]
    %vm8 = vcmask 523264
    %s9 = scalar_lea.vmem [#allocation0], 16
    %10 = vst.msk [vmem:[%s9] ss:$2 sm:$0xff] %vm8, %v7
    %s11 = scalar_lea.vmem %s0, 16
    %v12 = vld [vmem:[%s11] sm:$0xff]
    %vm13 = vcmask 523264
    %s14 = scalar_lea.vmem [#allocation0], 32
    %15 = vst.msk [vmem:[%s14] ss:$2 sm:$0xff] %vm13, %v12
    %s16 = scalar_lea.vmem %s0, 24
    %v17 = vld [vmem:[%s16] sm:$0xff]
    %vm18 = vcmask 523264
    %s19 = scalar_lea.vmem [#allocation0], 48
    %20 = vst.msk [vmem:[%s19] ss:$2 sm:$0xff] %vm18, %v17
    %v21 = vld [vmem:[%s0] sm:$0xff]
    %22 = vrot.lane.b32.xlu0 %v21, 64
    %v23 = vpop.permute.xlu0 %22
    %vm24 = vcmask 523264
    %s25 = scalar_lea.vmem [#allocation0], 1
    %26 = vst.msk [vmem:[%s25] ss:$2 sm:$0xff] %vm24, %v23
    %s27 = scalar_lea.vmem %s0, 16
    %v28 = vld [vmem:[%s27] sm:$0xff]
    %29 = vrot.lane.b32.xlu0 %v28, 64
    %v30 = vpop.permute.xlu0 %29
    %vm31 = vcmask 523264
    %s32 = scalar_lea.vmem [#allocation0], 33
    %33 = vst.msk [vmem:[%s32] ss:$2 sm:$0xff] %vm31, %v30
    %s34 = scalar_lea.vmem %s0, 8
    %v35 = vld [vmem:[%s34] sm:$0xff]
    %36 = vrot.lane.b32.xlu0 %v35, 64
    %v37 = vpop.permute.xlu0 %36
    %vm38 = vcmask 523264
    %s39 = scalar_lea.vmem [#allocation0], 17
    %40 = vst.msk [vmem:[%s39] ss:$2 sm:$0xff] %vm38, %v37
    %s41 = scalar_lea.vmem %s0, 24
    %v42 = vld [vmem:[%s41] sm:$0xff]
    %43 = vrot.lane.b32.xlu0 %v42, 64
    %v44 = vpop.permute.xlu0 %43
    %vm45 = vcmask 523264
    %s46 = scalar_lea.vmem [#allocation0], 49
    %47 = vst.msk [vmem:[%s46] ss:$2 sm:$0xff] %vm45, %v44
    %s49 = ssub.s32 1024, 1024
    %50 = vsyncadd [#allocation1], %s49
    %s52 = sshll.u32 [#allocation0], 4
    %s53 = int_to_ptr.vmem [resolvable:$true] %s52
    %55 = dma.vmem_to_hbm [thread:$0]  %s53, 1024, %s1, [#allocation1]
    %56 = dma.done [#allocation1], 1024
    %57 = vsyncpa [#allocation1], 1

// kernel: forward.1
$region0: #{forward.1}
  #allocation0 [shape = 'u32[]', space=smem, size = 0x4, offset = 0x4, fixed_abs, tag = 'smem constant byte address 0x4 - core index']
  #allocation1 [shape = 'u32[144,128]{1,0:T(1,128)}', space=vmem, size = 0x12000, scoped, tag = 'internal scratch']
  %s0 = inlined_call_operand.smem [shape: u32[36], index: -1, kind: input, shape index: {}]
  %s1 = sld [smem:[%s0]]
  %s2 = scalar_lea.smem %s0, 1
  %s3 = sld [smem:[%s2]]
  %s4 = scalar_lea.smem %s0, 2
  %s5 = sld [smem:[%s4]]
  %s6 = scalar_lea.smem %s0, 3
  %s7 = sld [smem:[%s6]]
  %s8 = scalar_lea.smem %s0, 4
  %s9 = sld [smem:[%s8]]
  %s10 = scalar_lea.smem %s0, 5
  %s11 = sld [smem:[%s10]]
  %s12 = scalar_lea.smem %s0, 6
  %s13 = sld [smem:[%s12]]
  %s14 = scalar_lea.smem %s0, 7
  %s15 = sld [smem:[%s14]]
  %s16 = scalar_lea.smem %s0, 8
  %s17 = sld [smem:[%s16]]
  %s18 = scalar_lea.smem %s0, 9
  %s19 = sld [smem:[%s18]]
  %s20 = scalar_lea.smem %s0, 10
  %s21 = sld [smem:[%s20]]
  %s22 = scalar_lea.smem %s0, 11
  %s23 = sld [smem:[%s22]]
  %s24 = scalar_lea.smem %s0, 12
  %s25 = sld [smem:[%s24]]
  %s26 = scalar_lea.smem %s0, 13
  %s27 = sld [smem:[%s26]]
  %s28 = scalar_lea.smem %s0, 14
  %s29 = sld [smem:[%s28]]
  %s30 = scalar_lea.smem %s0, 15
  %s31 = sld [smem:[%s30]]
  %s32 = scalar_lea.smem %s0, 16
  %s33 = sld [smem:[%s32]]
  %s34 = scalar_lea.smem %s0, 17
  %s35 = sld [smem:[%s34]]
  %s36 = scalar_lea.smem %s0, 18
  %s37 = sld [smem:[%s36]]
  %s38 = scalar_lea.smem %s0, 19
  %s39 = sld [smem:[%s38]]
  %s40 = scalar_lea.smem %s0, 20
  %s41 = sld [smem:[%s40]]
  %s42 = scalar_lea.smem %s0, 21
  %s43 = sld [smem:[%s42]]
  %s44 = scalar_lea.smem %s0, 22
  %s45 = sld [smem:[%s44]]
  %s46 = scalar_lea.smem %s0, 23
  %s47 = sld [smem:[%s46]]
  %s48 = scalar_lea.smem %s0, 24
  %s49 = sld [smem:[%s48]]
  %s50 = scalar_lea.smem %s0, 25
  %s51 = sld [smem:[%s50]]
  %s52 = scalar_lea.smem %s0, 26
  %s53 = sld [smem:[%s52]]
  %s54 = scalar_lea.smem %s0, 27
  %s55 = sld [smem:[%s54]]
  %s56 = scalar_lea.smem %s0, 28
  %s57 = sld [smem:[%s56]]
  %s58 = scalar_lea.smem %s0, 29
  %s59 = sld [smem:[%s58]]
  %s60 = scalar_lea.smem %s0, 30
  %s61 = sld [smem:[%s60]]
  %s62 = scalar_lea.smem %s0, 31
  %s63 = sld [smem:[%s62]]
  %s64 = scalar_lea.smem %s0, 32
  %s65 = sld [smem:[%s64]]
  %s66 = scalar_lea.smem %s0, 33
  %s67 = sld [smem:[%s66]]
  %s68 = scalar_lea.smem %s0, 34
  %s69 = sld [smem:[%s68]]
  %s70 = scalar_lea.smem %s0, 35
  %s71 = sld [smem:[%s70]]
  %72 = xla_tuple %s69, %s71
  %s73 = sld [smem:[#allocation0]]
  $region154: #{forward.1} parent=0
    _
  %s75 = ssub.s32 1, %s73
  %s76 = scalar_select 0, %s75, %s73
  // Predicated region
  $region2: #{forward.1} parent=0 // pred_check
    _
  $region3: #{forward.1} parent=0 // pred_check_branch
    %78 = sbr.rel (0) target = $region5
  $region4: #{forward.1} parent=0 // pred_region
    _
  $region5: #{forward.1} parent=0 // pred_fallthru
    _
  // Predicated region
  $region6: #{forward.1} parent=0 // pred_check
    _
  $region7: #{forward.1} parent=0 // pred_check_branch
    %80 = sbr.rel (0) target = $region9
  $region8: #{forward.1} parent=0 // pred_region
    _
  $region9: #{forward.1} parent=0 // pred_fallthru
    _
  // Predicated region
  $region10: #{forward.1} parent=0 // pred_check
    _
  $region11: #{forward.1} parent=0 // pred_check_branch
    %82 = sbr.rel (0) target = $region13
  $region12: #{forward.1} parent=0 // pred_region
    _
  $region13: #{forward.1} parent=0 // pred_fallthru
    _
  // Predicated region
  $region14: #{forward.1} parent=0 // pred_check
    _
  $region15: #{forward.1} parent=0 // pred_check_branch
    %84 = sbr.rel (0) target = $region17
  $region16: #{forward.1} parent=0 // pred_region
    _
  $region17: #{forward.1} parent=0 // pred_fallthru
    _
  // Predicated region
  $region18: #{forward.1} parent=0 // pred_check
    _
  $region19: #{forward.1} parent=0 // pred_check_branch
    %86 = sbr.rel (0) target = $region21
  $region20: #{forward.1} parent=0 // pred_region
    _
  $region21: #{forward.1} parent=0 // pred_fallthru
    _
  // Predicated region
  $region22: #{forward.1} parent=0 // pred_check
    _
  $region23: #{forward.1} parent=0 // pred_check_branch
    %88 = sbr.rel (0) target = $region25
  $region24: #{forward.1} parent=0 // pred_region
    _
  $region25: #{forward.1} parent=0 // pred_fallthru
    _
  // Predicated region
  $region26: #{forward.1} parent=0 // pred_check
    _
  $region27: #{forward.1} parent=0 // pred_check_branch
    %90 = sbr.rel (0) target = $region29
  $region28: #{forward.1} parent=0 // pred_region
    _
  $region29: #{forward.1} parent=0 // pred_fallthru
    _
  // Predicated region
  $region30: #{forward.1} parent=0 // pred_check
    _
  $region31: #{forward.1} parent=0 // pred_check_branch
    %92 = sbr.rel (0) target = $region33
  $region32: #{forward.1} parent=0 // pred_region
    _
  $region33: #{forward.1} parent=0 // pred_fallthru
    _
  // Predicated region
  $region34: #{forward.1} parent=0 // pred_check
    _
  $region35: #{forward.1} parent=0 // pred_check_branch
    %94 = sbr.rel (0) target = $region37
  $region36: #{forward.1} parent=0 // pred_region
    _
  $region37: #{forward.1} parent=0 // pred_fallthru
    _
  // Predicated region
  $region38: #{forward.1} parent=0 // pred_check
    _
  $region39: #{forward.1} parent=0 // pred_check_branch
    %96 = sbr.rel (0) target = $region41
  $region40: #{forward.1} parent=0 // pred_region
    _
  $region41: #{forward.1} parent=0 // pred_fallthru
    _
  // Predicated region
  $region42: #{forward.1} parent=0 // pred_check
    _
  $region43: #{forward.1} parent=0 // pred_check_branch
    %98 = sbr.rel (0) target = $region45
  $region44: #{forward.1} parent=0 // pred_region
    _
  $region45: #{forward.1} parent=0 // pred_fallthru
    _
  // Predicated region
  $region46: #{forward.1} parent=0 // pred_check
    _
  $region47: #{forward.1} parent=0 // pred_check_branch
    %100 = sbr.rel (0) target = $region49
  $region48: #{forward.1} parent=0 // pred_region
    _
  $region49: #{forward.1} parent=0 // pred_fallthru
    _
  // Predicated region
  $region50: #{forward.1} parent=0 // pred_check
    _
  $region51: #{forward.1} parent=0 // pred_check_branch
    %102 = sbr.rel (0) target = $region53
  $region52: #{forward.1} parent=0 // pred_region
    _
  $region53: #{forward.1} parent=0 // pred_fallthru
    _
  // Predicated region
  $region54: #{forward.1} parent=0 // pred_check
    _
  $region55: #{forward.1} parent=0 // pred_check_branch
    %104 = sbr.rel (0) target = $region57
  $region56: #{forward.1} parent=0 // pred_region
    _
  $region57: #{forward.1} parent=0 // pred_fallthru
    _
  // Predicated region
  $region58: #{forward.1} parent=0 // pred_check
    _
  $region59: #{forward.1} parent=0 // pred_check_branch
    %106 = sbr.rel (0) target = $region61
  $region60: #{forward.1} parent=0 // pred_region
    _
  $region61: #{forward.1} parent=0 // pred_fallthru
    _
  // Predicated region
  $region62: #{forward.1} parent=0 // pred_check
    _
  $region63: #{forward.1} parent=0 // pred_check_branch
    %108 = sbr.rel (0) target = $region65
  $region64: #{forward.1} parent=0 // pred_region
    _
  $region65: #{forward.1} parent=0 // pred_fallthru
    _
  // Predicated region
  $region66: #{forward.1} parent=0 // pred_check
    _
  $region67: #{forward.1} parent=0 // pred_check_branch
    %110 = sbr.rel (0) target = $region69
  $region68: #{forward.1} parent=0 // pred_region
    _
  $region69: #{forward.1} parent=0 // pred_fallthru
    _
  // Predicated region
  $region70: #{forward.1} parent=0 // pred_check
    _
  $region71: #{forward.1} parent=0 // pred_check_branch
    %112 = sbr.rel (0) target = $region73
  $region72: #{forward.1} parent=0 // pred_region
    _
  $region73: #{forward.1} parent=0 // pred_fallthru
    _
  // Predicated region
  $region74: #{forward.1} parent=0 // pred_check
    _
  $region75: #{forward.1} parent=0 // pred_check_branch
    %114 = sbr.rel (0) target = $region77
  $region76: #{forward.1} parent=0 // pred_region
    _
  $region77: #{forward.1} parent=0 // pred_fallthru
    _
  // Predicated region
  $region78: #{forward.1} parent=0 // pred_check
    _
  $region79: #{forward.1} parent=0 // pred_check_branch
    %116 = sbr.rel (0) target = $region81
  $region80: #{forward.1} parent=0 // pred_region
    _
  $region81: #{forward.1} parent=0 // pred_fallthru
    _
  // Predicated region
  $region82: #{forward.1} parent=0 // pred_check
    _
  $region83: #{forward.1} parent=0 // pred_check_branch
    %118 = sbr.rel (0) target = $region85
  $region84: #{forward.1} parent=0 // pred_region
    _
  $region85: #{forward.1} parent=0 // pred_fallthru
    _
  // Predicated region
  $region86: #{forward.1} parent=0 // pred_check
    _
  $region87: #{forward.1} parent=0 // pred_check_branch
    %120 = sbr.rel (0) target = $region89
  $region88: #{forward.1} parent=0 // pred_region
    _
  $region89: #{forward.1} parent=0 // pred_fallthru
    _
  // Predicated region
  $region90: #{forward.1} parent=0 // pred_check
    _
  $region91: #{forward.1} parent=0 // pred_check_branch
    %122 = sbr.rel (0) target = $region93
  $region92: #{forward.1} parent=0 // pred_region
    _
  $region93: #{forward.1} parent=0 // pred_fallthru
    _
  // Predicated region
  $region94: #{forward.1} parent=0 // pred_check
    _
  $region95: #{forward.1} parent=0 // pred_check_branch
    %124 = sbr.rel (0) target = $region97
  $region96: #{forward.1} parent=0 // pred_region
    _
  $region97: #{forward.1} parent=0 // pred_fallthru
    _
  // Predicated region
  $region98: #{forward.1} parent=0 // pred_check
    _
  $region99: #{forward.1} parent=0 // pred_check_branch
    %126 = sbr.rel (0) target = $region101
  $region100: #{forward.1} parent=0 // pred_region
    _
  $region101: #{forward.1} parent=0 // pred_fallthru
    _
  // Predicated region
  $region102: #{forward.1} parent=0 // pred_check
    _
  $region103: #{forward.1} parent=0 // pred_check_branch
    %128 = sbr.rel (0) target = $region105
  $region104: #{forward.1} parent=0 // pred_region
    _
  $region105: #{forward.1} parent=0 // pred_fallthru
    _
  // Predicated region
  $region106: #{forward.1} parent=0 // pred_check
    _
  $region107: #{forward.1} parent=0 // pred_check_branch
    %130 = sbr.rel (0) target = $region109
  $region108: #{forward.1} parent=0 // pred_region
    _
  $region109: #{forward.1} parent=0 // pred_fallthru
    _
  // Predicated region
  $region110: #{forward.1} parent=0 // pred_check
    _
  $region111: #{forward.1} parent=0 // pred_check_branch
    %132 = sbr.rel (0) target = $region113
  $region112: #{forward.1} parent=0 // pred_region
    _
  $region113: #{forward.1} parent=0 // pred_fallthru
    _
  // Predicated region
  $region114: #{forward.1} parent=0 // pred_check
    _
  $region115: #{forward.1} parent=0 // pred_check_branch
    %134 = sbr.rel (0) target = $region117
  $region116: #{forward.1} parent=0 // pred_region
    _
  $region117: #{forward.1} parent=0 // pred_fallthru
    _
  // Predicated region
  $region118: #{forward.1} parent=0 // pred_check
    _
  $region119: #{forward.1} parent=0 // pred_check_branch
    %136 = sbr.rel (0) target = $region121
  $region120: #{forward.1} parent=0 // pred_region
    _
  $region121: #{forward.1} parent=0 // pred_fallthru
    _
  // Predicated region
  $region122: #{forward.1} parent=0 // pred_check
    _
  $region123: #{forward.1} parent=0 // pred_check_branch
    %138 = sbr.rel (0) target = $region125
  $region124: #{forward.1} parent=0 // pred_region
    _
  $region125: #{forward.1} parent=0 // pred_fallthru
    _
  // Predicated region
  $region126: #{forward.1} parent=0 // pred_check
    _
  $region127: #{forward.1} parent=0 // pred_check_branch
    %140 = sbr.rel (0) target = $region129
  $region128: #{forward.1} parent=0 // pred_region
    _
  $region129: #{forward.1} parent=0 // pred_fallthru
    _
  // Predicated region
  $region130: #{forward.1} parent=0 // pred_check
    _
  $region131: #{forward.1} parent=0 // pred_check_branch
    %142 = sbr.rel (0) target = $region133
  $region132: #{forward.1} parent=0 // pred_region
    _
  $region133: #{forward.1} parent=0 // pred_fallthru
    _
  // Predicated region
  $region134: #{forward.1} parent=0 // pred_check
    _
  $region135: #{forward.1} parent=0 // pred_check_branch
    %144 = sbr.rel (0) target = $region137
  $region136: #{forward.1} parent=0 // pred_region
    _
  $region137: #{forward.1} parent=0 // pred_fallthru
    _
  %v146 = vld [vmem:[%s1] sm:$0xff]
  %v147 = vld [vmem:[%s1 + $0x8] sm:$0xff]
  %v148 = vld [vmem:[%s1 + $0x10] sm:$0xff]
  %v149 = vld [vmem:[%s1 + $0x18] sm:$0xff]
  %v150 = vld [vmem:[%s1 + $0x20] sm:$0xff]
  %v151 = vld [vmem:[%s1 + $0x28] sm:$0xff]
  %v152 = vld [vmem:[%s1 + $0x30] sm:$0xff]
  %v153 = vld [vmem:[%s1 + $0x38] sm:$0xff]
  %v154 = vld [vmem:[%s1 + $0x40] sm:$0xff]
  %v155 = vld [vmem:[%s1 + $0x48] sm:$0xff]
  %v156 = vld [vmem:[%s1 + $0x50] sm:$0xff]
  %v157 = vld [vmem:[%s1 + $0x58] sm:$0xff]
  %v158 = vld [vmem:[%s1 + $0x60] sm:$0xff]
  %v159 = vld [vmem:[%s1 + $0x68] sm:$0xff]
  %v160 = vld [vmem:[%s1 + $0x70] sm:$0xff]
  %v161 = vld [vmem:[%s1 + $0x78] sm:$0xff]
  %v162 = vld [vmem:[%s1 + $0x80] sm:$0xff]
  %v163 = vld [vmem:[%s1 + $0x88] sm:$0xff]
  %v164 = vld [vmem:[%s1 + $0x90] sm:$0xff]
  %v165 = vld [vmem:[%s1 + $0x98] sm:$0xff]
  %v166 = vld [vmem:[%s1 + $0xa0] sm:$0xff]
  %v167 = vld [vmem:[%s1 + $0xa8] sm:$0xff]
  %v168 = vld [vmem:[%s1 + $0xb0] sm:$0xff]
  %v169 = vld [vmem:[%s1 + $0xb8] sm:$0xff]
  %v170 = vld [vmem:[%s1 + $0xc0] sm:$0xff]
  %v171 = vld [vmem:[%s1 + $0xc8] sm:$0xff]
  %v172 = vld [vmem:[%s1 + $0xd0] sm:$0xff]
  %v173 = vld [vmem:[%s1 + $0xd8] sm:$0xff]
  %v174 = vld [vmem:[%s1 + $0xe0] sm:$0xff]
  %v175 = vld [vmem:[%s1 + $0xe8] sm:$0xff]
  %v176 = vld [vmem:[%s1 + $0xf0] sm:$0xff]
  %v177 = vld [vmem:[%s1 + $0xf8] sm:$0xff]
  %v178 = vld [vmem:[%s9] sm:$0xff]
  %v179 = vld [vmem:[%s9 + $0x8] sm:$0xff]
  %v180 = vld [vmem:[%s9 + $0x10] sm:$0xff]
  %v181 = vld [vmem:[%s9 + $0x18] sm:$0xff]
  %v182 = vld [vmem:[%s9 + $0x20] sm:$0xff]
  %v183 = vld [vmem:[%s9 + $0x28] sm:$0xff]
  %v184 = vld [vmem:[%s9 + $0x30] sm:$0xff]
  %v185 = vld [vmem:[%s9 + $0x38] sm:$0xff]
  %v186 = vld [vmem:[%s9 + $0x40] sm:$0xff]
  %v187 = vld [vmem:[%s9 + $0x48] sm:$0xff]
  %v188 = vld [vmem:[%s9 + $0x50] sm:$0xff]
  %v189 = vld [vmem:[%s9 + $0x58] sm:$0xff]
  %v190 = vld [vmem:[%s9 + $0x60] sm:$0xff]
  %v191 = vld [vmem:[%s9 + $0x68] sm:$0xff]
  %v192 = vld [vmem:[%s9 + $0x70] sm:$0xff]
  %v193 = vld [vmem:[%s9 + $0x78] sm:$0xff]
  %v194 = vld [vmem:[%s9 + $0x80] sm:$0xff]
  %v195 = vld [vmem:[%s9 + $0x88] sm:$0xff]
  %v196 = vld [vmem:[%s9 + $0x90] sm:$0xff]
  %v197 = vld [vmem:[%s9 + $0x98] sm:$0xff]
  %v198 = vld [vmem:[%s9 + $0xa0] sm:$0xff]
  %v199 = vld [vmem:[%s9 + $0xa8] sm:$0xff]
  %v200 = vld [vmem:[%s9 + $0xb0] sm:$0xff]
  %v201 = vld [vmem:[%s9 + $0xb8] sm:$0xff]
  %v202 = vld [vmem:[%s11] sm:$0x1]
  %v204 = vlaneseq
  %v205 = vshrl.u32 %v204, 7
  %v206 = vsub.s32 0, %v205
  %v207 = vrot.slane %v202, %v206
  %vm209 = vcmask 523264
  %v211 = vsel %vm209, %v147, 0
  %v214 = vsel %vm209, %v149, 0
  %v217 = vsel %vm209, %v151, 0
  %v220 = vsel %vm209, %v153, 0
  %v223 = vsel %vm209, %v155, 0
  %v226 = vsel %vm209, %v157, 0
  %v229 = vsel %vm209, %v159, 0
  %v232 = vsel %vm209, %v161, 0
  %v235 = vsel %vm209, %v163, 0
  %v238 = vsel %vm209, %v165, 0
  %v241 = vsel %vm209, %v167, 0
  %v244 = vsel %vm209, %v169, 0
  %v247 = vsel %vm209, %v171, 0
  %v250 = vsel %vm209, %v173, 0
  %v253 = vsel %vm209, %v175, 0
  %v256 = vsel %vm209, %v177, 0
  %258 = vmatprep.subr.mxu0 0.0
  %259 = vmatpush1.msra.mxu0 %v178
  %260 = vmatprep.subr.mxu0 0.0
  %261 = vmatpush1.msra.mxu0 %v179
  %262 = vmatprep.subr.mxu0 0.0
  %263 = vmatpush1.msra.mxu0 %v180
  %264 = vmatprep.subr.mxu0 0.0
  %265 = vmatpush1.msra.mxu0 %v181
  %266 = vmatprep.subr.mxu0 0.0
  %267 = vmatpush1.msra.mxu0 %v182
  %268 = vmatprep.subr.mxu0 0.0
  %269 = vmatpush1.msra.mxu0 %v183
  %270 = vmatprep.subr.mxu0 0.0
  %271 = vmatpush1.msra.mxu0 %v184
  %272 = vmatprep.subr.mxu0 0.0
  %273 = vmatpush1.msra.mxu0 %v185
  %274 = vmatprep.subr.mxu0 0.0
  %275 = vmatpush1.msra.mxu0 %v186
  %276 = vmatprep.subr.mxu0 0.0
  %277 = vmatpush1.msra.mxu0 %v187
  %278 = vmatprep.subr.mxu0 0.0
  %279 = vmatpush1.msra.mxu0 %v188
  %280 = vmatprep.subr.mxu0 0.0
  %281 = vmatpush1.msra.mxu0 %v189
  %282 = vmatprep.subr.mxu0 0.0
  %283 = vmatpush1.msra.mxu0 %v190
  %284 = vmatprep.subr.mxu0 0.0
  %285 = vmatpush1.msra.mxu0 %v191
  %286 = vmatprep.subr.mxu0 0.0
  %287 = vmatpush1.msra.mxu0 %v192
  %288 = vmatprep.subr.mxu0 0.0
  %289 = vmatpush1.msra.mxu0 %v193
  %290 = vmatprep.subr.mxu0 0.0
  %291 = vmatpush1.msra.mxu0 %v194
  %292 = vmatprep.subr.mxu0 0.0
  %293 = vmatpush1.msra.mxu0 %v195
  %294 = vmatprep.subr.mxu0 0.0
  %295 = vmatpush1.msra.mxu0 %v196
  %296 = vmatprep.subr.mxu0 0.0
  %297 = vmatpush1.msra.mxu0 %v197
  %298 = vmatprep.subr.mxu0 0.0
  %299 = vmatpush1.msra.mxu0 %v198
  %300 = vmatprep.subr.mxu0 0.0
  %301 = vmatpush1.msra.mxu0 %v199
  %302 = vmatprep.subr.mxu0 0.0
  %303 = vmatpush1.msra.mxu0 %v200
  %304 = vmatprep.subr.mxu0 0.0
  %305 = vmatpush1.msra.mxu0 %v201
  %306 = vmatprep.subr.mxu0 0.0
  %307 = vmatpush1.msra.mxu0 0.0
  %308 = vmatprep.subr.mxu0 0.0
  %309 = vmatpush1.msra.mxu0 0.0
  %310 = vmatprep.subr.mxu0 0.0
  %311 = vmatpush1.msra.mxu0 0.0
  %312 = vmatprep.subr.mxu0 0.0
  %313 = vmatpush1.msra.mxu0 0.0
  %314 = vmatprep.subr.mxu0 0.0
  %315 = vmatpush1.msra.mxu0 0.0
  %316 = vmatprep.subr.mxu0 0.0
  %317 = vmatpush1.msra.mxu0 0.0
  %318 = vmatprep.subr.mxu0 0.0
  %319 = vmatpush1.msra.mxu0 0.0
  %320 = vmatprep.subr.mxu0 0.0
  %321 = vmatpush1.msra.mxu0 0.0
  %322 = vmatprep.mubr.f32.mxu0 %v211
  %323 = vmatmul.mubr.f32.gmra.mrb[0].mxu0 %v146
  %v324 = vpop.f32.mrb[0].mxu0
  %v325 = vadd.f32 %v207, %v324
  %v326 = vpop.f32.mrb[0].mxu0
  %327 = vmatprep.mubr.f32.mxu0 %v214
  %328 = vmatmul.mubr.f32.gmra.mrb[0].mxu0 %v148
  %v329 = vpop.f32.mrb[0].mxu0
  %v330 = vadd.f32 %v207, %v329
  %v331 = vpop.f32.mrb[0].mxu0
  %332 = vmatprep.mubr.f32.mxu0 %v217
  %333 = vmatmul.mubr.f32.gmra.mrb[0].mxu0 %v150
  %v334 = vpop.f32.mrb[0].mxu0
  %v335 = vadd.f32 %v207, %v334
  %v336 = vpop.f32.mrb[0].mxu0
  %337 = vmatprep.mubr.f32.mxu0 %v220
  %338 = vmatmul.mubr.f32.gmra.mrb[0].mxu0 %v152
  %v339 = vpop.f32.mrb[0].mxu0
  %v340 = vadd.f32 %v207, %v339
  %v341 = vpop.f32.mrb[0].mxu0
  %342 = vmatprep.mubr.f32.mxu0 %v223
  %343 = vmatmul.mubr.f32.gmra.mrb[0].mxu0 %v154
  %v344 = vpop.f32.mrb[0].mxu0
  %v345 = vadd.f32 %v207, %v344
  %v346 = vpop.f32.mrb[0].mxu0
  %347 = vmatprep.mubr.f32.mxu0 %v226
  %348 = vmatmul.mubr.f32.gmra.mrb[0].mxu0 %v156
  %v349 = vpop.f32.mrb[0].mxu0
  %v350 = vadd.f32 %v207, %v349
  %v351 = vpop.f32.mrb[0].mxu0
  %352 = vmatprep.mubr.f32.mxu0 %v229
  %353 = vmatmul.mubr.f32.gmra.mrb[0].mxu0 %v158
  %v354 = vpop.f32.mrb[0].mxu0
  %v355 = vadd.f32 %v207, %v354
  %v356 = vpop.f32.mrb[0].mxu0
  %357 = vmatprep.mubr.f32.mxu0 %v232
  %358 = vmatmul.mubr.f32.gmra.mrb[0].mxu0 %v160
  %v359 = vpop.f32.mrb[0].mxu0
  %v360 = vadd.f32 %v207, %v359
  %v361 = vpop.f32.mrb[0].mxu0
  %362 = vmatprep.mubr.f32.mxu0 %v235
  %363 = vmatmul.mubr.f32.gmra.mrb[0].mxu0 %v162
  %v364 = vpop.f32.mrb[0].mxu0
  %v365 = vadd.f32 %v207, %v364
  %v366 = vpop.f32.mrb[0].mxu0
  %367 = vmatprep.mubr.f32.mxu0 %v238
  %368 = vmatmul.mubr.f32.gmra.mrb[0].mxu0 %v164
  %v369 = vpop.f32.mrb[0].mxu0
  %v370 = vadd.f32 %v207, %v369
  %v371 = vpop.f32.mrb[0].mxu0
  %372 = vmatprep.mubr.f32.mxu0 %v241
  %373 = vmatmul.mubr.f32.gmra.mrb[0].mxu0 %v166
  %v374 = vpop.f32.mrb[0].mxu0
  %v375 = vadd.f32 %v207, %v374
  %v376 = vpop.f32.mrb[0].mxu0
  %377 = vmatprep.mubr.f32.mxu0 %v244
  %378 = vmatmul.mubr.f32.gmra.mrb[0].mxu0 %v168
  %v379 = vpop.f32.mrb[0].mxu0
  %v380 = vadd.f32 %v207, %v379
  %v381 = vpop.f32.mrb[0].mxu0
  %382 = vmatprep.mubr.f32.mxu0 %v247
  %383 = vmatmul.mubr.f32.gmra.mrb[0].mxu0 %v170
  %v384 = vpop.f32.mrb[0].mxu0
  %v385 = vadd.f32 %v207, %v384
  %v386 = vpop.f32.mrb[0].mxu0
  %387 = vmatprep.mubr.f32.mxu0 %v250
  %388 = vmatmul.mubr.f32.gmra.mrb[0].mxu0 %v172
  %v389 = vpop.f32.mrb[0].mxu0
  %v390 = vadd.f32 %v207, %v389
  %v391 = vpop.f32.mrb[0].mxu0
  %392 = vmatprep.mubr.f32.mxu0 %v253
  %393 = vmatmul.mubr.f32.gmra.mrb[0].mxu0 %v174
  %v394 = vpop.f32.mrb[0].mxu0
  %v395 = vadd.f32 %v207, %v394
  %v396 = vpop.f32.mrb[0].mxu0
  %397 = vmatprep.mubr.f32.mxu0 %v256
  %398 = vmatmul.mubr.f32.gmra.mrb[0].mxu0 %v176
  %v399 = vpop.f32.mrb[0].mxu0
  %v400 = vadd.f32 %v207, %v399
  %v401 = vpop.f32.mrb[0].mxu0
  %402 = vdwg.mxu0
  %v403 = vld [vmem:[%s13] sm:$0xff]
  %v404 = vld [vmem:[%s13 + $0x8] sm:$0xff]
  %v405 = vld [vmem:[%s13 + $0x10] sm:$0xff]
  %v406 = vld [vmem:[%s13 + $0x18] sm:$0xff]
  %v407 = vld [vmem:[%s15] sm:$0x1]
  %v409 = vlaneseq
  %v410 = vshrl.u32 %v409, 7
  %v411 = vsub.s32 0, %v410
  %v412 = vrot.slane %v407, %v411
  %vm414 = vcmask 261120
  %v416 = vsel %vm414, %v325, 0
  %v419 = vsel %vm414, %v330, 0
  %v422 = vsel %vm414, %v335, 0
  %v425 = vsel %vm414, %v340, 0
  %v428 = vsel %vm414, %v345, 0
  %v431 = vsel %vm414, %v350, 0
  %v434 = vsel %vm414, %v355, 0
  %v437 = vsel %vm414, %v360, 0
  %v440 = vsel %vm414, %v365, 0
  %v443 = vsel %vm414, %v370, 0
  %v446 = vsel %vm414, %v375, 0
  %v449 = vsel %vm414, %v380, 0
  %v452 = vsel %vm414, %v385, 0
  %v455 = vsel %vm414, %v390, 0
  %v458 = vsel %vm414, %v395, 0
  %v461 = vsel %vm414, %v400, 0
  %463 = vmatprep.subr.mxu0 0.0
  %464 = vmatpush1.msra.mxu0 %v403
  %465 = vmatprep.subr.mxu0 0.0
  %466 = vmatpush1.msra.mxu0 %v404
  %467 = vmatprep.subr.mxu0 0.0
  %468 = vmatpush1.msra.mxu0 %v405
  %469 = vmatprep.subr.mxu0 0.0
  %470 = vmatpush1.msra.mxu0 %v406
  %471 = vmatprep.subr.mxu0 0.0
  %472 = vmatpush1.msra.mxu0 0.0
  %473 = vmatprep.subr.mxu0 0.0
  %474 = vmatpush1.msra.mxu0 0.0
  %475 = vmatprep.subr.mxu0 0.0
  %476 = vmatpush1.msra.mxu0 0.0
  %477 = vmatprep.subr.mxu0 0.0
  %478 = vmatpush1.msra.mxu0 0.0
  %479 = vmatprep.subr.mxu0 0.0
  %480 = vmatpush1.msra.mxu0 0.0
  %481 = vmatprep.subr.mxu0 0.0
  %482 = vmatpush1.msra.mxu0 0.0
  %483 = vmatprep.subr.mxu0 0.0
  %484 = vmatpush1.msra.mxu0 0.0
  %485 = vmatprep.subr.mxu0 0.0
  %486 = vmatpush1.msra.mxu0 0.0
  %487 = vmatprep.subr.mxu0 0.0
  %488 = vmatpush1.msra.mxu0 0.0
  %489 = vmatprep.subr.mxu0 0.0
  %490 = vmatpush1.msra.mxu0 0.0
  %491 = vmatprep.subr.mxu0 0.0
  %492 = vmatpush1.msra.mxu0 0.0
  %493 = vmatprep.subr.mxu0 0.0
  %494 = vmatpush1.msra.mxu0 0.0
  %495 = vmatprep.subr.mxu0 0.0
  %496 = vmatpush1.msra.mxu0 0.0
  %497 = vmatprep.subr.mxu0 0.0
  %498 = vmatpush1.msra.mxu0 0.0
  %499 = vmatprep.subr.mxu0 0.0
  %500 = vmatpush1.msra.mxu0 0.0
  %501 = vmatprep.subr.mxu0 0.0
  %502 = vmatpush1.msra.mxu0 0.0
  %503 = vmatprep.subr.mxu0 0.0
  %504 = vmatpush1.msra.mxu0 0.0
  %505 = vmatprep.subr.mxu0 0.0
  %506 = vmatpush1.msra.mxu0 0.0
  %507 = vmatprep.subr.mxu0 0.0
  %508 = vmatpush1.msra.mxu0 0.0
  %509 = vmatprep.subr.mxu0 0.0
  %510 = vmatpush1.msra.mxu0 0.0
  %511 = vmatprep.subr.mxu0 0.0
  %512 = vmatpush1.msra.mxu0 0.0
  %513 = vmatprep.subr.mxu0 0.0
  %514 = vmatpush1.msra.mxu0 0.0
  %515 = vmatprep.subr.mxu0 0.0
  %516 = vmatpush1.msra.mxu0 0.0
  %517 = vmatprep.subr.mxu0 0.0
  %518 = vmatpush1.msra.mxu0 0.0
  %519 = vmatprep.subr.mxu0 0.0
  %520 = vmatpush1.msra.mxu0 0.0
  %521 = vmatprep.subr.mxu0 0.0
  %522 = vmatpush1.msra.mxu0 0.0
  %523 = vmatprep.subr.mxu0 0.0
  %524 = vmatpush1.msra.mxu0 0.0
  %525 = vmatprep.subr.mxu0 0.0
  %526 = vmatpush1.msra.mxu0 0.0
  %527 = vmatprep.mubr.f32.mxu0 0.0
  %528 = vmatmul.mubr.f32.gmra.mrb[0].mxu0 %v416
  %v529 = vpop.f32.mrb[0].mxu0
  %v530 = vadd.f32 %v412, %v529
  %v531 = vpop.f32.mrb[0].mxu0
  %532 = vmatprep.mubr.f32.mxu0 0.0
  %533 = vmatmul.mubr.f32.gmra.mrb[0].mxu0 %v419
  %v534 = vpop.f32.mrb[0].mxu0
  %v535 = vadd.f32 %v412, %v534
  %v536 = vpop.f32.mrb[0].mxu0
  %537 = vmatprep.mubr.f32.mxu0 0.0
  %538 = vmatmul.mubr.f32.gmra.mrb[0].mxu0 %v422
  %v539 = vpop.f32.mrb[0].mxu0
  %v540 = vadd.f32 %v412, %v539
  %v541 = vpop.f32.mrb[0].mxu0
  %542 = vmatprep.mubr.f32.mxu0 0.0
  %543 = vmatmul.mubr.f32.gmra.mrb[0].mxu0 %v425
  %v544 = vpop.f32.mrb[0].mxu0
  %v545 = vadd.f32 %v412, %v544
  %v546 = vpop.f32.mrb[0].mxu0
  %547 = vmatprep.mubr.f32.mxu0 0.0
  %548 = vmatmul.mubr.f32.gmra.mrb[0].mxu0 %v428
  %v549 = vpop.f32.mrb[0].mxu0
  %v550 = vadd.f32 %v412, %v549
  %v551 = vpop.f32.mrb[0].mxu0
  %552 = vmatprep.mubr.f32.mxu0 0.0
  %553 = vmatmul.mubr.f32.gmra.mrb[0].mxu0 %v431
  %v554 = vpop.f32.mrb[0].mxu0
  %v555 = vadd.f32 %v412, %v554
  %v556 = vpop.f32.mrb[0].mxu0
  %557 = vmatprep.mubr.f32.mxu0 0.0
  %558 = vmatmul.mubr.f32.gmra.mrb[0].mxu0 %v434
  %v559 = vpop.f32.mrb[0].mxu0
  %v560 = vadd.f32 %v412, %v559
  %v561 = vpop.f32.mrb[0].mxu0
  %562 = vmatprep.mubr.f32.mxu0 0.0
  %563 = vmatmul.mubr.f32.gmra.mrb[0].mxu0 %v437
  %v564 = vpop.f32.mrb[0].mxu0
  %v565 = vadd.f32 %v412, %v564
  %v566 = vpop.f32.mrb[0].mxu0
  %567 = vmatprep.mubr.f32.mxu0 0.0
  %568 = vmatmul.mubr.f32.gmra.mrb[0].mxu0 %v440
  %v569 = vpop.f32.mrb[0].mxu0
  %v570 = vadd.f32 %v412, %v569
  %v571 = vpop.f32.mrb[0].mxu0
  %572 = vmatprep.mubr.f32.mxu0 0.0
  %573 = vmatmul.mubr.f32.gmra.mrb[0].mxu0 %v443
  %v574 = vpop.f32.mrb[0].mxu0
  %v575 = vadd.f32 %v412, %v574
  %v576 = vpop.f32.mrb[0].mxu0
  %577 = vmatprep.mubr.f32.mxu0 0.0
  %578 = vmatmul.mubr.f32.gmra.mrb[0].mxu0 %v446
  %v579 = vpop.f32.mrb[0].mxu0
  %v580 = vadd.f32 %v412, %v579
  %v581 = vpop.f32.mrb[0].mxu0
  %582 = vmatprep.mubr.f32.mxu0 0.0
  %583 = vmatmul.mubr.f32.gmra.mrb[0].mxu0 %v449
  %v584 = vpop.f32.mrb[0].mxu0
  %v585 = vadd.f32 %v412, %v584
  %v586 = vpop.f32.mrb[0].mxu0
  %587 = vmatprep.mubr.f32.mxu0 0.0
  %588 = vmatmul.mubr.f32.gmra.mrb[0].mxu0 %v452
  %v589 = vpop.f32.mrb[0].mxu0
  %v590 = vadd.f32 %v412, %v589
  %v591 = vpop.f32.mrb[0].mxu0
  %592 = vmatprep.mubr.f32.mxu0 0.0
  %593 = vmatmul.mubr.f32.gmra.mrb[0].mxu0 %v455
  %v594 = vpop.f32.mrb[0].mxu0
  %v595 = vadd.f32 %v412, %v594
  %v596 = vpop.f32.mrb[0].mxu0
  %597 = vmatprep.mubr.f32.mxu0 0.0
  %598 = vmatmul.mubr.f32.gmra.mrb[0].mxu0 %v458
  %v599 = vpop.f32.mrb[0].mxu0
  %v600 = vadd.f32 %v412, %v599
  %v601 = vpop.f32.mrb[0].mxu0
  %602 = vmatprep.mubr.f32.mxu0 0.0
  %603 = vmatmul.mubr.f32.gmra.mrb[0].mxu0 %v461
  %v604 = vpop.f32.mrb[0].mxu0
  %v605 = vadd.f32 %v412, %v604
  %v606 = vpop.f32.mrb[0].mxu0
  %607 = vdwg.mxu0
  %616 = vrot.lane.b32.xlu0 %v530, 96
  %v617 = vpop.permute.xlu0 %616
  %618 = vrot.lane.b32.xlu0 %v535, 96
  %v619 = vpop.permute.xlu0 %618
  %620 = vrot.lane.b32.xlu0 %v540, 96
  %v621 = vpop.permute.xlu0 %620
  %622 = vrot.lane.b32.xlu0 %v545, 96
  %v623 = vpop.permute.xlu0 %622
  %624 = vrot.lane.b32.xlu0 %v550, 96
  %v625 = vpop.permute.xlu0 %624
  %626 = vrot.lane.b32.xlu0 %v555, 96
  %v627 = vpop.permute.xlu0 %626
  %628 = vrot.lane.b32.xlu0 %v560, 96
  %v629 = vpop.permute.xlu0 %628
  %630 = vrot.lane.b32.xlu0 %v565, 96
  %v631 = vpop.permute.xlu0 %630
  %v632 = vsel %vm414, %v530, 0
  %v634 = vsel %vm414, %v535, 0
  %v636 = vsel %vm414, %v540, 0
  %v638 = vsel %vm414, %v545, 0
  %v640 = vsel %vm414, %v550, 0
  %v642 = vsel %vm414, %v555, 0
  %v644 = vsel %vm414, %v560, 0
  %v646 = vsel %vm414, %v565, 0
  %v648 = vsel %vm414, %v617, 0
  %v650 = vsel %vm414, %v619, 0
  %v652 = vsel %vm414, %v621, 0
  %v654 = vsel %vm414, %v623, 0
  %v656 = vsel %vm414, %v625, 0
  %v658 = vsel %vm414, %v627, 0
  %v660 = vsel %vm414, %v629, 0
  %v662 = vsel %vm414, %v631, 0
  %664 = vmatprep.subr.mxu0 0.0
  %665 = vmatpush1.xpose.msra.mxu0 %v648
  %666 = vmatprep.subr.mxu0 0.0
  %667 = vmatpush1.xpose.msra.mxu0 %v650
  %668 = vmatprep.subr.mxu0 0.0
  %669 = vmatpush1.xpose.msra.mxu0 %v652
  %670 = vmatprep.subr.mxu0 0.0
  %671 = vmatpush1.xpose.msra.mxu0 %v654
  %672 = vmatprep.subr.mxu0 0.0
  %673 = vmatpush1.xpose.msra.mxu0 %v656
  %674 = vmatprep.subr.mxu0 0.0
  %675 = vmatpush1.xpose.msra.mxu0 %v658
  %676 = vmatprep.subr.mxu0 0.0
  %677 = vmatpush1.xpose.msra.mxu0 %v660
  %678 = vmatprep.subr.mxu0 0.0
  %679 = vmatpush1.xpose.msra.mxu0 %v662
  %680 = vmatprep.subr.mxu0 0.0
  %681 = vmatpush1.xpose.msra.mxu0 0.0
  %682 = vmatprep.subr.mxu0 0.0
  %683 = vmatpush1.xpose.msra.mxu0 0.0
  %684 = vmatprep.subr.mxu0 0.0
  %685 = vmatpush1.xpose.msra.mxu0 0.0
  %686 = vmatprep.subr.mxu0 0.0
  %687 = vmatpush1.xpose.msra.mxu0 0.0
  %688 = vmatprep.subr.mxu0 0.0
  %689 = vmatpush1.xpose.msra.mxu0 0.0
  %690 = vmatprep.subr.mxu0 0.0
  %691 = vmatpush1.xpose.msra.mxu0 0.0
  %692 = vmatprep.subr.mxu0 0.0
  %693 = vmatpush1.xpose.msra.mxu0 0.0
  %694 = vmatprep.subr.mxu0 0.0
  %695 = vmatpush1.xpose.msra.mxu0 0.0
  %696 = vmatprep.subr.mxu0 0.0
  %697 = vmatpush1.xpose.msra.mxu0 0.0
  %698 = vmatprep.subr.mxu0 0.0
  %699 = vmatpush1.xpose.msra.mxu0 0.0
  %700 = vmatprep.subr.mxu0 0.0
  %701 = vmatpush1.xpose.msra.mxu0 0.0
  %702 = vmatprep.subr.mxu0 0.0
  %703 = vmatpush1.xpose.msra.mxu0 0.0
  %704 = vmatprep.subr.mxu0 0.0
  %705 = vmatpush1.xpose.msra.mxu0 0.0
  %706 = vmatprep.subr.mxu0 0.0
  %707 = vmatpush1.xpose.msra.mxu0 0.0
  %708 = vmatprep.subr.mxu0 0.0
  %709 = vmatpush1.xpose.msra.mxu0 0.0
  %710 = vmatprep.subr.mxu0 0.0
  %711 = vmatpush1.xpose.msra.mxu0 0.0
  %712 = vmatprep.subr.mxu0 0.0
  %713 = vmatpush1.xpose.msra.mxu0 0.0
  %714 = vmatprep.subr.mxu0 0.0
  %715 = vmatpush1.xpose.msra.mxu0 0.0
  %716 = vmatprep.subr.mxu0 0.0
  %717 = vmatpush1.xpose.msra.mxu0 0.0
  %718 = vmatprep.subr.mxu0 0.0
  %719 = vmatpush1.xpose.msra.mxu0 0.0
  %720 = vmatprep.subr.mxu0 0.0
  %721 = vmatpush1.xpose.msra.mxu0 0.0
  %722 = vmatprep.subr.mxu0 0.0
  %723 = vmatpush1.xpose.msra.mxu0 0.0
  %724 = vmatprep.subr.mxu0 0.0
  %725 = vmatpush1.xpose.msra.mxu0 0.0
  %726 = vmatprep.subr.mxu0 0.0
  %727 = vmatpush1.xpose.msra.mxu0 0.0
  %728 = vmatprep.mubr.f32.mxu0 0.0
  %729 = vmatmul.mubr.f32.gmra.mrb[0].mxu0 %v632
  %v730 = vpop.f32.mrb[0].mxu0
  %v731 = vadd.f32 0.0, %v730
  %v732 = vpop.f32.mrb[0].mxu0
  %733 = vmatprep.mubr.f32.mxu0 0.0
  %734 = vmatmul.mubr.f32.gmra.mrb[0].mxu0 %v634
  %v735 = vpop.f32.mrb[0].mxu0
  %v736 = vadd.f32 0.0, %v735
  %v737 = vpop.f32.mrb[0].mxu0
  %738 = vmatprep.mubr.f32.mxu0 0.0
  %739 = vmatmul.mubr.f32.gmra.mrb[0].mxu0 %v636
  %v740 = vpop.f32.mrb[0].mxu0
  %v741 = vadd.f32 0.0, %v740
  %v742 = vpop.f32.mrb[0].mxu0
  %743 = vmatprep.mubr.f32.mxu0 0.0
  %744 = vmatmul.mubr.f32.gmra.mrb[0].mxu0 %v638
  %v745 = vpop.f32.mrb[0].mxu0
  %v746 = vadd.f32 0.0, %v745
  %v747 = vpop.f32.mrb[0].mxu0
  %748 = vmatprep.mubr.f32.mxu0 0.0
  %749 = vmatmul.mubr.f32.gmra.mrb[0].mxu0 %v640
  %v750 = vpop.f32.mrb[0].mxu0
  %v751 = vadd.f32 0.0, %v750
  %v752 = vpop.f32.mrb[0].mxu0
  %753 = vmatprep.mubr.f32.mxu0 0.0
  %754 = vmatmul.mubr.f32.gmra.mrb[0].mxu0 %v642
  %v755 = vpop.f32.mrb[0].mxu0
  %v756 = vadd.f32 0.0, %v755
  %v757 = vpop.f32.mrb[0].mxu0
  %758 = vmatprep.mubr.f32.mxu0 0.0
  %759 = vmatmul.mubr.f32.gmra.mrb[0].mxu0 %v644
  %v760 = vpop.f32.mrb[0].mxu0
  %v761 = vadd.f32 0.0, %v760
  %v762 = vpop.f32.mrb[0].mxu0
  %763 = vmatprep.mubr.f32.mxu0 0.0
  %764 = vmatmul.mubr.f32.gmra.mrb[0].mxu0 %v646
  %v765 = vpop.f32.mrb[0].mxu0
  %v766 = vadd.f32 0.0, %v765
  %v767 = vpop.f32.mrb[0].mxu0
  %768 = vdwg.mxu0
  %v769 = vmul.f32 %v731, 0.17677669
  %v770 = vmul.f32 %v736, 0.17677669
  %v771 = vmul.f32 %v741, 0.17677669
  %v772 = vmul.f32 %v746, 0.17677669
  %v773 = vmul.f32 %v751, 0.17677669
  %v774 = vmul.f32 %v756, 0.17677669
  %v775 = vmul.f32 %v761, 0.17677669
  %v776 = vmul.f32 %v766, 0.17677669
  %v777 = vsel %vm209, %v769, -inf
  %778 = vmax.xlane.f32.xlu0 %v777
  %v779 = vpop.xlane.xlu0 %778
  %v780 = vsel %vm209, %v770, -inf
  %781 = vmax.xlane.f32.xlu0 %v780
  %v782 = vpop.xlane.xlu0 %781
  %v783 = vsel %vm209, %v771, -inf
  %784 = vmax.xlane.f32.xlu0 %v783
  %v785 = vpop.xlane.xlu0 %784
  %v786 = vsel %vm209, %v772, -inf
  %787 = vmax.xlane.f32.xlu0 %v786
  %v788 = vpop.xlane.xlu0 %787
  %v789 = vsel %vm209, %v773, -inf
  %790 = vmax.xlane.f32.xlu0 %v789
  %v791 = vpop.xlane.xlu0 %790
  %v792 = vsel %vm209, %v774, -inf
  %793 = vmax.xlane.f32.xlu0 %v792
  %v794 = vpop.xlane.xlu0 %793
  %v795 = vsel %vm209, %v775, -inf
  %796 = vmax.xlane.f32.xlu0 %v795
  %v797 = vpop.xlane.xlu0 %796
  %v798 = vsel %vm209, %v776, -inf
  %799 = vmax.xlane.f32.xlu0 %v798
  %v800 = vpop.xlane.xlu0 %799
  %v801 = vsub.f32 %v769, %v779
  %v802 = vsub.f32 %v770, %v782
  %v803 = vsub.f32 %v771, %v785
  %v804 = vsub.f32 %v772, %v788
  %v805 = vsub.f32 %v773, %v791
  %v806 = vsub.f32 %v774, %v794
  %v807 = vsub.f32 %v775, %v797
  %v808 = vsub.f32 %v776, %v800
  %v809 = vmul.f32 %v801, 1.442695
  %v810 = vpow.pop %v809
  %v811 = vmul.f32 %v802, 1.442695
  %v812 = vpow.pop %v811
  %v813 = vmul.f32 %v803, 1.442695
  %v814 = vpow.pop %v813
  %v815 = vmul.f32 %v804, 1.442695
  %v816 = vpow.pop %v815
  %v817 = vmul.f32 %v805, 1.442695
  %v818 = vpow.pop %v817
  %v819 = vmul.f32 %v806, 1.442695
  %v820 = vpow.pop %v819
  %v821 = vmul.f32 %v807, 1.442695
  %v822 = vpow.pop %v821
  %v823 = vmul.f32 %v808, 1.442695
  %v824 = vpow.pop %v823
  %v825 = vsel %vm209, %v810, 0.0
  %826 = vadd.xlane.f32.xlu0 %v825
  %v827 = vpop.xlane.xlu0 %826
  %v828 = vsel %vm209, %v812, 0.0
  %829 = vadd.xlane.f32.xlu0 %v828
  %v830 = vpop.xlane.xlu0 %829
  %v831 = vsel %vm209, %v814, 0.0
  %832 = vadd.xlane.f32.xlu0 %v831
  %v833 = vpop.xlane.xlu0 %832
  %v834 = vsel %vm209, %v816, 0.0
  %835 = vadd.xlane.f32.xlu0 %v834
  %v836 = vpop.xlane.xlu0 %835
  %v837 = vsel %vm209, %v818, 0.0
  %838 = vadd.xlane.f32.xlu0 %v837
  %v839 = vpop.xlane.xlu0 %838
  %v840 = vsel %vm209, %v820, 0.0
  %841 = vadd.xlane.f32.xlu0 %v840
  %v842 = vpop.xlane.xlu0 %841
  %v843 = vsel %vm209, %v822, 0.0
  %844 = vadd.xlane.f32.xlu0 %v843
  %v845 = vpop.xlane.xlu0 %844
  %v846 = vsel %vm209, %v824, 0.0
  %847 = vadd.xlane.f32.xlu0 %v846
  %v848 = vpop.xlane.xlu0 %847
  %v849 = vrcp.pop %v827
  %v850 = vrcp.pop %v830
  %v851 = vrcp.pop %v833
  %v852 = vrcp.pop %v836
  %v853 = vrcp.pop %v839
  %v854 = vrcp.pop %v842
  %v855 = vrcp.pop %v845
  %v856 = vrcp.pop %v848
  %v857 = vmul.f32 %v810, %v849
  %v858 = vmul.f32 %v812, %v850
  %v859 = vmul.f32 %v814, %v851
  %v860 = vmul.f32 %v816, %v852
  %v861 = vmul.f32 %v818, %v853
  %v862 = vmul.f32 %v820, %v854
  %v863 = vmul.f32 %v822, %v855
  %v864 = vmul.f32 %v824, %v856
  %865 = vrot.lane.b32.xlu0 %v530, 64
  %v866 = vpop.permute.xlu0 %865
  %867 = vrot.lane.b32.xlu0 %v535, 64
  %v868 = vpop.permute.xlu0 %867
  %869 = vrot.lane.b32.xlu0 %v540, 64
  %v870 = vpop.permute.xlu0 %869
  %871 = vrot.lane.b32.xlu0 %v545, 64
  %v872 = vpop.permute.xlu0 %871
  %873 = vrot.lane.b32.xlu0 %v550, 64
  %v874 = vpop.permute.xlu0 %873
  %875 = vrot.lane.b32.xlu0 %v555, 64
  %v876 = vpop.permute.xlu0 %875
  %877 = vrot.lane.b32.xlu0 %v560, 64
  %v878 = vpop.permute.xlu0 %877
  %879 = vrot.lane.b32.xlu0 %v565, 64
  %v880 = vpop.permute.xlu0 %879
  %v890 = vsel %vm209, %v857, 0
  %v893 = vsel %vm209, %v858, 0
  %v896 = vsel %vm209, %v859, 0
  %v899 = vsel %vm209, %v860, 0
  %v902 = vsel %vm209, %v861, 0
  %v905 = vsel %vm209, %v862, 0
  %v908 = vsel %vm209, %v863, 0
  %v911 = vsel %vm209, %v864, 0
  %913 = vmatprep.subr.mxu0 0.0
  %914 = vmatpush1.msra.mxu0 %v866
  %915 = vmatprep.subr.mxu0 0.0
  %916 = vmatpush1.msra.mxu0 %v868
  %917 = vmatprep.subr.mxu0 0.0
  %918 = vmatpush1.msra.mxu0 %v870
  %919 = vmatprep.subr.mxu0 0.0
  %920 = vmatpush1.msra.mxu0 %v872
  %921 = vmatprep.subr.mxu0 0.0
  %922 = vmatpush1.msra.mxu0 %v874
  %923 = vmatprep.subr.mxu0 0.0
  %924 = vmatpush1.msra.mxu0 %v876
  %925 = vmatprep.subr.mxu0 0.0
  %926 = vmatpush1.msra.mxu0 %v878
  %927 = vmatprep.subr.mxu0 0.0
  %928 = vmatpush1.msra.mxu0 %v880
  %929 = vmatprep.subr.mxu0 0.0
  %930 = vmatpush1.msra.mxu0 0.0
  %931 = vmatprep.subr.mxu0 0.0
  %932 = vmatpush1.msra.mxu0 0.0
  %933 = vmatprep.subr.mxu0 0.0
  %934 = vmatpush1.msra.mxu0 0.0
  %935 = vmatprep.subr.mxu0 0.0
  %936 = vmatpush1.msra.mxu0 0.0
  %937 = vmatprep.subr.mxu0 0.0
  %938 = vmatpush1.msra.mxu0 0.0
  %939 = vmatprep.subr.mxu0 0.0
  %940 = vmatpush1.msra.mxu0 0.0
  %941 = vmatprep.subr.mxu0 0.0
  %942 = vmatpush1.msra.mxu0 0.0
  %943 = vmatprep.subr.mxu0 0.0
  %944 = vmatpush1.msra.mxu0 0.0
  %945 = vmatprep.subr.mxu0 0.0
  %946 = vmatpush1.msra.mxu0 0.0
  %947 = vmatprep.subr.mxu0 0.0
  %948 = vmatpush1.msra.mxu0 0.0
  %949 = vmatprep.subr.mxu0 0.0
  %950 = vmatpush1.msra.mxu0 0.0
  %951 = vmatprep.subr.mxu0 0.0
  %952 = vmatpush1.msra.mxu0 0.0
  %953 = vmatprep.subr.mxu0 0.0
  %954 = vmatpush1.msra.mxu0 0.0
  %955 = vmatprep.subr.mxu0 0.0
  %956 = vmatpush1.msra.mxu0 0.0
  %957 = vmatprep.subr.mxu0 0.0
  %958 = vmatpush1.msra.mxu0 0.0
  %959 = vmatprep.subr.mxu0 0.0
  %960 = vmatpush1.msra.mxu0 0.0
  %961 = vmatprep.subr.mxu0 0.0
  %962 = vmatpush1.msra.mxu0 0.0
  %963 = vmatprep.subr.mxu0 0.0
  %964 = vmatpush1.msra.mxu0 0.0
  %965 = vmatprep.subr.mxu0 0.0
  %966 = vmatpush1.msra.mxu0 0.0
  %967 = vmatprep.subr.mxu0 0.0
  %968 = vmatpush1.msra.mxu0 0.0
  %969 = vmatprep.subr.mxu0 0.0
  %970 = vmatpush1.msra.mxu0 0.0
  %971 = vmatprep.subr.mxu0 0.0
  %972 = vmatpush1.msra.mxu0 0.0
  %973 = vmatprep.subr.mxu0 0.0
  %974 = vmatpush1.msra.mxu0 0.0
  %975 = vmatprep.subr.mxu0 0.0
  %976 = vmatpush1.msra.mxu0 0.0
  %977 = vmatprep.mubr.f32.mxu0 0.0
  %978 = vmatmul.mubr.f32.gmra.mrb[0].mxu0 %v890
  %v979 = vpop.f32.mrb[0].mxu0
  %v980 = vadd.f32 0.0, %v979
  %v981 = vpop.f32.mrb[0].mxu0
  %982 = vmatprep.mubr.f32.mxu0 0.0
  %983 = vmatmul.mubr.f32.gmra.mrb[0].mxu0 %v893
  %v984 = vpop.f32.mrb[0].mxu0
  %v985 = vadd.f32 0.0, %v984
  %v986 = vpop.f32.mrb[0].mxu0
  %987 = vmatprep.mubr.f32.mxu0 0.0
  %988 = vmatmul.mubr.f32.gmra.mrb[0].mxu0 %v896
  %v989 = vpop.f32.mrb[0].mxu0
  %v990 = vadd.f32 0.0, %v989
  %v991 = vpop.f32.mrb[0].mxu0
  %992 = vmatprep.mubr.f32.mxu0 0.0
  %993 = vmatmul.mubr.f32.gmra.mrb[0].mxu0 %v899
  %v994 = vpop.f32.mrb[0].mxu0
  %v995 = vadd.f32 0.0, %v994
  %v996 = vpop.f32.mrb[0].mxu0
  %997 = vmatprep.mubr.f32.mxu0 0.0
  %998 = vmatmul.mubr.f32.gmra.mrb[0].mxu0 %v902
  %v999 = vpop.f32.mrb[0].mxu0
  %v1000 = vadd.f32 0.0, %v999
  %v1001 = vpop.f32.mrb[0].mxu0
  %1002 = vmatprep.mubr.f32.mxu0 0.0
  %1003 = vmatmul.mubr.f32.gmra.mrb[0].mxu0 %v905
  %v1004 = vpop.f32.mrb[0].mxu0
  %v1005 = vadd.f32 0.0, %v1004
  %v1006 = vpop.f32.mrb[0].mxu0
  %1007 = vmatprep.mubr.f32.mxu0 0.0
  %1008 = vmatmul.mubr.f32.gmra.mrb[0].mxu0 %v908
  %v1009 = vpop.f32.mrb[0].mxu0
  %v1010 = vadd.f32 0.0, %v1009
  %v1011 = vpop.f32.mrb[0].mxu0
  %1012 = vmatprep.mubr.f32.mxu0 0.0
  %1013 = vmatmul.mubr.f32.gmra.mrb[0].mxu0 %v911
  %v1014 = vpop.f32.mrb[0].mxu0
  %v1015 = vadd.f32 0.0, %v1014
  %v1016 = vpop.f32.mrb[0].mxu0
  %1017 = vdwg.mxu0
  %1026 = vrot.lane.b32.xlu0 %v570, 96
  %v1027 = vpop.permute.xlu0 %1026
  %1028 = vrot.lane.b32.xlu0 %v575, 96
  %v1029 = vpop.permute.xlu0 %1028
  %1030 = vrot.lane.b32.xlu0 %v580, 96
  %v1031 = vpop.permute.xlu0 %1030
  %1032 = vrot.lane.b32.xlu0 %v585, 96
  %v1033 = vpop.permute.xlu0 %1032
  %1034 = vrot.lane.b32.xlu0 %v590, 96
  %v1035 = vpop.permute.xlu0 %1034
  %1036 = vrot.lane.b32.xlu0 %v595, 96
  %v1037 = vpop.permute.xlu0 %1036
  %1038 = vrot.lane.b32.xlu0 %v600, 96
  %v1039 = vpop.permute.xlu0 %1038
  %1040 = vrot.lane.b32.xlu0 %v605, 96
  %v1041 = vpop.permute.xlu0 %1040
  %v1042 = vsel %vm414, %v570, 0
  %v1044 = vsel %vm414, %v575, 0
  %v1046 = vsel %vm414, %v580, 0
  %v1048 = vsel %vm414, %v585, 0
  %v1050 = vsel %vm414, %v590, 0
  %v1052 = vsel %vm414, %v595, 0
  %v1054 = vsel %vm414, %v600, 0
  %v1056 = vsel %vm414, %v605, 0
  %v1058 = vsel %vm414, %v1027, 0
  %v1060 = vsel %vm414, %v1029, 0
  %v1062 = vsel %vm414, %v1031, 0
  %v1064 = vsel %vm414, %v1033, 0
  %v1066 = vsel %vm414, %v1035, 0
  %v1068 = vsel %vm414, %v1037, 0
  %v1070 = vsel %vm414, %v1039, 0
  %v1072 = vsel %vm414, %v1041, 0
  %1074 = vmatprep.subr.mxu0 0.0
  %1075 = vmatpush1.xpose.msra.mxu0 %v1058
  %1076 = vmatprep.subr.mxu0 0.0
  %1077 = vmatpush1.xpose.msra.mxu0 %v1060
  %1078 = vmatprep.subr.mxu0 0.0
  %1079 = vmatpush1.xpose.msra.mxu0 %v1062
  %1080 = vmatprep.subr.mxu0 0.0
  %1081 = vmatpush1.xpose.msra.mxu0 %v1064
  %1082 = vmatprep.subr.mxu0 0.0
  %1083 = vmatpush1.xpose.msra.mxu0 %v1066
  %1084 = vmatprep.subr.mxu0 0.0
  %1085 = vmatpush1.xpose.msra.mxu0 %v1068
  %1086 = vmatprep.subr.mxu0 0.0
  %1087 = vmatpush1.xpose.msra.mxu0 %v1070
  %1088 = vmatprep.subr.mxu0 0.0
  %1089 = vmatpush1.xpose.msra.mxu0 %v1072
  %1090 = vmatprep.subr.mxu0 0.0
  %1091 = vmatpush1.xpose.msra.mxu0 0.0
  %1092 = vmatprep.subr.mxu0 0.0
  %1093 = vmatpush1.xpose.msra.mxu0 0.0
  %1094 = vmatprep.subr.mxu0 0.0
  %1095 = vmatpush1.xpose.msra.mxu0 0.0
  %1096 = vmatprep.subr.mxu0 0.0
  %1097 = vmatpush1.xpose.msra.mxu0 0.0
  %1098 = vmatprep.subr.mxu0 0.0
  %1099 = vmatpush1.xpose.msra.mxu0 0.0
  %1100 = vmatprep.subr.mxu0 0.0
  %1101 = vmatpush1.xpose.msra.mxu0 0.0
  %1102 = vmatprep.subr.mxu0 0.0
  %1103 = vmatpush1.xpose.msra.mxu0 0.0
  %1104 = vmatprep.subr.mxu0 0.0
  %1105 = vmatpush1.xpose.msra.mxu0 0.0
  %1106 = vmatprep.subr.mxu0 0.0
  %1107 = vmatpush1.xpose.msra.mxu0 0.0
  %1108 = vmatprep.subr.mxu0 0.0
  %1109 = vmatpush1.xpose.msra.mxu0 0.0
  %1110 = vmatprep.subr.mxu0 0.0
  %1111 = vmatpush1.xpose.msra.mxu0 0.0
  %1112 = vmatprep.subr.mxu0 0.0
  %1113 = vmatpush1.xpose.msra.mxu0 0.0
  %1114 = vmatprep.subr.mxu0 0.0
  %1115 = vmatpush1.xpose.msra.mxu0 0.0
  %1116 = vmatprep.subr.mxu0 0.0
  %1117 = vmatpush1.xpose.msra.mxu0 0.0
  %1118 = vmatprep.subr.mxu0 0.0
  %1119 = vmatpush1.xpose.msra.mxu0 0.0
  %1120 = vmatprep.subr.mxu0 0.0
  %1121 = vmatpush1.xpose.msra.mxu0 0.0
  %1122 = vmatprep.subr.mxu0 0.0
  %1123 = vmatpush1.xpose.msra.mxu0 0.0
  %1124 = vmatprep.subr.mxu0 0.0
  %1125 = vmatpush1.xpose.msra.mxu0 0.0
  %1126 = vmatprep.subr.mxu0 0.0
  %1127 = vmatpush1.xpose.msra.mxu0 0.0
  %1128 = vmatprep.subr.mxu0 0.0
  %1129 = vmatpush1.xpose.msra.mxu0 0.0
  %1130 = vmatprep.subr.mxu0 0.0
  %1131 = vmatpush1.xpose.msra.mxu0 0.0
  %1132 = vmatprep.subr.mxu0 0.0
  %1133 = vmatpush1.xpose.msra.mxu0 0.0
  %1134 = vmatprep.subr.mxu0 0.0
  %1135 = vmatpush1.xpose.msra.mxu0 0.0
  %1136 = vmatprep.subr.mxu0 0.0
  %1137 = vmatpush1.xpose.msra.mxu0 0.0
  %1138 = vmatprep.mubr.f32.mxu0 0.0
  %1139 = vmatmul.mubr.f32.gmra.mrb[0].mxu0 %v1042
  %v1140 = vpop.f32.mrb[0].mxu0
  %v1141 = vadd.f32 0.0, %v1140
  %v1142 = vpop.f32.mrb[0].mxu0
  %1143 = vmatprep.mubr.f32.mxu0 0.0
  %1144 = vmatmul.mubr.f32.gmra.mrb[0].mxu0 %v1044
  %v1145 = vpop.f32.mrb[0].mxu0
  %v1146 = vadd.f32 0.0, %v1145
  %v1147 = vpop.f32.mrb[0].mxu0
  %1148 = vmatprep.mubr.f32.mxu0 0.0
  %1149 = vmatmul.mubr.f32.gmra.mrb[0].mxu0 %v1046
  %v1150 = vpop.f32.mrb[0].mxu0
  %v1151 = vadd.f32 0.0, %v1150
  %v1152 = vpop.f32.mrb[0].mxu0
  %1153 = vmatprep.mubr.f32.mxu0 0.0
  %1154 = vmatmul.mubr.f32.gmra.mrb[0].mxu0 %v1048
  %v1155 = vpop.f32.mrb[0].mxu0
  %v1156 = vadd.f32 0.0, %v1155
  %v1157 = vpop.f32.mrb[0].mxu0
  %1158 = vmatprep.mubr.f32.mxu0 0.0
  %1159 = vmatmul.mubr.f32.gmra.mrb[0].mxu0 %v1050
  %v1160 = vpop.f32.mrb[0].mxu0
  %v1161 = vadd.f32 0.0, %v1160
  %v1162 = vpop.f32.mrb[0].mxu0
  %1163 = vmatprep.mubr.f32.mxu0 0.0
  %1164 = vmatmul.mubr.f32.gmra.mrb[0].mxu0 %v1052
  %v1165 = vpop.f32.mrb[0].mxu0
  %v1166 = vadd.f32 0.0, %v1165
  %v1167 = vpop.f32.mrb[0].mxu0
  %1168 = vmatprep.mubr.f32.mxu0 0.0
  %1169 = vmatmul.mubr.f32.gmra.mrb[0].mxu0 %v1054
  %v1170 = vpop.f32.mrb[0].mxu0
  %v1171 = vadd.f32 0.0, %v1170
  %v1172 = vpop.f32.mrb[0].mxu0
  %1173 = vmatprep.mubr.f32.mxu0 0.0
  %1174 = vmatmul.mubr.f32.gmra.mrb[0].mxu0 %v1056
  %v1175 = vpop.f32.mrb[0].mxu0
  %v1176 = vadd.f32 0.0, %v1175
  %v1177 = vpop.f32.mrb[0].mxu0
  %1178 = vdwg.mxu0
  %v1179 = vmul.f32 %v1141, 0.17677669
  %v1180 = vmul.f32 %v1146, 0.17677669
  %v1181 = vmul.f32 %v1151, 0.17677669
  %v1182 = vmul.f32 %v1156, 0.17677669
  %v1183 = vmul.f32 %v1161, 0.17677669
  %v1184 = vmul.f32 %v1166, 0.17677669
  %v1185 = vmul.f32 %v1171, 0.17677669
  %v1186 = vmul.f32 %v1176, 0.17677669
  %v1187 = vsel %vm209, %v1179, -inf
  %1188 = vmax.xlane.f32.xlu0 %v1187
  %v1189 = vpop.xlane.xlu0 %1188
  %v1190 = vsel %vm209, %v1180, -inf
  %1191 = vmax.xlane.f32.xlu0 %v1190
  %v1192 = vpop.xlane.xlu0 %1191
  %v1193 = vsel %vm209, %v1181, -inf
  %1194 = vmax.xlane.f32.xlu0 %v1193
  %v1195 = vpop.xlane.xlu0 %1194
  %v1196 = vsel %vm209, %v1182, -inf
  %1197 = vmax.xlane.f32.xlu0 %v1196
  %v1198 = vpop.xlane.xlu0 %1197
  %v1199 = vsel %vm209, %v1183, -inf
  %1200 = vmax.xlane.f32.xlu0 %v1199
  %v1201 = vpop.xlane.xlu0 %1200
  %v1202 = vsel %vm209, %v1184, -inf
  %1203 = vmax.xlane.f32.xlu0 %v1202
  %v1204 = vpop.xlane.xlu0 %1203
  %v1205 = vsel %vm209, %v1185, -inf
  %1206 = vmax.xlane.f32.xlu0 %v1205
  %v1207 = vpop.xlane.xlu0 %1206
  %v1208 = vsel %vm209, %v1186, -inf
  %1209 = vmax.xlane.f32.xlu0 %v1208
  %v1210 = vpop.xlane.xlu0 %1209
  %v1211 = vsub.f32 %v1179, %v1189
  %v1212 = vsub.f32 %v1180, %v1192
  %v1213 = vsub.f32 %v1181, %v1195
  %v1214 = vsub.f32 %v1182, %v1198
  %v1215 = vsub.f32 %v1183, %v1201
  %v1216 = vsub.f32 %v1184, %v1204
  %v1217 = vsub.f32 %v1185, %v1207
  %v1218 = vsub.f32 %v1186, %v1210
  %v1219 = vmul.f32 %v1211, 1.442695
  %v1220 = vpow.pop %v1219
  %v1221 = vmul.f32 %v1212, 1.442695
  %v1222 = vpow.pop %v1221
  %v1223 = vmul.f32 %v1213, 1.442695
  %v1224 = vpow.pop %v1223
  %v1225 = vmul.f32 %v1214, 1.442695
  %v1226 = vpow.pop %v1225
  %v1227 = vmul.f32 %v1215, 1.442695
  %v1228 = vpow.pop %v1227
  %v1229 = vmul.f32 %v1216, 1.442695
  %v1230 = vpow.pop %v1229
  %v1231 = vmul.f32 %v1217, 1.442695
  %v1232 = vpow.pop %v1231
  %v1233 = vmul.f32 %v1218, 1.442695
  %v1234 = vpow.pop %v1233
  %v1235 = vsel %vm209, %v1220, 0.0
  %1236 = vadd.xlane.f32.xlu0 %v1235
  %v1237 = vpop.xlane.xlu0 %1236
  %v1238 = vsel %vm209, %v1222, 0.0
  %1239 = vadd.xlane.f32.xlu0 %v1238
  %v1240 = vpop.xlane.xlu0 %1239
  %v1241 = vsel %vm209, %v1224, 0.0
  %1242 = vadd.xlane.f32.xlu0 %v1241
  %v1243 = vpop.xlane.xlu0 %1242
  %v1244 = vsel %vm209, %v1226, 0.0
  %1245 = vadd.xlane.f32.xlu0 %v1244
  %v1246 = vpop.xlane.xlu0 %1245
  %v1247 = vsel %vm209, %v1228, 0.0
  %1248 = vadd.xlane.f32.xlu0 %v1247
  %v1249 = vpop.xlane.xlu0 %1248
  %v1250 = vsel %vm209, %v1230, 0.0
  %1251 = vadd.xlane.f32.xlu0 %v1250
  %v1252 = vpop.xlane.xlu0 %1251
  %v1253 = vsel %vm209, %v1232, 0.0
  %1254 = vadd.xlane.f32.xlu0 %v1253
  %v1255 = vpop.xlane.xlu0 %1254
  %v1256 = vsel %vm209, %v1234, 0.0
  %1257 = vadd.xlane.f32.xlu0 %v1256
  %v1258 = vpop.xlane.xlu0 %1257
  %v1259 = vrcp.pop %v1237
  %v1260 = vrcp.pop %v1240
  %v1261 = vrcp.pop %v1243
  %v1262 = vrcp.pop %v1246
  %v1263 = vrcp.pop %v1249
  %v1264 = vrcp.pop %v1252
  %v1265 = vrcp.pop %v1255
  %v1266 = vrcp.pop %v1258
  %v1267 = vmul.f32 %v1220, %v1259
  %v1268 = vmul.f32 %v1222, %v1260
  %v1269 = vmul.f32 %v1224, %v1261
  %v1270 = vmul.f32 %v1226, %v1262
  %v1271 = vmul.f32 %v1228, %v1263
  %v1272 = vmul.f32 %v1230, %v1264
  %v1273 = vmul.f32 %v1232, %v1265
  %v1274 = vmul.f32 %v1234, %v1266
  %1275 = vrot.lane.b32.xlu0 %v570, 64
  %v1276 = vpop.permute.xlu0 %1275
  %1277 = vrot.lane.b32.xlu0 %v575, 64
  %v1278 = vpop.permute.xlu0 %1277
  %1279 = vrot.lane.b32.xlu0 %v580, 64
  %v1280 = vpop.permute.xlu0 %1279
  %1281 = vrot.lane.b32.xlu0 %v585, 64
  %v1282 = vpop.permute.xlu0 %1281
  %1283 = vrot.lane.b32.xlu0 %v590, 64
  %v1284 = vpop.permute.xlu0 %1283
  %1285 = vrot.lane.b32.xlu0 %v595, 64
  %v1286 = vpop.permute.xlu0 %1285
  %1287 = vrot.lane.b32.xlu0 %v600, 64
  %v1288 = vpop.permute.xlu0 %1287
  %1289 = vrot.lane.b32.xlu0 %v605, 64
  %v1290 = vpop.permute.xlu0 %1289
  %v1300 = vsel %vm209, %v1267, 0
  %v1303 = vsel %vm209, %v1268, 0
  %v1306 = vsel %vm209, %v1269, 0
  %v1309 = vsel %vm209, %v1270, 0
  %v1312 = vsel %vm209, %v1271, 0
  %v1315 = vsel %vm209, %v1272, 0
  %v1318 = vsel %vm209, %v1273, 0
  %v1321 = vsel %vm209, %v1274, 0
  %1323 = vmatprep.subr.mxu0 0.0
  %1324 = vmatpush1.msra.mxu0 %v1276
  %1325 = vmatprep.subr.mxu0 0.0
  %1326 = vmatpush1.msra.mxu0 %v1278
  %1327 = vmatprep.subr.mxu0 0.0
  %1328 = vmatpush1.msra.mxu0 %v1280
  %1329 = vmatprep.subr.mxu0 0.0
  %1330 = vmatpush1.msra.mxu0 %v1282
  %1331 = vmatprep.subr.mxu0 0.0
  %1332 = vmatpush1.msra.mxu0 %v1284
  %1333 = vmatprep.subr.mxu0 0.0
  %1334 = vmatpush1.msra.mxu0 %v1286
  %1335 = vmatprep.subr.mxu0 0.0
  %1336 = vmatpush1.msra.mxu0 %v1288
  %1337 = vmatprep.subr.mxu0 0.0
  %1338 = vmatpush1.msra.mxu0 %v1290
  %1339 = vmatprep.subr.mxu0 0.0
  %1340 = vmatpush1.msra.mxu0 0.0
  %1341 = vmatprep.subr.mxu0 0.0
  %1342 = vmatpush1.msra.mxu0 0.0
  %1343 = vmatprep.subr.mxu0 0.0
  %1344 = vmatpush1.msra.mxu0 0.0
  %1345 = vmatprep.subr.mxu0 0.0
  %1346 = vmatpush1.msra.mxu0 0.0
  %1347 = vmatprep.subr.mxu0 0.0
  %1348 = vmatpush1.msra.mxu0 0.0
  %1349 = vmatprep.subr.mxu0 0.0
  %1350 = vmatpush1.msra.mxu0 0.0
  %1351 = vmatprep.subr.mxu0 0.0
  %1352 = vmatpush1.msra.mxu0 0.0
  %1353 = vmatprep.subr.mxu0 0.0
  %1354 = vmatpush1.msra.mxu0 0.0
  %1355 = vmatprep.subr.mxu0 0.0
  %1356 = vmatpush1.msra.mxu0 0.0
  %1357 = vmatprep.subr.mxu0 0.0
  %1358 = vmatpush1.msra.mxu0 0.0
  %1359 = vmatprep.subr.mxu0 0.0
  %1360 = vmatpush1.msra.mxu0 0.0
  %1361 = vmatprep.subr.mxu0 0.0
  %1362 = vmatpush1.msra.mxu0 0.0
  %1363 = vmatprep.subr.mxu0 0.0
  %1364 = vmatpush1.msra.mxu0 0.0
  %1365 = vmatprep.subr.mxu0 0.0
  %1366 = vmatpush1.msra.mxu0 0.0
  %1367 = vmatprep.subr.mxu0 0.0
  %1368 = vmatpush1.msra.mxu0 0.0
  %1369 = vmatprep.subr.mxu0 0.0
  %1370 = vmatpush1.msra.mxu0 0.0
  %1371 = vmatprep.subr.mxu0 0.0
  %1372 = vmatpush1.msra.mxu0 0.0
  %1373 = vmatprep.subr.mxu0 0.0
  %1374 = vmatpush1.msra.mxu0 0.0
  %1375 = vmatprep.subr.mxu0 0.0
  %1376 = vmatpush1.msra.mxu0 0.0
  %1377 = vmatprep.subr.mxu0 0.0
  %1378 = vmatpush1.msra.mxu0 0.0
  %1379 = vmatprep.subr.mxu0 0.0
  %1380 = vmatpush1.msra.mxu0 0.0
  %1381 = vmatprep.subr.mxu0 0.0
  %1382 = vmatpush1.msra.mxu0 0.0
  %1383 = vmatprep.subr.mxu0 0.0
  %1384 = vmatpush1.msra.mxu0 0.0
  %1385 = vmatprep.subr.mxu0 0.0
  %1386 = vmatpush1.msra.mxu0 0.0
  %1387 = vmatprep.mubr.f32.mxu0 0.0
  %1388 = vmatmul.mubr.f32.gmra.mrb[0].mxu0 %v1300
  %v1389 = vpop.f32.mrb[0].mxu0
  %v1390 = vadd.f32 0.0, %v1389
  %v1391 = vpop.f32.mrb[0].mxu0
  %1392 = vmatprep.mubr.f32.mxu0 0.0
  %1393 = vmatmul.mubr.f32.gmra.mrb[0].mxu0 %v1303
  %v1394 = vpop.f32.mrb[0].mxu0
  %v1395 = vadd.f32 0.0, %v1394
  %v1396 = vpop.f32.mrb[0].mxu0
  %1397 = vmatprep.mubr.f32.mxu0 0.0
  %1398 = vmatmul.mubr.f32.gmra.mrb[0].mxu0 %v1306
  %v1399 = vpop.f32.mrb[0].mxu0
  %v1400 = vadd.f32 0.0, %v1399
  %v1401 = vpop.f32.mrb[0].mxu0
  %1402 = vmatprep.mubr.f32.mxu0 0.0
  %1403 = vmatmul.mubr.f32.gmra.mrb[0].mxu0 %v1309
  %v1404 = vpop.f32.mrb[0].mxu0
  %v1405 = vadd.f32 0.0, %v1404
  %v1406 = vpop.f32.mrb[0].mxu0
  %1407 = vmatprep.mubr.f32.mxu0 0.0
  %1408 = vmatmul.mubr.f32.gmra.mrb[0].mxu0 %v1312
  %v1409 = vpop.f32.mrb[0].mxu0
  %v1410 = vadd.f32 0.0, %v1409
  %v1411 = vpop.f32.mrb[0].mxu0
  %1412 = vmatprep.mubr.f32.mxu0 0.0
  %1413 = vmatmul.mubr.f32.gmra.mrb[0].mxu0 %v1315
  %v1414 = vpop.f32.mrb[0].mxu0
  %v1415 = vadd.f32 0.0, %v1414
  %v1416 = vpop.f32.mrb[0].mxu0
  %1417 = vmatprep.mubr.f32.mxu0 0.0
  %1418 = vmatmul.mubr.f32.gmra.mrb[0].mxu0 %v1318
  %v1419 = vpop.f32.mrb[0].mxu0
  %v1420 = vadd.f32 0.0, %v1419
  %v1421 = vpop.f32.mrb[0].mxu0
  %1422 = vmatprep.mubr.f32.mxu0 0.0
  %1423 = vmatmul.mubr.f32.gmra.mrb[0].mxu0 %v1321
  %v1424 = vpop.f32.mrb[0].mxu0
  %v1425 = vadd.f32 0.0, %v1424
  %v1426 = vpop.f32.mrb[0].mxu0
  %1427 = vdwg.mxu0
  %v1428 = vld [vmem:[%s17] sm:$0xff]
  %v1429 = vld [vmem:[%s17 + $0x8] sm:$0xff]
  %v1430 = vld [vmem:[%s17 + $0x10] sm:$0xff]
  %v1431 = vld [vmem:[%s17 + $0x18] sm:$0xff]
  %v1432 = vld [vmem:[%s19] sm:$0x1]
  %v1434 = vlaneseq
  %v1435 = vshrl.u32 %v1434, 7
  %v1436 = vsub.s32 0, %v1435
  %v1437 = vrot.slane %v1432, %v1436
  %v1440 = vsel %vm414, %v980, 0
  %v1443 = vsel %vm414, %v985, 0
  %v1446 = vsel %vm414, %v990, 0
  %v1449 = vsel %vm414, %v995, 0
  %v1452 = vsel %vm414, %v1000, 0
  %v1455 = vsel %vm414, %v1005, 0
  %v1458 = vsel %vm414, %v1010, 0
  %v1461 = vsel %vm414, %v1015, 0
  %v1464 = vsel %vm414, %v1390, 0
  %v1467 = vsel %vm414, %v1395, 0
  %v1470 = vsel %vm414, %v1400, 0
  %v1473 = vsel %vm414, %v1405, 0
  %v1476 = vsel %vm414, %v1410, 0
  %v1479 = vsel %vm414, %v1415, 0
  %v1482 = vsel %vm414, %v1420, 0
  %v1485 = vsel %vm414, %v1425, 0
  %1487 = vmatprep.subr.mxu0 0.0
  %1488 = vmatpush1.msra.mxu0 %v1428
  %1489 = vmatprep.subr.mxu0 0.0
  %1490 = vmatpush1.msra.mxu0 %v1429
  %1491 = vmatprep.subr.mxu0 0.0
  %1492 = vmatpush1.msra.mxu0 %v1430
  %1493 = vmatprep.subr.mxu0 0.0
  %1494 = vmatpush1.msra.mxu0 %v1431
  %1495 = vmatprep.subr.mxu0 0.0
  %1496 = vmatpush1.msra.mxu0 0.0
  %1497 = vmatprep.subr.mxu0 0.0
  %1498 = vmatpush1.msra.mxu0 0.0
  %1499 = vmatprep.subr.mxu0 0.0
  %1500 = vmatpush1.msra.mxu0 0.0
  %1501 = vmatprep.subr.mxu0 0.0
  %1502 = vmatpush1.msra.mxu0 0.0
  %1503 = vmatprep.subr.mxu0 0.0
  %1504 = vmatpush1.msra.mxu0 0.0
  %1505 = vmatprep.subr.mxu0 0.0
  %1506 = vmatpush1.msra.mxu0 0.0
  %1507 = vmatprep.subr.mxu0 0.0
  %1508 = vmatpush1.msra.mxu0 0.0
  %1509 = vmatprep.subr.mxu0 0.0
  %1510 = vmatpush1.msra.mxu0 0.0
  %1511 = vmatprep.subr.mxu0 0.0
  %1512 = vmatpush1.msra.mxu0 0.0
  %1513 = vmatprep.subr.mxu0 0.0
  %1514 = vmatpush1.msra.mxu0 0.0
  %1515 = vmatprep.subr.mxu0 0.0
  %1516 = vmatpush1.msra.mxu0 0.0
  %1517 = vmatprep.subr.mxu0 0.0
  %1518 = vmatpush1.msra.mxu0 0.0
  %1519 = vmatprep.subr.mxu0 0.0
  %1520 = vmatpush1.msra.mxu0 0.0
  %1521 = vmatprep.subr.mxu0 0.0
  %1522 = vmatpush1.msra.mxu0 0.0
  %1523 = vmatprep.subr.mxu0 0.0
  %1524 = vmatpush1.msra.mxu0 0.0
  %1525 = vmatprep.subr.mxu0 0.0
  %1526 = vmatpush1.msra.mxu0 0.0
  %1527 = vmatprep.subr.mxu0 0.0
  %1528 = vmatpush1.msra.mxu0 0.0
  %1529 = vmatprep.subr.mxu0 0.0
  %1530 = vmatpush1.msra.mxu0 0.0
  %1531 = vmatprep.subr.mxu0 0.0
  %1532 = vmatpush1.msra.mxu0 0.0
  %1533 = vmatprep.subr.mxu0 0.0
  %1534 = vmatpush1.msra.mxu0 0.0
  %1535 = vmatprep.subr.mxu0 0.0
  %1536 = vmatpush1.msra.mxu0 0.0
  %1537 = vmatprep.subr.mxu0 0.0
  %1538 = vmatpush1.msra.mxu0 0.0
  %1539 = vmatprep.subr.mxu0 0.0
  %1540 = vmatpush1.msra.mxu0 0.0
  %1541 = vmatprep.subr.mxu0 0.0
  %1542 = vmatpush1.msra.mxu0 0.0
  %1543 = vmatprep.subr.mxu0 0.0
  %1544 = vmatpush1.msra.mxu0 0.0
  %1545 = vmatprep.subr.mxu0 0.0
  %1546 = vmatpush1.msra.mxu0 0.0
  %1547 = vmatprep.subr.mxu0 0.0
  %1548 = vmatpush1.msra.mxu0 0.0
  %1549 = vmatprep.subr.mxu0 0.0
  %1550 = vmatpush1.msra.mxu0 0.0
  %1551 = vmatprep.mubr.f32.mxu0 0.0
  %1552 = vmatmul.mubr.f32.gmra.mrb[0].mxu0 %v1440
  %v1553 = vpop.f32.mrb[0].mxu0
  %v1554 = vadd.f32 %v1437, %v1553
  %v1555 = vpop.f32.mrb[0].mxu0
  %1556 = vmatprep.mubr.f32.mxu0 0.0
  %1557 = vmatmul.mubr.f32.gmra.mrb[0].mxu0 %v1443
  %v1558 = vpop.f32.mrb[0].mxu0
  %v1559 = vadd.f32 %v1437, %v1558
  %v1560 = vpop.f32.mrb[0].mxu0
  %1561 = vmatprep.mubr.f32.mxu0 0.0
  %1562 = vmatmul.mubr.f32.gmra.mrb[0].mxu0 %v1446
  %v1563 = vpop.f32.mrb[0].mxu0
  %v1564 = vadd.f32 %v1437, %v1563
  %v1565 = vpop.f32.mrb[0].mxu0
  %1566 = vmatprep.mubr.f32.mxu0 0.0
  %1567 = vmatmul.mubr.f32.gmra.mrb[0].mxu0 %v1449
  %v1568 = vpop.f32.mrb[0].mxu0
  %v1569 = vadd.f32 %v1437, %v1568
  %v1570 = vpop.f32.mrb[0].mxu0
  %1571 = vmatprep.mubr.f32.mxu0 0.0
  %1572 = vmatmul.mubr.f32.gmra.mrb[0].mxu0 %v1452
  %v1573 = vpop.f32.mrb[0].mxu0
  %v1574 = vadd.f32 %v1437, %v1573
  %v1575 = vpop.f32.mrb[0].mxu0
  %1576 = vmatprep.mubr.f32.mxu0 0.0
  %1577 = vmatmul.mubr.f32.gmra.mrb[0].mxu0 %v1455
  %v1578 = vpop.f32.mrb[0].mxu0
  %v1579 = vadd.f32 %v1437, %v1578
  %v1580 = vpop.f32.mrb[0].mxu0
  %1581 = vmatprep.mubr.f32.mxu0 0.0
  %1582 = vmatmul.mubr.f32.gmra.mrb[0].mxu0 %v1458
  %v1583 = vpop.f32.mrb[0].mxu0
  %v1584 = vadd.f32 %v1437, %v1583
  %v1585 = vpop.f32.mrb[0].mxu0
  %1586 = vmatprep.mubr.f32.mxu0 0.0
  %1587 = vmatmul.mubr.f32.gmra.mrb[0].mxu0 %v1461
  %v1588 = vpop.f32.mrb[0].mxu0
  %v1589 = vadd.f32 %v1437, %v1588
  %v1590 = vpop.f32.mrb[0].mxu0
  %1591 = vmatprep.mubr.f32.mxu0 0.0
  %1592 = vmatmul.mubr.f32.gmra.mrb[0].mxu0 %v1464
  %v1593 = vpop.f32.mrb[0].mxu0
  %v1594 = vadd.f32 %v1437, %v1593
  %v1595 = vpop.f32.mrb[0].mxu0
  %1596 = vmatprep.mubr.f32.mxu0 0.0
  %1597 = vmatmul.mubr.f32.gmra.mrb[0].mxu0 %v1467
  %v1598 = vpop.f32.mrb[0].mxu0
  %v1599 = vadd.f32 %v1437, %v1598
  %v1600 = vpop.f32.mrb[0].mxu0
  %1601 = vmatprep.mubr.f32.mxu0 0.0
  %1602 = vmatmul.mubr.f32.gmra.mrb[0].mxu0 %v1470
  %v1603 = vpop.f32.mrb[0].mxu0
  %v1604 = vadd.f32 %v1437, %v1603
  %v1605 = vpop.f32.mrb[0].mxu0
  %1606 = vmatprep.mubr.f32.mxu0 0.0
  %1607 = vmatmul.mubr.f32.gmra.mrb[0].mxu0 %v1473
  %v1608 = vpop.f32.mrb[0].mxu0
  %v1609 = vadd.f32 %v1437, %v1608
  %v1610 = vpop.f32.mrb[0].mxu0
  %1611 = vmatprep.mubr.f32.mxu0 0.0
  %1612 = vmatmul.mubr.f32.gmra.mrb[0].mxu0 %v1476
  %v1613 = vpop.f32.mrb[0].mxu0
  %v1614 = vadd.f32 %v1437, %v1613
  %v1615 = vpop.f32.mrb[0].mxu0
  %1616 = vmatprep.mubr.f32.mxu0 0.0
  %1617 = vmatmul.mubr.f32.gmra.mrb[0].mxu0 %v1479
  %v1618 = vpop.f32.mrb[0].mxu0
  %v1619 = vadd.f32 %v1437, %v1618
  %v1620 = vpop.f32.mrb[0].mxu0
  %1621 = vmatprep.mubr.f32.mxu0 0.0
  %1622 = vmatmul.mubr.f32.gmra.mrb[0].mxu0 %v1482
  %v1623 = vpop.f32.mrb[0].mxu0
  %v1624 = vadd.f32 %v1437, %v1623
  %v1625 = vpop.f32.mrb[0].mxu0
  %1626 = vmatprep.mubr.f32.mxu0 0.0
  %1627 = vmatmul.mubr.f32.gmra.mrb[0].mxu0 %v1485
  %v1628 = vpop.f32.mrb[0].mxu0
  %v1629 = vadd.f32 %v1437, %v1628
  %v1630 = vpop.f32.mrb[0].mxu0
  %1631 = vdwg.mxu0
  %v1632 = vadd.f32 %v325, %v1554
  %v1633 = vadd.f32 %v330, %v1559
  %v1634 = vadd.f32 %v335, %v1564
  %v1635 = vadd.f32 %v340, %v1569
  %v1636 = vadd.f32 %v345, %v1574
  %v1637 = vadd.f32 %v350, %v1579
  %v1638 = vadd.f32 %v355, %v1584
  %v1639 = vadd.f32 %v360, %v1589
  %v1640 = vadd.f32 %v365, %v1594
  %v1641 = vadd.f32 %v370, %v1599
  %v1642 = vadd.f32 %v375, %v1604
  %v1643 = vadd.f32 %v380, %v1609
  %v1644 = vadd.f32 %v385, %v1614
  %v1645 = vadd.f32 %v390, %v1619
  %v1646 = vadd.f32 %v395, %v1624
  %v1647 = vadd.f32 %v400, %v1629
  %v1648 = vld [vmem:[%s21] sm:$0xff]
  %v1649 = vld [vmem:[%s21 + $0x8] sm:$0xff]
  %v1650 = vld [vmem:[%s21 + $0x10] sm:$0xff]
  %v1651 = vld [vmem:[%s21 + $0x18] sm:$0xff]
  %v1652 = vld [vmem:[%s23] sm:$0x1]
  %v1654 = vlaneseq
  %v1655 = vshrl.u32 %v1654, 7
  %v1656 = vsub.s32 0, %v1655
  %v1657 = vrot.slane %v1652, %v1656
  %v1660 = vsel %vm414, %v1632, 0
  %v1663 = vsel %vm414, %v1633, 0
  %v1666 = vsel %vm414, %v1634, 0
  %v1669 = vsel %vm414, %v1635, 0
  %v1672 = vsel %vm414, %v1636, 0
  %v1675 = vsel %vm414, %v1637, 0
  %v1678 = vsel %vm414, %v1638, 0
  %v1681 = vsel %vm414, %v1639, 0
  %v1684 = vsel %vm414, %v1640, 0
  %v1687 = vsel %vm414, %v1641, 0
  %v1690 = vsel %vm414, %v1642, 0
  %v1693 = vsel %vm414, %v1643, 0
  %v1696 = vsel %vm414, %v1644, 0
  %v1699 = vsel %vm414, %v1645, 0
  %v1702 = vsel %vm414, %v1646, 0
  %v1705 = vsel %vm414, %v1647, 0
  %1707 = vmatprep.subr.mxu0 0.0
  %1708 = vmatpush1.msra.mxu0 %v1648
  %1709 = vmatprep.subr.mxu0 0.0
  %1710 = vmatpush1.msra.mxu0 %v1649
  %1711 = vmatprep.subr.mxu0 0.0
  %1712 = vmatpush1.msra.mxu0 %v1650
  %1713 = vmatprep.subr.mxu0 0.0
  %1714 = vmatpush1.msra.mxu0 %v1651
  %1715 = vmatprep.subr.mxu0 0.0
  %1716 = vmatpush1.msra.mxu0 0.0
  %1717 = vmatprep.subr.mxu0 0.0
  %1718 = vmatpush1.msra.mxu0 0.0
  %1719 = vmatprep.subr.mxu0 0.0
  %1720 = vmatpush1.msra.mxu0 0.0
  %1721 = vmatprep.subr.mxu0 0.0
  %1722 = vmatpush1.msra.mxu0 0.0
  %1723 = vmatprep.subr.mxu0 0.0
  %1724 = vmatpush1.msra.mxu0 0.0
  %1725 = vmatprep.subr.mxu0 0.0
  %1726 = vmatpush1.msra.mxu0 0.0
  %1727 = vmatprep.subr.mxu0 0.0
  %1728 = vmatpush1.msra.mxu0 0.0
  %1729 = vmatprep.subr.mxu0 0.0
  %1730 = vmatpush1.msra.mxu0 0.0
  %1731 = vmatprep.subr.mxu0 0.0
  %1732 = vmatpush1.msra.mxu0 0.0
  %1733 = vmatprep.subr.mxu0 0.0
  %1734 = vmatpush1.msra.mxu0 0.0
  %1735 = vmatprep.subr.mxu0 0.0
  %1736 = vmatpush1.msra.mxu0 0.0
  %1737 = vmatprep.subr.mxu0 0.0
  %1738 = vmatpush1.msra.mxu0 0.0
  %1739 = vmatprep.subr.mxu0 0.0
  %1740 = vmatpush1.msra.mxu0 0.0
  %1741 = vmatprep.subr.mxu0 0.0
  %1742 = vmatpush1.msra.mxu0 0.0
  %1743 = vmatprep.subr.mxu0 0.0
  %1744 = vmatpush1.msra.mxu0 0.0
  %1745 = vmatprep.subr.mxu0 0.0
  %1746 = vmatpush1.msra.mxu0 0.0
  %1747 = vmatprep.subr.mxu0 0.0
  %1748 = vmatpush1.msra.mxu0 0.0
  %1749 = vmatprep.subr.mxu0 0.0
  %1750 = vmatpush1.msra.mxu0 0.0
  %1751 = vmatprep.subr.mxu0 0.0
  %1752 = vmatpush1.msra.mxu0 0.0
  %1753 = vmatprep.subr.mxu0 0.0
  %1754 = vmatpush1.msra.mxu0 0.0
  %1755 = vmatprep.subr.mxu0 0.0
  %1756 = vmatpush1.msra.mxu0 0.0
  %1757 = vmatprep.subr.mxu0 0.0
  %1758 = vmatpush1.msra.mxu0 0.0
  %1759 = vmatprep.subr.mxu0 0.0
  %1760 = vmatpush1.msra.mxu0 0.0
  %1761 = vmatprep.subr.mxu0 0.0
  %1762 = vmatpush1.msra.mxu0 0.0
  %1763 = vmatprep.subr.mxu0 0.0
  %1764 = vmatpush1.msra.mxu0 0.0
  %1765 = vmatprep.subr.mxu0 0.0
  %1766 = vmatpush1.msra.mxu0 0.0
  %1767 = vmatprep.subr.mxu0 0.0
  %1768 = vmatpush1.msra.mxu0 0.0
  %1769 = vmatprep.subr.mxu0 0.0
  %1770 = vmatpush1.msra.mxu0 0.0
  %1771 = vmatprep.mubr.f32.mxu0 0.0
  %1772 = vmatmul.mubr.f32.gmra.mrb[0].mxu0 %v1660
  %v1773 = vpop.f32.mrb[0].mxu0
  %v1774 = vadd.f32 %v1657, %v1773
  %v1775 = vpop.f32.mrb[0].mxu0
  %1776 = vmatprep.mubr.f32.mxu0 0.0
  %1777 = vmatmul.mubr.f32.gmra.mrb[0].mxu0 %v1663
  %v1778 = vpop.f32.mrb[0].mxu0
  %v1779 = vadd.f32 %v1657, %v1778
  %v1780 = vpop.f32.mrb[0].mxu0
  %1781 = vmatprep.mubr.f32.mxu0 0.0
  %1782 = vmatmul.mubr.f32.gmra.mrb[0].mxu0 %v1666
  %v1783 = vpop.f32.mrb[0].mxu0
  %v1784 = vadd.f32 %v1657, %v1783
  %v1785 = vpop.f32.mrb[0].mxu0
  %1786 = vmatprep.mubr.f32.mxu0 0.0
  %1787 = vmatmul.mubr.f32.gmra.mrb[0].mxu0 %v1669
  %v1788 = vpop.f32.mrb[0].mxu0
  %v1789 = vadd.f32 %v1657, %v1788
  %v1790 = vpop.f32.mrb[0].mxu0
  %1791 = vmatprep.mubr.f32.mxu0 0.0
  %1792 = vmatmul.mubr.f32.gmra.mrb[0].mxu0 %v1672
  %v1793 = vpop.f32.mrb[0].mxu0
  %v1794 = vadd.f32 %v1657, %v1793
  %v1795 = vpop.f32.mrb[0].mxu0
  %1796 = vmatprep.mubr.f32.mxu0 0.0
  %1797 = vmatmul.mubr.f32.gmra.mrb[0].mxu0 %v1675
  %v1798 = vpop.f32.mrb[0].mxu0
  %v1799 = vadd.f32 %v1657, %v1798
  %v1800 = vpop.f32.mrb[0].mxu0
  %1801 = vmatprep.mubr.f32.mxu0 0.0
  %1802 = vmatmul.mubr.f32.gmra.mrb[0].mxu0 %v1678
  %v1803 = vpop.f32.mrb[0].mxu0
  %v1804 = vadd.f32 %v1657, %v1803
  %v1805 = vpop.f32.mrb[0].mxu0
  %1806 = vmatprep.mubr.f32.mxu0 0.0
  %1807 = vmatmul.mubr.f32.gmra.mrb[0].mxu0 %v1681
  %v1808 = vpop.f32.mrb[0].mxu0
  %v1809 = vadd.f32 %v1657, %v1808
  %v1810 = vpop.f32.mrb[0].mxu0
  %1811 = vmatprep.mubr.f32.mxu0 0.0
  %1812 = vmatmul.mubr.f32.gmra.mrb[0].mxu0 %v1684
  %v1813 = vpop.f32.mrb[0].mxu0
  %v1814 = vadd.f32 %v1657, %v1813
  %v1815 = vpop.f32.mrb[0].mxu0
  %1816 = vmatprep.mubr.f32.mxu0 0.0
  %1817 = vmatmul.mubr.f32.gmra.mrb[0].mxu0 %v1687
  %v1818 = vpop.f32.mrb[0].mxu0
  %v1819 = vadd.f32 %v1657, %v1818
  %v1820 = vpop.f32.mrb[0].mxu0
  %1821 = vmatprep.mubr.f32.mxu0 0.0
  %1822 = vmatmul.mubr.f32.gmra.mrb[0].mxu0 %v1690
  %v1823 = vpop.f32.mrb[0].mxu0
  %v1824 = vadd.f32 %v1657, %v1823
  %v1825 = vpop.f32.mrb[0].mxu0
  %1826 = vmatprep.mubr.f32.mxu0 0.0
  %1827 = vmatmul.mubr.f32.gmra.mrb[0].mxu0 %v1693
  %v1828 = vpop.f32.mrb[0].mxu0
  %v1829 = vadd.f32 %v1657, %v1828
  %v1830 = vpop.f32.mrb[0].mxu0
  %1831 = vmatprep.mubr.f32.mxu0 0.0
  %1832 = vmatmul.mubr.f32.gmra.mrb[0].mxu0 %v1696
  %v1833 = vpop.f32.mrb[0].mxu0
  %v1834 = vadd.f32 %v1657, %v1833
  %v1835 = vpop.f32.mrb[0].mxu0
  %1836 = vmatprep.mubr.f32.mxu0 0.0
  %1837 = vmatmul.mubr.f32.gmra.mrb[0].mxu0 %v1699
  %v1838 = vpop.f32.mrb[0].mxu0
  %v1839 = vadd.f32 %v1657, %v1838
  %v1840 = vpop.f32.mrb[0].mxu0
  %1841 = vmatprep.mubr.f32.mxu0 0.0
  %1842 = vmatmul.mubr.f32.gmra.mrb[0].mxu0 %v1702
  %v1843 = vpop.f32.mrb[0].mxu0
  %v1844 = vadd.f32 %v1657, %v1843
  %v1845 = vpop.f32.mrb[0].mxu0
  %1846 = vmatprep.mubr.f32.mxu0 0.0
  %1847 = vmatmul.mubr.f32.gmra.mrb[0].mxu0 %v1705
  %v1848 = vpop.f32.mrb[0].mxu0
  %v1849 = vadd.f32 %v1657, %v1848
  %v1850 = vpop.f32.mrb[0].mxu0
  %1851 = vdwg.mxu0
  %v1852 = vmax.f32 %v1774, 0.0
  %v1853 = vmax.f32 %v1779, 0.0
  %v1854 = vmax.f32 %v1784, 0.0
  %v1855 = vmax.f32 %v1789, 0.0
  %v1856 = vmax.f32 %v1794, 0.0
  %v1857 = vmax.f32 %v1799, 0.0
  %v1858 = vmax.f32 %v1804, 0.0
  %v1859 = vmax.f32 %v1809, 0.0
  %v1860 = vmax.f32 %v1814, 0.0
  %v1861 = vmax.f32 %v1819, 0.0
  %v1862 = vmax.f32 %v1824, 0.0
  %v1863 = vmax.f32 %v1829, 0.0
  %v1864 = vmax.f32 %v1834, 0.0
  %v1865 = vmax.f32 %v1839, 0.0
  %v1866 = vmax.f32 %v1844, 0.0
  %v1867 = vmax.f32 %v1849, 0.0
  %v1868 = vld [vmem:[%s25] sm:$0xff]
  %v1869 = vld [vmem:[%s25 + $0x8] sm:$0xff]
  %v1870 = vld [vmem:[%s25 + $0x10] sm:$0xff]
  %v1871 = vld [vmem:[%s25 + $0x18] sm:$0xff]
  %v1872 = vld [vmem:[%s25 + $0x20] sm:$0xff]
  %v1873 = vld [vmem:[%s25 + $0x28] sm:$0xff]
  %v1874 = vld [vmem:[%s25 + $0x30] sm:$0xff]
  %v1875 = vld [vmem:[%s25 + $0x38] sm:$0xff]
  %v1876 = vld [vmem:[%s27] sm:$0x1]
  %v1878 = vlaneseq
  %v1879 = vshrl.u32 %v1878, 7
  %v1880 = vsub.s32 0, %v1879
  %v1881 = vrot.slane %v1876, %v1880
  %v1884 = vsel %vm209, %v1852, 0
  %v1887 = vsel %vm209, %v1853, 0
  %v1890 = vsel %vm209, %v1854, 0
  %v1893 = vsel %vm209, %v1855, 0
  %v1896 = vsel %vm209, %v1856, 0
  %v1899 = vsel %vm209, %v1857, 0
  %v1902 = vsel %vm209, %v1858, 0
  %v1905 = vsel %vm209, %v1859, 0
  %v1908 = vsel %vm209, %v1860, 0
  %v1911 = vsel %vm209, %v1861, 0
  %v1914 = vsel %vm209, %v1862, 0
  %v1917 = vsel %vm209, %v1863, 0
  %v1920 = vsel %vm209, %v1864, 0
  %v1923 = vsel %vm209, %v1865, 0
  %v1926 = vsel %vm209, %v1866, 0
  %v1929 = vsel %vm209, %v1867, 0
  %1931 = vmatprep.subr.mxu0 0.0
  %1932 = vmatpush1.msra.mxu0 %v1868
  %1933 = vmatprep.subr.mxu0 0.0
  %1934 = vmatpush1.msra.mxu0 %v1869
  %1935 = vmatprep.subr.mxu0 0.0
  %1936 = vmatpush1.msra.mxu0 %v1870
  %1937 = vmatprep.subr.mxu0 0.0
  %1938 = vmatpush1.msra.mxu0 %v1871
  %1939 = vmatprep.subr.mxu0 0.0
  %1940 = vmatpush1.msra.mxu0 %v1872
  %1941 = vmatprep.subr.mxu0 0.0
  %1942 = vmatpush1.msra.mxu0 %v1873
  %1943 = vmatprep.subr.mxu0 0.0
  %1944 = vmatpush1.msra.mxu0 %v1874
  %1945 = vmatprep.subr.mxu0 0.0
  %1946 = vmatpush1.msra.mxu0 %v1875
  %1947 = vmatprep.subr.mxu0 0.0
  %1948 = vmatpush1.msra.mxu0 0.0
  %1949 = vmatprep.subr.mxu0 0.0
  %1950 = vmatpush1.msra.mxu0 0.0
  %1951 = vmatprep.subr.mxu0 0.0
  %1952 = vmatpush1.msra.mxu0 0.0
  %1953 = vmatprep.subr.mxu0 0.0
  %1954 = vmatpush1.msra.mxu0 0.0
  %1955 = vmatprep.subr.mxu0 0.0
  %1956 = vmatpush1.msra.mxu0 0.0
  %1957 = vmatprep.subr.mxu0 0.0
  %1958 = vmatpush1.msra.mxu0 0.0
  %1959 = vmatprep.subr.mxu0 0.0
  %1960 = vmatpush1.msra.mxu0 0.0
  %1961 = vmatprep.subr.mxu0 0.0
  %1962 = vmatpush1.msra.mxu0 0.0
  %1963 = vmatprep.subr.mxu0 0.0
  %1964 = vmatpush1.msra.mxu0 0.0
  %1965 = vmatprep.subr.mxu0 0.0
  %1966 = vmatpush1.msra.mxu0 0.0
  %1967 = vmatprep.subr.mxu0 0.0
  %1968 = vmatpush1.msra.mxu0 0.0
  %1969 = vmatprep.subr.mxu0 0.0
  %1970 = vmatpush1.msra.mxu0 0.0
  %1971 = vmatprep.subr.mxu0 0.0
  %1972 = vmatpush1.msra.mxu0 0.0
  %1973 = vmatprep.subr.mxu0 0.0
  %1974 = vmatpush1.msra.mxu0 0.0
  %1975 = vmatprep.subr.mxu0 0.0
  %1976 = vmatpush1.msra.mxu0 0.0
  %1977 = vmatprep.subr.mxu0 0.0
  %1978 = vmatpush1.msra.mxu0 0.0
  %1979 = vmatprep.subr.mxu0 0.0
  %1980 = vmatpush1.msra.mxu0 0.0
  %1981 = vmatprep.subr.mxu0 0.0
  %1982 = vmatpush1.msra.mxu0 0.0
  %1983 = vmatprep.subr.mxu0 0.0
  %1984 = vmatpush1.msra.mxu0 0.0
  %1985 = vmatprep.subr.mxu0 0.0
  %1986 = vmatpush1.msra.mxu0 0.0
  %1987 = vmatprep.subr.mxu0 0.0
  %1988 = vmatpush1.msra.mxu0 0.0
  %1989 = vmatprep.subr.mxu0 0.0
  %1990 = vmatpush1.msra.mxu0 0.0
  %1991 = vmatprep.subr.mxu0 0.0
  %1992 = vmatpush1.msra.mxu0 0.0
  %1993 = vmatprep.subr.mxu0 0.0
  %1994 = vmatpush1.msra.mxu0 0.0
  %1995 = vmatprep.mubr.f32.mxu0 0.0
  %1996 = vmatmul.mubr.f32.gmra.mrb[0].mxu0 %v1884
  %v1997 = vpop.f32.mrb[0].mxu0
  %v1998 = vadd.f32 %v1881, %v1997
  %v1999 = vpop.f32.mrb[0].mxu0
  %2000 = vmatprep.mubr.f32.mxu0 0.0
  %2001 = vmatmul.mubr.f32.gmra.mrb[0].mxu0 %v1887
  %v2002 = vpop.f32.mrb[0].mxu0
  %v2003 = vadd.f32 %v1881, %v2002
  %v2004 = vpop.f32.mrb[0].mxu0
  %2005 = vmatprep.mubr.f32.mxu0 0.0
  %2006 = vmatmul.mubr.f32.gmra.mrb[0].mxu0 %v1890
  %v2007 = vpop.f32.mrb[0].mxu0
  %v2008 = vadd.f32 %v1881, %v2007
  %v2009 = vpop.f32.mrb[0].mxu0
  %2010 = vmatprep.mubr.f32.mxu0 0.0
  %2011 = vmatmul.mubr.f32.gmra.mrb[0].mxu0 %v1893
  %v2012 = vpop.f32.mrb[0].mxu0
  %v2013 = vadd.f32 %v1881, %v2012
  %v2014 = vpop.f32.mrb[0].mxu0
  %2015 = vmatprep.mubr.f32.mxu0 0.0
  %2016 = vmatmul.mubr.f32.gmra.mrb[0].mxu0 %v1896
  %v2017 = vpop.f32.mrb[0].mxu0
  %v2018 = vadd.f32 %v1881, %v2017
  %v2019 = vpop.f32.mrb[0].mxu0
  %2020 = vmatprep.mubr.f32.mxu0 0.0
  %2021 = vmatmul.mubr.f32.gmra.mrb[0].mxu0 %v1899
  %v2022 = vpop.f32.mrb[0].mxu0
  %v2023 = vadd.f32 %v1881, %v2022
  %v2024 = vpop.f32.mrb[0].mxu0
  %2025 = vmatprep.mubr.f32.mxu0 0.0
  %2026 = vmatmul.mubr.f32.gmra.mrb[0].mxu0 %v1902
  %v2027 = vpop.f32.mrb[0].mxu0
  %v2028 = vadd.f32 %v1881, %v2027
  %v2029 = vpop.f32.mrb[0].mxu0
  %2030 = vmatprep.mubr.f32.mxu0 0.0
  %2031 = vmatmul.mubr.f32.gmra.mrb[0].mxu0 %v1905
  %v2032 = vpop.f32.mrb[0].mxu0
  %v2033 = vadd.f32 %v1881, %v2032
  %v2034 = vpop.f32.mrb[0].mxu0
  %2035 = vmatprep.mubr.f32.mxu0 0.0
  %2036 = vmatmul.mubr.f32.gmra.mrb[0].mxu0 %v1908
  %v2037 = vpop.f32.mrb[0].mxu0
  %v2038 = vadd.f32 %v1881, %v2037
  %v2039 = vpop.f32.mrb[0].mxu0
  %2040 = vmatprep.mubr.f32.mxu0 0.0
  %2041 = vmatmul.mubr.f32.gmra.mrb[0].mxu0 %v1911
  %v2042 = vpop.f32.mrb[0].mxu0
  %v2043 = vadd.f32 %v1881, %v2042
  %v2044 = vpop.f32.mrb[0].mxu0
  %2045 = vmatprep.mubr.f32.mxu0 0.0
  %2046 = vmatmul.mubr.f32.gmra.mrb[0].mxu0 %v1914
  %v2047 = vpop.f32.mrb[0].mxu0
  %v2048 = vadd.f32 %v1881, %v2047
  %v2049 = vpop.f32.mrb[0].mxu0
  %2050 = vmatprep.mubr.f32.mxu0 0.0
  %2051 = vmatmul.mubr.f32.gmra.mrb[0].mxu0 %v1917
  %v2052 = vpop.f32.mrb[0].mxu0
  %v2053 = vadd.f32 %v1881, %v2052
  %v2054 = vpop.f32.mrb[0].mxu0
  %2055 = vmatprep.mubr.f32.mxu0 0.0
  %2056 = vmatmul.mubr.f32.gmra.mrb[0].mxu0 %v1920
  %v2057 = vpop.f32.mrb[0].mxu0
  %v2058 = vadd.f32 %v1881, %v2057
  %v2059 = vpop.f32.mrb[0].mxu0
  %2060 = vmatprep.mubr.f32.mxu0 0.0
  %2061 = vmatmul.mubr.f32.gmra.mrb[0].mxu0 %v1923
  %v2062 = vpop.f32.mrb[0].mxu0
  %v2063 = vadd.f32 %v1881, %v2062
  %v2064 = vpop.f32.mrb[0].mxu0
  %2065 = vmatprep.mubr.f32.mxu0 0.0
  %2066 = vmatmul.mubr.f32.gmra.mrb[0].mxu0 %v1926
  %v2067 = vpop.f32.mrb[0].mxu0
  %v2068 = vadd.f32 %v1881, %v2067
  %v2069 = vpop.f32.mrb[0].mxu0
  %2070 = vmatprep.mubr.f32.mxu0 0.0
  %2071 = vmatmul.mubr.f32.gmra.mrb[0].mxu0 %v1929
  %v2072 = vpop.f32.mrb[0].mxu0
  %v2073 = vadd.f32 %v1881, %v2072
  %v2074 = vpop.f32.mrb[0].mxu0
  %2075 = vdwg.mxu0
  %v2076 = vadd.f32 %v1632, %v1998
  %v2077 = vadd.f32 %v1633, %v2003
  %v2078 = vadd.f32 %v1634, %v2008
  %v2079 = vadd.f32 %v1635, %v2013
  %v2080 = vadd.f32 %v1636, %v2018
  %v2081 = vadd.f32 %v1637, %v2023
  %v2082 = vadd.f32 %v1638, %v2028
  %v2083 = vadd.f32 %v1639, %v2033
  %v2084 = vadd.f32 %v1640, %v2038
  %v2085 = vadd.f32 %v1641, %v2043
  %v2086 = vadd.f32 %v1642, %v2048
  %v2087 = vadd.f32 %v1643, %v2053
  %v2088 = vadd.f32 %v1644, %v2058
  %v2089 = vadd.f32 %v1645, %v2063
  %v2090 = vadd.f32 %v1646, %v2068
  %v2091 = vadd.f32 %v1647, %v2073
  %v2092 = vld [vmem:[%s5] sm:$0xff]
  %v2093 = vld [vmem:[%s5 + $0x8] sm:$0xff]
  %v2094 = vld [vmem:[%s5 + $0x10] sm:$0xff]
  %v2095 = vld [vmem:[%s5 + $0x18] sm:$0xff]
  %v2096 = vld [vmem:[%s5 + $0x20] sm:$0xff]
  %v2097 = vld [vmem:[%s5 + $0x28] sm:$0xff]
  %v2098 = vld [vmem:[%s5 + $0x30] sm:$0xff]
  %v2099 = vld [vmem:[%s5 + $0x38] sm:$0xff]
  %v2100 = vld [vmem:[%s5 + $0x40] sm:$0xff]
  %v2101 = vld [vmem:[%s5 + $0x48] sm:$0xff]
  %v2102 = vld [vmem:[%s5 + $0x50] sm:$0xff]
  %v2103 = vld [vmem:[%s5 + $0x58] sm:$0xff]
  %v2104 = vld [vmem:[%s5 + $0x60] sm:$0xff]
  %v2105 = vld [vmem:[%s5 + $0x68] sm:$0xff]
  %v2106 = vld [vmem:[%s5 + $0x70] sm:$0xff]
  %v2107 = vld [vmem:[%s5 + $0x78] sm:$0xff]
  %v2108 = vadd.f32 %v2076, %v2092
  %v2109 = vadd.f32 %v2077, %v2093
  %v2110 = vadd.f32 %v2078, %v2094
  %v2111 = vadd.f32 %v2079, %v2095
  %v2112 = vadd.f32 %v2080, %v2096
  %v2113 = vadd.f32 %v2081, %v2097
  %v2114 = vadd.f32 %v2082, %v2098
  %v2115 = vadd.f32 %v2083, %v2099
  %v2116 = vadd.f32 %v2084, %v2100
  %v2117 = vadd.f32 %v2085, %v2101
  %v2118 = vadd.f32 %v2086, %v2102
  %v2119 = vadd.f32 %v2087, %v2103
  %v2120 = vadd.f32 %v2088, %v2104
  %v2121 = vadd.f32 %v2089, %v2105
  %v2122 = vadd.f32 %v2090, %v2106
  %v2123 = vadd.f32 %v2091, %v2107
  %v2124 = vld [vmem:[%s33] sm:$0xff]
  %v2125 = vld [vmem:[%s33 + $0x8] sm:$0xff]
  %v2126 = vld [vmem:[%s33 + $0x10] sm:$0xff]
  %v2127 = vld [vmem:[%s33 + $0x18] sm:$0xff]
  %v2128 = vld [vmem:[%s35] sm:$0x1]
  %v2130 = vlaneseq
  %v2131 = vshrl.u32 %v2130, 7
  %v2132 = vsub.s32 0, %v2131
  %v2133 = vrot.slane %v2128, %v2132
  %v2136 = vsel %vm414, %v2108, 0
  %v2139 = vsel %vm414, %v2109, 0
  %v2142 = vsel %vm414, %v2110, 0
  %v2145 = vsel %vm414, %v2111, 0
  %v2148 = vsel %vm414, %v2112, 0
  %v2151 = vsel %vm414, %v2113, 0
  %v2154 = vsel %vm414, %v2114, 0
  %v2157 = vsel %vm414, %v2115, 0
  %v2160 = vsel %vm414, %v2116, 0
  %v2163 = vsel %vm414, %v2117, 0
  %v2166 = vsel %vm414, %v2118, 0
  %v2169 = vsel %vm414, %v2119, 0
  %v2172 = vsel %vm414, %v2120, 0
  %v2175 = vsel %vm414, %v2121, 0
  %v2178 = vsel %vm414, %v2122, 0
  %v2181 = vsel %vm414, %v2123, 0
  %2183 = vmatprep.subr.mxu0 0.0
  %2184 = vmatpush1.msra.mxu0 %v2124
  %2185 = vmatprep.subr.mxu0 0.0
  %2186 = vmatpush1.msra.mxu0 %v2125
  %2187 = vmatprep.subr.mxu0 0.0
  %2188 = vmatpush1.msra.mxu0 %v2126
  %2189 = vmatprep.subr.mxu0 0.0
  %2190 = vmatpush1.msra.mxu0 %v2127
  %2191 = vmatprep.subr.mxu0 0.0
  %2192 = vmatpush1.msra.mxu0 0.0
  %2193 = vmatprep.subr.mxu0 0.0
  %2194 = vmatpush1.msra.mxu0 0.0
  %2195 = vmatprep.subr.mxu0 0.0
  %2196 = vmatpush1.msra.mxu0 0.0
  %2197 = vmatprep.subr.mxu0 0.0
  %2198 = vmatpush1.msra.mxu0 0.0
  %2199 = vmatprep.subr.mxu0 0.0
  %2200 = vmatpush1.msra.mxu0 0.0
  %2201 = vmatprep.subr.mxu0 0.0
  %2202 = vmatpush1.msra.mxu0 0.0
  %2203 = vmatprep.subr.mxu0 0.0
  %2204 = vmatpush1.msra.mxu0 0.0
  %2205 = vmatprep.subr.mxu0 0.0
  %2206 = vmatpush1.msra.mxu0 0.0
  %2207 = vmatprep.subr.mxu0 0.0
  %2208 = vmatpush1.msra.mxu0 0.0
  %2209 = vmatprep.subr.mxu0 0.0
  %2210 = vmatpush1.msra.mxu0 0.0
  %2211 = vmatprep.subr.mxu0 0.0
  %2212 = vmatpush1.msra.mxu0 0.0
  %2213 = vmatprep.subr.mxu0 0.0
  %2214 = vmatpush1.msra.mxu0 0.0
  %2215 = vmatprep.subr.mxu0 0.0
  %2216 = vmatpush1.msra.mxu0 0.0
  %2217 = vmatprep.subr.mxu0 0.0
  %2218 = vmatpush1.msra.mxu0 0.0
  %2219 = vmatprep.subr.mxu0 0.0
  %2220 = vmatpush1.msra.mxu0 0.0
  %2221 = vmatprep.subr.mxu0 0.0
  %2222 = vmatpush1.msra.mxu0 0.0
  %2223 = vmatprep.subr.mxu0 0.0
  %2224 = vmatpush1.msra.mxu0 0.0
  %2225 = vmatprep.subr.mxu0 0.0
  %2226 = vmatpush1.msra.mxu0 0.0
  %2227 = vmatprep.subr.mxu0 0.0
  %2228 = vmatpush1.msra.mxu0 0.0
  %2229 = vmatprep.subr.mxu0 0.0
  %2230 = vmatpush1.msra.mxu0 0.0
  %2231 = vmatprep.subr.mxu0 0.0
  %2232 = vmatpush1.msra.mxu0 0.0
  %2233 = vmatprep.subr.mxu0 0.0
  %2234 = vmatpush1.msra.mxu0 0.0
  %2235 = vmatprep.subr.mxu0 0.0
  %2236 = vmatpush1.msra.mxu0 0.0
  %2237 = vmatprep.subr.mxu0 0.0
  %2238 = vmatpush1.msra.mxu0 0.0
  %2239 = vmatprep.subr.mxu0 0.0
  %2240 = vmatpush1.msra.mxu0 0.0
  %2241 = vmatprep.subr.mxu0 0.0
  %2242 = vmatpush1.msra.mxu0 0.0
  %2243 = vmatprep.subr.mxu0 0.0
  %2244 = vmatpush1.msra.mxu0 0.0
  %2245 = vmatprep.subr.mxu0 0.0
  %2246 = vmatpush1.msra.mxu0 0.0
  %2247 = vmatprep.mubr.f32.mxu0 0.0
  %2248 = vmatmul.mubr.f32.gmra.mrb[0].mxu0 %v2136
  %v2249 = vpop.f32.mrb[0].mxu0
  %v2250 = vadd.f32 %v2133, %v2249
  %v2251 = vpop.f32.mrb[0].mxu0
  %2252 = vmatprep.mubr.f32.mxu0 0.0
  %2253 = vmatmul.mubr.f32.gmra.mrb[0].mxu0 %v2139
  %v2254 = vpop.f32.mrb[0].mxu0
  %v2255 = vadd.f32 %v2133, %v2254
  %v2256 = vpop.f32.mrb[0].mxu0
  %2257 = vmatprep.mubr.f32.mxu0 0.0
  %2258 = vmatmul.mubr.f32.gmra.mrb[0].mxu0 %v2142
  %v2259 = vpop.f32.mrb[0].mxu0
  %v2260 = vadd.f32 %v2133, %v2259
  %v2261 = vpop.f32.mrb[0].mxu0
  %2262 = vmatprep.mubr.f32.mxu0 0.0
  %2263 = vmatmul.mubr.f32.gmra.mrb[0].mxu0 %v2145
  %v2264 = vpop.f32.mrb[0].mxu0
  %v2265 = vadd.f32 %v2133, %v2264
  %v2266 = vpop.f32.mrb[0].mxu0
  %2267 = vmatprep.mubr.f32.mxu0 0.0
  %2268 = vmatmul.mubr.f32.gmra.mrb[0].mxu0 %v2148
  %v2269 = vpop.f32.mrb[0].mxu0
  %v2270 = vadd.f32 %v2133, %v2269
  %v2271 = vpop.f32.mrb[0].mxu0
  %2272 = vmatprep.mubr.f32.mxu0 0.0
  %2273 = vmatmul.mubr.f32.gmra.mrb[0].mxu0 %v2151
  %v2274 = vpop.f32.mrb[0].mxu0
  %v2275 = vadd.f32 %v2133, %v2274
  %v2276 = vpop.f32.mrb[0].mxu0
  %2277 = vmatprep.mubr.f32.mxu0 0.0
  %2278 = vmatmul.mubr.f32.gmra.mrb[0].mxu0 %v2154
  %v2279 = vpop.f32.mrb[0].mxu0
  %v2280 = vadd.f32 %v2133, %v2279
  %v2281 = vpop.f32.mrb[0].mxu0
  %2282 = vmatprep.mubr.f32.mxu0 0.0
  %2283 = vmatmul.mubr.f32.gmra.mrb[0].mxu0 %v2157
  %v2284 = vpop.f32.mrb[0].mxu0
  %v2285 = vadd.f32 %v2133, %v2284
  %v2286 = vpop.f32.mrb[0].mxu0
  %2287 = vmatprep.mubr.f32.mxu0 0.0
  %2288 = vmatmul.mubr.f32.gmra.mrb[0].mxu0 %v2160
  %v2289 = vpop.f32.mrb[0].mxu0
  %v2290 = vadd.f32 %v2133, %v2289
  %v2291 = vpop.f32.mrb[0].mxu0
  %2292 = vmatprep.mubr.f32.mxu0 0.0
  %2293 = vmatmul.mubr.f32.gmra.mrb[0].mxu0 %v2163
  %v2294 = vpop.f32.mrb[0].mxu0
  %v2295 = vadd.f32 %v2133, %v2294
  %v2296 = vpop.f32.mrb[0].mxu0
  %2297 = vmatprep.mubr.f32.mxu0 0.0
  %2298 = vmatmul.mubr.f32.gmra.mrb[0].mxu0 %v2166
  %v2299 = vpop.f32.mrb[0].mxu0
  %v2300 = vadd.f32 %v2133, %v2299
  %v2301 = vpop.f32.mrb[0].mxu0
  %2302 = vmatprep.mubr.f32.mxu0 0.0
  %2303 = vmatmul.mubr.f32.gmra.mrb[0].mxu0 %v2169
  %v2304 = vpop.f32.mrb[0].mxu0
  %v2305 = vadd.f32 %v2133, %v2304
  %v2306 = vpop.f32.mrb[0].mxu0
  %2307 = vmatprep.mubr.f32.mxu0 0.0
  %2308 = vmatmul.mubr.f32.gmra.mrb[0].mxu0 %v2172
  %v2309 = vpop.f32.mrb[0].mxu0
  %v2310 = vadd.f32 %v2133, %v2309
  %v2311 = vpop.f32.mrb[0].mxu0
  %2312 = vmatprep.mubr.f32.mxu0 0.0
  %2313 = vmatmul.mubr.f32.gmra.mrb[0].mxu0 %v2175
  %v2314 = vpop.f32.mrb[0].mxu0
  %v2315 = vadd.f32 %v2133, %v2314
  %v2316 = vpop.f32.mrb[0].mxu0
  %2317 = vmatprep.mubr.f32.mxu0 0.0
  %2318 = vmatmul.mubr.f32.gmra.mrb[0].mxu0 %v2178
  %v2319 = vpop.f32.mrb[0].mxu0
  %v2320 = vadd.f32 %v2133, %v2319
  %v2321 = vpop.f32.mrb[0].mxu0
  %2322 = vmatprep.mubr.f32.mxu0 0.0
  %2323 = vmatmul.mubr.f32.gmra.mrb[0].mxu0 %v2181
  %v2324 = vpop.f32.mrb[0].mxu0
  %v2325 = vadd.f32 %v2133, %v2324
  %v2326 = vpop.f32.mrb[0].mxu0
  %2327 = vdwg.mxu0
  %v2328 = vld [vmem:[%s37] sm:$0xff]
  %v2329 = vld [vmem:[%s37 + $0x8] sm:$0xff]
  %v2330 = vld [vmem:[%s37 + $0x10] sm:$0xff]
  %v2331 = vld [vmem:[%s37 + $0x18] sm:$0xff]
  %v2332 = vld [vmem:[%s39] sm:$0x1]
  %v2334 = vlaneseq
  %v2335 = vshrl.u32 %v2334, 7
  %v2336 = vsub.s32 0, %v2335
  %v2337 = vrot.slane %v2332, %v2336
  %v2340 = vsel %vm414, %v2076, 0
  %v2343 = vsel %vm414, %v2077, 0
  %v2346 = vsel %vm414, %v2078, 0
  %v2349 = vsel %vm414, %v2079, 0
  %v2352 = vsel %vm414, %v2080, 0
  %v2355 = vsel %vm414, %v2081, 0
  %v2358 = vsel %vm414, %v2082, 0
  %v2361 = vsel %vm414, %v2083, 0
  %v2364 = vsel %vm414, %v2084, 0
  %v2367 = vsel %vm414, %v2085, 0
  %v2370 = vsel %vm414, %v2086, 0
  %v2373 = vsel %vm414, %v2087, 0
  %v2376 = vsel %vm414, %v2088, 0
  %v2379 = vsel %vm414, %v2089, 0
  %v2382 = vsel %vm414, %v2090, 0
  %v2385 = vsel %vm414, %v2091, 0
  %2387 = vmatprep.subr.mxu0 0.0
  %2388 = vmatpush1.msra.mxu0 %v2328
  %2389 = vmatprep.subr.mxu0 0.0
  %2390 = vmatpush1.msra.mxu0 %v2329
  %2391 = vmatprep.subr.mxu0 0.0
  %2392 = vmatpush1.msra.mxu0 %v2330
  %2393 = vmatprep.subr.mxu0 0.0
  %2394 = vmatpush1.msra.mxu0 %v2331
  %2395 = vmatprep.subr.mxu0 0.0
  %2396 = vmatpush1.msra.mxu0 0.0
  %2397 = vmatprep.subr.mxu0 0.0
  %2398 = vmatpush1.msra.mxu0 0.0
  %2399 = vmatprep.subr.mxu0 0.0
  %2400 = vmatpush1.msra.mxu0 0.0
  %2401 = vmatprep.subr.mxu0 0.0
  %2402 = vmatpush1.msra.mxu0 0.0
  %2403 = vmatprep.subr.mxu0 0.0
  %2404 = vmatpush1.msra.mxu0 0.0
  %2405 = vmatprep.subr.mxu0 0.0
  %2406 = vmatpush1.msra.mxu0 0.0
  %2407 = vmatprep.subr.mxu0 0.0
  %2408 = vmatpush1.msra.mxu0 0.0
  %2409 = vmatprep.subr.mxu0 0.0
  %2410 = vmatpush1.msra.mxu0 0.0
  %2411 = vmatprep.subr.mxu0 0.0
  %2412 = vmatpush1.msra.mxu0 0.0
  %2413 = vmatprep.subr.mxu0 0.0
  %2414 = vmatpush1.msra.mxu0 0.0
  %2415 = vmatprep.subr.mxu0 0.0
  %2416 = vmatpush1.msra.mxu0 0.0
  %2417 = vmatprep.subr.mxu0 0.0
  %2418 = vmatpush1.msra.mxu0 0.0
  %2419 = vmatprep.subr.mxu0 0.0
  %2420 = vmatpush1.msra.mxu0 0.0
  %2421 = vmatprep.subr.mxu0 0.0
  %2422 = vmatpush1.msra.mxu0 0.0
  %2423 = vmatprep.subr.mxu0 0.0
  %2424 = vmatpush1.msra.mxu0 0.0
  %2425 = vmatprep.subr.mxu0 0.0
  %2426 = vmatpush1.msra.mxu0 0.0
  %2427 = vmatprep.subr.mxu0 0.0
  %2428 = vmatpush1.msra.mxu0 0.0
  %2429 = vmatprep.subr.mxu0 0.0
  %2430 = vmatpush1.msra.mxu0 0.0
  %2431 = vmatprep.subr.mxu0 0.0
  %2432 = vmatpush1.msra.mxu0 0.0
  %2433 = vmatprep.subr.mxu0 0.0
  %2434 = vmatpush1.msra.mxu0 0.0
  %2435 = vmatprep.subr.mxu0 0.0
  %2436 = vmatpush1.msra.mxu0 0.0
  %2437 = vmatprep.subr.mxu0 0.0
  %2438 = vmatpush1.msra.mxu0 0.0
  %2439 = vmatprep.subr.mxu0 0.0
  %2440 = vmatpush1.msra.mxu0 0.0
  %2441 = vmatprep.subr.mxu0 0.0
  %2442 = vmatpush1.msra.mxu0 0.0
  %2443 = vmatprep.subr.mxu0 0.0
  %2444 = vmatpush1.msra.mxu0 0.0
  %2445 = vmatprep.subr.mxu0 0.0
  %2446 = vmatpush1.msra.mxu0 0.0
  %2447 = vmatprep.subr.mxu0 0.0
  %2448 = vmatpush1.msra.mxu0 0.0
  %2449 = vmatprep.subr.mxu0 0.0
  %2450 = vmatpush1.msra.mxu0 0.0
  %2451 = vmatprep.mubr.f32.mxu0 0.0
  %2452 = vmatmul.mubr.f32.gmra.mrb[0].mxu0 %v2340
  %v2453 = vpop.f32.mrb[0].mxu0
  %v2454 = vadd.f32 %v2337, %v2453
  %v2455 = vpop.f32.mrb[0].mxu0
  %2456 = vmatprep.mubr.f32.mxu0 0.0
  %2457 = vmatmul.mubr.f32.gmra.mrb[0].mxu0 %v2343
  %v2458 = vpop.f32.mrb[0].mxu0
  %v2459 = vadd.f32 %v2337, %v2458
  %v2460 = vpop.f32.mrb[0].mxu0
  %2461 = vmatprep.mubr.f32.mxu0 0.0
  %2462 = vmatmul.mubr.f32.gmra.mrb[0].mxu0 %v2346
  %v2463 = vpop.f32.mrb[0].mxu0
  %v2464 = vadd.f32 %v2337, %v2463
  %v2465 = vpop.f32.mrb[0].mxu0
  %2466 = vmatprep.mubr.f32.mxu0 0.0
  %2467 = vmatmul.mubr.f32.gmra.mrb[0].mxu0 %v2349
  %v2468 = vpop.f32.mrb[0].mxu0
  %v2469 = vadd.f32 %v2337, %v2468
  %v2470 = vpop.f32.mrb[0].mxu0
  %2471 = vmatprep.mubr.f32.mxu0 0.0
  %2472 = vmatmul.mubr.f32.gmra.mrb[0].mxu0 %v2352
  %v2473 = vpop.f32.mrb[0].mxu0
  %v2474 = vadd.f32 %v2337, %v2473
  %v2475 = vpop.f32.mrb[0].mxu0
  %2476 = vmatprep.mubr.f32.mxu0 0.0
  %2477 = vmatmul.mubr.f32.gmra.mrb[0].mxu0 %v2355
  %v2478 = vpop.f32.mrb[0].mxu0
  %v2479 = vadd.f32 %v2337, %v2478
  %v2480 = vpop.f32.mrb[0].mxu0
  %2481 = vmatprep.mubr.f32.mxu0 0.0
  %2482 = vmatmul.mubr.f32.gmra.mrb[0].mxu0 %v2358
  %v2483 = vpop.f32.mrb[0].mxu0
  %v2484 = vadd.f32 %v2337, %v2483
  %v2485 = vpop.f32.mrb[0].mxu0
  %2486 = vmatprep.mubr.f32.mxu0 0.0
  %2487 = vmatmul.mubr.f32.gmra.mrb[0].mxu0 %v2361
  %v2488 = vpop.f32.mrb[0].mxu0
  %v2489 = vadd.f32 %v2337, %v2488
  %v2490 = vpop.f32.mrb[0].mxu0
  %2491 = vmatprep.mubr.f32.mxu0 0.0
  %2492 = vmatmul.mubr.f32.gmra.mrb[0].mxu0 %v2364
  %v2493 = vpop.f32.mrb[0].mxu0
  %v2494 = vadd.f32 %v2337, %v2493
  %v2495 = vpop.f32.mrb[0].mxu0
  %2496 = vmatprep.mubr.f32.mxu0 0.0
  %2497 = vmatmul.mubr.f32.gmra.mrb[0].mxu0 %v2367
  %v2498 = vpop.f32.mrb[0].mxu0
  %v2499 = vadd.f32 %v2337, %v2498
  %v2500 = vpop.f32.mrb[0].mxu0
  %2501 = vmatprep.mubr.f32.mxu0 0.0
  %2502 = vmatmul.mubr.f32.gmra.mrb[0].mxu0 %v2370
  %v2503 = vpop.f32.mrb[0].mxu0
  %v2504 = vadd.f32 %v2337, %v2503
  %v2505 = vpop.f32.mrb[0].mxu0
  %2506 = vmatprep.mubr.f32.mxu0 0.0
  %2507 = vmatmul.mubr.f32.gmra.mrb[0].mxu0 %v2373
  %v2508 = vpop.f32.mrb[0].mxu0
  %v2509 = vadd.f32 %v2337, %v2508
  %v2510 = vpop.f32.mrb[0].mxu0
  %2511 = vmatprep.mubr.f32.mxu0 0.0
  %2512 = vmatmul.mubr.f32.gmra.mrb[0].mxu0 %v2376
  %v2513 = vpop.f32.mrb[0].mxu0
  %v2514 = vadd.f32 %v2337, %v2513
  %v2515 = vpop.f32.mrb[0].mxu0
  %2516 = vmatprep.mubr.f32.mxu0 0.0
  %2517 = vmatmul.mubr.f32.gmra.mrb[0].mxu0 %v2379
  %v2518 = vpop.f32.mrb[0].mxu0
  %v2519 = vadd.f32 %v2337, %v2518
  %v2520 = vpop.f32.mrb[0].mxu0
  %2521 = vmatprep.mubr.f32.mxu0 0.0
  %2522 = vmatmul.mubr.f32.gmra.mrb[0].mxu0 %v2382
  %v2523 = vpop.f32.mrb[0].mxu0
  %v2524 = vadd.f32 %v2337, %v2523
  %v2525 = vpop.f32.mrb[0].mxu0
  %2526 = vmatprep.mubr.f32.mxu0 0.0
  %2527 = vmatmul.mubr.f32.gmra.mrb[0].mxu0 %v2385
  %v2528 = vpop.f32.mrb[0].mxu0
  %v2529 = vadd.f32 %v2337, %v2528
  %v2530 = vpop.f32.mrb[0].mxu0
  %2531 = vdwg.mxu0
  %v2532 = vld [vmem:[%s3] sm:$0x3f]
  %v2533 = vld [vmem:[%s29] sm:$0xff]
  %v2534 = vld [vmem:[%s29 + $0x8] sm:$0xff]
  %v2535 = vld [vmem:[%s29 + $0x10] sm:$0xff]
  %v2536 = vld [vmem:[%s29 + $0x18] sm:$0xff]
  %v2537 = vld [vmem:[%s31] sm:$0x1]
  %v2539 = vlaneseq
  %v2540 = vshrl.u32 %v2539, 7
  %v2541 = vsub.s32 0, %v2540
  %v2542 = vrot.slane %v2537, %v2541
  %v2545 = vsel %vm414, %v2532, 0
  %2547 = vmatprep.subr.mxu0 0.0
  %2548 = vmatpush1.msra.mxu0 %v2533
  %2549 = vmatprep.subr.mxu0 0.0
  %2550 = vmatpush1.msra.mxu0 %v2534
  %2551 = vmatprep.subr.mxu0 0.0
  %2552 = vmatpush1.msra.mxu0 %v2535
  %2553 = vmatprep.subr.mxu0 0.0
  %2554 = vmatpush1.msra.mxu0 %v2536
  %2555 = vmatprep.subr.mxu0 0.0
  %2556 = vmatpush1.msra.mxu0 0.0
  %2557 = vmatprep.subr.mxu0 0.0
  %2558 = vmatpush1.msra.mxu0 0.0
  %2559 = vmatprep.subr.mxu0 0.0
  %2560 = vmatpush1.msra.mxu0 0.0
  %2561 = vmatprep.subr.mxu0 0.0
  %2562 = vmatpush1.msra.mxu0 0.0
  %2563 = vmatprep.subr.mxu0 0.0
  %2564 = vmatpush1.msra.mxu0 0.0
  %2565 = vmatprep.subr.mxu0 0.0
  %2566 = vmatpush1.msra.mxu0 0.0
  %2567 = vmatprep.subr.mxu0 0.0
  %2568 = vmatpush1.msra.mxu0 0.0
  %2569 = vmatprep.subr.mxu0 0.0
  %2570 = vmatpush1.msra.mxu0 0.0
  %2571 = vmatprep.subr.mxu0 0.0
  %2572 = vmatpush1.msra.mxu0 0.0
  %2573 = vmatprep.subr.mxu0 0.0
  %2574 = vmatpush1.msra.mxu0 0.0
  %2575 = vmatprep.subr.mxu0 0.0
  %2576 = vmatpush1.msra.mxu0 0.0
  %2577 = vmatprep.subr.mxu0 0.0
  %2578 = vmatpush1.msra.mxu0 0.0
  %2579 = vmatprep.subr.mxu0 0.0
  %2580 = vmatpush1.msra.mxu0 0.0
  %2581 = vmatprep.subr.mxu0 0.0
  %2582 = vmatpush1.msra.mxu0 0.0
  %2583 = vmatprep.subr.mxu0 0.0
  %2584 = vmatpush1.msra.mxu0 0.0
  %2585 = vmatprep.subr.mxu0 0.0
  %2586 = vmatpush1.msra.mxu0 0.0
  %2587 = vmatprep.subr.mxu0 0.0
  %2588 = vmatpush1.msra.mxu0 0.0
  %2589 = vmatprep.subr.mxu0 0.0
  %2590 = vmatpush1.msra.mxu0 0.0
  %2591 = vmatprep.subr.mxu0 0.0
  %2592 = vmatpush1.msra.mxu0 0.0
  %2593 = vmatprep.subr.mxu0 0.0
  %2594 = vmatpush1.msra.mxu0 0.0
  %2595 = vmatprep.subr.mxu0 0.0
  %2596 = vmatpush1.msra.mxu0 0.0
  %2597 = vmatprep.subr.mxu0 0.0
  %2598 = vmatpush1.msra.mxu0 0.0
  %2599 = vmatprep.subr.mxu0 0.0
  %2600 = vmatpush1.msra.mxu0 0.0
  %2601 = vmatprep.subr.mxu0 0.0
  %2602 = vmatpush1.msra.mxu0 0.0
  %2603 = vmatprep.subr.mxu0 0.0
  %2604 = vmatpush1.msra.mxu0 0.0
  %2605 = vmatprep.subr.mxu0 0.0
  %2606 = vmatpush1.msra.mxu0 0.0
  %2607 = vmatprep.subr.mxu0 0.0
  %2608 = vmatpush1.msra.mxu0 0.0
  %2609 = vmatprep.subr.mxu0 0.0
  %2610 = vmatpush1.msra.mxu0 0.0
  %2611 = vmatprep.mubr.f32.mxu0 0.0
  %2612 = vmatmul.mubr.f32.gmra.mrb[0].mxu0 %v2545
  %v2613 = vpop.f32.mrb[0].mxu0
  %v2614 = vadd.f32 %v2542, %v2613
  %v2615 = vpop.f32.mrb[0].mxu0
  %2616 = vdwg.mxu0
  %v2618 = vsel %vm414, %v2614, 0
  %v2621 = vsel %vm414, %v2250, 0
  %v2624 = vsel %vm414, %v2255, 0
  %v2627 = vsel %vm414, %v2260, 0
  %v2630 = vsel %vm414, %v2265, 0
  %v2633 = vsel %vm414, %v2270, 0
  %v2636 = vsel %vm414, %v2275, 0
  %v2639 = vsel %vm414, %v2280, 0
  %v2642 = vsel %vm414, %v2285, 0
  %2644 = vmatprep.subr.mxu0 0.0
  %2645 = vmatpush1.xpose.msra.mxu0 %v2621
  %2646 = vmatprep.subr.mxu0 0.0
  %2647 = vmatpush1.xpose.msra.mxu0 %v2624
  %2648 = vmatprep.subr.mxu0 0.0
  %2649 = vmatpush1.xpose.msra.mxu0 %v2627
  %2650 = vmatprep.subr.mxu0 0.0
  %2651 = vmatpush1.xpose.msra.mxu0 %v2630
  %2652 = vmatprep.subr.mxu0 0.0
  %2653 = vmatpush1.xpose.msra.mxu0 %v2633
  %2654 = vmatprep.subr.mxu0 0.0
  %2655 = vmatpush1.xpose.msra.mxu0 %v2636
  %2656 = vmatprep.subr.mxu0 0.0
  %2657 = vmatpush1.xpose.msra.mxu0 %v2639
  %2658 = vmatprep.subr.mxu0 0.0
  %2659 = vmatpush1.xpose.msra.mxu0 %v2642
  %2660 = vmatprep.subr.mxu0 0.0
  %2661 = vmatpush1.xpose.msra.mxu0 0.0
  %2662 = vmatprep.subr.mxu0 0.0
  %2663 = vmatpush1.xpose.msra.mxu0 0.0
  %2664 = vmatprep.subr.mxu0 0.0
  %2665 = vmatpush1.xpose.msra.mxu0 0.0
  %2666 = vmatprep.subr.mxu0 0.0
  %2667 = vmatpush1.xpose.msra.mxu0 0.0
  %2668 = vmatprep.subr.mxu0 0.0
  %2669 = vmatpush1.xpose.msra.mxu0 0.0
  %2670 = vmatprep.subr.mxu0 0.0
  %2671 = vmatpush1.xpose.msra.mxu0 0.0
  %2672 = vmatprep.subr.mxu0 0.0
  %2673 = vmatpush1.xpose.msra.mxu0 0.0
  %2674 = vmatprep.subr.mxu0 0.0
  %2675 = vmatpush1.xpose.msra.mxu0 0.0
  %2676 = vmatprep.subr.mxu0 0.0
  %2677 = vmatpush1.xpose.msra.mxu0 0.0
  %2678 = vmatprep.subr.mxu0 0.0
  %2679 = vmatpush1.xpose.msra.mxu0 0.0
  %2680 = vmatprep.subr.mxu0 0.0
  %2681 = vmatpush1.xpose.msra.mxu0 0.0
  %2682 = vmatprep.subr.mxu0 0.0
  %2683 = vmatpush1.xpose.msra.mxu0 0.0
  %2684 = vmatprep.subr.mxu0 0.0
  %2685 = vmatpush1.xpose.msra.mxu0 0.0
  %2686 = vmatprep.subr.mxu0 0.0
  %2687 = vmatpush1.xpose.msra.mxu0 0.0
  %2688 = vmatprep.subr.mxu0 0.0
  %2689 = vmatpush1.xpose.msra.mxu0 0.0
  %2690 = vmatprep.subr.mxu0 0.0
  %2691 = vmatpush1.xpose.msra.mxu0 0.0
  %2692 = vmatprep.subr.mxu0 0.0
  %2693 = vmatpush1.xpose.msra.mxu0 0.0
  %2694 = vmatprep.subr.mxu0 0.0
  %2695 = vmatpush1.xpose.msra.mxu0 0.0
  %2696 = vmatprep.subr.mxu0 0.0
  %2697 = vmatpush1.xpose.msra.mxu0 0.0
  %2698 = vmatprep.subr.mxu0 0.0
  %2699 = vmatpush1.xpose.msra.mxu0 0.0
  %2700 = vmatprep.subr.mxu0 0.0
  %2701 = vmatpush1.xpose.msra.mxu0 0.0
  %2702 = vmatprep.subr.mxu0 0.0
  %2703 = vmatpush1.xpose.msra.mxu0 0.0
  %2704 = vmatprep.subr.mxu0 0.0
  %2705 = vmatpush1.xpose.msra.mxu0 0.0
  %2706 = vmatprep.subr.mxu0 0.0
  %2707 = vmatpush1.xpose.msra.mxu0 0.0
  %2708 = vmatprep.mubr.f32.mxu0 0.0
  %2709 = vmatmul.mubr.f32.gmra.mrb[0].mxu0 %v2618
  %v2710 = vpop.f32.mrb[0].mxu0
  %v2711 = vadd.f32 0.0, %v2710
  %v2712 = vpop.f32.mrb[0].mxu0
  %2713 = vdwg.mxu0
  %v2714 = vmul.f32 %v2711, 0.17677669
  %vm2715 = vcmask 521216
  %v2716 = vsel %vm2715, %v2714, -inf
  %2717 = vmax.xlane.f32.xlu0 %v2716
  %v2718 = vpop.xlane.xlu0 %2717
  %v2719 = vsub.f32 %v2714, %v2718
  %v2720 = vmul.f32 %v2719, 1.442695
  %v2721 = vpow.pop %v2720
  %v2722 = vsel %vm2715, %v2721, 0.0
  %2723 = vadd.xlane.f32.xlu0 %v2722
  %v2724 = vpop.xlane.xlu0 %2723
  %v2725 = vrcp.pop %v2724
  %v2726 = vmul.f32 %v2721, %v2725
  %v2728 = vsel %vm209, %v2726, 0
  %2730 = vmatprep.subr.mxu0 0.0
  %2731 = vmatpush1.msra.mxu0 %v2454
  %2732 = vmatprep.subr.mxu0 0.0
  %2733 = vmatpush1.msra.mxu0 %v2459
  %2734 = vmatprep.subr.mxu0 0.0
  %2735 = vmatpush1.msra.mxu0 %v2464
  %2736 = vmatprep.subr.mxu0 0.0
  %2737 = vmatpush1.msra.mxu0 %v2469
  %2738 = vmatprep.subr.mxu0 0.0
  %2739 = vmatpush1.msra.mxu0 %v2474
  %2740 = vmatprep.subr.mxu0 0.0
  %2741 = vmatpush1.msra.mxu0 %v2479
  %2742 = vmatprep.subr.mxu0 0.0
  %2743 = vmatpush1.msra.mxu0 %v2484
  %2744 = vmatprep.subr.mxu0 0.0
  %2745 = vmatpush1.msra.mxu0 %v2489
  %2746 = vmatprep.subr.mxu0 0.0
  %2747 = vmatpush1.msra.mxu0 0.0
  %2748 = vmatprep.subr.mxu0 0.0
  %2749 = vmatpush1.msra.mxu0 0.0
  %2750 = vmatprep.subr.mxu0 0.0
  %2751 = vmatpush1.msra.mxu0 0.0
  %2752 = vmatprep.subr.mxu0 0.0
  %2753 = vmatpush1.msra.mxu0 0.0
  %2754 = vmatprep.subr.mxu0 0.0
  %2755 = vmatpush1.msra.mxu0 0.0
  %2756 = vmatprep.subr.mxu0 0.0
  %2757 = vmatpush1.msra.mxu0 0.0
  %2758 = vmatprep.subr.mxu0 0.0
  %2759 = vmatpush1.msra.mxu0 0.0
  %2760 = vmatprep.subr.mxu0 0.0
  %2761 = vmatpush1.msra.mxu0 0.0
  %2762 = vmatprep.subr.mxu0 0.0
  %2763 = vmatpush1.msra.mxu0 0.0
  %2764 = vmatprep.subr.mxu0 0.0
  %2765 = vmatpush1.msra.mxu0 0.0
  %2766 = vmatprep.subr.mxu0 0.0
  %2767 = vmatpush1.msra.mxu0 0.0
  %2768 = vmatprep.subr.mxu0 0.0
  %2769 = vmatpush1.msra.mxu0 0.0
  %2770 = vmatprep.subr.mxu0 0.0
  %2771 = vmatpush1.msra.mxu0 0.0
  %2772 = vmatprep.subr.mxu0 0.0
  %2773 = vmatpush1.msra.mxu0 0.0
  %2774 = vmatprep.subr.mxu0 0.0
  %2775 = vmatpush1.msra.mxu0 0.0
  %2776 = vmatprep.subr.mxu0 0.0
  %2777 = vmatpush1.msra.mxu0 0.0
  %2778 = vmatprep.subr.mxu0 0.0
  %2779 = vmatpush1.msra.mxu0 0.0
  %2780 = vmatprep.subr.mxu0 0.0
  %2781 = vmatpush1.msra.mxu0 0.0
  %2782 = vmatprep.subr.mxu0 0.0
  %2783 = vmatpush1.msra.mxu0 0.0
  %2784 = vmatprep.subr.mxu0 0.0
  %2785 = vmatpush1.msra.mxu0 0.0
  %2786 = vmatprep.subr.mxu0 0.0
  %2787 = vmatpush1.msra.mxu0 0.0
  %2788 = vmatprep.subr.mxu0 0.0
  %2789 = vmatpush1.msra.mxu0 0.0
  %2790 = vmatprep.subr.mxu0 0.0
  %2791 = vmatpush1.msra.mxu0 0.0
  %2792 = vmatprep.subr.mxu0 0.0
  %2793 = vmatpush1.msra.mxu0 0.0
  %2794 = vmatprep.mubr.f32.mxu0 0.0
  %2795 = vmatmul.mubr.f32.gmra.mrb[0].mxu0 %v2728
  %v2796 = vpop.f32.mrb[0].mxu0
  %v2797 = vadd.f32 0.0, %v2796
  %v2798 = vpop.f32.mrb[0].mxu0
  %2799 = vdwg.mxu0
  %v2800 = vld [vmem:[%s41] sm:$0xff]
  %v2801 = vld [vmem:[%s41 + $0x8] sm:$0xff]
  %v2802 = vld [vmem:[%s41 + $0x10] sm:$0xff]
  %v2803 = vld [vmem:[%s41 + $0x18] sm:$0xff]
  %v2804 = vld [vmem:[%s43] sm:$0x1]
  %v2806 = vlaneseq
  %v2807 = vshrl.u32 %v2806, 7
  %v2808 = vsub.s32 0, %v2807
  %v2809 = vrot.slane %v2804, %v2808
  %v2812 = vsel %vm414, %v2797, 0
  %2814 = vmatprep.subr.mxu0 0.0
  %2815 = vmatpush1.msra.mxu0 %v2800
  %2816 = vmatprep.subr.mxu0 0.0
  %2817 = vmatpush1.msra.mxu0 %v2801
  %2818 = vmatprep.subr.mxu0 0.0
  %2819 = vmatpush1.msra.mxu0 %v2802
  %2820 = vmatprep.subr.mxu0 0.0
  %2821 = vmatpush1.msra.mxu0 %v2803
  %2822 = vmatprep.subr.mxu0 0.0
  %2823 = vmatpush1.msra.mxu0 0.0
  %2824 = vmatprep.subr.mxu0 0.0
  %2825 = vmatpush1.msra.mxu0 0.0
  %2826 = vmatprep.subr.mxu0 0.0
  %2827 = vmatpush1.msra.mxu0 0.0
  %2828 = vmatprep.subr.mxu0 0.0
  %2829 = vmatpush1.msra.mxu0 0.0
  %2830 = vmatprep.subr.mxu0 0.0
  %2831 = vmatpush1.msra.mxu0 0.0
  %2832 = vmatprep.subr.mxu0 0.0
  %2833 = vmatpush1.msra.mxu0 0.0
  %2834 = vmatprep.subr.mxu0 0.0
  %2835 = vmatpush1.msra.mxu0 0.0
  %2836 = vmatprep.subr.mxu0 0.0
  %2837 = vmatpush1.msra.mxu0 0.0
  %2838 = vmatprep.subr.mxu0 0.0
  %2839 = vmatpush1.msra.mxu0 0.0
  %2840 = vmatprep.subr.mxu0 0.0
  %2841 = vmatpush1.msra.mxu0 0.0
  %2842 = vmatprep.subr.mxu0 0.0
  %2843 = vmatpush1.msra.mxu0 0.0
  %2844 = vmatprep.subr.mxu0 0.0
  %2845 = vmatpush1.msra.mxu0 0.0
  %2846 = vmatprep.subr.mxu0 0.0
  %2847 = vmatpush1.msra.mxu0 0.0
  %2848 = vmatprep.subr.mxu0 0.0
  %2849 = vmatpush1.msra.mxu0 0.0
  %2850 = vmatprep.subr.mxu0 0.0
  %2851 = vmatpush1.msra.mxu0 0.0
  %2852 = vmatprep.subr.mxu0 0.0
  %2853 = vmatpush1.msra.mxu0 0.0
  %2854 = vmatprep.subr.mxu0 0.0
  %2855 = vmatpush1.msra.mxu0 0.0
  %2856 = vmatprep.subr.mxu0 0.0
  %2857 = vmatpush1.msra.mxu0 0.0
  %2858 = vmatprep.subr.mxu0 0.0
  %2859 = vmatpush1.msra.mxu0 0.0
  %2860 = vmatprep.subr.mxu0 0.0
  %2861 = vmatpush1.msra.mxu0 0.0
  %2862 = vmatprep.subr.mxu0 0.0
  %2863 = vmatpush1.msra.mxu0 0.0
  %2864 = vmatprep.subr.mxu0 0.0
  %2865 = vmatpush1.msra.mxu0 0.0
  %2866 = vmatprep.subr.mxu0 0.0
  %2867 = vmatpush1.msra.mxu0 0.0
  %2868 = vmatprep.subr.mxu0 0.0
  %2869 = vmatpush1.msra.mxu0 0.0
  %2870 = vmatprep.subr.mxu0 0.0
  %2871 = vmatpush1.msra.mxu0 0.0
  %2872 = vmatprep.subr.mxu0 0.0
  %2873 = vmatpush1.msra.mxu0 0.0
  %2874 = vmatprep.subr.mxu0 0.0
  %2875 = vmatpush1.msra.mxu0 0.0
  %2876 = vmatprep.subr.mxu0 0.0
  %2877 = vmatpush1.msra.mxu0 0.0
  %2878 = vmatprep.mubr.f32.mxu0 0.0
  %2879 = vmatmul.mubr.f32.gmra.mrb[0].mxu0 %v2812
  %v2880 = vpop.f32.mrb[0].mxu0
  %v2881 = vadd.f32 %v2809, %v2880
  %v2882 = vpop.f32.mrb[0].mxu0
  %2883 = vdwg.mxu0
  %v2884 = vadd.f32 %v2532, %v2881
  %v2885 = vld [vmem:[%s45] sm:$0xff]
  %v2886 = vld [vmem:[%s45 + $0x8] sm:$0xff]
  %v2887 = vld [vmem:[%s45 + $0x10] sm:$0xff]
  %v2888 = vld [vmem:[%s45 + $0x18] sm:$0xff]
  %v2889 = vld [vmem:[%s47] sm:$0x1]
  %v2891 = vlaneseq
  %v2892 = vshrl.u32 %v2891, 7
  %v2893 = vsub.s32 0, %v2892
  %v2894 = vrot.slane %v2889, %v2893
  %v2897 = vsel %vm414, %v2884, 0
  %2899 = vmatprep.subr.mxu0 0.0
  %2900 = vmatpush1.msra.mxu0 %v2885
  %2901 = vmatprep.subr.mxu0 0.0
  %2902 = vmatpush1.msra.mxu0 %v2886
  %2903 = vmatprep.subr.mxu0 0.0
  %2904 = vmatpush1.msra.mxu0 %v2887
  %2905 = vmatprep.subr.mxu0 0.0
  %2906 = vmatpush1.msra.mxu0 %v2888
  %2907 = vmatprep.subr.mxu0 0.0
  %2908 = vmatpush1.msra.mxu0 0.0
  %2909 = vmatprep.subr.mxu0 0.0
  %2910 = vmatpush1.msra.mxu0 0.0
  %2911 = vmatprep.subr.mxu0 0.0
  %2912 = vmatpush1.msra.mxu0 0.0
  %2913 = vmatprep.subr.mxu0 0.0
  %2914 = vmatpush1.msra.mxu0 0.0
  %2915 = vmatprep.subr.mxu0 0.0
  %2916 = vmatpush1.msra.mxu0 0.0
  %2917 = vmatprep.subr.mxu0 0.0
  %2918 = vmatpush1.msra.mxu0 0.0
  %2919 = vmatprep.subr.mxu0 0.0
  %2920 = vmatpush1.msra.mxu0 0.0
  %2921 = vmatprep.subr.mxu0 0.0
  %2922 = vmatpush1.msra.mxu0 0.0
  %2923 = vmatprep.subr.mxu0 0.0
  %2924 = vmatpush1.msra.mxu0 0.0
  %2925 = vmatprep.subr.mxu0 0.0
  %2926 = vmatpush1.msra.mxu0 0.0
  %2927 = vmatprep.subr.mxu0 0.0
  %2928 = vmatpush1.msra.mxu0 0.0
  %2929 = vmatprep.subr.mxu0 0.0
  %2930 = vmatpush1.msra.mxu0 0.0
  %2931 = vmatprep.subr.mxu0 0.0
  %2932 = vmatpush1.msra.mxu0 0.0
  %2933 = vmatprep.subr.mxu0 0.0
  %2934 = vmatpush1.msra.mxu0 0.0
  %2935 = vmatprep.subr.mxu0 0.0
  %2936 = vmatpush1.msra.mxu0 0.0
  %2937 = vmatprep.subr.mxu0 0.0
  %2938 = vmatpush1.msra.mxu0 0.0
  %2939 = vmatprep.subr.mxu0 0.0
  %2940 = vmatpush1.msra.mxu0 0.0
  %2941 = vmatprep.subr.mxu0 0.0
  %2942 = vmatpush1.msra.mxu0 0.0
  %2943 = vmatprep.subr.mxu0 0.0
  %2944 = vmatpush1.msra.mxu0 0.0
  %2945 = vmatprep.subr.mxu0 0.0
  %2946 = vmatpush1.msra.mxu0 0.0
  %2947 = vmatprep.subr.mxu0 0.0
  %2948 = vmatpush1.msra.mxu0 0.0
  %2949 = vmatprep.subr.mxu0 0.0
  %2950 = vmatpush1.msra.mxu0 0.0
  %2951 = vmatprep.subr.mxu0 0.0
  %2952 = vmatpush1.msra.mxu0 0.0
  %2953 = vmatprep.subr.mxu0 0.0
  %2954 = vmatpush1.msra.mxu0 0.0
  %2955 = vmatprep.subr.mxu0 0.0
  %2956 = vmatpush1.msra.mxu0 0.0
  %2957 = vmatprep.subr.mxu0 0.0
  %2958 = vmatpush1.msra.mxu0 0.0
  %2959 = vmatprep.subr.mxu0 0.0
  %2960 = vmatpush1.msra.mxu0 0.0
  %2961 = vmatprep.subr.mxu0 0.0
  %2962 = vmatpush1.msra.mxu0 0.0
  %2963 = vmatprep.mubr.f32.mxu0 0.0
  %2964 = vmatmul.mubr.f32.gmra.mrb[0].mxu0 %v2897
  %v2965 = vpop.f32.mrb[0].mxu0
  %v2966 = vadd.f32 %v2894, %v2965
  %v2967 = vpop.f32.mrb[0].mxu0
  %2968 = vdwg.mxu0
  %v2969 = vmax.f32 %v2966, 0.0
  %v2970 = vld [vmem:[%s49] sm:$0xff]
  %v2971 = vld [vmem:[%s49 + $0x8] sm:$0xff]
  %v2972 = vld [vmem:[%s49 + $0x10] sm:$0xff]
  %v2973 = vld [vmem:[%s49 + $0x18] sm:$0xff]
  %v2974 = vld [vmem:[%s49 + $0x20] sm:$0xff]
  %v2975 = vld [vmem:[%s49 + $0x28] sm:$0xff]
  %v2976 = vld [vmem:[%s49 + $0x30] sm:$0xff]
  %v2977 = vld [vmem:[%s49 + $0x38] sm:$0xff]
  %v2978 = vld [vmem:[%s51] sm:$0x1]
  %v2980 = vlaneseq
  %v2981 = vshrl.u32 %v2980, 7
  %v2982 = vsub.s32 0, %v2981
  %v2983 = vrot.slane %v2978, %v2982
  %v2986 = vsel %vm209, %v2969, 0
  %2988 = vmatprep.subr.mxu0 0.0
  %2989 = vmatpush1.msra.mxu0 %v2970
  %2990 = vmatprep.subr.mxu0 0.0
  %2991 = vmatpush1.msra.mxu0 %v2971
  %2992 = vmatprep.subr.mxu0 0.0
  %2993 = vmatpush1.msra.mxu0 %v2972
  %2994 = vmatprep.subr.mxu0 0.0
  %2995 = vmatpush1.msra.mxu0 %v2973
  %2996 = vmatprep.subr.mxu0 0.0
  %2997 = vmatpush1.msra.mxu0 %v2974
  %2998 = vmatprep.subr.mxu0 0.0
  %2999 = vmatpush1.msra.mxu0 %v2975
  %3000 = vmatprep.subr.mxu0 0.0
  %3001 = vmatpush1.msra.mxu0 %v2976
  %3002 = vmatprep.subr.mxu0 0.0
  %3003 = vmatpush1.msra.mxu0 %v2977
  %3004 = vmatprep.subr.mxu0 0.0
  %3005 = vmatpush1.msra.mxu0 0.0
  %3006 = vmatprep.subr.mxu0 0.0
  %3007 = vmatpush1.msra.mxu0 0.0
  %3008 = vmatprep.subr.mxu0 0.0
  %3009 = vmatpush1.msra.mxu0 0.0
  %3010 = vmatprep.subr.mxu0 0.0
  %3011 = vmatpush1.msra.mxu0 0.0
  %3012 = vmatprep.subr.mxu0 0.0
  %3013 = vmatpush1.msra.mxu0 0.0
  %3014 = vmatprep.subr.mxu0 0.0
  %3015 = vmatpush1.msra.mxu0 0.0
  %3016 = vmatprep.subr.mxu0 0.0
  %3017 = vmatpush1.msra.mxu0 0.0
  %3018 = vmatprep.subr.mxu0 0.0
  %3019 = vmatpush1.msra.mxu0 0.0
  %3020 = vmatprep.subr.mxu0 0.0
  %3021 = vmatpush1.msra.mxu0 0.0
  %3022 = vmatprep.subr.mxu0 0.0
  %3023 = vmatpush1.msra.mxu0 0.0
  %3024 = vmatprep.subr.mxu0 0.0
  %3025 = vmatpush1.msra.mxu0 0.0
  %3026 = vmatprep.subr.mxu0 0.0
  %3027 = vmatpush1.msra.mxu0 0.0
  %3028 = vmatprep.subr.mxu0 0.0
  %3029 = vmatpush1.msra.mxu0 0.0
  %3030 = vmatprep.subr.mxu0 0.0
  %3031 = vmatpush1.msra.mxu0 0.0
  %3032 = vmatprep.subr.mxu0 0.0
  %3033 = vmatpush1.msra.mxu0 0.0
  %3034 = vmatprep.subr.mxu0 0.0
  %3035 = vmatpush1.msra.mxu0 0.0
  %3036 = vmatprep.subr.mxu0 0.0
  %3037 = vmatpush1.msra.mxu0 0.0
  %3038 = vmatprep.subr.mxu0 0.0
  %3039 = vmatpush1.msra.mxu0 0.0
  %3040 = vmatprep.subr.mxu0 0.0
  %3041 = vmatpush1.msra.mxu0 0.0
  %3042 = vmatprep.subr.mxu0 0.0
  %3043 = vmatpush1.msra.mxu0 0.0
  %3044 = vmatprep.subr.mxu0 0.0
  %3045 = vmatpush1.msra.mxu0 0.0
  %3046 = vmatprep.subr.mxu0 0.0
  %3047 = vmatpush1.msra.mxu0 0.0
  %3048 = vmatprep.subr.mxu0 0.0
  %3049 = vmatpush1.msra.mxu0 0.0
  %3050 = vmatprep.subr.mxu0 0.0
  %3051 = vmatpush1.msra.mxu0 0.0
  %3052 = vmatprep.mubr.f32.mxu0 0.0
  %3053 = vmatmul.mubr.f32.gmra.mrb[0].mxu0 %v2986
  %v3054 = vpop.f32.mrb[0].mxu0
  %v3055 = vadd.f32 %v2983, %v3054
  %v3056 = vpop.f32.mrb[0].mxu0
  %3057 = vdwg.mxu0
  %v3058 = vadd.f32 %v2884, %v3055
  %v3059 = vld [vmem:[%s53] sm:$0xff]
  %v3060 = vld [vmem:[%s53 + $0x8] sm:$0xff]
  %v3061 = vld [vmem:[%s53 + $0x10] sm:$0xff]
  %v3062 = vld [vmem:[%s53 + $0x18] sm:$0xff]
  %v3063 = vld [vmem:[%s55] sm:$0x1]
  %v3065 = vlaneseq
  %v3066 = vshrl.u32 %v3065, 7
  %v3067 = vsub.s32 0, %v3066
  %v3068 = vrot.slane %v3063, %v3067
  %v3071 = vsel %vm414, %v3058, 0
  %3073 = vmatprep.subr.mxu0 0.0
  %3074 = vmatpush1.msra.mxu0 %v3059
  %3075 = vmatprep.subr.mxu0 0.0
  %3076 = vmatpush1.msra.mxu0 %v3060
  %3077 = vmatprep.subr.mxu0 0.0
  %3078 = vmatpush1.msra.mxu0 %v3061
  %3079 = vmatprep.subr.mxu0 0.0
  %3080 = vmatpush1.msra.mxu0 %v3062
  %3081 = vmatprep.subr.mxu0 0.0
  %3082 = vmatpush1.msra.mxu0 0.0
  %3083 = vmatprep.subr.mxu0 0.0
  %3084 = vmatpush1.msra.mxu0 0.0
  %3085 = vmatprep.subr.mxu0 0.0
  %3086 = vmatpush1.msra.mxu0 0.0
  %3087 = vmatprep.subr.mxu0 0.0
  %3088 = vmatpush1.msra.mxu0 0.0
  %3089 = vmatprep.subr.mxu0 0.0
  %3090 = vmatpush1.msra.mxu0 0.0
  %3091 = vmatprep.subr.mxu0 0.0
  %3092 = vmatpush1.msra.mxu0 0.0
  %3093 = vmatprep.subr.mxu0 0.0
  %3094 = vmatpush1.msra.mxu0 0.0
  %3095 = vmatprep.subr.mxu0 0.0
  %3096 = vmatpush1.msra.mxu0 0.0
  %3097 = vmatprep.subr.mxu0 0.0
  %3098 = vmatpush1.msra.mxu0 0.0
  %3099 = vmatprep.subr.mxu0 0.0
  %3100 = vmatpush1.msra.mxu0 0.0
  %3101 = vmatprep.subr.mxu0 0.0
  %3102 = vmatpush1.msra.mxu0 0.0
  %3103 = vmatprep.subr.mxu0 0.0
  %3104 = vmatpush1.msra.mxu0 0.0
  %3105 = vmatprep.subr.mxu0 0.0
  %3106 = vmatpush1.msra.mxu0 0.0
  %3107 = vmatprep.subr.mxu0 0.0
  %3108 = vmatpush1.msra.mxu0 0.0
  %3109 = vmatprep.subr.mxu0 0.0
  %3110 = vmatpush1.msra.mxu0 0.0
  %3111 = vmatprep.subr.mxu0 0.0
  %3112 = vmatpush1.msra.mxu0 0.0
  %3113 = vmatprep.subr.mxu0 0.0
  %3114 = vmatpush1.msra.mxu0 0.0
  %3115 = vmatprep.subr.mxu0 0.0
  %3116 = vmatpush1.msra.mxu0 0.0
  %3117 = vmatprep.subr.mxu0 0.0
  %3118 = vmatpush1.msra.mxu0 0.0
  %3119 = vmatprep.subr.mxu0 0.0
  %3120 = vmatpush1.msra.mxu0 0.0
  %3121 = vmatprep.subr.mxu0 0.0
  %3122 = vmatpush1.msra.mxu0 0.0
  %3123 = vmatprep.subr.mxu0 0.0
  %3124 = vmatpush1.msra.mxu0 0.0
  %3125 = vmatprep.subr.mxu0 0.0
  %3126 = vmatpush1.msra.mxu0 0.0
  %3127 = vmatprep.subr.mxu0 0.0
  %3128 = vmatpush1.msra.mxu0 0.0
  %3129 = vmatprep.subr.mxu0 0.0
  %3130 = vmatpush1.msra.mxu0 0.0
  %3131 = vmatprep.subr.mxu0 0.0
  %3132 = vmatpush1.msra.mxu0 0.0
  %3133 = vmatprep.subr.mxu0 0.0
  %3134 = vmatpush1.msra.mxu0 0.0
  %3135 = vmatprep.subr.mxu0 0.0
  %3136 = vmatpush1.msra.mxu0 0.0
  %3137 = vmatprep.mubr.f32.mxu0 0.0
  %3138 = vmatmul.mubr.f32.gmra.mrb[0].mxu0 %v3071
  %v3139 = vpop.f32.mrb[0].mxu0
  %v3140 = vadd.f32 %v3068, %v3139
  %v3141 = vpop.f32.mrb[0].mxu0
  %3142 = vdwg.mxu0
  %3143 = vrot.lane.b32.xlu0 %v2250, 96
  %v3144 = vpop.permute.xlu0 %3143
  %3145 = vrot.lane.b32.xlu0 %v2255, 96
  %v3146 = vpop.permute.xlu0 %3145
  %3147 = vrot.lane.b32.xlu0 %v2260, 96
  %v3148 = vpop.permute.xlu0 %3147
  %3149 = vrot.lane.b32.xlu0 %v2265, 96
  %v3150 = vpop.permute.xlu0 %3149
  %3151 = vrot.lane.b32.xlu0 %v2270, 96
  %v3152 = vpop.permute.xlu0 %3151
  %3153 = vrot.lane.b32.xlu0 %v2275, 96
  %v3154 = vpop.permute.xlu0 %3153
  %3155 = vrot.lane.b32.xlu0 %v2280, 96
  %v3156 = vpop.permute.xlu0 %3155
  %3157 = vrot.lane.b32.xlu0 %v2285, 96
  %v3158 = vpop.permute.xlu0 %3157
  %v3159 = vsel %vm414, %v3144, 0
  %v3161 = vsel %vm414, %v3146, 0
  %v3163 = vsel %vm414, %v3148, 0
  %v3165 = vsel %vm414, %v3150, 0
  %v3167 = vsel %vm414, %v3152, 0
  %v3169 = vsel %vm414, %v3154, 0
  %v3171 = vsel %vm414, %v3156, 0
  %v3173 = vsel %vm414, %v3158, 0
  %v3176 = vsel %vm414, %v3140, 0
  %3178 = vmatprep.subr.mxu0 0.0
  %3179 = vmatpush1.xpose.msra.mxu0 %v3176
  %3180 = vmatprep.subr.mxu0 0.0
  %3181 = vmatpush1.xpose.msra.mxu0 0.0
  %3182 = vmatprep.subr.mxu0 0.0
  %3183 = vmatpush1.xpose.msra.mxu0 0.0
  %3184 = vmatprep.subr.mxu0 0.0
  %3185 = vmatpush1.xpose.msra.mxu0 0.0
  %3186 = vmatprep.subr.mxu0 0.0
  %3187 = vmatpush1.xpose.msra.mxu0 0.0
  %3188 = vmatprep.subr.mxu0 0.0
  %3189 = vmatpush1.xpose.msra.mxu0 0.0
  %3190 = vmatprep.subr.mxu0 0.0
  %3191 = vmatpush1.xpose.msra.mxu0 0.0
  %3192 = vmatprep.subr.mxu0 0.0
  %3193 = vmatpush1.xpose.msra.mxu0 0.0
  %3194 = vmatprep.subr.mxu0 0.0
  %3195 = vmatpush1.xpose.msra.mxu0 0.0
  %3196 = vmatprep.subr.mxu0 0.0
  %3197 = vmatpush1.xpose.msra.mxu0 0.0
  %3198 = vmatprep.subr.mxu0 0.0
  %3199 = vmatpush1.xpose.msra.mxu0 0.0
  %3200 = vmatprep.subr.mxu0 0.0
  %3201 = vmatpush1.xpose.msra.mxu0 0.0
  %3202 = vmatprep.subr.mxu0 0.0
  %3203 = vmatpush1.xpose.msra.mxu0 0.0
  %3204 = vmatprep.subr.mxu0 0.0
  %3205 = vmatpush1.xpose.msra.mxu0 0.0
  %3206 = vmatprep.subr.mxu0 0.0
  %3207 = vmatpush1.xpose.msra.mxu0 0.0
  %3208 = vmatprep.subr.mxu0 0.0
  %3209 = vmatpush1.xpose.msra.mxu0 0.0
  %3210 = vmatprep.subr.mxu0 0.0
  %3211 = vmatpush1.xpose.msra.mxu0 0.0
  %3212 = vmatprep.subr.mxu0 0.0
  %3213 = vmatpush1.xpose.msra.mxu0 0.0
  %3214 = vmatprep.subr.mxu0 0.0
  %3215 = vmatpush1.xpose.msra.mxu0 0.0
  %3216 = vmatprep.subr.mxu0 0.0
  %3217 = vmatpush1.xpose.msra.mxu0 0.0
  %3218 = vmatprep.subr.mxu0 0.0
  %3219 = vmatpush1.xpose.msra.mxu0 0.0
  %3220 = vmatprep.subr.mxu0 0.0
  %3221 = vmatpush1.xpose.msra.mxu0 0.0
  %3222 = vmatprep.subr.mxu0 0.0
  %3223 = vmatpush1.xpose.msra.mxu0 0.0
  %3224 = vmatprep.subr.mxu0 0.0
  %3225 = vmatpush1.xpose.msra.mxu0 0.0
  %3226 = vmatprep.subr.mxu0 0.0
  %3227 = vmatpush1.xpose.msra.mxu0 0.0
  %3228 = vmatprep.subr.mxu0 0.0
  %3229 = vmatpush1.xpose.msra.mxu0 0.0
  %3230 = vmatprep.subr.mxu0 0.0
  %3231 = vmatpush1.xpose.msra.mxu0 0.0
  %3232 = vmatprep.subr.mxu0 0.0
  %3233 = vmatpush1.xpose.msra.mxu0 0.0
  %3234 = vmatprep.subr.mxu0 0.0
  %3235 = vmatpush1.xpose.msra.mxu0 0.0
  %3236 = vmatprep.subr.mxu0 0.0
  %3237 = vmatpush1.xpose.msra.mxu0 0.0
  %3238 = vmatprep.subr.mxu0 0.0
  %3239 = vmatpush1.xpose.msra.mxu0 0.0
  %3240 = vmatprep.subr.mxu0 0.0
  %3241 = vmatpush1.xpose.msra.mxu0 0.0
  %3242 = vmatprep.mubr.f32.mxu0 0.0
  %3243 = vmatmul.mubr.f32.gmra.mrb[0].mxu0 %v3159
  %v3244 = vpop.f32.mrb[0].mxu0
  %v3245 = vadd.f32 0.0, %v3244
  %v3246 = vpop.f32.mrb[0].mxu0
  %3247 = vmatprep.mubr.f32.mxu0 0.0
  %3248 = vmatmul.mubr.f32.gmra.mrb[0].mxu0 %v3161
  %v3249 = vpop.f32.mrb[0].mxu0
  %v3250 = vadd.f32 0.0, %v3249
  %v3251 = vpop.f32.mrb[0].mxu0
  %3252 = vmatprep.mubr.f32.mxu0 0.0
  %3253 = vmatmul.mubr.f32.gmra.mrb[0].mxu0 %v3163
  %v3254 = vpop.f32.mrb[0].mxu0
  %v3255 = vadd.f32 0.0, %v3254
  %v3256 = vpop.f32.mrb[0].mxu0
  %3257 = vmatprep.mubr.f32.mxu0 0.0
  %3258 = vmatmul.mubr.f32.gmra.mrb[0].mxu0 %v3165
  %v3259 = vpop.f32.mrb[0].mxu0
  %v3260 = vadd.f32 0.0, %v3259
  %v3261 = vpop.f32.mrb[0].mxu0
  %3262 = vmatprep.mubr.f32.mxu0 0.0
  %3263 = vmatmul.mubr.f32.gmra.mrb[0].mxu0 %v3167
  %v3264 = vpop.f32.mrb[0].mxu0
  %v3265 = vadd.f32 0.0, %v3264
  %v3266 = vpop.f32.mrb[0].mxu0
  %3267 = vmatprep.mubr.f32.mxu0 0.0
  %3268 = vmatmul.mubr.f32.gmra.mrb[0].mxu0 %v3169
  %v3269 = vpop.f32.mrb[0].mxu0
  %v3270 = vadd.f32 0.0, %v3269
  %v3271 = vpop.f32.mrb[0].mxu0
  %3272 = vmatprep.mubr.f32.mxu0 0.0
  %3273 = vmatmul.mubr.f32.gmra.mrb[0].mxu0 %v3171
  %v3274 = vpop.f32.mrb[0].mxu0
  %v3275 = vadd.f32 0.0, %v3274
  %v3276 = vpop.f32.mrb[0].mxu0
  %3277 = vmatprep.mubr.f32.mxu0 0.0
  %3278 = vmatmul.mubr.f32.gmra.mrb[0].mxu0 %v3173
  %v3279 = vpop.f32.mrb[0].mxu0
  %v3280 = vadd.f32 0.0, %v3279
  %v3281 = vpop.f32.mrb[0].mxu0
  %3282 = vdwg.mxu0
  %v3283 = vmul.f32 %v3245, 0.17677669
  %v3284 = vmul.f32 %v3250, 0.17677669
  %v3285 = vmul.f32 %v3255, 0.17677669
  %v3286 = vmul.f32 %v3260, 0.17677669
  %v3287 = vmul.f32 %v3265, 0.17677669
  %v3288 = vmul.f32 %v3270, 0.17677669
  %v3289 = vmul.f32 %v3275, 0.17677669
  %v3290 = vmul.f32 %v3280, 0.17677669
  %vm3291 = vcmask 48128
  %v3292 = vsel %vm3291, %v3283, -inf
  %3293 = vmax.xlane.f32.xlu0 %v3292
  %v3294 = vpop.xlane.xlu0 %3293
  %v3295 = vsel %vm3291, %v3284, -inf
  %3296 = vmax.xlane.f32.xlu0 %v3295
  %v3297 = vpop.xlane.xlu0 %3296
  %v3298 = vsel %vm3291, %v3285, -inf
  %3299 = vmax.xlane.f32.xlu0 %v3298
  %v3300 = vpop.xlane.xlu0 %3299
  %v3301 = vsel %vm3291, %v3286, -inf
  %3302 = vmax.xlane.f32.xlu0 %v3301
  %v3303 = vpop.xlane.xlu0 %3302
  %v3304 = vsel %vm3291, %v3287, -inf
  %3305 = vmax.xlane.f32.xlu0 %v3304
  %v3306 = vpop.xlane.xlu0 %3305
  %v3307 = vsel %vm3291, %v3288, -inf
  %3308 = vmax.xlane.f32.xlu0 %v3307
  %v3309 = vpop.xlane.xlu0 %3308
  %v3310 = vsel %vm3291, %v3289, -inf
  %3311 = vmax.xlane.f32.xlu0 %v3310
  %v3312 = vpop.xlane.xlu0 %3311
  %v3313 = vsel %vm3291, %v3290, -inf
  %3314 = vmax.xlane.f32.xlu0 %v3313
  %v3315 = vpop.xlane.xlu0 %3314
  %v3316 = vsub.f32 %v3283, %v3294
  %v3317 = vsub.f32 %v3284, %v3297
  %v3318 = vsub.f32 %v3285, %v3300
  %v3319 = vsub.f32 %v3286, %v3303
  %v3320 = vsub.f32 %v3287, %v3306
  %v3321 = vsub.f32 %v3288, %v3309
  %v3322 = vsub.f32 %v3289, %v3312
  %v3323 = vsub.f32 %v3290, %v3315
  %v3324 = vmul.f32 %v3316, 1.442695
  %v3325 = vpow.pop %v3324
  %v3326 = vmul.f32 %v3317, 1.442695
  %v3327 = vpow.pop %v3326
  %v3328 = vmul.f32 %v3318, 1.442695
  %v3329 = vpow.pop %v3328
  %v3330 = vmul.f32 %v3319, 1.442695
  %v3331 = vpow.pop %v3330
  %v3332 = vmul.f32 %v3320, 1.442695
  %v3333 = vpow.pop %v3332
  %v3334 = vmul.f32 %v3321, 1.442695
  %v3335 = vpow.pop %v3334
  %v3336 = vmul.f32 %v3322, 1.442695
  %v3337 = vpow.pop %v3336
  %v3338 = vmul.f32 %v3323, 1.442695
  %v3339 = vpow.pop %v3338
  %v3340 = vsel %vm3291, %v3325, 0.0
  %3341 = vadd.xlane.f32.xlu0 %v3340
  %v3342 = vpop.xlane.xlu0 %3341
  %v3343 = vsel %vm3291, %v3327, 0.0
  %3344 = vadd.xlane.f32.xlu0 %v3343
  %v3345 = vpop.xlane.xlu0 %3344
  %v3346 = vsel %vm3291, %v3329, 0.0
  %3347 = vadd.xlane.f32.xlu0 %v3346
  %v3348 = vpop.xlane.xlu0 %3347
  %v3349 = vsel %vm3291, %v3331, 0.0
  %3350 = vadd.xlane.f32.xlu0 %v3349
  %v3351 = vpop.xlane.xlu0 %3350
  %v3352 = vsel %vm3291, %v3333, 0.0
  %3353 = vadd.xlane.f32.xlu0 %v3352
  %v3354 = vpop.xlane.xlu0 %3353
  %v3355 = vsel %vm3291, %v3335, 0.0
  %3356 = vadd.xlane.f32.xlu0 %v3355
  %v3357 = vpop.xlane.xlu0 %3356
  %v3358 = vsel %vm3291, %v3337, 0.0
  %3359 = vadd.xlane.f32.xlu0 %v3358
  %v3360 = vpop.xlane.xlu0 %3359
  %v3361 = vsel %vm3291, %v3339, 0.0
  %3362 = vadd.xlane.f32.xlu0 %v3361
  %v3363 = vpop.xlane.xlu0 %3362
  %v3364 = vrcp.pop %v3342
  %v3365 = vrcp.pop %v3345
  %v3366 = vrcp.pop %v3348
  %v3367 = vrcp.pop %v3351
  %v3368 = vrcp.pop %v3354
  %v3369 = vrcp.pop %v3357
  %v3370 = vrcp.pop %v3360
  %v3371 = vrcp.pop %v3363
  %v3372 = vmul.f32 %v3325, %v3364
  %v3373 = vmul.f32 %v3327, %v3365
  %v3374 = vmul.f32 %v3329, %v3366
  %v3375 = vmul.f32 %v3331, %v3367
  %v3376 = vmul.f32 %v3333, %v3368
  %v3377 = vmul.f32 %v3335, %v3369
  %v3378 = vmul.f32 %v3337, %v3370
  %v3379 = vmul.f32 %v3339, %v3371
  %3380 = vrot.lane.b32.xlu0 %v3140, 96
  %v3381 = vpop.permute.xlu0 %3380
  %v3383 = vsel %vm3291, %v3372, 0
  %v3386 = vsel %vm3291, %v3373, 0
  %v3389 = vsel %vm3291, %v3374, 0
  %v3392 = vsel %vm3291, %v3375, 0
  %v3395 = vsel %vm3291, %v3376, 0
  %v3398 = vsel %vm3291, %v3377, 0
  %v3401 = vsel %vm3291, %v3378, 0
  %v3404 = vsel %vm3291, %v3379, 0
  %vm3406 = vcmask 1045504
  %v3407 = vsel %vm3406, %v3381, 0
  %3409 = vmatprep.subr.mxu0 0.0
  %3410 = vmatpush1.msra.mxu0 %v3407
  %3411 = vmatprep.subr.mxu0 0.0
  %3412 = vmatpush1.msra.mxu0 0.0
  %3413 = vmatprep.subr.mxu0 0.0
  %3414 = vmatpush1.msra.mxu0 0.0
  %3415 = vmatprep.subr.mxu0 0.0
  %3416 = vmatpush1.msra.mxu0 0.0
  %3417 = vmatprep.subr.mxu0 0.0
  %3418 = vmatpush1.msra.mxu0 0.0
  %3419 = vmatprep.subr.mxu0 0.0
  %3420 = vmatpush1.msra.mxu0 0.0
  %3421 = vmatprep.subr.mxu0 0.0
  %3422 = vmatpush1.msra.mxu0 0.0
  %3423 = vmatprep.subr.mxu0 0.0
  %3424 = vmatpush1.msra.mxu0 0.0
  %3425 = vmatprep.subr.mxu0 0.0
  %3426 = vmatpush1.msra.mxu0 0.0
  %3427 = vmatprep.subr.mxu0 0.0
  %3428 = vmatpush1.msra.mxu0 0.0
  %3429 = vmatprep.subr.mxu0 0.0
  %3430 = vmatpush1.msra.mxu0 0.0
  %3431 = vmatprep.subr.mxu0 0.0
  %3432 = vmatpush1.msra.mxu0 0.0
  %3433 = vmatprep.subr.mxu0 0.0
  %3434 = vmatpush1.msra.mxu0 0.0
  %3435 = vmatprep.subr.mxu0 0.0
  %3436 = vmatpush1.msra.mxu0 0.0
  %3437 = vmatprep.subr.mxu0 0.0
  %3438 = vmatpush1.msra.mxu0 0.0
  %3439 = vmatprep.subr.mxu0 0.0
  %3440 = vmatpush1.msra.mxu0 0.0
  %3441 = vmatprep.subr.mxu0 0.0
  %3442 = vmatpush1.msra.mxu0 0.0
  %3443 = vmatprep.subr.mxu0 0.0
  %3444 = vmatpush1.msra.mxu0 0.0
  %3445 = vmatprep.subr.mxu0 0.0
  %3446 = vmatpush1.msra.mxu0 0.0
  %3447 = vmatprep.subr.mxu0 0.0
  %3448 = vmatpush1.msra.mxu0 0.0
  %3449 = vmatprep.subr.mxu0 0.0
  %3450 = vmatpush1.msra.mxu0 0.0
  %3451 = vmatprep.subr.mxu0 0.0
  %3452 = vmatpush1.msra.mxu0 0.0
  %3453 = vmatprep.subr.mxu0 0.0
  %3454 = vmatpush1.msra.mxu0 0.0
  %3455 = vmatprep.subr.mxu0 0.0
  %3456 = vmatpush1.msra.mxu0 0.0
  %3457 = vmatprep.subr.mxu0 0.0
  %3458 = vmatpush1.msra.mxu0 0.0
  %3459 = vmatprep.subr.mxu0 0.0
  %3460 = vmatpush1.msra.mxu0 0.0
  %3461 = vmatprep.subr.mxu0 0.0
  %3462 = vmatpush1.msra.mxu0 0.0
  %3463 = vmatprep.subr.mxu0 0.0
  %3464 = vmatpush1.msra.mxu0 0.0
  %3465 = vmatprep.subr.mxu0 0.0
  %3466 = vmatpush1.msra.mxu0 0.0
  %3467 = vmatprep.subr.mxu0 0.0
  %3468 = vmatpush1.msra.mxu0 0.0
  %3469 = vmatprep.subr.mxu0 0.0
  %3470 = vmatpush1.msra.mxu0 0.0
  %3471 = vmatprep.subr.mxu0 0.0
  %3472 = vmatpush1.msra.mxu0 0.0
  %3473 = vmatprep.mubr.f32.mxu0 0.0
  %3474 = vmatmul.mubr.f32.gmra.mrb[0].mxu0 %v3383
  %v3475 = vpop.f32.mrb[0].mxu0
  %v3476 = vadd.f32 0.0, %v3475
  %v3477 = vpop.f32.mrb[0].mxu0
  %3478 = vmatprep.mubr.f32.mxu0 0.0
  %3479 = vmatmul.mubr.f32.gmra.mrb[0].mxu0 %v3386
  %v3480 = vpop.f32.mrb[0].mxu0
  %v3481 = vadd.f32 0.0, %v3480
  %v3482 = vpop.f32.mrb[0].mxu0
  %3483 = vmatprep.mubr.f32.mxu0 0.0
  %3484 = vmatmul.mubr.f32.gmra.mrb[0].mxu0 %v3389
  %v3485 = vpop.f32.mrb[0].mxu0
  %v3486 = vadd.f32 0.0, %v3485
  %v3487 = vpop.f32.mrb[0].mxu0
  %3488 = vmatprep.mubr.f32.mxu0 0.0
  %3489 = vmatmul.mubr.f32.gmra.mrb[0].mxu0 %v3392
  %v3490 = vpop.f32.mrb[0].mxu0
  %v3491 = vadd.f32 0.0, %v3490
  %v3492 = vpop.f32.mrb[0].mxu0
  %3493 = vmatprep.mubr.f32.mxu0 0.0
  %3494 = vmatmul.mubr.f32.gmra.mrb[0].mxu0 %v3395
  %v3495 = vpop.f32.mrb[0].mxu0
  %v3496 = vadd.f32 0.0, %v3495
  %v3497 = vpop.f32.mrb[0].mxu0
  %3498 = vmatprep.mubr.f32.mxu0 0.0
  %3499 = vmatmul.mubr.f32.gmra.mrb[0].mxu0 %v3398
  %v3500 = vpop.f32.mrb[0].mxu0
  %v3501 = vadd.f32 0.0, %v3500
  %v3502 = vpop.f32.mrb[0].mxu0
  %3503 = vmatprep.mubr.f32.mxu0 0.0
  %3504 = vmatmul.mubr.f32.gmra.mrb[0].mxu0 %v3401
  %v3505 = vpop.f32.mrb[0].mxu0
  %v3506 = vadd.f32 0.0, %v3505
  %v3507 = vpop.f32.mrb[0].mxu0
  %3508 = vmatprep.mubr.f32.mxu0 0.0
  %3509 = vmatmul.mubr.f32.gmra.mrb[0].mxu0 %v3404
  %v3510 = vpop.f32.mrb[0].mxu0
  %v3511 = vadd.f32 0.0, %v3510
  %v3512 = vpop.f32.mrb[0].mxu0
  %3513 = vdwg.mxu0
  %v3514 = vld [vmem:[%s57] sm:$0xff]
  %v3515 = vld [vmem:[%s57 + $0x8] sm:$0xff]
  %v3516 = vld [vmem:[%s57 + $0x10] sm:$0xff]
  %v3517 = vld [vmem:[%s57 + $0x18] sm:$0xff]
  %v3518 = vld [vmem:[%s59] sm:$0x1]
  %v3520 = vlaneseq
  %v3521 = vshrl.u32 %v3520, 7
  %v3522 = vsub.s32 0, %v3521
  %v3523 = vrot.slane %v3518, %v3522
  %v3526 = vsel %vm414, %v3476, 0
  %v3529 = vsel %vm414, %v3481, 0
  %v3532 = vsel %vm414, %v3486, 0
  %v3535 = vsel %vm414, %v3491, 0
  %v3538 = vsel %vm414, %v3496, 0
  %v3541 = vsel %vm414, %v3501, 0
  %v3544 = vsel %vm414, %v3506, 0
  %v3547 = vsel %vm414, %v3511, 0
  %3549 = vmatprep.subr.mxu0 0.0
  %3550 = vmatpush1.msra.mxu0 %v3514
  %3551 = vmatprep.subr.mxu0 0.0
  %3552 = vmatpush1.msra.mxu0 %v3515
  %3553 = vmatprep.subr.mxu0 0.0
  %3554 = vmatpush1.msra.mxu0 %v3516
  %3555 = vmatprep.subr.mxu0 0.0
  %3556 = vmatpush1.msra.mxu0 %v3517
  %3557 = vmatprep.subr.mxu0 0.0
  %3558 = vmatpush1.msra.mxu0 0.0
  %3559 = vmatprep.subr.mxu0 0.0
  %3560 = vmatpush1.msra.mxu0 0.0
  %3561 = vmatprep.subr.mxu0 0.0
  %3562 = vmatpush1.msra.mxu0 0.0
  %3563 = vmatprep.subr.mxu0 0.0
  %3564 = vmatpush1.msra.mxu0 0.0
  %3565 = vmatprep.subr.mxu0 0.0
  %3566 = vmatpush1.msra.mxu0 0.0
  %3567 = vmatprep.subr.mxu0 0.0
  %3568 = vmatpush1.msra.mxu0 0.0
  %3569 = vmatprep.subr.mxu0 0.0
  %3570 = vmatpush1.msra.mxu0 0.0
  %3571 = vmatprep.subr.mxu0 0.0
  %3572 = vmatpush1.msra.mxu0 0.0
  %3573 = vmatprep.subr.mxu0 0.0
  %3574 = vmatpush1.msra.mxu0 0.0
  %3575 = vmatprep.subr.mxu0 0.0
  %3576 = vmatpush1.msra.mxu0 0.0
  %3577 = vmatprep.subr.mxu0 0.0
  %3578 = vmatpush1.msra.mxu0 0.0
  %3579 = vmatprep.subr.mxu0 0.0
  %3580 = vmatpush1.msra.mxu0 0.0
  %3581 = vmatprep.subr.mxu0 0.0
  %3582 = vmatpush1.msra.mxu0 0.0
  %3583 = vmatprep.subr.mxu0 0.0
  %3584 = vmatpush1.msra.mxu0 0.0
  %3585 = vmatprep.subr.mxu0 0.0
  %3586 = vmatpush1.msra.mxu0 0.0
  %3587 = vmatprep.subr.mxu0 0.0
  %3588 = vmatpush1.msra.mxu0 0.0
  %3589 = vmatprep.subr.mxu0 0.0
  %3590 = vmatpush1.msra.mxu0 0.0
  %3591 = vmatprep.subr.mxu0 0.0
  %3592 = vmatpush1.msra.mxu0 0.0
  %3593 = vmatprep.subr.mxu0 0.0
  %3594 = vmatpush1.msra.mxu0 0.0
  %3595 = vmatprep.subr.mxu0 0.0
  %3596 = vmatpush1.msra.mxu0 0.0
  %3597 = vmatprep.subr.mxu0 0.0
  %3598 = vmatpush1.msra.mxu0 0.0
  %3599 = vmatprep.subr.mxu0 0.0
  %3600 = vmatpush1.msra.mxu0 0.0
  %3601 = vmatprep.subr.mxu0 0.0
  %3602 = vmatpush1.msra.mxu0 0.0
  %3603 = vmatprep.subr.mxu0 0.0
  %3604 = vmatpush1.msra.mxu0 0.0
  %3605 = vmatprep.subr.mxu0 0.0
  %3606 = vmatpush1.msra.mxu0 0.0
  %3607 = vmatprep.subr.mxu0 0.0
  %3608 = vmatpush1.msra.mxu0 0.0
  %3609 = vmatprep.subr.mxu0 0.0
  %3610 = vmatpush1.msra.mxu0 0.0
  %3611 = vmatprep.subr.mxu0 0.0
  %3612 = vmatpush1.msra.mxu0 0.0
  %3613 = vmatprep.mubr.f32.mxu0 0.0
  %3614 = vmatmul.mubr.f32.gmra.mrb[0].mxu0 %v3526
  %v3615 = vpop.f32.mrb[0].mxu0
  %v3616 = vadd.f32 %v3523, %v3615
  %v3617 = vpop.f32.mrb[0].mxu0
  %3618 = vmatprep.mubr.f32.mxu0 0.0
  %3619 = vmatmul.mubr.f32.gmra.mrb[0].mxu0 %v3529
  %v3620 = vpop.f32.mrb[0].mxu0
  %v3621 = vadd.f32 %v3523, %v3620
  %v3622 = vpop.f32.mrb[0].mxu0
  %3623 = vmatprep.mubr.f32.mxu0 0.0
  %3624 = vmatmul.mubr.f32.gmra.mrb[0].mxu0 %v3532
  %v3625 = vpop.f32.mrb[0].mxu0
  %v3626 = vadd.f32 %v3523, %v3625
  %v3627 = vpop.f32.mrb[0].mxu0
  %3628 = vmatprep.mubr.f32.mxu0 0.0
  %3629 = vmatmul.mubr.f32.gmra.mrb[0].mxu0 %v3535
  %v3630 = vpop.f32.mrb[0].mxu0
  %v3631 = vadd.f32 %v3523, %v3630
  %v3632 = vpop.f32.mrb[0].mxu0
  %3633 = vmatprep.mubr.f32.mxu0 0.0
  %3634 = vmatmul.mubr.f32.gmra.mrb[0].mxu0 %v3538
  %v3635 = vpop.f32.mrb[0].mxu0
  %v3636 = vadd.f32 %v3523, %v3635
  %v3637 = vpop.f32.mrb[0].mxu0
  %3638 = vmatprep.mubr.f32.mxu0 0.0
  %3639 = vmatmul.mubr.f32.gmra.mrb[0].mxu0 %v3541
  %v3640 = vpop.f32.mrb[0].mxu0
  %v3641 = vadd.f32 %v3523, %v3640
  %v3642 = vpop.f32.mrb[0].mxu0
  %3643 = vmatprep.mubr.f32.mxu0 0.0
  %3644 = vmatmul.mubr.f32.gmra.mrb[0].mxu0 %v3544
  %v3645 = vpop.f32.mrb[0].mxu0
  %v3646 = vadd.f32 %v3523, %v3645
  %v3647 = vpop.f32.mrb[0].mxu0
  %3648 = vmatprep.mubr.f32.mxu0 0.0
  %3649 = vmatmul.mubr.f32.gmra.mrb[0].mxu0 %v3547
  %v3650 = vpop.f32.mrb[0].mxu0
  %v3651 = vadd.f32 %v3523, %v3650
  %v3652 = vpop.f32.mrb[0].mxu0
  %3653 = vdwg.mxu0
  %v3654 = vadd.f32 %v2076, %v3616
  %v3655 = vadd.f32 %v2077, %v3621
  %v3656 = vadd.f32 %v2078, %v3626
  %v3657 = vadd.f32 %v2079, %v3631
  %v3658 = vadd.f32 %v2080, %v3636
  %v3659 = vadd.f32 %v2081, %v3641
  %v3660 = vadd.f32 %v2082, %v3646
  %v3661 = vadd.f32 %v2083, %v3651
  %v3662 = vld [vmem:[%s61] sm:$0xff]
  %v3663 = vld [vmem:[%s61 + $0x8] sm:$0xff]
  %v3664 = vld [vmem:[%s61 + $0x10] sm:$0xff]
  %v3665 = vld [vmem:[%s61 + $0x18] sm:$0xff]
  %v3666 = vld [vmem:[%s63] sm:$0x1]
  %v3668 = vlaneseq
  %v3669 = vshrl.u32 %v3668, 7
  %v3670 = vsub.s32 0, %v3669
  %v3671 = vrot.slane %v3666, %v3670
  %3673 = vmatprep.subr.mxu0 0.0
  %3674 = vmatpush1.msra.mxu0 %v3662
  %3675 = vmatprep.subr.mxu0 0.0
  %3676 = vmatpush1.msra.mxu0 %v3663
  %3677 = vmatprep.subr.mxu0 0.0
  %3678 = vmatpush1.msra.mxu0 %v3664
  %3679 = vmatprep.subr.mxu0 0.0
  %3680 = vmatpush1.msra.mxu0 %v3665
  %3681 = vmatprep.subr.mxu0 0.0
  %3682 = vmatpush1.msra.mxu0 0.0
  %3683 = vmatprep.subr.mxu0 0.0
  %3684 = vmatpush1.msra.mxu0 0.0
  %3685 = vmatprep.subr.mxu0 0.0
  %3686 = vmatpush1.msra.mxu0 0.0
  %3687 = vmatprep.subr.mxu0 0.0
  %3688 = vmatpush1.msra.mxu0 0.0
  %3689 = vmatprep.subr.mxu0 0.0
  %3690 = vmatpush1.msra.mxu0 0.0
  %3691 = vmatprep.subr.mxu0 0.0
  %3692 = vmatpush1.msra.mxu0 0.0
  %3693 = vmatprep.subr.mxu0 0.0
  %3694 = vmatpush1.msra.mxu0 0.0
  %3695 = vmatprep.subr.mxu0 0.0
  %3696 = vmatpush1.msra.mxu0 0.0
  %3697 = vmatprep.subr.mxu0 0.0
  %3698 = vmatpush1.msra.mxu0 0.0
  %3699 = vmatprep.subr.mxu0 0.0
  %3700 = vmatpush1.msra.mxu0 0.0
  %3701 = vmatprep.subr.mxu0 0.0
  %3702 = vmatpush1.msra.mxu0 0.0
  %3703 = vmatprep.subr.mxu0 0.0
  %3704 = vmatpush1.msra.mxu0 0.0
  %3705 = vmatprep.subr.mxu0 0.0
  %3706 = vmatpush1.msra.mxu0 0.0
  %3707 = vmatprep.subr.mxu0 0.0
  %3708 = vmatpush1.msra.mxu0 0.0
  %3709 = vmatprep.subr.mxu0 0.0
  %3710 = vmatpush1.msra.mxu0 0.0
  %3711 = vmatprep.subr.mxu0 0.0
  %3712 = vmatpush1.msra.mxu0 0.0
  %3713 = vmatprep.subr.mxu0 0.0
  %3714 = vmatpush1.msra.mxu0 0.0
  %3715 = vmatprep.subr.mxu0 0.0
  %3716 = vmatpush1.msra.mxu0 0.0
  %3717 = vmatprep.subr.mxu0 0.0
  %3718 = vmatpush1.msra.mxu0 0.0
  %3719 = vmatprep.subr.mxu0 0.0
  %3720 = vmatpush1.msra.mxu0 0.0
  %3721 = vmatprep.subr.mxu0 0.0
  %3722 = vmatpush1.msra.mxu0 0.0
  %3723 = vmatprep.subr.mxu0 0.0
  %3724 = vmatpush1.msra.mxu0 0.0
  %3725 = vmatprep.subr.mxu0 0.0
  %3726 = vmatpush1.msra.mxu0 0.0
  %3727 = vmatprep.subr.mxu0 0.0
  %3728 = vmatpush1.msra.mxu0 0.0
  %3729 = vmatprep.subr.mxu0 0.0
  %3730 = vmatpush1.msra.mxu0 0.0
  %3731 = vmatprep.subr.mxu0 0.0
  %3732 = vmatpush1.msra.mxu0 0.0
  %3733 = vmatprep.subr.mxu0 0.0
  %3734 = vmatpush1.msra.mxu0 0.0
  %3735 = vmatprep.subr.mxu0 0.0
  %3736 = vmatpush1.msra.mxu0 0.0
  %3737 = vmatprep.mubr.f32.mxu0 0.0
  %3738 = vmatmul.mubr.f32.gmra.mrb[0].mxu0 %v3071
  %v3739 = vpop.f32.mrb[0].mxu0
  %v3740 = vadd.f32 %v3671, %v3739
  %v3741 = vpop.f32.mrb[0].mxu0
  %3742 = vdwg.mxu0
  %v3743 = vmax.f32 %v3740, 0.0
  %v3744 = vld [vmem:[%s65] sm:$0xff]
  %v3745 = vld [vmem:[%s65 + $0x8] sm:$0xff]
  %v3746 = vld [vmem:[%s65 + $0x10] sm:$0xff]
  %v3747 = vld [vmem:[%s65 + $0x18] sm:$0xff]
  %v3748 = vld [vmem:[%s67] sm:$0x1]
  %v3750 = vlaneseq
  %v3751 = vshrl.u32 %v3750, 7
  %v3752 = vsub.s32 0, %v3751
  %v3753 = vrot.slane %v3748, %v3752
  %v3756 = vsel %vm414, %v3743, 0
  %3758 = vmatprep.subr.mxu0 0.0
  %3759 = vmatpush1.msra.mxu0 %v3744
  %3760 = vmatprep.subr.mxu0 0.0
  %3761 = vmatpush1.msra.mxu0 %v3745
  %3762 = vmatprep.subr.mxu0 0.0
  %3763 = vmatpush1.msra.mxu0 %v3746
  %3764 = vmatprep.subr.mxu0 0.0
  %3765 = vmatpush1.msra.mxu0 %v3747
  %3766 = vmatprep.subr.mxu0 0.0
  %3767 = vmatpush1.msra.mxu0 0.0
  %3768 = vmatprep.subr.mxu0 0.0
  %3769 = vmatpush1.msra.mxu0 0.0
  %3770 = vmatprep.subr.mxu0 0.0
  %3771 = vmatpush1.msra.mxu0 0.0
  %3772 = vmatprep.subr.mxu0 0.0
  %3773 = vmatpush1.msra.mxu0 0.0
  %3774 = vmatprep.subr.mxu0 0.0
  %3775 = vmatpush1.msra.mxu0 0.0
  %3776 = vmatprep.subr.mxu0 0.0
  %3777 = vmatpush1.msra.mxu0 0.0
  %3778 = vmatprep.subr.mxu0 0.0
  %3779 = vmatpush1.msra.mxu0 0.0
  %3780 = vmatprep.subr.mxu0 0.0
  %3781 = vmatpush1.msra.mxu0 0.0
  %3782 = vmatprep.subr.mxu0 0.0
  %3783 = vmatpush1.msra.mxu0 0.0
  %3784 = vmatprep.subr.mxu0 0.0
  %3785 = vmatpush1.msra.mxu0 0.0
  %3786 = vmatprep.subr.mxu0 0.0
  %3787 = vmatpush1.msra.mxu0 0.0
  %3788 = vmatprep.subr.mxu0 0.0
  %3789 = vmatpush1.msra.mxu0 0.0
  %3790 = vmatprep.subr.mxu0 0.0
  %3791 = vmatpush1.msra.mxu0 0.0
  %3792 = vmatprep.subr.mxu0 0.0
  %3793 = vmatpush1.msra.mxu0 0.0
  %3794 = vmatprep.subr.mxu0 0.0
  %3795 = vmatpush1.msra.mxu0 0.0
  %3796 = vmatprep.subr.mxu0 0.0
  %3797 = vmatpush1.msra.mxu0 0.0
  %3798 = vmatprep.subr.mxu0 0.0
  %3799 = vmatpush1.msra.mxu0 0.0
  %3800 = vmatprep.subr.mxu0 0.0
  %3801 = vmatpush1.msra.mxu0 0.0
  %3802 = vmatprep.subr.mxu0 0.0
  %3803 = vmatpush1.msra.mxu0 0.0
  %3804 = vmatprep.subr.mxu0 0.0
  %3805 = vmatpush1.msra.mxu0 0.0
  %3806 = vmatprep.subr.mxu0 0.0
  %3807 = vmatpush1.msra.mxu0 0.0
  %3808 = vmatprep.subr.mxu0 0.0
  %3809 = vmatpush1.msra.mxu0 0.0
  %3810 = vmatprep.subr.mxu0 0.0
  %3811 = vmatpush1.msra.mxu0 0.0
  %3812 = vmatprep.subr.mxu0 0.0
  %3813 = vmatpush1.msra.mxu0 0.0
  %3814 = vmatprep.subr.mxu0 0.0
  %3815 = vmatpush1.msra.mxu0 0.0
  %3816 = vmatprep.subr.mxu0 0.0
  %3817 = vmatpush1.msra.mxu0 0.0
  %3818 = vmatprep.subr.mxu0 0.0
  %3819 = vmatpush1.msra.mxu0 0.0
  %3820 = vmatprep.subr.mxu0 0.0
  %3821 = vmatpush1.msra.mxu0 0.0
  %3822 = vmatprep.mubr.f32.mxu0 0.0
  %3823 = vmatmul.mubr.f32.gmra.mrb[0].mxu0 %v3756
  %v3824 = vpop.f32.mrb[0].mxu0
  %v3825 = vadd.f32 %v3753, %v3824
  %v3826 = vpop.f32.mrb[0].mxu0
  %3827 = vdwg.mxu0
  %v3829 = vrot.slane %v3825, 1
  %v3830 = vsel %vm414, %v3829, 0
  %v3833 = vsel %vm414, %v3654, 0
  %v3836 = vsel %vm414, %v3655, 0
  %v3839 = vsel %vm414, %v3656, 0
  %v3842 = vsel %vm414, %v3657, 0
  %v3845 = vsel %vm414, %v3658, 0
  %v3848 = vsel %vm414, %v3659, 0
  %v3851 = vsel %vm414, %v3660, 0
  %v3854 = vsel %vm414, %v3661, 0
  %3856 = vmatprep.subr.mxu0 0.0
  %3857 = vmatpush1.xpose.msra.mxu0 %v3833
  %3858 = vmatprep.subr.mxu0 0.0
  %3859 = vmatpush1.xpose.msra.mxu0 %v3836
  %3860 = vmatprep.subr.mxu0 0.0
  %3861 = vmatpush1.xpose.msra.mxu0 %v3839
  %3862 = vmatprep.subr.mxu0 0.0
  %3863 = vmatpush1.xpose.msra.mxu0 %v3842
  %3864 = vmatprep.subr.mxu0 0.0
  %3865 = vmatpush1.xpose.msra.mxu0 %v3845
  %3866 = vmatprep.subr.mxu0 0.0
  %3867 = vmatpush1.xpose.msra.mxu0 %v3848
  %3868 = vmatprep.subr.mxu0 0.0
  %3869 = vmatpush1.xpose.msra.mxu0 %v3851
  %3870 = vmatprep.subr.mxu0 0.0
  %3871 = vmatpush1.xpose.msra.mxu0 %v3854
  %3872 = vmatprep.subr.mxu0 0.0
  %3873 = vmatpush1.xpose.msra.mxu0 0.0
  %3874 = vmatprep.subr.mxu0 0.0
  %3875 = vmatpush1.xpose.msra.mxu0 0.0
  %3876 = vmatprep.subr.mxu0 0.0
  %3877 = vmatpush1.xpose.msra.mxu0 0.0
  %3878 = vmatprep.subr.mxu0 0.0
  %3879 = vmatpush1.xpose.msra.mxu0 0.0
  %3880 = vmatprep.subr.mxu0 0.0
  %3881 = vmatpush1.xpose.msra.mxu0 0.0
  %3882 = vmatprep.subr.mxu0 0.0
  %3883 = vmatpush1.xpose.msra.mxu0 0.0
  %3884 = vmatprep.subr.mxu0 0.0
  %3885 = vmatpush1.xpose.msra.mxu0 0.0
  %3886 = vmatprep.subr.mxu0 0.0
  %3887 = vmatpush1.xpose.msra.mxu0 0.0
  %3888 = vmatprep.subr.mxu0 0.0
  %3889 = vmatpush1.xpose.msra.mxu0 0.0
  %3890 = vmatprep.subr.mxu0 0.0
  %3891 = vmatpush1.xpose.msra.mxu0 0.0
  %3892 = vmatprep.subr.mxu0 0.0
  %3893 = vmatpush1.xpose.msra.mxu0 0.0
  %3894 = vmatprep.subr.mxu0 0.0
  %3895 = vmatpush1.xpose.msra.mxu0 0.0
  %3896 = vmatprep.subr.mxu0 0.0
  %3897 = vmatpush1.xpose.msra.mxu0 0.0
  %3898 = vmatprep.subr.mxu0 0.0
  %3899 = vmatpush1.xpose.msra.mxu0 0.0
  %3900 = vmatprep.subr.mxu0 0.0
  %3901 = vmatpush1.xpose.msra.mxu0 0.0
  %3902 = vmatprep.subr.mxu0 0.0
  %3903 = vmatpush1.xpose.msra.mxu0 0.0
  %3904 = vmatprep.subr.mxu0 0.0
  %3905 = vmatpush1.xpose.msra.mxu0 0.0
  %3906 = vmatprep.subr.mxu0 0.0
  %3907 = vmatpush1.xpose.msra.mxu0 0.0
  %3908 = vmatprep.subr.mxu0 0.0
  %3909 = vmatpush1.xpose.msra.mxu0 0.0
  %3910 = vmatprep.subr.mxu0 0.0
  %3911 = vmatpush1.xpose.msra.mxu0 0.0
  %3912 = vmatprep.subr.mxu0 0.0
  %3913 = vmatpush1.xpose.msra.mxu0 0.0
  %3914 = vmatprep.subr.mxu0 0.0
  %3915 = vmatpush1.xpose.msra.mxu0 0.0
  %3916 = vmatprep.subr.mxu0 0.0
  %3917 = vmatpush1.xpose.msra.mxu0 0.0
  %3918 = vmatprep.subr.mxu0 0.0
  %3919 = vmatpush1.xpose.msra.mxu0 0.0
  %3920 = vmatprep.mubr.f32.mxu0 0.0
  %3921 = vmatmul.mubr.f32.gmra.mrb[0].mxu0 %v3830
  %v3922 = vpop.f32.mrb[0].mxu0
  %v3923 = vadd.f32 0.0, %v3922
  %v3924 = vpop.f32.mrb[0].mxu0
  %3925 = vdwg.mxu0
  %v3927 = vrot.slane %v3740, 1
  %vm3929 = vcmask 1040384
  %v3930 = vsel %vm3929, %v3740, %v3927
  %3931 = vst [vmem:[%s71] sm:$0x3] %v3930
  %s3932 = scalar_lea.vmem %s3, 8
  %v3933 = vld [vmem:[%s3932] sm:$0x3f]
  %v3934 = vld [vmem:[%s29] sm:$0xff]
  %v3935 = vld [vmem:[%s29 + $0x8] sm:$0xff]
  %v3936 = vld [vmem:[%s29 + $0x10] sm:$0xff]
  %v3937 = vld [vmem:[%s29 + $0x18] sm:$0xff]
  %v3938 = vld [vmem:[%s31] sm:$0x1]
  %v3940 = vlaneseq
  %v3941 = vshrl.u32 %v3940, 7
  %v3942 = vsub.s32 0, %v3941
  %v3943 = vrot.slane %v3938, %v3942
  %v3946 = vsel %vm414, %v3933, 0
  %3948 = vmatprep.subr.mxu0 0.0
  %3949 = vmatpush1.msra.mxu0 %v3934
  %3950 = vmatprep.subr.mxu0 0.0
  %3951 = vmatpush1.msra.mxu0 %v3935
  %3952 = vmatprep.subr.mxu0 0.0
  %3953 = vmatpush1.msra.mxu0 %v3936
  %3954 = vmatprep.subr.mxu0 0.0
  %3955 = vmatpush1.msra.mxu0 %v3937
  %3956 = vmatprep.subr.mxu0 0.0
  %3957 = vmatpush1.msra.mxu0 0.0
  %3958 = vmatprep.subr.mxu0 0.0
  %3959 = vmatpush1.msra.mxu0 0.0
  %3960 = vmatprep.subr.mxu0 0.0
  %3961 = vmatpush1.msra.mxu0 0.0
  %3962 = vmatprep.subr.mxu0 0.0
  %3963 = vmatpush1.msra.mxu0 0.0
  %3964 = vmatprep.subr.mxu0 0.0
  %3965 = vmatpush1.msra.mxu0 0.0
  %3966 = vmatprep.subr.mxu0 0.0
  %3967 = vmatpush1.msra.mxu0 0.0
  %3968 = vmatprep.subr.mxu0 0.0
  %3969 = vmatpush1.msra.mxu0 0.0
  %3970 = vmatprep.subr.mxu0 0.0
  %3971 = vmatpush1.msra.mxu0 0.0
  %3972 = vmatprep.subr.mxu0 0.0
  %3973 = vmatpush1.msra.mxu0 0.0
  %3974 = vmatprep.subr.mxu0 0.0
  %3975 = vmatpush1.msra.mxu0 0.0
  %3976 = vmatprep.subr.mxu0 0.0
  %3977 = vmatpush1.msra.mxu0 0.0
  %3978 = vmatprep.subr.mxu0 0.0
  %3979 = vmatpush1.msra.mxu0 0.0
  %3980 = vmatprep.subr.mxu0 0.0
  %3981 = vmatpush1.msra.mxu0 0.0
  %3982 = vmatprep.subr.mxu0 0.0
  %3983 = vmatpush1.msra.mxu0 0.0
  %3984 = vmatprep.subr.mxu0 0.0
  %3985 = vmatpush1.msra.mxu0 0.0
  %3986 = vmatprep.subr.mxu0 0.0
  %3987 = vmatpush1.msra.mxu0 0.0
  %3988 = vmatprep.subr.mxu0 0.0
  %3989 = vmatpush1.msra.mxu0 0.0
  %3990 = vmatprep.subr.mxu0 0.0
  %3991 = vmatpush1.msra.mxu0 0.0
  %3992 = vmatprep.subr.mxu0 0.0
  %3993 = vmatpush1.msra.mxu0 0.0
  %3994 = vmatprep.subr.mxu0 0.0
  %3995 = vmatpush1.msra.mxu0 0.0
  %3996 = vmatprep.subr.mxu0 0.0
  %3997 = vmatpush1.msra.mxu0 0.0
  %3998 = vmatprep.subr.mxu0 0.0
  %3999 = vmatpush1.msra.mxu0 0.0
  %4000 = vmatprep.subr.mxu0 0.0
  %4001 = vmatpush1.msra.mxu0 0.0
  %4002 = vmatprep.subr.mxu0 0.0
  %4003 = vmatpush1.msra.mxu0 0.0
  %4004 = vmatprep.subr.mxu0 0.0
  %4005 = vmatpush1.msra.mxu0 0.0
  %4006 = vmatprep.subr.mxu0 0.0
  %4007 = vmatpush1.msra.mxu0 0.0
  %4008 = vmatprep.subr.mxu0 0.0
  %4009 = vmatpush1.msra.mxu0 0.0
  %4010 = vmatprep.subr.mxu0 0.0
  %4011 = vmatpush1.msra.mxu0 0.0
  %4012 = vmatprep.mubr.f32.mxu0 0.0
  %4013 = vmatmul.mubr.f32.gmra.mrb[0].mxu0 %v3946
  %v4014 = vpop.f32.mrb[0].mxu0
  %v4015 = vadd.f32 %v3943, %v4014
  %v4016 = vpop.f32.mrb[0].mxu0
  %4017 = vdwg.mxu0
  %v4019 = vsel %vm414, %v4015, 0
  %v4022 = vsel %vm414, %v2290, 0
  %v4025 = vsel %vm414, %v2295, 0
  %v4028 = vsel %vm414, %v2300, 0
  %v4031 = vsel %vm414, %v2305, 0
  %v4034 = vsel %vm414, %v2310, 0
  %v4037 = vsel %vm414, %v2315, 0
  %v4040 = vsel %vm414, %v2320, 0
  %v4043 = vsel %vm414, %v2325, 0
  %4045 = vmatprep.subr.mxu0 0.0
  %4046 = vmatpush1.xpose.msra.mxu0 %v4022
  %4047 = vmatprep.subr.mxu0 0.0
  %4048 = vmatpush1.xpose.msra.mxu0 %v4025
  %4049 = vmatprep.subr.mxu0 0.0
  %4050 = vmatpush1.xpose.msra.mxu0 %v4028
  %4051 = vmatprep.subr.mxu0 0.0
  %4052 = vmatpush1.xpose.msra.mxu0 %v4031
  %4053 = vmatprep.subr.mxu0 0.0
  %4054 = vmatpush1.xpose.msra.mxu0 %v4034
  %4055 = vmatprep.subr.mxu0 0.0
  %4056 = vmatpush1.xpose.msra.mxu0 %v4037
  %4057 = vmatprep.subr.mxu0 0.0
  %4058 = vmatpush1.xpose.msra.mxu0 %v4040
  %4059 = vmatprep.subr.mxu0 0.0
  %4060 = vmatpush1.xpose.msra.mxu0 %v4043
  %4061 = vmatprep.subr.mxu0 0.0
  %4062 = vmatpush1.xpose.msra.mxu0 0.0
  %4063 = vmatprep.subr.mxu0 0.0
  %4064 = vmatpush1.xpose.msra.mxu0 0.0
  %4065 = vmatprep.subr.mxu0 0.0
  %4066 = vmatpush1.xpose.msra.mxu0 0.0
  %4067 = vmatprep.subr.mxu0 0.0
  %4068 = vmatpush1.xpose.msra.mxu0 0.0
  %4069 = vmatprep.subr.mxu0 0.0
  %4070 = vmatpush1.xpose.msra.mxu0 0.0
  %4071 = vmatprep.subr.mxu0 0.0
  %4072 = vmatpush1.xpose.msra.mxu0 0.0
  %4073 = vmatprep.subr.mxu0 0.0
  %4074 = vmatpush1.xpose.msra.mxu0 0.0
  %4075 = vmatprep.subr.mxu0 0.0
  %4076 = vmatpush1.xpose.msra.mxu0 0.0
  %4077 = vmatprep.subr.mxu0 0.0
  %4078 = vmatpush1.xpose.msra.mxu0 0.0
  %4079 = vmatprep.subr.mxu0 0.0
  %4080 = vmatpush1.xpose.msra.mxu0 0.0
  %4081 = vmatprep.subr.mxu0 0.0
  %4082 = vmatpush1.xpose.msra.mxu0 0.0
  %4083 = vmatprep.subr.mxu0 0.0
  %4084 = vmatpush1.xpose.msra.mxu0 0.0
  %4085 = vmatprep.subr.mxu0 0.0
  %4086 = vmatpush1.xpose.msra.mxu0 0.0
  %4087 = vmatprep.subr.mxu0 0.0
  %4088 = vmatpush1.xpose.msra.mxu0 0.0
  %4089 = vmatprep.subr.mxu0 0.0
  %4090 = vmatpush1.xpose.msra.mxu0 0.0
  %4091 = vmatprep.subr.mxu0 0.0
  %4092 = vmatpush1.xpose.msra.mxu0 0.0
  %4093 = vmatprep.subr.mxu0 0.0
  %4094 = vmatpush1.xpose.msra.mxu0 0.0
  %4095 = vmatprep.subr.mxu0 0.0
  %4096 = vmatpush1.xpose.msra.mxu0 0.0
  %4097 = vmatprep.subr.mxu0 0.0
  %4098 = vmatpush1.xpose.msra.mxu0 0.0
  %4099 = vmatprep.subr.mxu0 0.0
  %4100 = vmatpush1.xpose.msra.mxu0 0.0
  %4101 = vmatprep.subr.mxu0 0.0
  %4102 = vmatpush1.xpose.msra.mxu0 0.0
  %4103 = vmatprep.subr.mxu0 0.0
  %4104 = vmatpush1.xpose.msra.mxu0 0.0
  %4105 = vmatprep.subr.mxu0 0.0
  %4106 = vmatpush1.xpose.msra.mxu0 0.0
  %4107 = vmatprep.subr.mxu0 0.0
  %4108 = vmatpush1.xpose.msra.mxu0 0.0
  %4109 = vmatprep.mubr.f32.mxu0 0.0
  %4110 = vmatmul.mubr.f32.gmra.mrb[0].mxu0 %v4019
  %v4111 = vpop.f32.mrb[0].mxu0
  %v4112 = vadd.f32 0.0, %v4111
  %v4113 = vpop.f32.mrb[0].mxu0
  %4114 = vdwg.mxu0
  %v4115 = vmul.f32 %v4112, 0.17677669
  %v4116 = vsel %vm2715, %v4115, -inf
  %4117 = vmax.xlane.f32.xlu0 %v4116
  %v4118 = vpop.xlane.xlu0 %4117
  %v4119 = vsub.f32 %v4115, %v4118
  %v4120 = vmul.f32 %v4119, 1.442695
  %v4121 = vpow.pop %v4120
  %v4122 = vsel %vm2715, %v4121, 0.0
  %4123 = vadd.xlane.f32.xlu0 %v4122
  %v4124 = vpop.xlane.xlu0 %4123
  %v4125 = vrcp.pop %v4124
  %v4126 = vmul.f32 %v4121, %v4125
  %v4128 = vsel %vm209, %v4126, 0
  %4130 = vmatprep.subr.mxu0 0.0
  %4131 = vmatpush1.msra.mxu0 %v2494
  %4132 = vmatprep.subr.mxu0 0.0
  %4133 = vmatpush1.msra.mxu0 %v2499
  %4134 = vmatprep.subr.mxu0 0.0
  %4135 = vmatpush1.msra.mxu0 %v2504
  %4136 = vmatprep.subr.mxu0 0.0
  %4137 = vmatpush1.msra.mxu0 %v2509
  %4138 = vmatprep.subr.mxu0 0.0
  %4139 = vmatpush1.msra.mxu0 %v2514
  %4140 = vmatprep.subr.mxu0 0.0
  %4141 = vmatpush1.msra.mxu0 %v2519
  %4142 = vmatprep.subr.mxu0 0.0
  %4143 = vmatpush1.msra.mxu0 %v2524
  %4144 = vmatprep.subr.mxu0 0.0
  %4145 = vmatpush1.msra.mxu0 %v2529
  %4146 = vmatprep.subr.mxu0 0.0
  %4147 = vmatpush1.msra.mxu0 0.0
  %4148 = vmatprep.subr.mxu0 0.0
  %4149 = vmatpush1.msra.mxu0 0.0
  %4150 = vmatprep.subr.mxu0 0.0
  %4151 = vmatpush1.msra.mxu0 0.0
  %4152 = vmatprep.subr.mxu0 0.0
  %4153 = vmatpush1.msra.mxu0 0.0
  %4154 = vmatprep.subr.mxu0 0.0
  %4155 = vmatpush1.msra.mxu0 0.0
  %4156 = vmatprep.subr.mxu0 0.0
  %4157 = vmatpush1.msra.mxu0 0.0
  %4158 = vmatprep.subr.mxu0 0.0
  %4159 = vmatpush1.msra.mxu0 0.0
  %4160 = vmatprep.subr.mxu0 0.0
  %4161 = vmatpush1.msra.mxu0 0.0
  %4162 = vmatprep.subr.mxu0 0.0
  %4163 = vmatpush1.msra.mxu0 0.0
  %4164 = vmatprep.subr.mxu0 0.0
  %4165 = vmatpush1.msra.mxu0 0.0
  %4166 = vmatprep.subr.mxu0 0.0
  %4167 = vmatpush1.msra.mxu0 0.0
  %4168 = vmatprep.subr.mxu0 0.0
  %4169 = vmatpush1.msra.mxu0 0.0
  %4170 = vmatprep.subr.mxu0 0.0
  %4171 = vmatpush1.msra.mxu0 0.0
  %4172 = vmatprep.subr.mxu0 0.0
  %4173 = vmatpush1.msra.mxu0 0.0
  %4174 = vmatprep.subr.mxu0 0.0
  %4175 = vmatpush1.msra.mxu0 0.0
  %4176 = vmatprep.subr.mxu0 0.0
  %4177 = vmatpush1.msra.mxu0 0.0
  %4178 = vmatprep.subr.mxu0 0.0
  %4179 = vmatpush1.msra.mxu0 0.0
  %4180 = vmatprep.subr.mxu0 0.0
  %4181 = vmatpush1.msra.mxu0 0.0
  %4182 = vmatprep.subr.mxu0 0.0
  %4183 = vmatpush1.msra.mxu0 0.0
  %4184 = vmatprep.subr.mxu0 0.0
  %4185 = vmatpush1.msra.mxu0 0.0
  %4186 = vmatprep.subr.mxu0 0.0
  %4187 = vmatpush1.msra.mxu0 0.0
  %4188 = vmatprep.subr.mxu0 0.0
  %4189 = vmatpush1.msra.mxu0 0.0
  %4190 = vmatprep.subr.mxu0 0.0
  %4191 = vmatpush1.msra.mxu0 0.0
  %4192 = vmatprep.subr.mxu0 0.0
  %4193 = vmatpush1.msra.mxu0 0.0
  %4194 = vmatprep.mubr.f32.mxu0 0.0
  %4195 = vmatmul.mubr.f32.gmra.mrb[0].mxu0 %v4128
  %v4196 = vpop.f32.mrb[0].mxu0
  %v4197 = vadd.f32 0.0, %v4196
  %v4198 = vpop.f32.mrb[0].mxu0
  %4199 = vdwg.mxu0
  %v4200 = vld [vmem:[%s41] sm:$0xff]
  %v4201 = vld [vmem:[%s41 + $0x8] sm:$0xff]
  %v4202 = vld [vmem:[%s41 + $0x10] sm:$0xff]
  %v4203 = vld [vmem:[%s41 + $0x18] sm:$0xff]
  %v4204 = vld [vmem:[%s43] sm:$0x1]
  %v4206 = vlaneseq
  %v4207 = vshrl.u32 %v4206, 7
  %v4208 = vsub.s32 0, %v4207
  %v4209 = vrot.slane %v4204, %v4208
  %v4212 = vsel %vm414, %v4197, 0
  %4214 = vmatprep.subr.mxu0 0.0
  %4215 = vmatpush1.msra.mxu0 %v4200
  %4216 = vmatprep.subr.mxu0 0.0
  %4217 = vmatpush1.msra.mxu0 %v4201
  %4218 = vmatprep.subr.mxu0 0.0
  %4219 = vmatpush1.msra.mxu0 %v4202
  %4220 = vmatprep.subr.mxu0 0.0
  %4221 = vmatpush1.msra.mxu0 %v4203
  %4222 = vmatprep.subr.mxu0 0.0
  %4223 = vmatpush1.msra.mxu0 0.0
  %4224 = vmatprep.subr.mxu0 0.0
  %4225 = vmatpush1.msra.mxu0 0.0
  %4226 = vmatprep.subr.mxu0 0.0
  %4227 = vmatpush1.msra.mxu0 0.0
  %4228 = vmatprep.subr.mxu0 0.0
  %4229 = vmatpush1.msra.mxu0 0.0
  %4230 = vmatprep.subr.mxu0 0.0
  %4231 = vmatpush1.msra.mxu0 0.0
  %4232 = vmatprep.subr.mxu0 0.0
  %4233 = vmatpush1.msra.mxu0 0.0
  %4234 = vmatprep.subr.mxu0 0.0
  %4235 = vmatpush1.msra.mxu0 0.0
  %4236 = vmatprep.subr.mxu0 0.0
  %4237 = vmatpush1.msra.mxu0 0.0
  %4238 = vmatprep.subr.mxu0 0.0
  %4239 = vmatpush1.msra.mxu0 0.0
  %4240 = vmatprep.subr.mxu0 0.0
  %4241 = vmatpush1.msra.mxu0 0.0
  %4242 = vmatprep.subr.mxu0 0.0
  %4243 = vmatpush1.msra.mxu0 0.0
  %4244 = vmatprep.subr.mxu0 0.0
  %4245 = vmatpush1.msra.mxu0 0.0
  %4246 = vmatprep.subr.mxu0 0.0
  %4247 = vmatpush1.msra.mxu0 0.0
  %4248 = vmatprep.subr.mxu0 0.0
  %4249 = vmatpush1.msra.mxu0 0.0
  %4250 = vmatprep.subr.mxu0 0.0
  %4251 = vmatpush1.msra.mxu0 0.0
  %4252 = vmatprep.subr.mxu0 0.0
  %4253 = vmatpush1.msra.mxu0 0.0
  %4254 = vmatprep.subr.mxu0 0.0
  %4255 = vmatpush1.msra.mxu0 0.0
  %4256 = vmatprep.subr.mxu0 0.0
  %4257 = vmatpush1.msra.mxu0 0.0
  %4258 = vmatprep.subr.mxu0 0.0
  %4259 = vmatpush1.msra.mxu0 0.0
  %4260 = vmatprep.subr.mxu0 0.0
  %4261 = vmatpush1.msra.mxu0 0.0
  %4262 = vmatprep.subr.mxu0 0.0
  %4263 = vmatpush1.msra.mxu0 0.0
  %4264 = vmatprep.subr.mxu0 0.0
  %4265 = vmatpush1.msra.mxu0 0.0
  %4266 = vmatprep.subr.mxu0 0.0
  %4267 = vmatpush1.msra.mxu0 0.0
  %4268 = vmatprep.subr.mxu0 0.0
  %4269 = vmatpush1.msra.mxu0 0.0
  %4270 = vmatprep.subr.mxu0 0.0
  %4271 = vmatpush1.msra.mxu0 0.0
  %4272 = vmatprep.subr.mxu0 0.0
  %4273 = vmatpush1.msra.mxu0 0.0
  %4274 = vmatprep.subr.mxu0 0.0
  %4275 = vmatpush1.msra.mxu0 0.0
  %4276 = vmatprep.subr.mxu0 0.0
  %4277 = vmatpush1.msra.mxu0 0.0
  %4278 = vmatprep.mubr.f32.mxu0 0.0
  %4279 = vmatmul.mubr.f32.gmra.mrb[0].mxu0 %v4212
  %v4280 = vpop.f32.mrb[0].mxu0
  %v4281 = vadd.f32 %v4209, %v4280
  %v4282 = vpop.f32.mrb[0].mxu0
  %4283 = vdwg.mxu0
  %v4284 = vadd.f32 %v3933, %v4281
  %v4285 = vld [vmem:[%s45] sm:$0xff]
  %v4286 = vld [vmem:[%s45 + $0x8] sm:$0xff]
  %v4287 = vld [vmem:[%s45 + $0x10] sm:$0xff]
  %v4288 = vld [vmem:[%s45 + $0x18] sm:$0xff]
  %v4289 = vld [vmem:[%s47] sm:$0x1]
  %v4291 = vlaneseq
  %v4292 = vshrl.u32 %v4291, 7
  %v4293 = vsub.s32 0, %v4292
  %v4294 = vrot.slane %v4289, %v4293
  %v4297 = vsel %vm414, %v4284, 0
  %4299 = vmatprep.subr.mxu0 0.0
  %4300 = vmatpush1.msra.mxu0 %v4285
  %4301 = vmatprep.subr.mxu0 0.0
  %4302 = vmatpush1.msra.mxu0 %v4286
  %4303 = vmatprep.subr.mxu0 0.0
  %4304 = vmatpush1.msra.mxu0 %v4287
  %4305 = vmatprep.subr.mxu0 0.0
  %4306 = vmatpush1.msra.mxu0 %v4288
  %4307 = vmatprep.subr.mxu0 0.0
  %4308 = vmatpush1.msra.mxu0 0.0
  %4309 = vmatprep.subr.mxu0 0.0
  %4310 = vmatpush1.msra.mxu0 0.0
  %4311 = vmatprep.subr.mxu0 0.0
  %4312 = vmatpush1.msra.mxu0 0.0
  %4313 = vmatprep.subr.mxu0 0.0
  %4314 = vmatpush1.msra.mxu0 0.0
  %4315 = vmatprep.subr.mxu0 0.0
  %4316 = vmatpush1.msra.mxu0 0.0
  %4317 = vmatprep.subr.mxu0 0.0
  %4318 = vmatpush1.msra.mxu0 0.0
  %4319 = vmatprep.subr.mxu0 0.0
  %4320 = vmatpush1.msra.mxu0 0.0
  %4321 = vmatprep.subr.mxu0 0.0
  %4322 = vmatpush1.msra.mxu0 0.0
  %4323 = vmatprep.subr.mxu0 0.0
  %4324 = vmatpush1.msra.mxu0 0.0
  %4325 = vmatprep.subr.mxu0 0.0
  %4326 = vmatpush1.msra.mxu0 0.0
  %4327 = vmatprep.subr.mxu0 0.0
  %4328 = vmatpush1.msra.mxu0 0.0
  %4329 = vmatprep.subr.mxu0 0.0
  %4330 = vmatpush1.msra.mxu0 0.0
  %4331 = vmatprep.subr.mxu0 0.0
  %4332 = vmatpush1.msra.mxu0 0.0
  %4333 = vmatprep.subr.mxu0 0.0
  %4334 = vmatpush1.msra.mxu0 0.0
  %4335 = vmatprep.subr.mxu0 0.0
  %4336 = vmatpush1.msra.mxu0 0.0
  %4337 = vmatprep.subr.mxu0 0.0
  %4338 = vmatpush1.msra.mxu0 0.0
  %4339 = vmatprep.subr.mxu0 0.0
  %4340 = vmatpush1.msra.mxu0 0.0
  %4341 = vmatprep.subr.mxu0 0.0
  %4342 = vmatpush1.msra.mxu0 0.0
  %4343 = vmatprep.subr.mxu0 0.0
  %4344 = vmatpush1.msra.mxu0 0.0
  %4345 = vmatprep.subr.mxu0 0.0
  %4346 = vmatpush1.msra.mxu0 0.0
  %4347 = vmatprep.subr.mxu0 0.0
  %4348 = vmatpush1.msra.mxu0 0.0
  %4349 = vmatprep.subr.mxu0 0.0
  %4350 = vmatpush1.msra.mxu0 0.0
  %4351 = vmatprep.subr.mxu0 0.0
  %4352 = vmatpush1.msra.mxu0 0.0
  %4353 = vmatprep.subr.mxu0 0.0
  %4354 = vmatpush1.msra.mxu0 0.0
  %4355 = vmatprep.subr.mxu0 0.0
  %4356 = vmatpush1.msra.mxu0 0.0
  %4357 = vmatprep.subr.mxu0 0.0
  %4358 = vmatpush1.msra.mxu0 0.0
  %4359 = vmatprep.subr.mxu0 0.0
  %4360 = vmatpush1.msra.mxu0 0.0
  %4361 = vmatprep.subr.mxu0 0.0
  %4362 = vmatpush1.msra.mxu0 0.0
  %4363 = vmatprep.mubr.f32.mxu0 0.0
  %4364 = vmatmul.mubr.f32.gmra.mrb[0].mxu0 %v4297
  %v4365 = vpop.f32.mrb[0].mxu0
  %v4366 = vadd.f32 %v4294, %v4365
  %v4367 = vpop.f32.mrb[0].mxu0
  %4368 = vdwg.mxu0
  %v4369 = vmax.f32 %v4366, 0.0
  %v4370 = vld [vmem:[%s49] sm:$0xff]
  %v4371 = vld [vmem:[%s49 + $0x8] sm:$0xff]
  %v4372 = vld [vmem:[%s49 + $0x10] sm:$0xff]
  %v4373 = vld [vmem:[%s49 + $0x18] sm:$0xff]
  %v4374 = vld [vmem:[%s49 + $0x20] sm:$0xff]
  %v4375 = vld [vmem:[%s49 + $0x28] sm:$0xff]
  %v4376 = vld [vmem:[%s49 + $0x30] sm:$0xff]
  %v4377 = vld [vmem:[%s49 + $0x38] sm:$0xff]
  %v4378 = vld [vmem:[%s51] sm:$0x1]
  %v4380 = vlaneseq
  %v4381 = vshrl.u32 %v4380, 7
  %v4382 = vsub.s32 0, %v4381
  %v4383 = vrot.slane %v4378, %v4382
  %v4386 = vsel %vm209, %v4369, 0
  %4388 = vmatprep.subr.mxu0 0.0
  %4389 = vmatpush1.msra.mxu0 %v4370
  %4390 = vmatprep.subr.mxu0 0.0
  %4391 = vmatpush1.msra.mxu0 %v4371
  %4392 = vmatprep.subr.mxu0 0.0
  %4393 = vmatpush1.msra.mxu0 %v4372
  %4394 = vmatprep.subr.mxu0 0.0
  %4395 = vmatpush1.msra.mxu0 %v4373
  %4396 = vmatprep.subr.mxu0 0.0
  %4397 = vmatpush1.msra.mxu0 %v4374
  %4398 = vmatprep.subr.mxu0 0.0
  %4399 = vmatpush1.msra.mxu0 %v4375
  %4400 = vmatprep.subr.mxu0 0.0
  %4401 = vmatpush1.msra.mxu0 %v4376
  %4402 = vmatprep.subr.mxu0 0.0
  %4403 = vmatpush1.msra.mxu0 %v4377
  %4404 = vmatprep.subr.mxu0 0.0
  %4405 = vmatpush1.msra.mxu0 0.0
  %4406 = vmatprep.subr.mxu0 0.0
  %4407 = vmatpush1.msra.mxu0 0.0
  %4408 = vmatprep.subr.mxu0 0.0
  %4409 = vmatpush1.msra.mxu0 0.0
  %4410 = vmatprep.subr.mxu0 0.0
  %4411 = vmatpush1.msra.mxu0 0.0
  %4412 = vmatprep.subr.mxu0 0.0
  %4413 = vmatpush1.msra.mxu0 0.0
  %4414 = vmatprep.subr.mxu0 0.0
  %4415 = vmatpush1.msra.mxu0 0.0
  %4416 = vmatprep.subr.mxu0 0.0
  %4417 = vmatpush1.msra.mxu0 0.0
  %4418 = vmatprep.subr.mxu0 0.0
  %4419 = vmatpush1.msra.mxu0 0.0
  %4420 = vmatprep.subr.mxu0 0.0
  %4421 = vmatpush1.msra.mxu0 0.0
  %4422 = vmatprep.subr.mxu0 0.0
  %4423 = vmatpush1.msra.mxu0 0.0
  %4424 = vmatprep.subr.mxu0 0.0
  %4425 = vmatpush1.msra.mxu0 0.0
  %4426 = vmatprep.subr.mxu0 0.0
  %4427 = vmatpush1.msra.mxu0 0.0
  %4428 = vmatprep.subr.mxu0 0.0
  %4429 = vmatpush1.msra.mxu0 0.0
  %4430 = vmatprep.subr.mxu0 0.0
  %4431 = vmatpush1.msra.mxu0 0.0
  %4432 = vmatprep.subr.mxu0 0.0
  %4433 = vmatpush1.msra.mxu0 0.0
  %4434 = vmatprep.subr.mxu0 0.0
  %4435 = vmatpush1.msra.mxu0 0.0
  %4436 = vmatprep.subr.mxu0 0.0
  %4437 = vmatpush1.msra.mxu0 0.0
  %4438 = vmatprep.subr.mxu0 0.0
  %4439 = vmatpush1.msra.mxu0 0.0
  %4440 = vmatprep.subr.mxu0 0.0
  %4441 = vmatpush1.msra.mxu0 0.0
  %4442 = vmatprep.subr.mxu0 0.0
  %4443 = vmatpush1.msra.mxu0 0.0
  %4444 = vmatprep.subr.mxu0 0.0
  %4445 = vmatpush1.msra.mxu0 0.0
  %4446 = vmatprep.subr.mxu0 0.0
  %4447 = vmatpush1.msra.mxu0 0.0
  %4448 = vmatprep.subr.mxu0 0.0
  %4449 = vmatpush1.msra.mxu0 0.0
  %4450 = vmatprep.subr.mxu0 0.0
  %4451 = vmatpush1.msra.mxu0 0.0
  %4452 = vmatprep.mubr.f32.mxu0 0.0
  %4453 = vmatmul.mubr.f32.gmra.mrb[0].mxu0 %v4386
  %v4454 = vpop.f32.mrb[0].mxu0
  %v4455 = vadd.f32 %v4383, %v4454
  %v4456 = vpop.f32.mrb[0].mxu0
  %4457 = vdwg.mxu0
  %v4458 = vadd.f32 %v4284, %v4455
  %v4459 = vld [vmem:[%s53] sm:$0xff]
  %v4460 = vld [vmem:[%s53 + $0x8] sm:$0xff]
  %v4461 = vld [vmem:[%s53 + $0x10] sm:$0xff]
  %v4462 = vld [vmem:[%s53 + $0x18] sm:$0xff]
  %v4463 = vld [vmem:[%s55] sm:$0x1]
  %v4465 = vlaneseq
  %v4466 = vshrl.u32 %v4465, 7
  %v4467 = vsub.s32 0, %v4466
  %v4468 = vrot.slane %v4463, %v4467
  %v4471 = vsel %vm414, %v4458, 0
  %4473 = vmatprep.subr.mxu0 0.0
  %4474 = vmatpush1.msra.mxu0 %v4459
  %4475 = vmatprep.subr.mxu0 0.0
  %4476 = vmatpush1.msra.mxu0 %v4460
  %4477 = vmatprep.subr.mxu0 0.0
  %4478 = vmatpush1.msra.mxu0 %v4461
  %4479 = vmatprep.subr.mxu0 0.0
  %4480 = vmatpush1.msra.mxu0 %v4462
  %4481 = vmatprep.subr.mxu0 0.0
  %4482 = vmatpush1.msra.mxu0 0.0
  %4483 = vmatprep.subr.mxu0 0.0
  %4484 = vmatpush1.msra.mxu0 0.0
  %4485 = vmatprep.subr.mxu0 0.0
  %4486 = vmatpush1.msra.mxu0 0.0
  %4487 = vmatprep.subr.mxu0 0.0
  %4488 = vmatpush1.msra.mxu0 0.0
  %4489 = vmatprep.subr.mxu0 0.0
  %4490 = vmatpush1.msra.mxu0 0.0
  %4491 = vmatprep.subr.mxu0 0.0
  %4492 = vmatpush1.msra.mxu0 0.0
  %4493 = vmatprep.subr.mxu0 0.0
  %4494 = vmatpush1.msra.mxu0 0.0
  %4495 = vmatprep.subr.mxu0 0.0
  %4496 = vmatpush1.msra.mxu0 0.0
  %4497 = vmatprep.subr.mxu0 0.0
  %4498 = vmatpush1.msra.mxu0 0.0
  %4499 = vmatprep.subr.mxu0 0.0
  %4500 = vmatpush1.msra.mxu0 0.0
  %4501 = vmatprep.subr.mxu0 0.0
  %4502 = vmatpush1.msra.mxu0 0.0
  %4503 = vmatprep.subr.mxu0 0.0
  %4504 = vmatpush1.msra.mxu0 0.0
  %4505 = vmatprep.subr.mxu0 0.0
  %4506 = vmatpush1.msra.mxu0 0.0
  %4507 = vmatprep.subr.mxu0 0.0
  %4508 = vmatpush1.msra.mxu0 0.0
  %4509 = vmatprep.subr.mxu0 0.0
  %4510 = vmatpush1.msra.mxu0 0.0
  %4511 = vmatprep.subr.mxu0 0.0
  %4512 = vmatpush1.msra.mxu0 0.0
  %4513 = vmatprep.subr.mxu0 0.0
  %4514 = vmatpush1.msra.mxu0 0.0
  %4515 = vmatprep.subr.mxu0 0.0
  %4516 = vmatpush1.msra.mxu0 0.0
  %4517 = vmatprep.subr.mxu0 0.0
  %4518 = vmatpush1.msra.mxu0 0.0
  %4519 = vmatprep.subr.mxu0 0.0
  %4520 = vmatpush1.msra.mxu0 0.0
  %4521 = vmatprep.subr.mxu0 0.0
  %4522 = vmatpush1.msra.mxu0 0.0
  %4523 = vmatprep.subr.mxu0 0.0
  %4524 = vmatpush1.msra.mxu0 0.0
  %4525 = vmatprep.subr.mxu0 0.0
  %4526 = vmatpush1.msra.mxu0 0.0
  %4527 = vmatprep.subr.mxu0 0.0
  %4528 = vmatpush1.msra.mxu0 0.0
  %4529 = vmatprep.subr.mxu0 0.0
  %4530 = vmatpush1.msra.mxu0 0.0
  %4531 = vmatprep.subr.mxu0 0.0
  %4532 = vmatpush1.msra.mxu0 0.0
  %4533 = vmatprep.subr.mxu0 0.0
  %4534 = vmatpush1.msra.mxu0 0.0
  %4535 = vmatprep.subr.mxu0 0.0
  %4536 = vmatpush1.msra.mxu0 0.0
  %4537 = vmatprep.mubr.f32.mxu0 0.0
  %4538 = vmatmul.mubr.f32.gmra.mrb[0].mxu0 %v4471
  %v4539 = vpop.f32.mrb[0].mxu0
  %v4540 = vadd.f32 %v4468, %v4539
  %v4541 = vpop.f32.mrb[0].mxu0
  %4542 = vdwg.mxu0
  %4543 = vrot.lane.b32.xlu0 %v2290, 96
  %v4544 = vpop.permute.xlu0 %4543
  %4545 = vrot.lane.b32.xlu0 %v2295, 96
  %v4546 = vpop.permute.xlu0 %4545
  %4547 = vrot.lane.b32.xlu0 %v2300, 96
  %v4548 = vpop.permute.xlu0 %4547
  %4549 = vrot.lane.b32.xlu0 %v2305, 96
  %v4550 = vpop.permute.xlu0 %4549
  %4551 = vrot.lane.b32.xlu0 %v2310, 96
  %v4552 = vpop.permute.xlu0 %4551
  %4553 = vrot.lane.b32.xlu0 %v2315, 96
  %v4554 = vpop.permute.xlu0 %4553
  %4555 = vrot.lane.b32.xlu0 %v2320, 96
  %v4556 = vpop.permute.xlu0 %4555
  %4557 = vrot.lane.b32.xlu0 %v2325, 96
  %v4558 = vpop.permute.xlu0 %4557
  %v4559 = vsel %vm414, %v4544, 0
  %v4561 = vsel %vm414, %v4546, 0
  %v4563 = vsel %vm414, %v4548, 0
  %v4565 = vsel %vm414, %v4550, 0
  %v4567 = vsel %vm414, %v4552, 0
  %v4569 = vsel %vm414, %v4554, 0
  %v4571 = vsel %vm414, %v4556, 0
  %v4573 = vsel %vm414, %v4558, 0
  %v4576 = vsel %vm414, %v4540, 0
  %4578 = vmatprep.subr.mxu0 0.0
  %4579 = vmatpush1.xpose.msra.mxu0 %v4576
  %4580 = vmatprep.subr.mxu0 0.0
  %4581 = vmatpush1.xpose.msra.mxu0 0.0
  %4582 = vmatprep.subr.mxu0 0.0
  %4583 = vmatpush1.xpose.msra.mxu0 0.0
  %4584 = vmatprep.subr.mxu0 0.0
  %4585 = vmatpush1.xpose.msra.mxu0 0.0
  %4586 = vmatprep.subr.mxu0 0.0
  %4587 = vmatpush1.xpose.msra.mxu0 0.0
  %4588 = vmatprep.subr.mxu0 0.0
  %4589 = vmatpush1.xpose.msra.mxu0 0.0
  %4590 = vmatprep.subr.mxu0 0.0
  %4591 = vmatpush1.xpose.msra.mxu0 0.0
  %4592 = vmatprep.subr.mxu0 0.0
  %4593 = vmatpush1.xpose.msra.mxu0 0.0
  %4594 = vmatprep.subr.mxu0 0.0
  %4595 = vmatpush1.xpose.msra.mxu0 0.0
  %4596 = vmatprep.subr.mxu0 0.0
  %4597 = vmatpush1.xpose.msra.mxu0 0.0
  %4598 = vmatprep.subr.mxu0 0.0
  %4599 = vmatpush1.xpose.msra.mxu0 0.0
  %4600 = vmatprep.subr.mxu0 0.0
  %4601 = vmatpush1.xpose.msra.mxu0 0.0
  %4602 = vmatprep.subr.mxu0 0.0
  %4603 = vmatpush1.xpose.msra.mxu0 0.0
  %4604 = vmatprep.subr.mxu0 0.0
  %4605 = vmatpush1.xpose.msra.mxu0 0.0
  %4606 = vmatprep.subr.mxu0 0.0
  %4607 = vmatpush1.xpose.msra.mxu0 0.0
  %4608 = vmatprep.subr.mxu0 0.0
  %4609 = vmatpush1.xpose.msra.mxu0 0.0
  %4610 = vmatprep.subr.mxu0 0.0
  %4611 = vmatpush1.xpose.msra.mxu0 0.0
  %4612 = vmatprep.subr.mxu0 0.0
  %4613 = vmatpush1.xpose.msra.mxu0 0.0
  %4614 = vmatprep.subr.mxu0 0.0
  %4615 = vmatpush1.xpose.msra.mxu0 0.0
  %4616 = vmatprep.subr.mxu0 0.0
  %4617 = vmatpush1.xpose.msra.mxu0 0.0
  %4618 = vmatprep.subr.mxu0 0.0
  %4619 = vmatpush1.xpose.msra.mxu0 0.0
  %4620 = vmatprep.subr.mxu0 0.0
  %4621 = vmatpush1.xpose.msra.mxu0 0.0
  %4622 = vmatprep.subr.mxu0 0.0
  %4623 = vmatpush1.xpose.msra.mxu0 0.0
  %4624 = vmatprep.subr.mxu0 0.0
  %4625 = vmatpush1.xpose.msra.mxu0 0.0
  %4626 = vmatprep.subr.mxu0 0.0
  %4627 = vmatpush1.xpose.msra.mxu0 0.0
  %4628 = vmatprep.subr.mxu0 0.0
  %4629 = vmatpush1.xpose.msra.mxu0 0.0
  %4630 = vmatprep.subr.mxu0 0.0
  %4631 = vmatpush1.xpose.msra.mxu0 0.0
  %4632 = vmatprep.subr.mxu0 0.0
  %4633 = vmatpush1.xpose.msra.mxu0 0.0
  %4634 = vmatprep.subr.mxu0 0.0
  %4635 = vmatpush1.xpose.msra.mxu0 0.0
  %4636 = vmatprep.subr.mxu0 0.0
  %4637 = vmatpush1.xpose.msra.mxu0 0.0
  %4638 = vmatprep.subr.mxu0 0.0
  %4639 = vmatpush1.xpose.msra.mxu0 0.0
  %4640 = vmatprep.subr.mxu0 0.0
  %4641 = vmatpush1.xpose.msra.mxu0 0.0
  %4642 = vmatprep.mubr.f32.mxu0 0.0
  %4643 = vmatmul.mubr.f32.gmra.mrb[0].mxu0 %v4559
  %v4644 = vpop.f32.mrb[0].mxu0
  %v4645 = vadd.f32 0.0, %v4644
  %v4646 = vpop.f32.mrb[0].mxu0
  %4647 = vmatprep.mubr.f32.mxu0 0.0
  %4648 = vmatmul.mubr.f32.gmra.mrb[0].mxu0 %v4561
  %v4649 = vpop.f32.mrb[0].mxu0
  %v4650 = vadd.f32 0.0, %v4649
  %v4651 = vpop.f32.mrb[0].mxu0
  %4652 = vmatprep.mubr.f32.mxu0 0.0
  %4653 = vmatmul.mubr.f32.gmra.mrb[0].mxu0 %v4563
  %v4654 = vpop.f32.mrb[0].mxu0
  %v4655 = vadd.f32 0.0, %v4654
  %v4656 = vpop.f32.mrb[0].mxu0
  %4657 = vmatprep.mubr.f32.mxu0 0.0
  %4658 = vmatmul.mubr.f32.gmra.mrb[0].mxu0 %v4565
  %v4659 = vpop.f32.mrb[0].mxu0
  %v4660 = vadd.f32 0.0, %v4659
  %v4661 = vpop.f32.mrb[0].mxu0
  %4662 = vmatprep.mubr.f32.mxu0 0.0
  %4663 = vmatmul.mubr.f32.gmra.mrb[0].mxu0 %v4567
  %v4664 = vpop.f32.mrb[0].mxu0
  %v4665 = vadd.f32 0.0, %v4664
  %v4666 = vpop.f32.mrb[0].mxu0
  %4667 = vmatprep.mubr.f32.mxu0 0.0
  %4668 = vmatmul.mubr.f32.gmra.mrb[0].mxu0 %v4569
  %v4669 = vpop.f32.mrb[0].mxu0
  %v4670 = vadd.f32 0.0, %v4669
  %v4671 = vpop.f32.mrb[0].mxu0
  %4672 = vmatprep.mubr.f32.mxu0 0.0
  %4673 = vmatmul.mubr.f32.gmra.mrb[0].mxu0 %v4571
  %v4674 = vpop.f32.mrb[0].mxu0
  %v4675 = vadd.f32 0.0, %v4674
  %v4676 = vpop.f32.mrb[0].mxu0
  %4677 = vmatprep.mubr.f32.mxu0 0.0
  %4678 = vmatmul.mubr.f32.gmra.mrb[0].mxu0 %v4573
  %v4679 = vpop.f32.mrb[0].mxu0
  %v4680 = vadd.f32 0.0, %v4679
  %v4681 = vpop.f32.mrb[0].mxu0
  %4682 = vdwg.mxu0
  %v4683 = vmul.f32 %v4645, 0.17677669
  %v4684 = vmul.f32 %v4650, 0.17677669
  %v4685 = vmul.f32 %v4655, 0.17677669
  %v4686 = vmul.f32 %v4660, 0.17677669
  %v4687 = vmul.f32 %v4665, 0.17677669
  %v4688 = vmul.f32 %v4670, 0.17677669
  %v4689 = vmul.f32 %v4675, 0.17677669
  %v4690 = vmul.f32 %v4680, 0.17677669
  %v4691 = vsel %vm3291, %v4683, -inf
  %4692 = vmax.xlane.f32.xlu0 %v4691
  %v4693 = vpop.xlane.xlu0 %4692
  %v4694 = vsel %vm3291, %v4684, -inf
  %4695 = vmax.xlane.f32.xlu0 %v4694
  %v4696 = vpop.xlane.xlu0 %4695
  %v4697 = vsel %vm3291, %v4685, -inf
  %4698 = vmax.xlane.f32.xlu0 %v4697
  %v4699 = vpop.xlane.xlu0 %4698
  %v4700 = vsel %vm3291, %v4686, -inf
  %4701 = vmax.xlane.f32.xlu0 %v4700
  %v4702 = vpop.xlane.xlu0 %4701
  %v4703 = vsel %vm3291, %v4687, -inf
  %4704 = vmax.xlane.f32.xlu0 %v4703
  %v4705 = vpop.xlane.xlu0 %4704
  %v4706 = vsel %vm3291, %v4688, -inf
  %4707 = vmax.xlane.f32.xlu0 %v4706
  %v4708 = vpop.xlane.xlu0 %4707
  %v4709 = vsel %vm3291, %v4689, -inf
  %4710 = vmax.xlane.f32.xlu0 %v4709
  %v4711 = vpop.xlane.xlu0 %4710
  %v4712 = vsel %vm3291, %v4690, -inf
  %4713 = vmax.xlane.f32.xlu0 %v4712
  %v4714 = vpop.xlane.xlu0 %4713
  %v4715 = vsub.f32 %v4683, %v4693
  %v4716 = vsub.f32 %v4684, %v4696
  %v4717 = vsub.f32 %v4685, %v4699
  %v4718 = vsub.f32 %v4686, %v4702
  %v4719 = vsub.f32 %v4687, %v4705
  %v4720 = vsub.f32 %v4688, %v4708
  %v4721 = vsub.f32 %v4689, %v4711
  %v4722 = vsub.f32 %v4690, %v4714
  %v4723 = vmul.f32 %v4715, 1.442695
  %v4724 = vpow.pop %v4723
  %v4725 = vmul.f32 %v4716, 1.442695
  %v4726 = vpow.pop %v4725
  %v4727 = vmul.f32 %v4717, 1.442695
  %v4728 = vpow.pop %v4727
  %v4729 = vmul.f32 %v4718, 1.442695
  %v4730 = vpow.pop %v4729
  %v4731 = vmul.f32 %v4719, 1.442695
  %v4732 = vpow.pop %v4731
  %v4733 = vmul.f32 %v4720, 1.442695
  %v4734 = vpow.pop %v4733
  %v4735 = vmul.f32 %v4721, 1.442695
  %v4736 = vpow.pop %v4735
  %v4737 = vmul.f32 %v4722, 1.442695
  %v4738 = vpow.pop %v4737
  %v4739 = vsel %vm3291, %v4724, 0.0
  %4740 = vadd.xlane.f32.xlu0 %v4739
  %v4741 = vpop.xlane.xlu0 %4740
  %v4742 = vsel %vm3291, %v4726, 0.0
  %4743 = vadd.xlane.f32.xlu0 %v4742
  %v4744 = vpop.xlane.xlu0 %4743
  %v4745 = vsel %vm3291, %v4728, 0.0
  %4746 = vadd.xlane.f32.xlu0 %v4745
  %v4747 = vpop.xlane.xlu0 %4746
  %v4748 = vsel %vm3291, %v4730, 0.0
  %4749 = vadd.xlane.f32.xlu0 %v4748
  %v4750 = vpop.xlane.xlu0 %4749
  %v4751 = vsel %vm3291, %v4732, 0.0
  %4752 = vadd.xlane.f32.xlu0 %v4751
  %v4753 = vpop.xlane.xlu0 %4752
  %v4754 = vsel %vm3291, %v4734, 0.0
  %4755 = vadd.xlane.f32.xlu0 %v4754
  %v4756 = vpop.xlane.xlu0 %4755
  %v4757 = vsel %vm3291, %v4736, 0.0
  %4758 = vadd.xlane.f32.xlu0 %v4757
  %v4759 = vpop.xlane.xlu0 %4758
  %v4760 = vsel %vm3291, %v4738, 0.0
  %4761 = vadd.xlane.f32.xlu0 %v4760
  %v4762 = vpop.xlane.xlu0 %4761
  %v4763 = vrcp.pop %v4741
  %v4764 = vrcp.pop %v4744
  %v4765 = vrcp.pop %v4747
  %v4766 = vrcp.pop %v4750
  %v4767 = vrcp.pop %v4753
  %v4768 = vrcp.pop %v4756
  %v4769 = vrcp.pop %v4759
  %v4770 = vrcp.pop %v4762
  %v4771 = vmul.f32 %v4724, %v4763
  %v4772 = vmul.f32 %v4726, %v4764
  %v4773 = vmul.f32 %v4728, %v4765
  %v4774 = vmul.f32 %v4730, %v4766
  %v4775 = vmul.f32 %v4732, %v4767
  %v4776 = vmul.f32 %v4734, %v4768
  %v4777 = vmul.f32 %v4736, %v4769
  %v4778 = vmul.f32 %v4738, %v4770
  %4779 = vrot.lane.b32.xlu0 %v4540, 96
  %v4780 = vpop.permute.xlu0 %4779
  %v4782 = vsel %vm3291, %v4771, 0
  %v4785 = vsel %vm3291, %v4772, 0
  %v4788 = vsel %vm3291, %v4773, 0
  %v4791 = vsel %vm3291, %v4774, 0
  %v4794 = vsel %vm3291, %v4775, 0
  %v4797 = vsel %vm3291, %v4776, 0
  %v4800 = vsel %vm3291, %v4777, 0
  %v4803 = vsel %vm3291, %v4778, 0
  %v4805 = vsel %vm3406, %v4780, 0
  %4807 = vmatprep.subr.mxu0 0.0
  %4808 = vmatpush1.msra.mxu0 %v4805
  %4809 = vmatprep.subr.mxu0 0.0
  %4810 = vmatpush1.msra.mxu0 0.0
  %4811 = vmatprep.subr.mxu0 0.0
  %4812 = vmatpush1.msra.mxu0 0.0
  %4813 = vmatprep.subr.mxu0 0.0
  %4814 = vmatpush1.msra.mxu0 0.0
  %4815 = vmatprep.subr.mxu0 0.0
  %4816 = vmatpush1.msra.mxu0 0.0
  %4817 = vmatprep.subr.mxu0 0.0
  %4818 = vmatpush1.msra.mxu0 0.0
  %4819 = vmatprep.subr.mxu0 0.0
  %4820 = vmatpush1.msra.mxu0 0.0
  %4821 = vmatprep.subr.mxu0 0.0
  %4822 = vmatpush1.msra.mxu0 0.0
  %4823 = vmatprep.subr.mxu0 0.0
  %4824 = vmatpush1.msra.mxu0 0.0
  %4825 = vmatprep.subr.mxu0 0.0
  %4826 = vmatpush1.msra.mxu0 0.0
  %4827 = vmatprep.subr.mxu0 0.0
  %4828 = vmatpush1.msra.mxu0 0.0
  %4829 = vmatprep.subr.mxu0 0.0
  %4830 = vmatpush1.msra.mxu0 0.0
  %4831 = vmatprep.subr.mxu0 0.0
  %4832 = vmatpush1.msra.mxu0 0.0
  %4833 = vmatprep.subr.mxu0 0.0
  %4834 = vmatpush1.msra.mxu0 0.0
  %4835 = vmatprep.subr.mxu0 0.0
  %4836 = vmatpush1.msra.mxu0 0.0
  %4837 = vmatprep.subr.mxu0 0.0
  %4838 = vmatpush1.msra.mxu0 0.0
  %4839 = vmatprep.subr.mxu0 0.0
  %4840 = vmatpush1.msra.mxu0 0.0
  %4841 = vmatprep.subr.mxu0 0.0
  %4842 = vmatpush1.msra.mxu0 0.0
  %4843 = vmatprep.subr.mxu0 0.0
  %4844 = vmatpush1.msra.mxu0 0.0
  %4845 = vmatprep.subr.mxu0 0.0
  %4846 = vmatpush1.msra.mxu0 0.0
  %4847 = vmatprep.subr.mxu0 0.0
  %4848 = vmatpush1.msra.mxu0 0.0
  %4849 = vmatprep.subr.mxu0 0.0
  %4850 = vmatpush1.msra.mxu0 0.0
  %4851 = vmatprep.subr.mxu0 0.0
  %4852 = vmatpush1.msra.mxu0 0.0
  %4853 = vmatprep.subr.mxu0 0.0
  %4854 = vmatpush1.msra.mxu0 0.0
  %4855 = vmatprep.subr.mxu0 0.0
  %4856 = vmatpush1.msra.mxu0 0.0
  %4857 = vmatprep.subr.mxu0 0.0
  %4858 = vmatpush1.msra.mxu0 0.0
  %4859 = vmatprep.subr.mxu0 0.0
  %4860 = vmatpush1.msra.mxu0 0.0
  %4861 = vmatprep.subr.mxu0 0.0
  %4862 = vmatpush1.msra.mxu0 0.0
  %4863 = vmatprep.subr.mxu0 0.0
  %4864 = vmatpush1.msra.mxu0 0.0
  %4865 = vmatprep.subr.mxu0 0.0
  %4866 = vmatpush1.msra.mxu0 0.0
  %4867 = vmatprep.subr.mxu0 0.0
  %4868 = vmatpush1.msra.mxu0 0.0
  %4869 = vmatprep.subr.mxu0 0.0
  %4870 = vmatpush1.msra.mxu0 0.0
  %4871 = vmatprep.mubr.f32.mxu0 0.0
  %4872 = vmatmul.mubr.f32.gmra.mrb[0].mxu0 %v4782
  %v4873 = vpop.f32.mrb[0].mxu0
  %v4874 = vadd.f32 0.0, %v4873
  %v4875 = vpop.f32.mrb[0].mxu0
  %4876 = vmatprep.mubr.f32.mxu0 0.0
  %4877 = vmatmul.mubr.f32.gmra.mrb[0].mxu0 %v4785
  %v4878 = vpop.f32.mrb[0].mxu0
  %v4879 = vadd.f32 0.0, %v4878
  %v4880 = vpop.f32.mrb[0].mxu0
  %4881 = vmatprep.mubr.f32.mxu0 0.0
  %4882 = vmatmul.mubr.f32.gmra.mrb[0].mxu0 %v4788
  %v4883 = vpop.f32.mrb[0].mxu0
  %v4884 = vadd.f32 0.0, %v4883
  %v4885 = vpop.f32.mrb[0].mxu0
  %4886 = vmatprep.mubr.f32.mxu0 0.0
  %4887 = vmatmul.mubr.f32.gmra.mrb[0].mxu0 %v4791
  %v4888 = vpop.f32.mrb[0].mxu0
  %v4889 = vadd.f32 0.0, %v4888
  %v4890 = vpop.f32.mrb[0].mxu0
  %4891 = vmatprep.mubr.f32.mxu0 0.0
  %4892 = vmatmul.mubr.f32.gmra.mrb[0].mxu0 %v4794
  %v4893 = vpop.f32.mrb[0].mxu0
  %v4894 = vadd.f32 0.0, %v4893
  %v4895 = vpop.f32.mrb[0].mxu0
  %4896 = vmatprep.mubr.f32.mxu0 0.0
  %4897 = vmatmul.mubr.f32.gmra.mrb[0].mxu0 %v4797
  %v4898 = vpop.f32.mrb[0].mxu0
  %v4899 = vadd.f32 0.0, %v4898
  %v4900 = vpop.f32.mrb[0].mxu0
  %4901 = vmatprep.mubr.f32.mxu0 0.0
  %4902 = vmatmul.mubr.f32.gmra.mrb[0].mxu0 %v4800
  %v4903 = vpop.f32.mrb[0].mxu0
  %v4904 = vadd.f32 0.0, %v4903
  %v4905 = vpop.f32.mrb[0].mxu0
  %4906 = vmatprep.mubr.f32.mxu0 0.0
  %4907 = vmatmul.mubr.f32.gmra.mrb[0].mxu0 %v4803
  %v4908 = vpop.f32.mrb[0].mxu0
  %v4909 = vadd.f32 0.0, %v4908
  %v4910 = vpop.f32.mrb[0].mxu0
  %4911 = vdwg.mxu0
  %v4912 = vld [vmem:[%s57] sm:$0xff]
  %v4913 = vld [vmem:[%s57 + $0x8] sm:$0xff]
  %v4914 = vld [vmem:[%s57 + $0x10] sm:$0xff]
  %v4915 = vld [vmem:[%s57 + $0x18] sm:$0xff]
  %v4916 = vld [vmem:[%s59] sm:$0x1]
  %v4918 = vlaneseq
  %v4919 = vshrl.u32 %v4918, 7
  %v4920 = vsub.s32 0, %v4919
  %v4921 = vrot.slane %v4916, %v4920
  %v4924 = vsel %vm414, %v4874, 0
  %v4927 = vsel %vm414, %v4879, 0
  %v4930 = vsel %vm414, %v4884, 0
  %v4933 = vsel %vm414, %v4889, 0
  %v4936 = vsel %vm414, %v4894, 0
  %v4939 = vsel %vm414, %v4899, 0
  %v4942 = vsel %vm414, %v4904, 0
  %v4945 = vsel %vm414, %v4909, 0
  %4947 = vmatprep.subr.mxu0 0.0
  %4948 = vmatpush1.msra.mxu0 %v4912
  %4949 = vmatprep.subr.mxu0 0.0
  %4950 = vmatpush1.msra.mxu0 %v4913
  %4951 = vmatprep.subr.mxu0 0.0
  %4952 = vmatpush1.msra.mxu0 %v4914
  %4953 = vmatprep.subr.mxu0 0.0
  %4954 = vmatpush1.msra.mxu0 %v4915
  %4955 = vmatprep.subr.mxu0 0.0
  %4956 = vmatpush1.msra.mxu0 0.0
  %4957 = vmatprep.subr.mxu0 0.0
  %4958 = vmatpush1.msra.mxu0 0.0
  %4959 = vmatprep.subr.mxu0 0.0
  %4960 = vmatpush1.msra.mxu0 0.0
  %4961 = vmatprep.subr.mxu0 0.0
  %4962 = vmatpush1.msra.mxu0 0.0
  %4963 = vmatprep.subr.mxu0 0.0
  %4964 = vmatpush1.msra.mxu0 0.0
  %4965 = vmatprep.subr.mxu0 0.0
  %4966 = vmatpush1.msra.mxu0 0.0
  %4967 = vmatprep.subr.mxu0 0.0
  %4968 = vmatpush1.msra.mxu0 0.0
  %4969 = vmatprep.subr.mxu0 0.0
  %4970 = vmatpush1.msra.mxu0 0.0
  %4971 = vmatprep.subr.mxu0 0.0
  %4972 = vmatpush1.msra.mxu0 0.0
  %4973 = vmatprep.subr.mxu0 0.0
  %4974 = vmatpush1.msra.mxu0 0.0
  %4975 = vmatprep.subr.mxu0 0.0
  %4976 = vmatpush1.msra.mxu0 0.0
  %4977 = vmatprep.subr.mxu0 0.0
  %4978 = vmatpush1.msra.mxu0 0.0
  %4979 = vmatprep.subr.mxu0 0.0
  %4980 = vmatpush1.msra.mxu0 0.0
  %4981 = vmatprep.subr.mxu0 0.0
  %4982 = vmatpush1.msra.mxu0 0.0
  %4983 = vmatprep.subr.mxu0 0.0
  %4984 = vmatpush1.msra.mxu0 0.0
  %4985 = vmatprep.subr.mxu0 0.0
  %4986 = vmatpush1.msra.mxu0 0.0
  %4987 = vmatprep.subr.mxu0 0.0
  %4988 = vmatpush1.msra.mxu0 0.0
  %4989 = vmatprep.subr.mxu0 0.0
  %4990 = vmatpush1.msra.mxu0 0.0
  %4991 = vmatprep.subr.mxu0 0.0
  %4992 = vmatpush1.msra.mxu0 0.0
  %4993 = vmatprep.subr.mxu0 0.0
  %4994 = vmatpush1.msra.mxu0 0.0
  %4995 = vmatprep.subr.mxu0 0.0
  %4996 = vmatpush1.msra.mxu0 0.0
  %4997 = vmatprep.subr.mxu0 0.0
  %4998 = vmatpush1.msra.mxu0 0.0
  %4999 = vmatprep.subr.mxu0 0.0
  %5000 = vmatpush1.msra.mxu0 0.0
  %5001 = vmatprep.subr.mxu0 0.0
  %5002 = vmatpush1.msra.mxu0 0.0
  %5003 = vmatprep.subr.mxu0 0.0
  %5004 = vmatpush1.msra.mxu0 0.0
  %5005 = vmatprep.subr.mxu0 0.0
  %5006 = vmatpush1.msra.mxu0 0.0
  %5007 = vmatprep.subr.mxu0 0.0
  %5008 = vmatpush1.msra.mxu0 0.0
  %5009 = vmatprep.subr.mxu0 0.0
  %5010 = vmatpush1.msra.mxu0 0.0
  %5011 = vmatprep.mubr.f32.mxu0 0.0
  %5012 = vmatmul.mubr.f32.gmra.mrb[0].mxu0 %v4924
  %v5013 = vpop.f32.mrb[0].mxu0
  %v5014 = vadd.f32 %v4921, %v5013
  %v5015 = vpop.f32.mrb[0].mxu0
  %5016 = vmatprep.mubr.f32.mxu0 0.0
  %5017 = vmatmul.mubr.f32.gmra.mrb[0].mxu0 %v4927
  %v5018 = vpop.f32.mrb[0].mxu0
  %v5019 = vadd.f32 %v4921, %v5018
  %v5020 = vpop.f32.mrb[0].mxu0
  %5021 = vmatprep.mubr.f32.mxu0 0.0
  %5022 = vmatmul.mubr.f32.gmra.mrb[0].mxu0 %v4930
  %v5023 = vpop.f32.mrb[0].mxu0
  %v5024 = vadd.f32 %v4921, %v5023
  %v5025 = vpop.f32.mrb[0].mxu0
  %5026 = vmatprep.mubr.f32.mxu0 0.0
  %5027 = vmatmul.mubr.f32.gmra.mrb[0].mxu0 %v4933
  %v5028 = vpop.f32.mrb[0].mxu0
  %v5029 = vadd.f32 %v4921, %v5028
  %v5030 = vpop.f32.mrb[0].mxu0
  %5031 = vmatprep.mubr.f32.mxu0 0.0
  %5032 = vmatmul.mubr.f32.gmra.mrb[0].mxu0 %v4936
  %v5033 = vpop.f32.mrb[0].mxu0
  %v5034 = vadd.f32 %v4921, %v5033
  %v5035 = vpop.f32.mrb[0].mxu0
  %5036 = vmatprep.mubr.f32.mxu0 0.0
  %5037 = vmatmul.mubr.f32.gmra.mrb[0].mxu0 %v4939
  %v5038 = vpop.f32.mrb[0].mxu0
  %v5039 = vadd.f32 %v4921, %v5038
  %v5040 = vpop.f32.mrb[0].mxu0
  %5041 = vmatprep.mubr.f32.mxu0 0.0
  %5042 = vmatmul.mubr.f32.gmra.mrb[0].mxu0 %v4942
  %v5043 = vpop.f32.mrb[0].mxu0
  %v5044 = vadd.f32 %v4921, %v5043
  %v5045 = vpop.f32.mrb[0].mxu0
  %5046 = vmatprep.mubr.f32.mxu0 0.0
  %5047 = vmatmul.mubr.f32.gmra.mrb[0].mxu0 %v4945
  %v5048 = vpop.f32.mrb[0].mxu0
  %v5049 = vadd.f32 %v4921, %v5048
  %v5050 = vpop.f32.mrb[0].mxu0
  %5051 = vdwg.mxu0
  %v5052 = vadd.f32 %v2084, %v5014
  %v5053 = vadd.f32 %v2085, %v5019
  %v5054 = vadd.f32 %v2086, %v5024
  %v5055 = vadd.f32 %v2087, %v5029
  %v5056 = vadd.f32 %v2088, %v5034
  %v5057 = vadd.f32 %v2089, %v5039
  %v5058 = vadd.f32 %v2090, %v5044
  %v5059 = vadd.f32 %v2091, %v5049
  %v5060 = vld [vmem:[%s61] sm:$0xff]
  %v5061 = vld [vmem:[%s61 + $0x8] sm:$0xff]
  %v5062 = vld [vmem:[%s61 + $0x10] sm:$0xff]
  %v5063 = vld [vmem:[%s61 + $0x18] sm:$0xff]
  %v5064 = vld [vmem:[%s63] sm:$0x1]
  %v5066 = vlaneseq
  %v5067 = vshrl.u32 %v5066, 7
  %v5068 = vsub.s32 0, %v5067
  %v5069 = vrot.slane %v5064, %v5068
  %5071 = vmatprep.subr.mxu0 0.0
  %5072 = vmatpush1.msra.mxu0 %v5060
  %5073 = vmatprep.subr.mxu0 0.0
  %5074 = vmatpush1.msra.mxu0 %v5061
  %5075 = vmatprep.subr.mxu0 0.0
  %5076 = vmatpush1.msra.mxu0 %v5062
  %5077 = vmatprep.subr.mxu0 0.0
  %5078 = vmatpush1.msra.mxu0 %v5063
  %5079 = vmatprep.subr.mxu0 0.0
  %5080 = vmatpush1.msra.mxu0 0.0
  %5081 = vmatprep.subr.mxu0 0.0
  %5082 = vmatpush1.msra.mxu0 0.0
  %5083 = vmatprep.subr.mxu0 0.0
  %5084 = vmatpush1.msra.mxu0 0.0
  %5085 = vmatprep.subr.mxu0 0.0
  %5086 = vmatpush1.msra.mxu0 0.0
  %5087 = vmatprep.subr.mxu0 0.0
  %5088 = vmatpush1.msra.mxu0 0.0
  %5089 = vmatprep.subr.mxu0 0.0
  %5090 = vmatpush1.msra.mxu0 0.0
  %5091 = vmatprep.subr.mxu0 0.0
  %5092 = vmatpush1.msra.mxu0 0.0
  %5093 = vmatprep.subr.mxu0 0.0
  %5094 = vmatpush1.msra.mxu0 0.0
  %5095 = vmatprep.subr.mxu0 0.0
  %5096 = vmatpush1.msra.mxu0 0.0
  %5097 = vmatprep.subr.mxu0 0.0
  %5098 = vmatpush1.msra.mxu0 0.0
  %5099 = vmatprep.subr.mxu0 0.0
  %5100 = vmatpush1.msra.mxu0 0.0
  %5101 = vmatprep.subr.mxu0 0.0
  %5102 = vmatpush1.msra.mxu0 0.0
  %5103 = vmatprep.subr.mxu0 0.0
  %5104 = vmatpush1.msra.mxu0 0.0
  %5105 = vmatprep.subr.mxu0 0.0
  %5106 = vmatpush1.msra.mxu0 0.0
  %5107 = vmatprep.subr.mxu0 0.0
  %5108 = vmatpush1.msra.mxu0 0.0
  %5109 = vmatprep.subr.mxu0 0.0
  %5110 = vmatpush1.msra.mxu0 0.0
  %5111 = vmatprep.subr.mxu0 0.0
  %5112 = vmatpush1.msra.mxu0 0.0
  %5113 = vmatprep.subr.mxu0 0.0
  %5114 = vmatpush1.msra.mxu0 0.0
  %5115 = vmatprep.subr.mxu0 0.0
  %5116 = vmatpush1.msra.mxu0 0.0
  %5117 = vmatprep.subr.mxu0 0.0
  %5118 = vmatpush1.msra.mxu0 0.0
  %5119 = vmatprep.subr.mxu0 0.0
  %5120 = vmatpush1.msra.mxu0 0.0
  %5121 = vmatprep.subr.mxu0 0.0
  %5122 = vmatpush1.msra.mxu0 0.0
  %5123 = vmatprep.subr.mxu0 0.0
  %5124 = vmatpush1.msra.mxu0 0.0
  %5125 = vmatprep.subr.mxu0 0.0
  %5126 = vmatpush1.msra.mxu0 0.0
  %5127 = vmatprep.subr.mxu0 0.0
  %5128 = vmatpush1.msra.mxu0 0.0
  %5129 = vmatprep.subr.mxu0 0.0
  %5130 = vmatpush1.msra.mxu0 0.0
  %5131 = vmatprep.subr.mxu0 0.0
  %5132 = vmatpush1.msra.mxu0 0.0
  %5133 = vmatprep.subr.mxu0 0.0
  %5134 = vmatpush1.msra.mxu0 0.0
  %5135 = vmatprep.mubr.f32.mxu0 0.0
  %5136 = vmatmul.mubr.f32.gmra.mrb[0].mxu0 %v4471
  %v5137 = vpop.f32.mrb[0].mxu0
  %v5138 = vadd.f32 %v5069, %v5137
  %v5139 = vpop.f32.mrb[0].mxu0
  %5140 = vdwg.mxu0
  %v5141 = vmax.f32 %v5138, 0.0
  %v5142 = vld [vmem:[%s65] sm:$0xff]
  %v5143 = vld [vmem:[%s65 + $0x8] sm:$0xff]
  %v5144 = vld [vmem:[%s65 + $0x10] sm:$0xff]
  %v5145 = vld [vmem:[%s65 + $0x18] sm:$0xff]
  %v5146 = vld [vmem:[%s67] sm:$0x1]
  %v5148 = vlaneseq
  %v5149 = vshrl.u32 %v5148, 7
  %v5150 = vsub.s32 0, %v5149
  %v5151 = vrot.slane %v5146, %v5150
  %v5154 = vsel %vm414, %v5141, 0
  %5156 = vmatprep.subr.mxu0 0.0
  %5157 = vmatpush1.msra.mxu0 %v5142
  %5158 = vmatprep.subr.mxu0 0.0
  %5159 = vmatpush1.msra.mxu0 %v5143
  %5160 = vmatprep.subr.mxu0 0.0
  %5161 = vmatpush1.msra.mxu0 %v5144
  %5162 = vmatprep.subr.mxu0 0.0
  %5163 = vmatpush1.msra.mxu0 %v5145
  %5164 = vmatprep.subr.mxu0 0.0
  %5165 = vmatpush1.msra.mxu0 0.0
  %5166 = vmatprep.subr.mxu0 0.0
  %5167 = vmatpush1.msra.mxu0 0.0
  %5168 = vmatprep.subr.mxu0 0.0
  %5169 = vmatpush1.msra.mxu0 0.0
  %5170 = vmatprep.subr.mxu0 0.0
  %5171 = vmatpush1.msra.mxu0 0.0
  %5172 = vmatprep.subr.mxu0 0.0
  %5173 = vmatpush1.msra.mxu0 0.0
  %5174 = vmatprep.subr.mxu0 0.0
  %5175 = vmatpush1.msra.mxu0 0.0
  %5176 = vmatprep.subr.mxu0 0.0
  %5177 = vmatpush1.msra.mxu0 0.0
  %5178 = vmatprep.subr.mxu0 0.0
  %5179 = vmatpush1.msra.mxu0 0.0
  %5180 = vmatprep.subr.mxu0 0.0
  %5181 = vmatpush1.msra.mxu0 0.0
  %5182 = vmatprep.subr.mxu0 0.0
  %5183 = vmatpush1.msra.mxu0 0.0
  %5184 = vmatprep.subr.mxu0 0.0
  %5185 = vmatpush1.msra.mxu0 0.0
  %5186 = vmatprep.subr.mxu0 0.0
  %5187 = vmatpush1.msra.mxu0 0.0
  %5188 = vmatprep.subr.mxu0 0.0
  %5189 = vmatpush1.msra.mxu0 0.0
  %5190 = vmatprep.subr.mxu0 0.0
  %5191 = vmatpush1.msra.mxu0 0.0
  %5192 = vmatprep.subr.mxu0 0.0
  %5193 = vmatpush1.msra.mxu0 0.0
  %5194 = vmatprep.subr.mxu0 0.0
  %5195 = vmatpush1.msra.mxu0 0.0
  %5196 = vmatprep.subr.mxu0 0.0
  %5197 = vmatpush1.msra.mxu0 0.0
  %5198 = vmatprep.subr.mxu0 0.0
  %5199 = vmatpush1.msra.mxu0 0.0
  %5200 = vmatprep.subr.mxu0 0.0
  %5201 = vmatpush1.msra.mxu0 0.0
  %5202 = vmatprep.subr.mxu0 0.0
  %5203 = vmatpush1.msra.mxu0 0.0
  %5204 = vmatprep.subr.mxu0 0.0
  %5205 = vmatpush1.msra.mxu0 0.0
  %5206 = vmatprep.subr.mxu0 0.0
  %5207 = vmatpush1.msra.mxu0 0.0
  %5208 = vmatprep.subr.mxu0 0.0
  %5209 = vmatpush1.msra.mxu0 0.0
  %5210 = vmatprep.subr.mxu0 0.0
  %5211 = vmatpush1.msra.mxu0 0.0
  %5212 = vmatprep.subr.mxu0 0.0
  %5213 = vmatpush1.msra.mxu0 0.0
  %5214 = vmatprep.subr.mxu0 0.0
  %5215 = vmatpush1.msra.mxu0 0.0
  %5216 = vmatprep.subr.mxu0 0.0
  %5217 = vmatpush1.msra.mxu0 0.0
  %5218 = vmatprep.subr.mxu0 0.0
  %5219 = vmatpush1.msra.mxu0 0.0
  %5220 = vmatprep.mubr.f32.mxu0 0.0
  %5221 = vmatmul.mubr.f32.gmra.mrb[0].mxu0 %v5154
  %v5222 = vpop.f32.mrb[0].mxu0
  %v5223 = vadd.f32 %v5151, %v5222
  %v5224 = vpop.f32.mrb[0].mxu0
  %5225 = vdwg.mxu0
  %v5227 = vrot.slane %v5223, 1
  %v5228 = vsel %vm414, %v5227, 0
  %v5231 = vsel %vm414, %v5052, 0
  %v5234 = vsel %vm414, %v5053, 0
  %v5237 = vsel %vm414, %v5054, 0
  %v5240 = vsel %vm414, %v5055, 0
  %v5243 = vsel %vm414, %v5056, 0
  %v5246 = vsel %vm414, %v5057, 0
  %v5249 = vsel %vm414, %v5058, 0
  %v5252 = vsel %vm414, %v5059, 0
  %5254 = vmatprep.subr.mxu0 0.0
  %5255 = vmatpush1.xpose.msra.mxu0 %v5231
  %5256 = vmatprep.subr.mxu0 0.0
  %5257 = vmatpush1.xpose.msra.mxu0 %v5234
  %5258 = vmatprep.subr.mxu0 0.0
  %5259 = vmatpush1.xpose.msra.mxu0 %v5237
  %5260 = vmatprep.subr.mxu0 0.0
  %5261 = vmatpush1.xpose.msra.mxu0 %v5240
  %5262 = vmatprep.subr.mxu0 0.0
  %5263 = vmatpush1.xpose.msra.mxu0 %v5243
  %5264 = vmatprep.subr.mxu0 0.0
  %5265 = vmatpush1.xpose.msra.mxu0 %v5246
  %5266 = vmatprep.subr.mxu0 0.0
  %5267 = vmatpush1.xpose.msra.mxu0 %v5249
  %5268 = vmatprep.subr.mxu0 0.0
  %5269 = vmatpush1.xpose.msra.mxu0 %v5252
  %5270 = vmatprep.subr.mxu0 0.0
  %5271 = vmatpush1.xpose.msra.mxu0 0.0
  %5272 = vmatprep.subr.mxu0 0.0
  %5273 = vmatpush1.xpose.msra.mxu0 0.0
  %5274 = vmatprep.subr.mxu0 0.0
  %5275 = vmatpush1.xpose.msra.mxu0 0.0
  %5276 = vmatprep.subr.mxu0 0.0
  %5277 = vmatpush1.xpose.msra.mxu0 0.0
  %5278 = vmatprep.subr.mxu0 0.0
  %5279 = vmatpush1.xpose.msra.mxu0 0.0
  %5280 = vmatprep.subr.mxu0 0.0
  %5281 = vmatpush1.xpose.msra.mxu0 0.0
  %5282 = vmatprep.subr.mxu0 0.0
  %5283 = vmatpush1.xpose.msra.mxu0 0.0
  %5284 = vmatprep.subr.mxu0 0.0
  %5285 = vmatpush1.xpose.msra.mxu0 0.0
  %5286 = vmatprep.subr.mxu0 0.0
  %5287 = vmatpush1.xpose.msra.mxu0 0.0
  %5288 = vmatprep.subr.mxu0 0.0
  %5289 = vmatpush1.xpose.msra.mxu0 0.0
  %5290 = vmatprep.subr.mxu0 0.0
  %5291 = vmatpush1.xpose.msra.mxu0 0.0
  %5292 = vmatprep.subr.mxu0 0.0
  %5293 = vmatpush1.xpose.msra.mxu0 0.0
  %5294 = vmatprep.subr.mxu0 0.0
  %5295 = vmatpush1.xpose.msra.mxu0 0.0
  %5296 = vmatprep.subr.mxu0 0.0
  %5297 = vmatpush1.xpose.msra.mxu0 0.0
  %5298 = vmatprep.subr.mxu0 0.0
  %5299 = vmatpush1.xpose.msra.mxu0 0.0
  %5300 = vmatprep.subr.mxu0 0.0
  %5301 = vmatpush1.xpose.msra.mxu0 0.0
  %5302 = vmatprep.subr.mxu0 0.0
  %5303 = vmatpush1.xpose.msra.mxu0 0.0
  %5304 = vmatprep.subr.mxu0 0.0
  %5305 = vmatpush1.xpose.msra.mxu0 0.0
  %5306 = vmatprep.subr.mxu0 0.0
  %5307 = vmatpush1.xpose.msra.mxu0 0.0
  %5308 = vmatprep.subr.mxu0 0.0
  %5309 = vmatpush1.xpose.msra.mxu0 0.0
  %5310 = vmatprep.subr.mxu0 0.0
  %5311 = vmatpush1.xpose.msra.mxu0 0.0
  %5312 = vmatprep.subr.mxu0 0.0
  %5313 = vmatpush1.xpose.msra.mxu0 0.0
  %5314 = vmatprep.subr.mxu0 0.0
  %5315 = vmatpush1.xpose.msra.mxu0 0.0
  %5316 = vmatprep.subr.mxu0 0.0
  %5317 = vmatpush1.xpose.msra.mxu0 0.0
  %5318 = vmatprep.mubr.f32.mxu0 0.0
  %5319 = vmatmul.mubr.f32.gmra.mrb[0].mxu0 %v5228
  %v5320 = vpop.f32.mrb[0].mxu0
  %v5321 = vadd.f32 0.0, %v5320
  %v5322 = vpop.f32.mrb[0].mxu0
  %5323 = vdwg.mxu0
  %v5325 = vrot.slane %v5138, 1
  %v5327 = vsel %vm3929, %v5138, %v5325
  %s5328 = scalar_lea.vmem %s71, 2
  %5329 = vst [vmem:[%s5328] sm:$0x3] %v5327
  %v5331 = vrot.slane %v5321, 7
  %v5333 = vsel %vm3929, %v3923, %v5331
  %v5334 = vpack.c.bf16 %v5333, %v5333
  %v5335 = vld [vmem:[%s7] sm:$0xff]
  %v5336 = vld [vmem:[%s7 + $0x8] sm:$0xff]
  %v5337 = vld [vmem:[%s7 + $0x10] sm:$0xff]
  %v5338 = vld [vmem:[%s7 + $0x18] sm:$0xff]
  %v5339 = vld [vmem:[%s7 + $0x20] sm:$0xff]
  %v5340 = vld [vmem:[%s7 + $0x28] sm:$0xff]
  %v5341 = vld [vmem:[%s7 + $0x30] sm:$0xff]
  %v5342 = vld [vmem:[%s7 + $0x38] sm:$0xff]
  %v5343 = vld [vmem:[%s7 + $0x40] sm:$0xff]
  %v5344 = vld [vmem:[%s7 + $0x48] sm:$0xff]
  %v5345 = vld [vmem:[%s7 + $0x50] sm:$0xff]
  %v5346 = vld [vmem:[%s7 + $0x58] sm:$0xff]
  %v5347 = vld [vmem:[%s7 + $0x60] sm:$0xff]
  %v5348 = vld [vmem:[%s7 + $0x68] sm:$0xff]
  %v5349 = vld [vmem:[%s7 + $0x70] sm:$0xff]
  %v5350 = vld [vmem:[%s7 + $0x78] sm:$0xff]
  %v5351 = vld [vmem:[%s7 + $0x80] sm:$0xff]
  %v5352 = vld [vmem:[%s7 + $0x88] sm:$0xff]
  %v5353 = vld [vmem:[%s7 + $0x90] sm:$0xff]
  %v5354 = vld [vmem:[%s7 + $0x98] sm:$0xff]
  %v5355 = vld [vmem:[%s7 + $0xa0] sm:$0xff]
  %v5356 = vld [vmem:[%s7 + $0xa8] sm:$0xff]
  %v5357 = vld [vmem:[%s7 + $0xb0] sm:$0xff]
  %v5358 = vld [vmem:[%s7 + $0xb8] sm:$0xff]
  %v5359 = vld [vmem:[%s7 + $0xc0] sm:$0xff]
  %v5360 = vld [vmem:[%s7 + $0xc8] sm:$0xff]
  %v5361 = vld [vmem:[%s7 + $0xd0] sm:$0xff]
  %v5362 = vld [vmem:[%s7 + $0xd8] sm:$0xff]
  %v5363 = vld [vmem:[%s7 + $0xe0] sm:$0xff]
  %v5364 = vld [vmem:[%s7 + $0xe8] sm:$0xff]
  %v5365 = vld [vmem:[%s7 + $0xf0] sm:$0xff]
  %v5366 = vld [vmem:[%s7 + $0xf8] sm:$0xff]
  %v5367 = vld [vmem:[%s7 + $0x100] sm:$0xff]
  %v5368 = vld [vmem:[%s7 + $0x108] sm:$0xff]
  %v5369 = vld [vmem:[%s7 + $0x110] sm:$0xff]
  %v5370 = vld [vmem:[%s7 + $0x118] sm:$0xff]
  %v5371 = vld [vmem:[%s7 + $0x120] sm:$0xff]
  %v5372 = vld [vmem:[%s7 + $0x128] sm:$0xff]
  %v5373 = vld [vmem:[%s7 + $0x130] sm:$0xff]
  %v5374 = vld [vmem:[%s7 + $0x138] sm:$0xff]
  %v5375 = vld [vmem:[%s7 + $0x140] sm:$0xff]
  %v5376 = vld [vmem:[%s7 + $0x148] sm:$0xff]
  %v5377 = vld [vmem:[%s7 + $0x150] sm:$0xff]
  %v5378 = vld [vmem:[%s7 + $0x158] sm:$0xff]
  %v5379 = vld [vmem:[%s7 + $0x160] sm:$0xff]
  %v5380 = vld [vmem:[%s7 + $0x168] sm:$0xff]
  %v5381 = vld [vmem:[%s7 + $0x170] sm:$0xff]
  %v5382 = vld [vmem:[%s7 + $0x178] sm:$0xff]
  %v5383 = vld [vmem:[%s7 + $0x180] sm:$0xff]
  %v5384 = vld [vmem:[%s7 + $0x188] sm:$0xff]
  %v5385 = vld [vmem:[%s7 + $0x190] sm:$0xff]
  %v5386 = vld [vmem:[%s7 + $0x198] sm:$0xff]
  %v5387 = vld [vmem:[%s7 + $0x1a0] sm:$0xff]
  %v5388 = vld [vmem:[%s7 + $0x1a8] sm:$0xff]
  %v5389 = vld [vmem:[%s7 + $0x1b0] sm:$0xff]
  %v5390 = vld [vmem:[%s7 + $0x1b8] sm:$0xff]
  %v5391 = vld [vmem:[%s7 + $0x1c0] sm:$0xff]
  %v5392 = vld [vmem:[%s7 + $0x1c8] sm:$0xff]
  %v5393 = vld [vmem:[%s7 + $0x1d0] sm:$0xff]
  %v5394 = vld [vmem:[%s7 + $0x1d8] sm:$0xff]
  %v5395 = vld [vmem:[%s7 + $0x1e0] sm:$0xff]
  %v5396 = vld [vmem:[%s7 + $0x1e8] sm:$0xff]
  %v5397 = vld [vmem:[%s7 + $0x1f0] sm:$0xff]
  %v5398 = vld [vmem:[%s7 + $0x1f8] sm:$0xff]
  %v5399 = vld [vmem:[%s7 + $0x200] sm:$0xff]
  %v5400 = vld [vmem:[%s7 + $0x208] sm:$0xff]
  %v5401 = vld [vmem:[%s7 + $0x210] sm:$0xff]
  %v5402 = vld [vmem:[%s7 + $0x218] sm:$0xff]
  %v5403 = vld [vmem:[%s7 + $0x220] sm:$0xff]
  %v5404 = vld [vmem:[%s7 + $0x228] sm:$0xff]
  %v5405 = vld [vmem:[%s7 + $0x230] sm:$0xff]
  %v5406 = vld [vmem:[%s7 + $0x238] sm:$0xff]
  %v5407 = vld [vmem:[%s7 + $0x240] sm:$0xff]
  %v5408 = vld [vmem:[%s7 + $0x248] sm:$0xff]
  %v5409 = vld [vmem:[%s7 + $0x250] sm:$0xff]
  %v5410 = vld [vmem:[%s7 + $0x258] sm:$0xff]
  %v5411 = vld [vmem:[%s7 + $0x260] sm:$0xff]
  %v5412 = vld [vmem:[%s7 + $0x268] sm:$0xff]
  %v5413 = vld [vmem:[%s7 + $0x270] sm:$0xff]
  %v5414 = vld [vmem:[%s7 + $0x278] sm:$0xff]
  %v5415 = vld [vmem:[%s7 + $0x280] sm:$0xff]
  %v5416 = vld [vmem:[%s7 + $0x288] sm:$0xff]
  %v5417 = vld [vmem:[%s7 + $0x290] sm:$0xff]
  %v5418 = vld [vmem:[%s7 + $0x298] sm:$0xff]
  %v5419 = vld [vmem:[%s7 + $0x2a0] sm:$0xff]
  %v5420 = vld [vmem:[%s7 + $0x2a8] sm:$0xff]
  %v5421 = vld [vmem:[%s7 + $0x2b0] sm:$0xff]
  %v5422 = vld [vmem:[%s7 + $0x2b8] sm:$0xff]
  %v5423 = vld [vmem:[%s7 + $0x2c0] sm:$0xff]
  %v5424 = vld [vmem:[%s7 + $0x2c8] sm:$0xff]
  %v5425 = vld [vmem:[%s7 + $0x2d0] sm:$0xff]
  %v5426 = vld [vmem:[%s7 + $0x2d8] sm:$0xff]
  %v5427 = vld [vmem:[%s7 + $0x2e0] sm:$0xff]
  %v5428 = vld [vmem:[%s7 + $0x2e8] sm:$0xff]
  %v5429 = vld [vmem:[%s7 + $0x2f0] sm:$0xff]
  %v5430 = vld [vmem:[%s7 + $0x2f8] sm:$0xff]
  %v5431 = vld [vmem:[%s7 + $0x300] sm:$0xff]
  %v5432 = vld [vmem:[%s7 + $0x308] sm:$0xff]
  %v5433 = vld [vmem:[%s7 + $0x310] sm:$0xff]
  %v5434 = vld [vmem:[%s7 + $0x318] sm:$0xff]
  %v5435 = vld [vmem:[%s7 + $0x320] sm:$0xff]
  %v5436 = vld [vmem:[%s7 + $0x328] sm:$0xff]
  %v5437 = vld [vmem:[%s7 + $0x330] sm:$0xff]
  %v5438 = vld [vmem:[%s7 + $0x338] sm:$0xff]
  %v5439 = vld [vmem:[%s7 + $0x340] sm:$0xff]
  %v5440 = vld [vmem:[%s7 + $0x348] sm:$0xff]
  %v5441 = vld [vmem:[%s7 + $0x350] sm:$0xff]
  %v5442 = vld [vmem:[%s7 + $0x358] sm:$0xff]
  %v5443 = vld [vmem:[%s7 + $0x360] sm:$0xff]
  %v5444 = vld [vmem:[%s7 + $0x368] sm:$0xff]
  %v5445 = vld [vmem:[%s7 + $0x370] sm:$0xff]
  %v5446 = vld [vmem:[%s7 + $0x378] sm:$0xff]
  %v5447 = vld [vmem:[%s7 + $0x380] sm:$0xff]
  %v5448 = vld [vmem:[%s7 + $0x388] sm:$0xff]
  %v5449 = vld [vmem:[%s7 + $0x390] sm:$0xff]
  %v5450 = vld [vmem:[%s7 + $0x398] sm:$0xff]
  %v5451 = vld [vmem:[%s7 + $0x3a0] sm:$0xff]
  %v5452 = vld [vmem:[%s7 + $0x3a8] sm:$0xff]
  %v5453 = vld [vmem:[%s7 + $0x3b0] sm:$0xff]
  %v5454 = vld [vmem:[%s7 + $0x3b8] sm:$0xff]
  %v5455 = vld [vmem:[%s7 + $0x3c0] sm:$0xff]
  %v5456 = vld [vmem:[%s7 + $0x3c8] sm:$0xff]
  %v5457 = vld [vmem:[%s7 + $0x3d0] sm:$0xff]
  %v5458 = vld [vmem:[%s7 + $0x3d8] sm:$0xff]
  %v5459 = vld [vmem:[%s7 + $0x3e0] sm:$0xff]
  %v5460 = vld [vmem:[%s7 + $0x3e8] sm:$0xff]
  %v5461 = vld [vmem:[%s7 + $0x3f0] sm:$0xff]
  %v5462 = vld [vmem:[%s7 + $0x3f8] sm:$0xff]
  %v5591 = vunpack.c.l.b16 %v5335
  %v5592 = vunpack.c.h.b16 %v5335
  %v5593 = vunpack.c.l.b16 %v5336
  %v5594 = vunpack.c.h.b16 %v5336
  %v5595 = vunpack.c.l.b16 %v5337
  %v5596 = vunpack.c.h.b16 %v5337
  %v5597 = vunpack.c.l.b16 %v5338
  %v5598 = vunpack.c.h.b16 %v5338
  %v5599 = vunpack.c.l.b16 %v5339
  %v5600 = vunpack.c.h.b16 %v5339
  %v5601 = vunpack.c.l.b16 %v5340
  %v5602 = vunpack.c.h.b16 %v5340
  %v5603 = vunpack.c.l.b16 %v5341
  %v5604 = vunpack.c.h.b16 %v5341
  %v5605 = vunpack.c.l.b16 %v5342
  %v5606 = vunpack.c.h.b16 %v5342
  %v5607 = vunpack.c.l.b16 %v5343
  %v5608 = vunpack.c.h.b16 %v5343
  %v5609 = vunpack.c.l.b16 %v5344
  %v5610 = vunpack.c.h.b16 %v5344
  %v5611 = vunpack.c.l.b16 %v5345
  %v5612 = vunpack.c.h.b16 %v5345
  %v5613 = vunpack.c.l.b16 %v5346
  %v5614 = vunpack.c.h.b16 %v5346
  %v5615 = vunpack.c.l.b16 %v5347
  %v5616 = vunpack.c.h.b16 %v5347
  %v5617 = vunpack.c.l.b16 %v5348
  %v5618 = vunpack.c.h.b16 %v5348
  %v5619 = vunpack.c.l.b16 %v5349
  %v5620 = vunpack.c.h.b16 %v5349
  %v5621 = vunpack.c.l.b16 %v5350
  %v5622 = vunpack.c.h.b16 %v5350
  %v5623 = vunpack.c.l.b16 %v5351
  %v5624 = vunpack.c.h.b16 %v5351
  %v5625 = vunpack.c.l.b16 %v5352
  %v5626 = vunpack.c.h.b16 %v5352
  %v5627 = vunpack.c.l.b16 %v5353
  %v5628 = vunpack.c.h.b16 %v5353
  %v5629 = vunpack.c.l.b16 %v5354
  %v5630 = vunpack.c.h.b16 %v5354
  %v5631 = vunpack.c.l.b16 %v5355
  %v5632 = vunpack.c.h.b16 %v5355
  %v5633 = vunpack.c.l.b16 %v5356
  %v5634 = vunpack.c.h.b16 %v5356
  %v5635 = vunpack.c.l.b16 %v5357
  %v5636 = vunpack.c.h.b16 %v5357
  %v5637 = vunpack.c.l.b16 %v5358
  %v5638 = vunpack.c.h.b16 %v5358
  %v5639 = vunpack.c.l.b16 %v5359
  %v5640 = vunpack.c.h.b16 %v5359
  %v5641 = vunpack.c.l.b16 %v5360
  %v5642 = vunpack.c.h.b16 %v5360
  %v5643 = vunpack.c.l.b16 %v5361
  %v5644 = vunpack.c.h.b16 %v5361
  %v5645 = vunpack.c.l.b16 %v5362
  %v5646 = vunpack.c.h.b16 %v5362
  %v5647 = vunpack.c.l.b16 %v5363
  %v5648 = vunpack.c.h.b16 %v5363
  %v5649 = vunpack.c.l.b16 %v5364
  %v5650 = vunpack.c.h.b16 %v5364
  %v5651 = vunpack.c.l.b16 %v5365
  %v5652 = vunpack.c.h.b16 %v5365
  %v5653 = vunpack.c.l.b16 %v5366
  %v5654 = vunpack.c.h.b16 %v5366
  %v5655 = vunpack.c.l.b16 %v5367
  %v5656 = vunpack.c.h.b16 %v5367
  %v5657 = vunpack.c.l.b16 %v5368
  %v5658 = vunpack.c.h.b16 %v5368
  %v5659 = vunpack.c.l.b16 %v5369
  %v5660 = vunpack.c.h.b16 %v5369
  %v5661 = vunpack.c.l.b16 %v5370
  %v5662 = vunpack.c.h.b16 %v5370
  %v5663 = vunpack.c.l.b16 %v5371
  %v5664 = vunpack.c.h.b16 %v5371
  %v5665 = vunpack.c.l.b16 %v5372
  %v5666 = vunpack.c.h.b16 %v5372
  %v5667 = vunpack.c.l.b16 %v5373
  %v5668 = vunpack.c.h.b16 %v5373
  %v5669 = vunpack.c.l.b16 %v5374
  %v5670 = vunpack.c.h.b16 %v5374
  %v5671 = vunpack.c.l.b16 %v5375
  %v5672 = vunpack.c.h.b16 %v5375
  %v5673 = vunpack.c.l.b16 %v5376
  %v5674 = vunpack.c.h.b16 %v5376
  %v5675 = vunpack.c.l.b16 %v5377
  %v5676 = vunpack.c.h.b16 %v5377
  %v5677 = vunpack.c.l.b16 %v5378
  %v5678 = vunpack.c.h.b16 %v5378
  %v5679 = vunpack.c.l.b16 %v5379
  %v5680 = vunpack.c.h.b16 %v5379
  %v5681 = vunpack.c.l.b16 %v5380
  %v5682 = vunpack.c.h.b16 %v5380
  %v5683 = vunpack.c.l.b16 %v5381
  %v5684 = vunpack.c.h.b16 %v5381
  %v5685 = vunpack.c.l.b16 %v5382
  %v5686 = vunpack.c.h.b16 %v5382
  %v5687 = vunpack.c.l.b16 %v5383
  %v5688 = vunpack.c.h.b16 %v5383
  %v5689 = vunpack.c.l.b16 %v5384
  %v5690 = vunpack.c.h.b16 %v5384
  %v5691 = vunpack.c.l.b16 %v5385
  %v5692 = vunpack.c.h.b16 %v5385
  %v5693 = vunpack.c.l.b16 %v5386
  %v5694 = vunpack.c.h.b16 %v5386
  %v5695 = vunpack.c.l.b16 %v5387
  %v5696 = vunpack.c.h.b16 %v5387
  %v5697 = vunpack.c.l.b16 %v5388
  %v5698 = vunpack.c.h.b16 %v5388
  %v5699 = vunpack.c.l.b16 %v5389
  %v5700 = vunpack.c.h.b16 %v5389
  %v5701 = vunpack.c.l.b16 %v5390
  %v5702 = vunpack.c.h.b16 %v5390
  %v5703 = vunpack.c.l.b16 %v5391
  %v5704 = vunpack.c.h.b16 %v5391
  %v5705 = vunpack.c.l.b16 %v5392
  %v5706 = vunpack.c.h.b16 %v5392
  %v5707 = vunpack.c.l.b16 %v5393
  %v5708 = vunpack.c.h.b16 %v5393
  %v5709 = vunpack.c.l.b16 %v5394
  %v5710 = vunpack.c.h.b16 %v5394
  %v5711 = vunpack.c.l.b16 %v5395
  %v5712 = vunpack.c.h.b16 %v5395
  %v5713 = vunpack.c.l.b16 %v5396
  %v5714 = vunpack.c.h.b16 %v5396
  %v5715 = vunpack.c.l.b16 %v5397
  %v5716 = vunpack.c.h.b16 %v5397
  %v5717 = vunpack.c.l.b16 %v5398
  %v5718 = vunpack.c.h.b16 %v5398
  %v5719 = vunpack.c.l.b16 %v5399
  %v5720 = vunpack.c.h.b16 %v5399
  %v5721 = vunpack.c.l.b16 %v5400
  %v5722 = vunpack.c.h.b16 %v5400
  %v5723 = vunpack.c.l.b16 %v5401
  %v5724 = vunpack.c.h.b16 %v5401
  %v5725 = vunpack.c.l.b16 %v5402
  %v5726 = vunpack.c.h.b16 %v5402
  %v5727 = vunpack.c.l.b16 %v5403
  %v5728 = vunpack.c.h.b16 %v5403
  %v5729 = vunpack.c.l.b16 %v5404
  %v5730 = vunpack.c.h.b16 %v5404
  %v5731 = vunpack.c.l.b16 %v5405
  %v5732 = vunpack.c.h.b16 %v5405
  %v5733 = vunpack.c.l.b16 %v5406
  %v5734 = vunpack.c.h.b16 %v5406
  %v5735 = vunpack.c.l.b16 %v5407
  %v5736 = vunpack.c.h.b16 %v5407
  %v5737 = vunpack.c.l.b16 %v5408
  %v5738 = vunpack.c.h.b16 %v5408
  %v5739 = vunpack.c.l.b16 %v5409
  %v5740 = vunpack.c.h.b16 %v5409
  %v5741 = vunpack.c.l.b16 %v5410
  %v5742 = vunpack.c.h.b16 %v5410
  %v5743 = vunpack.c.l.b16 %v5411
  %v5744 = vunpack.c.h.b16 %v5411
  %v5745 = vunpack.c.l.b16 %v5412
  %v5746 = vunpack.c.h.b16 %v5412
  %v5747 = vunpack.c.l.b16 %v5413
  %v5748 = vunpack.c.h.b16 %v5413
  %v5749 = vunpack.c.l.b16 %v5414
  %v5750 = vunpack.c.h.b16 %v5414
  %v5751 = vunpack.c.l.b16 %v5415
  %v5752 = vunpack.c.h.b16 %v5415
  %v5753 = vunpack.c.l.b16 %v5416
  %v5754 = vunpack.c.h.b16 %v5416
  %v5755 = vunpack.c.l.b16 %v5417
  %v5756 = vunpack.c.h.b16 %v5417
  %v5757 = vunpack.c.l.b16 %v5418
  %v5758 = vunpack.c.h.b16 %v5418
  %v5759 = vunpack.c.l.b16 %v5419
  %v5760 = vunpack.c.h.b16 %v5419
  %v5761 = vunpack.c.l.b16 %v5420
  %v5762 = vunpack.c.h.b16 %v5420
  %v5763 = vunpack.c.l.b16 %v5421
  %v5764 = vunpack.c.h.b16 %v5421
  %v5765 = vunpack.c.l.b16 %v5422
  %v5766 = vunpack.c.h.b16 %v5422
  %v5767 = vunpack.c.l.b16 %v5423
  %v5768 = vunpack.c.h.b16 %v5423
  %v5769 = vunpack.c.l.b16 %v5424
  %v5770 = vunpack.c.h.b16 %v5424
  %v5771 = vunpack.c.l.b16 %v5425
  %v5772 = vunpack.c.h.b16 %v5425
  %v5773 = vunpack.c.l.b16 %v5426
  %v5774 = vunpack.c.h.b16 %v5426
  %v5775 = vunpack.c.l.b16 %v5427
  %v5776 = vunpack.c.h.b16 %v5427
  %v5777 = vunpack.c.l.b16 %v5428
  %v5778 = vunpack.c.h.b16 %v5428
  %v5779 = vunpack.c.l.b16 %v5429
  %v5780 = vunpack.c.h.b16 %v5429
  %v5781 = vunpack.c.l.b16 %v5430
  %v5782 = vunpack.c.h.b16 %v5430
  %v5783 = vunpack.c.l.b16 %v5431
  %v5784 = vunpack.c.h.b16 %v5431
  %v5785 = vunpack.c.l.b16 %v5432
  %v5786 = vunpack.c.h.b16 %v5432
  %v5787 = vunpack.c.l.b16 %v5433
  %v5788 = vunpack.c.h.b16 %v5433
  %v5789 = vunpack.c.l.b16 %v5434
  %v5790 = vunpack.c.h.b16 %v5434
  %v5791 = vunpack.c.l.b16 %v5435
  %v5792 = vunpack.c.h.b16 %v5435
  %v5793 = vunpack.c.l.b16 %v5436
  %v5794 = vunpack.c.h.b16 %v5436
  %v5795 = vunpack.c.l.b16 %v5437
  %v5796 = vunpack.c.h.b16 %v5437
  %v5797 = vunpack.c.l.b16 %v5438
  %v5798 = vunpack.c.h.b16 %v5438
  %v5799 = vunpack.c.l.b16 %v5439
  %v5800 = vunpack.c.h.b16 %v5439
  %v5801 = vunpack.c.l.b16 %v5440
  %v5802 = vunpack.c.h.b16 %v5440
  %v5803 = vunpack.c.l.b16 %v5441
  %v5804 = vunpack.c.h.b16 %v5441
  %v5805 = vunpack.c.l.b16 %v5442
  %v5806 = vunpack.c.h.b16 %v5442
  %v5807 = vunpack.c.l.b16 %v5443
  %v5808 = vunpack.c.h.b16 %v5443
  %v5809 = vunpack.c.l.b16 %v5444
  %v5810 = vunpack.c.h.b16 %v5444
  %v5811 = vunpack.c.l.b16 %v5445
  %v5812 = vunpack.c.h.b16 %v5445
  %v5813 = vunpack.c.l.b16 %v5446
  %v5814 = vunpack.c.h.b16 %v5446
  %v5815 = vunpack.c.l.b16 %v5447
  %v5816 = vunpack.c.h.b16 %v5447
  %v5817 = vunpack.c.l.b16 %v5448
  %v5818 = vunpack.c.h.b16 %v5448
  %v5819 = vunpack.c.l.b16 %v5449
  %v5820 = vunpack.c.h.b16 %v5449
  %v5821 = vunpack.c.l.b16 %v5450
  %v5822 = vunpack.c.h.b16 %v5450
  %v5823 = vunpack.c.l.b16 %v5451
  %v5824 = vunpack.c.h.b16 %v5451
  %v5825 = vunpack.c.l.b16 %v5452
  %v5826 = vunpack.c.h.b16 %v5452
  %v5827 = vunpack.c.l.b16 %v5453
  %v5828 = vunpack.c.h.b16 %v5453
  %v5829 = vunpack.c.l.b16 %v5454
  %v5830 = vunpack.c.h.b16 %v5454
  %v5831 = vunpack.c.l.b16 %v5455
  %v5832 = vunpack.c.h.b16 %v5455
  %v5833 = vunpack.c.l.b16 %v5456
  %v5834 = vunpack.c.h.b16 %v5456
  %v5835 = vunpack.c.l.b16 %v5457
  %v5836 = vunpack.c.h.b16 %v5457
  %v5837 = vunpack.c.l.b16 %v5458
  %v5838 = vunpack.c.h.b16 %v5458
  %v5839 = vunpack.c.l.b16 %v5459
  %v5840 = vunpack.c.h.b16 %v5459
  %v5841 = vunpack.c.l.b16 %v5460
  %v5842 = vunpack.c.h.b16 %v5460
  %v5843 = vunpack.c.l.b16 %v5461
  %v5844 = vunpack.c.h.b16 %v5461
  %v5845 = vunpack.c.l.b16 %v5462
  %v5846 = vunpack.c.h.b16 %v5462
  %v5847 = vpack.c.b16 %v5623, %v5591
  %v5848 = vpack.c.b16 %v5624, %v5592
  %v5849 = vpack.c.b16 %v5625, %v5593
  %v5850 = vpack.c.b16 %v5626, %v5594
  %v5851 = vpack.c.b16 %v5627, %v5595
  %v5852 = vpack.c.b16 %v5628, %v5596
  %v5853 = vpack.c.b16 %v5629, %v5597
  %v5854 = vpack.c.b16 %v5630, %v5598
  %v5855 = vpack.c.b16 %v5631, %v5599
  %v5856 = vpack.c.b16 %v5632, %v5600
  %v5857 = vpack.c.b16 %v5633, %v5601
  %v5858 = vpack.c.b16 %v5634, %v5602
  %v5859 = vpack.c.b16 %v5635, %v5603
  %v5860 = vpack.c.b16 %v5636, %v5604
  %v5861 = vpack.c.b16 %v5637, %v5605
  %v5862 = vpack.c.b16 %v5638, %v5606
  %v5863 = vpack.c.b16 %v5639, %v5607
  %v5864 = vpack.c.b16 %v5640, %v5608
  %v5865 = vpack.c.b16 %v5641, %v5609
  %v5866 = vpack.c.b16 %v5642, %v5610
  %v5867 = vpack.c.b16 %v5643, %v5611
  %v5868 = vpack.c.b16 %v5644, %v5612
  %v5869 = vpack.c.b16 %v5645, %v5613
  %v5870 = vpack.c.b16 %v5646, %v5614
  %v5871 = vpack.c.b16 %v5647, %v5615
  %v5872 = vpack.c.b16 %v5648, %v5616
  %v5873 = vpack.c.b16 %v5649, %v5617
  %v5874 = vpack.c.b16 %v5650, %v5618
  %v5875 = vpack.c.b16 %v5651, %v5619
  %v5876 = vpack.c.b16 %v5652, %v5620
  %v5877 = vpack.c.b16 %v5653, %v5621
  %v5878 = vpack.c.b16 %v5654, %v5622
  %v5879 = vpack.c.b16 %v5687, %v5655
  %v5880 = vpack.c.b16 %v5688, %v5656
  %v5881 = vpack.c.b16 %v5689, %v5657
  %v5882 = vpack.c.b16 %v5690, %v5658
  %v5883 = vpack.c.b16 %v5691, %v5659
  %v5884 = vpack.c.b16 %v5692, %v5660
  %v5885 = vpack.c.b16 %v5693, %v5661
  %v5886 = vpack.c.b16 %v5694, %v5662
  %v5887 = vpack.c.b16 %v5695, %v5663
  %v5888 = vpack.c.b16 %v5696, %v5664
  %v5889 = vpack.c.b16 %v5697, %v5665
  %v5890 = vpack.c.b16 %v5698, %v5666
  %v5891 = vpack.c.b16 %v5699, %v5667
  %v5892 = vpack.c.b16 %v5700, %v5668
  %v5893 = vpack.c.b16 %v5701, %v5669
  %v5894 = vpack.c.b16 %v5702, %v5670
  %v5895 = vpack.c.b16 %v5703, %v5671
  %v5896 = vpack.c.b16 %v5704, %v5672
  %v5897 = vpack.c.b16 %v5705, %v5673
  %v5898 = vpack.c.b16 %v5706, %v5674
  %v5899 = vpack.c.b16 %v5707, %v5675
  %v5900 = vpack.c.b16 %v5708, %v5676
  %v5901 = vpack.c.b16 %v5709, %v5677
  %v5902 = vpack.c.b16 %v5710, %v5678
  %v5903 = vpack.c.b16 %v5711, %v5679
  %v5904 = vpack.c.b16 %v5712, %v5680
  %v5905 = vpack.c.b16 %v5713, %v5681
  %v5906 = vpack.c.b16 %v5714, %v5682
  %v5907 = vpack.c.b16 %v5715, %v5683
  %v5908 = vpack.c.b16 %v5716, %v5684
  %v5909 = vpack.c.b16 %v5717, %v5685
  %v5910 = vpack.c.b16 %v5718, %v5686
  %v5911 = vpack.c.b16 %v5751, %v5719
  %v5912 = vpack.c.b16 %v5752, %v5720
  %v5913 = vpack.c.b16 %v5753, %v5721
  %v5914 = vpack.c.b16 %v5754, %v5722
  %v5915 = vpack.c.b16 %v5755, %v5723
  %v5916 = vpack.c.b16 %v5756, %v5724
  %v5917 = vpack.c.b16 %v5757, %v5725
  %v5918 = vpack.c.b16 %v5758, %v5726
  %v5919 = vpack.c.b16 %v5759, %v5727
  %v5920 = vpack.c.b16 %v5760, %v5728
  %v5921 = vpack.c.b16 %v5761, %v5729
  %v5922 = vpack.c.b16 %v5762, %v5730
  %v5923 = vpack.c.b16 %v5763, %v5731
  %v5924 = vpack.c.b16 %v5764, %v5732
  %v5925 = vpack.c.b16 %v5765, %v5733
  %v5926 = vpack.c.b16 %v5766, %v5734
  %v5927 = vpack.c.b16 %v5767, %v5735
  %v5928 = vpack.c.b16 %v5768, %v5736
  %v5929 = vpack.c.b16 %v5769, %v5737
  %v5930 = vpack.c.b16 %v5770, %v5738
  %v5931 = vpack.c.b16 %v5771, %v5739
  %v5932 = vpack.c.b16 %v5772, %v5740
  %v5933 = vpack.c.b16 %v5773, %v5741
  %v5934 = vpack.c.b16 %v5774, %v5742
  %v5935 = vpack.c.b16 %v5775, %v5743
  %v5936 = vpack.c.b16 %v5776, %v5744
  %v5937 = vpack.c.b16 %v5777, %v5745
  %v5938 = vpack.c.b16 %v5778, %v5746
  %v5939 = vpack.c.b16 %v5779, %v5747
  %v5940 = vpack.c.b16 %v5780, %v5748
  %v5941 = vpack.c.b16 %v5781, %v5749
  %v5942 = vpack.c.b16 %v5782, %v5750
  %v5943 = vpack.c.b16 %v5815, %v5783
  %v5944 = vpack.c.b16 %v5816, %v5784
  %v5945 = vpack.c.b16 %v5817, %v5785
  %v5946 = vpack.c.b16 %v5818, %v5786
  %v5947 = vpack.c.b16 %v5819, %v5787
  %v5948 = vpack.c.b16 %v5820, %v5788
  %v5949 = vpack.c.b16 %v5821, %v5789
  %v5950 = vpack.c.b16 %v5822, %v5790
  %v5951 = vpack.c.b16 %v5823, %v5791
  %v5952 = vpack.c.b16 %v5824, %v5792
  %v5953 = vpack.c.b16 %v5825, %v5793
  %v5954 = vpack.c.b16 %v5826, %v5794
  %v5955 = vpack.c.b16 %v5827, %v5795
  %v5956 = vpack.c.b16 %v5828, %v5796
  %v5957 = vpack.c.b16 %v5829, %v5797
  %v5958 = vpack.c.b16 %v5830, %v5798
  %v5959 = vpack.c.b16 %v5831, %v5799
  %v5960 = vpack.c.b16 %v5832, %v5800
  %v5961 = vpack.c.b16 %v5833, %v5801
  %v5962 = vpack.c.b16 %v5834, %v5802
  %v5963 = vpack.c.b16 %v5835, %v5803
  %v5964 = vpack.c.b16 %v5836, %v5804
  %v5965 = vpack.c.b16 %v5837, %v5805
  %v5966 = vpack.c.b16 %v5838, %v5806
  %v5967 = vpack.c.b16 %v5839, %v5807
  %v5968 = vpack.c.b16 %v5840, %v5808
  %v5969 = vpack.c.b16 %v5841, %v5809
  %v5970 = vpack.c.b16 %v5842, %v5810
  %v5971 = vpack.c.b16 %v5843, %v5811
  %v5972 = vpack.c.b16 %v5844, %v5812
  %v5973 = vpack.c.b16 %v5845, %v5813
  %v5974 = vpack.c.b16 %v5846, %v5814
  %v6104 = vsel %vm209, %v5334, 0
  %6106 = vmatprep.subr.bf16.mxu0 %v5848
  %6107 = vmatpush1.bf16.msra.mxu0 %v5847
  %6108 = vmatprep.subr.bf16.mxu0 %v5880
  %6109 = vmatpush1.bf16.msra.mxu0 %v5879
  %6110 = vmatprep.subr.bf16.mxu0 %v5912
  %6111 = vmatpush1.bf16.msra.mxu0 %v5911
  %6112 = vmatprep.subr.bf16.mxu0 %v5944
  %6113 = vmatpush1.bf16.msra.mxu0 %v5943
  %6114 = vmatprep.subr.bf16.mxu0 0
  %6115 = vmatpush1.bf16.msra.mxu0 0
  %6116 = vmatprep.subr.bf16.mxu0 0
  %6117 = vmatpush1.bf16.msra.mxu0 0
  %6118 = vmatprep.subr.bf16.mxu0 0
  %6119 = vmatpush1.bf16.msra.mxu0 0
  %6120 = vmatprep.subr.bf16.mxu0 0
  %6121 = vmatpush1.bf16.msra.mxu0 0
  %6122 = vmatprep.subr.bf16.mxu0 0
  %6123 = vmatpush1.bf16.msra.mxu0 0
  %6124 = vmatprep.subr.bf16.mxu0 0
  %6125 = vmatpush1.bf16.msra.mxu0 0
  %6126 = vmatprep.subr.bf16.mxu0 0
  %6127 = vmatpush1.bf16.msra.mxu0 0
  %6128 = vmatprep.subr.bf16.mxu0 0
  %6129 = vmatpush1.bf16.msra.mxu0 0
  %6130 = vmatprep.subr.bf16.mxu0 0
  %6131 = vmatpush1.bf16.msra.mxu0 0
  %6132 = vmatprep.subr.bf16.mxu0 0
  %6133 = vmatpush1.bf16.msra.mxu0 0
  %6134 = vmatprep.subr.bf16.mxu0 0
  %6135 = vmatpush1.bf16.msra.mxu0 0
  %6136 = vmatprep.subr.bf16.mxu0 0
  %6137 = vmatpush1.bf16.msra.mxu0 0
  %6138 = vmatprep.mubr.bf16.mxu0 0
  %6139 = vmatmul.mubr.bf16.gmra.mrb[0].mxu0 %v6104
  %v6140 = vpop.f32.mrb[0].mxu0
  %v6141 = vadd.f32 0.0, %v6140
  %v6142 = vpop.f32.mrb[0].mxu0
  %v6143 = vadd.f32 0.0, %v6142
  %v6144 = vpop.f32.mrb[0].mxu0
  %v6145 = vpop.f32.mrb[0].mxu0
  %6146 = vdwg.mxu0
  %6147 = vmatprep.subr.bf16.mxu0 %v5850
  %6148 = vmatpush1.bf16.msra.mxu0 %v5849
  %6149 = vmatprep.subr.bf16.mxu0 %v5882
  %6150 = vmatpush1.bf16.msra.mxu0 %v5881
  %6151 = vmatprep.subr.bf16.mxu0 %v5914
  %6152 = vmatpush1.bf16.msra.mxu0 %v5913
  %6153 = vmatprep.subr.bf16.mxu0 %v5946
  %6154 = vmatpush1.bf16.msra.mxu0 %v5945
  %6155 = vmatprep.subr.bf16.mxu0 0
  %6156 = vmatpush1.bf16.msra.mxu0 0
  %6157 = vmatprep.subr.bf16.mxu0 0
  %6158 = vmatpush1.bf16.msra.mxu0 0
  %6159 = vmatprep.subr.bf16.mxu0 0
  %6160 = vmatpush1.bf16.msra.mxu0 0
  %6161 = vmatprep.subr.bf16.mxu0 0
  %6162 = vmatpush1.bf16.msra.mxu0 0
  %6163 = vmatprep.subr.bf16.mxu0 0
  %6164 = vmatpush1.bf16.msra.mxu0 0
  %6165 = vmatprep.subr.bf16.mxu0 0
  %6166 = vmatpush1.bf16.msra.mxu0 0
  %6167 = vmatprep.subr.bf16.mxu0 0
  %6168 = vmatpush1.bf16.msra.mxu0 0
  %6169 = vmatprep.subr.bf16.mxu0 0
  %6170 = vmatpush1.bf16.msra.mxu0 0
  %6171 = vmatprep.subr.bf16.mxu0 0
  %6172 = vmatpush1.bf16.msra.mxu0 0
  %6173 = vmatprep.subr.bf16.mxu0 0
  %6174 = vmatpush1.bf16.msra.mxu0 0
  %6175 = vmatprep.subr.bf16.mxu0 0
  %6176 = vmatpush1.bf16.msra.mxu0 0
  %6177 = vmatprep.subr.bf16.mxu0 0
  %6178 = vmatpush1.bf16.msra.mxu0 0
  %6179 = vmatprep.mubr.bf16.mxu0 0
  %6180 = vmatmul.mubr.bf16.gmra.mrb[0].mxu0 %v6104
  %v6181 = vpop.f32.mrb[0].mxu0
  %v6182 = vadd.f32 0.0, %v6181
  %v6183 = vpop.f32.mrb[0].mxu0
  %v6184 = vadd.f32 0.0, %v6183
  %v6185 = vpop.f32.mrb[0].mxu0
  %v6186 = vpop.f32.mrb[0].mxu0
  %6187 = vdwg.mxu0
  %6188 = vmatprep.subr.bf16.mxu0 %v5852
  %6189 = vmatpush1.bf16.msra.mxu0 %v5851
  %6190 = vmatprep.subr.bf16.mxu0 %v5884
  %6191 = vmatpush1.bf16.msra.mxu0 %v5883
  %6192 = vmatprep.subr.bf16.mxu0 %v5916
  %6193 = vmatpush1.bf16.msra.mxu0 %v5915
  %6194 = vmatprep.subr.bf16.mxu0 %v5948
  %6195 = vmatpush1.bf16.msra.mxu0 %v5947
  %6196 = vmatprep.subr.bf16.mxu0 0
  %6197 = vmatpush1.bf16.msra.mxu0 0
  %6198 = vmatprep.subr.bf16.mxu0 0
  %6199 = vmatpush1.bf16.msra.mxu0 0
  %6200 = vmatprep.subr.bf16.mxu0 0
  %6201 = vmatpush1.bf16.msra.mxu0 0
  %6202 = vmatprep.subr.bf16.mxu0 0
  %6203 = vmatpush1.bf16.msra.mxu0 0
  %6204 = vmatprep.subr.bf16.mxu0 0
  %6205 = vmatpush1.bf16.msra.mxu0 0
  %6206 = vmatprep.subr.bf16.mxu0 0
  %6207 = vmatpush1.bf16.msra.mxu0 0
  %6208 = vmatprep.subr.bf16.mxu0 0
  %6209 = vmatpush1.bf16.msra.mxu0 0
  %6210 = vmatprep.subr.bf16.mxu0 0
  %6211 = vmatpush1.bf16.msra.mxu0 0
  %6212 = vmatprep.subr.bf16.mxu0 0
  %6213 = vmatpush1.bf16.msra.mxu0 0
  %6214 = vmatprep.subr.bf16.mxu0 0
  %6215 = vmatpush1.bf16.msra.mxu0 0
  %6216 = vmatprep.subr.bf16.mxu0 0
  %6217 = vmatpush1.bf16.msra.mxu0 0
  %6218 = vmatprep.subr.bf16.mxu0 0
  %6219 = vmatpush1.bf16.msra.mxu0 0
  %6220 = vmatprep.mubr.bf16.mxu0 0
  %6221 = vmatmul.mubr.bf16.gmra.mrb[0].mxu0 %v6104
  %v6222 = vpop.f32.mrb[0].mxu0
  %v6223 = vadd.f32 0.0, %v6222
  %v6224 = vpop.f32.mrb[0].mxu0
  %v6225 = vadd.f32 0.0, %v6224
  %v6226 = vpop.f32.mrb[0].mxu0
  %v6227 = vpop.f32.mrb[0].mxu0
  %6228 = vdwg.mxu0
  %6229 = vmatprep.subr.bf16.mxu0 %v5854
  %6230 = vmatpush1.bf16.msra.mxu0 %v5853
  %6231 = vmatprep.subr.bf16.mxu0 %v5886
  %6232 = vmatpush1.bf16.msra.mxu0 %v5885
  %6233 = vmatprep.subr.bf16.mxu0 %v5918
  %6234 = vmatpush1.bf16.msra.mxu0 %v5917
  %6235 = vmatprep.subr.bf16.mxu0 %v5950
  %6236 = vmatpush1.bf16.msra.mxu0 %v5949
  %6237 = vmatprep.subr.bf16.mxu0 0
  %6238 = vmatpush1.bf16.msra.mxu0 0
  %6239 = vmatprep.subr.bf16.mxu0 0
  %6240 = vmatpush1.bf16.msra.mxu0 0
  %6241 = vmatprep.subr.bf16.mxu0 0
  %6242 = vmatpush1.bf16.msra.mxu0 0
  %6243 = vmatprep.subr.bf16.mxu0 0
  %6244 = vmatpush1.bf16.msra.mxu0 0
  %6245 = vmatprep.subr.bf16.mxu0 0
  %6246 = vmatpush1.bf16.msra.mxu0 0
  %6247 = vmatprep.subr.bf16.mxu0 0
  %6248 = vmatpush1.bf16.msra.mxu0 0
  %6249 = vmatprep.subr.bf16.mxu0 0
  %6250 = vmatpush1.bf16.msra.mxu0 0
  %6251 = vmatprep.subr.bf16.mxu0 0
  %6252 = vmatpush1.bf16.msra.mxu0 0
  %6253 = vmatprep.subr.bf16.mxu0 0
  %6254 = vmatpush1.bf16.msra.mxu0 0
  %6255 = vmatprep.subr.bf16.mxu0 0
  %6256 = vmatpush1.bf16.msra.mxu0 0
  %6257 = vmatprep.subr.bf16.mxu0 0
  %6258 = vmatpush1.bf16.msra.mxu0 0
  %6259 = vmatprep.subr.bf16.mxu0 0
  %6260 = vmatpush1.bf16.msra.mxu0 0
  %6261 = vmatprep.mubr.bf16.mxu0 0
  %6262 = vmatmul.mubr.bf16.gmra.mrb[0].mxu0 %v6104
  %v6263 = vpop.f32.mrb[0].mxu0
  %v6264 = vadd.f32 0.0, %v6263
  %v6265 = vpop.f32.mrb[0].mxu0
  %v6266 = vadd.f32 0.0, %v6265
  %v6267 = vpop.f32.mrb[0].mxu0
  %v6268 = vpop.f32.mrb[0].mxu0
  %6269 = vdwg.mxu0
  %6270 = vmatprep.subr.bf16.mxu0 %v5856
  %6271 = vmatpush1.bf16.msra.mxu0 %v5855
  %6272 = vmatprep.subr.bf16.mxu0 %v5888
  %6273 = vmatpush1.bf16.msra.mxu0 %v5887
  %6274 = vmatprep.subr.bf16.mxu0 %v5920
  %6275 = vmatpush1.bf16.msra.mxu0 %v5919
  %6276 = vmatprep.subr.bf16.mxu0 %v5952
  %6277 = vmatpush1.bf16.msra.mxu0 %v5951
  %6278 = vmatprep.subr.bf16.mxu0 0
  %6279 = vmatpush1.bf16.msra.mxu0 0
  %6280 = vmatprep.subr.bf16.mxu0 0
  %6281 = vmatpush1.bf16.msra.mxu0 0
  %6282 = vmatprep.subr.bf16.mxu0 0
  %6283 = vmatpush1.bf16.msra.mxu0 0
  %6284 = vmatprep.subr.bf16.mxu0 0
  %6285 = vmatpush1.bf16.msra.mxu0 0
  %6286 = vmatprep.subr.bf16.mxu0 0
  %6287 = vmatpush1.bf16.msra.mxu0 0
  %6288 = vmatprep.subr.bf16.mxu0 0
  %6289 = vmatpush1.bf16.msra.mxu0 0
  %6290 = vmatprep.subr.bf16.mxu0 0
  %6291 = vmatpush1.bf16.msra.mxu0 0
  %6292 = vmatprep.subr.bf16.mxu0 0
  %6293 = vmatpush1.bf16.msra.mxu0 0
  %6294 = vmatprep.subr.bf16.mxu0 0
  %6295 = vmatpush1.bf16.msra.mxu0 0
  %6296 = vmatprep.subr.bf16.mxu0 0
  %6297 = vmatpush1.bf16.msra.mxu0 0
  %6298 = vmatprep.subr.bf16.mxu0 0
  %6299 = vmatpush1.bf16.msra.mxu0 0
  %6300 = vmatprep.subr.bf16.mxu0 0
  %6301 = vmatpush1.bf16.msra.mxu0 0
  %6302 = vmatprep.mubr.bf16.mxu0 0
  %6303 = vmatmul.mubr.bf16.gmra.mrb[0].mxu0 %v6104
  %v6304 = vpop.f32.mrb[0].mxu0
  %v6305 = vadd.f32 0.0, %v6304
  %v6306 = vpop.f32.mrb[0].mxu0
  %v6307 = vadd.f32 0.0, %v6306
  %v6308 = vpop.f32.mrb[0].mxu0
  %v6309 = vpop.f32.mrb[0].mxu0
  %6310 = vdwg.mxu0
  %6311 = vmatprep.subr.bf16.mxu0 %v5858
  %6312 = vmatpush1.bf16.msra.mxu0 %v5857
  %6313 = vmatprep.subr.bf16.mxu0 %v5890
  %6314 = vmatpush1.bf16.msra.mxu0 %v5889
  %6315 = vmatprep.subr.bf16.mxu0 %v5922
  %6316 = vmatpush1.bf16.msra.mxu0 %v5921
  %6317 = vmatprep.subr.bf16.mxu0 %v5954
  %6318 = vmatpush1.bf16.msra.mxu0 %v5953
  %6319 = vmatprep.subr.bf16.mxu0 0
  %6320 = vmatpush1.bf16.msra.mxu0 0
  %6321 = vmatprep.subr.bf16.mxu0 0
  %6322 = vmatpush1.bf16.msra.mxu0 0
  %6323 = vmatprep.subr.bf16.mxu0 0
  %6324 = vmatpush1.bf16.msra.mxu0 0
  %6325 = vmatprep.subr.bf16.mxu0 0
  %6326 = vmatpush1.bf16.msra.mxu0 0
  %6327 = vmatprep.subr.bf16.mxu0 0
  %6328 = vmatpush1.bf16.msra.mxu0 0
  %6329 = vmatprep.subr.bf16.mxu0 0
  %6330 = vmatpush1.bf16.msra.mxu0 0
  %6331 = vmatprep.subr.bf16.mxu0 0
  %6332 = vmatpush1.bf16.msra.mxu0 0
  %6333 = vmatprep.subr.bf16.mxu0 0
  %6334 = vmatpush1.bf16.msra.mxu0 0
  %6335 = vmatprep.subr.bf16.mxu0 0
  %6336 = vmatpush1.bf16.msra.mxu0 0
  %6337 = vmatprep.subr.bf16.mxu0 0
  %6338 = vmatpush1.bf16.msra.mxu0 0
  %6339 = vmatprep.subr.bf16.mxu0 0
  %6340 = vmatpush1.bf16.msra.mxu0 0
  %6341 = vmatprep.subr.bf16.mxu0 0
  %6342 = vmatpush1.bf16.msra.mxu0 0
  %6343 = vmatprep.mubr.bf16.mxu0 0
  %6344 = vmatmul.mubr.bf16.gmra.mrb[0].mxu0 %v6104
  %v6345 = vpop.f32.mrb[0].mxu0
  %v6346 = vadd.f32 0.0, %v6345
  %v6347 = vpop.f32.mrb[0].mxu0
  %v6348 = vadd.f32 0.0, %v6347
  %v6349 = vpop.f32.mrb[0].mxu0
  %v6350 = vpop.f32.mrb[0].mxu0
  %6351 = vdwg.mxu0
  %6352 = vmatprep.subr.bf16.mxu0 %v5860
  %6353 = vmatpush1.bf16.msra.mxu0 %v5859
  %6354 = vmatprep.subr.bf16.mxu0 %v5892
  %6355 = vmatpush1.bf16.msra.mxu0 %v5891
  %6356 = vmatprep.subr.bf16.mxu0 %v5924
  %6357 = vmatpush1.bf16.msra.mxu0 %v5923
  %6358 = vmatprep.subr.bf16.mxu0 %v5956
  %6359 = vmatpush1.bf16.msra.mxu0 %v5955
  %6360 = vmatprep.subr.bf16.mxu0 0
  %6361 = vmatpush1.bf16.msra.mxu0 0
  %6362 = vmatprep.subr.bf16.mxu0 0
  %6363 = vmatpush1.bf16.msra.mxu0 0
  %6364 = vmatprep.subr.bf16.mxu0 0
  %6365 = vmatpush1.bf16.msra.mxu0 0
  %6366 = vmatprep.subr.bf16.mxu0 0
  %6367 = vmatpush1.bf16.msra.mxu0 0
  %6368 = vmatprep.subr.bf16.mxu0 0
  %6369 = vmatpush1.bf16.msra.mxu0 0
  %6370 = vmatprep.subr.bf16.mxu0 0
  %6371 = vmatpush1.bf16.msra.mxu0 0
  %6372 = vmatprep.subr.bf16.mxu0 0
  %6373 = vmatpush1.bf16.msra.mxu0 0
  %6374 = vmatprep.subr.bf16.mxu0 0
  %6375 = vmatpush1.bf16.msra.mxu0 0
  %6376 = vmatprep.subr.bf16.mxu0 0
  %6377 = vmatpush1.bf16.msra.mxu0 0
  %6378 = vmatprep.subr.bf16.mxu0 0
  %6379 = vmatpush1.bf16.msra.mxu0 0
  %6380 = vmatprep.subr.bf16.mxu0 0
  %6381 = vmatpush1.bf16.msra.mxu0 0
  %6382 = vmatprep.subr.bf16.mxu0 0
  %6383 = vmatpush1.bf16.msra.mxu0 0
  %6384 = vmatprep.mubr.bf16.mxu0 0
  %6385 = vmatmul.mubr.bf16.gmra.mrb[0].mxu0 %v6104
  %v6386 = vpop.f32.mrb[0].mxu0
  %v6387 = vadd.f32 0.0, %v6386
  %v6388 = vpop.f32.mrb[0].mxu0
  %v6389 = vadd.f32 0.0, %v6388
  %v6390 = vpop.f32.mrb[0].mxu0
  %v6391 = vpop.f32.mrb[0].mxu0
  %6392 = vdwg.mxu0
  %6393 = vmatprep.subr.bf16.mxu0 %v5862
  %6394 = vmatpush1.bf16.msra.mxu0 %v5861
  %6395 = vmatprep.subr.bf16.mxu0 %v5894
  %6396 = vmatpush1.bf16.msra.mxu0 %v5893
  %6397 = vmatprep.subr.bf16.mxu0 %v5926
  %6398 = vmatpush1.bf16.msra.mxu0 %v5925
  %6399 = vmatprep.subr.bf16.mxu0 %v5958
  %6400 = vmatpush1.bf16.msra.mxu0 %v5957
  %6401 = vmatprep.subr.bf16.mxu0 0
  %6402 = vmatpush1.bf16.msra.mxu0 0
  %6403 = vmatprep.subr.bf16.mxu0 0
  %6404 = vmatpush1.bf16.msra.mxu0 0
  %6405 = vmatprep.subr.bf16.mxu0 0
  %6406 = vmatpush1.bf16.msra.mxu0 0
  %6407 = vmatprep.subr.bf16.mxu0 0
  %6408 = vmatpush1.bf16.msra.mxu0 0
  %6409 = vmatprep.subr.bf16.mxu0 0
  %6410 = vmatpush1.bf16.msra.mxu0 0
  %6411 = vmatprep.subr.bf16.mxu0 0
  %6412 = vmatpush1.bf16.msra.mxu0 0
  %6413 = vmatprep.subr.bf16.mxu0 0
  %6414 = vmatpush1.bf16.msra.mxu0 0
  %6415 = vmatprep.subr.bf16.mxu0 0
  %6416 = vmatpush1.bf16.msra.mxu0 0
  %6417 = vmatprep.subr.bf16.mxu0 0
  %6418 = vmatpush1.bf16.msra.mxu0 0
  %6419 = vmatprep.subr.bf16.mxu0 0
  %6420 = vmatpush1.bf16.msra.mxu0 0
  %6421 = vmatprep.subr.bf16.mxu0 0
  %6422 = vmatpush1.bf16.msra.mxu0 0
  %6423 = vmatprep.subr.bf16.mxu0 0
  %6424 = vmatpush1.bf16.msra.mxu0 0
  %6425 = vmatprep.mubr.bf16.mxu0 0
  %6426 = vmatmul.mubr.bf16.gmra.mrb[0].mxu0 %v6104
  %v6427 = vpop.f32.mrb[0].mxu0
  %v6428 = vadd.f32 0.0, %v6427
  %v6429 = vpop.f32.mrb[0].mxu0
  %v6430 = vadd.f32 0.0, %v6429
  %v6431 = vpop.f32.mrb[0].mxu0
  %v6432 = vpop.f32.mrb[0].mxu0
  %6433 = vdwg.mxu0
  %6434 = vmatprep.subr.bf16.mxu0 %v5864
  %6435 = vmatpush1.bf16.msra.mxu0 %v5863
  %6436 = vmatprep.subr.bf16.mxu0 %v5896
  %6437 = vmatpush1.bf16.msra.mxu0 %v5895
  %6438 = vmatprep.subr.bf16.mxu0 %v5928
  %6439 = vmatpush1.bf16.msra.mxu0 %v5927
  %6440 = vmatprep.subr.bf16.mxu0 %v5960
  %6441 = vmatpush1.bf16.msra.mxu0 %v5959
  %6442 = vmatprep.subr.bf16.mxu0 0
  %6443 = vmatpush1.bf16.msra.mxu0 0
  %6444 = vmatprep.subr.bf16.mxu0 0
  %6445 = vmatpush1.bf16.msra.mxu0 0
  %6446 = vmatprep.subr.bf16.mxu0 0
  %6447 = vmatpush1.bf16.msra.mxu0 0
  %6448 = vmatprep.subr.bf16.mxu0 0
  %6449 = vmatpush1.bf16.msra.mxu0 0
  %6450 = vmatprep.subr.bf16.mxu0 0
  %6451 = vmatpush1.bf16.msra.mxu0 0
  %6452 = vmatprep.subr.bf16.mxu0 0
  %6453 = vmatpush1.bf16.msra.mxu0 0
  %6454 = vmatprep.subr.bf16.mxu0 0
  %6455 = vmatpush1.bf16.msra.mxu0 0
  %6456 = vmatprep.subr.bf16.mxu0 0
  %6457 = vmatpush1.bf16.msra.mxu0 0
  %6458 = vmatprep.subr.bf16.mxu0 0
  %6459 = vmatpush1.bf16.msra.mxu0 0
  %6460 = vmatprep.subr.bf16.mxu0 0
  %6461 = vmatpush1.bf16.msra.mxu0 0
  %6462 = vmatprep.subr.bf16.mxu0 0
  %6463 = vmatpush1.bf16.msra.mxu0 0
  %6464 = vmatprep.subr.bf16.mxu0 0
  %6465 = vmatpush1.bf16.msra.mxu0 0
  %6466 = vmatprep.mubr.bf16.mxu0 0
  %6467 = vmatmul.mubr.bf16.gmra.mrb[0].mxu0 %v6104
  %v6468 = vpop.f32.mrb[0].mxu0
  %v6469 = vadd.f32 0.0, %v6468
  %v6470 = vpop.f32.mrb[0].mxu0
  %v6471 = vadd.f32 0.0, %v6470
  %v6472 = vpop.f32.mrb[0].mxu0
  %v6473 = vpop.f32.mrb[0].mxu0
  %6474 = vdwg.mxu0
  %6475 = vmatprep.subr.bf16.mxu0 %v5866
  %6476 = vmatpush1.bf16.msra.mxu0 %v5865
  %6477 = vmatprep.subr.bf16.mxu0 %v5898
  %6478 = vmatpush1.bf16.msra.mxu0 %v5897
  %6479 = vmatprep.subr.bf16.mxu0 %v5930
  %6480 = vmatpush1.bf16.msra.mxu0 %v5929
  %6481 = vmatprep.subr.bf16.mxu0 %v5962
  %6482 = vmatpush1.bf16.msra.mxu0 %v5961
  %6483 = vmatprep.subr.bf16.mxu0 0
  %6484 = vmatpush1.bf16.msra.mxu0 0
  %6485 = vmatprep.subr.bf16.mxu0 0
  %6486 = vmatpush1.bf16.msra.mxu0 0
  %6487 = vmatprep.subr.bf16.mxu0 0
  %6488 = vmatpush1.bf16.msra.mxu0 0
  %6489 = vmatprep.subr.bf16.mxu0 0
  %6490 = vmatpush1.bf16.msra.mxu0 0
  %6491 = vmatprep.subr.bf16.mxu0 0
  %6492 = vmatpush1.bf16.msra.mxu0 0
  %6493 = vmatprep.subr.bf16.mxu0 0
  %6494 = vmatpush1.bf16.msra.mxu0 0
  %6495 = vmatprep.subr.bf16.mxu0 0
  %6496 = vmatpush1.bf16.msra.mxu0 0
  %6497 = vmatprep.subr.bf16.mxu0 0
  %6498 = vmatpush1.bf16.msra.mxu0 0
  %6499 = vmatprep.subr.bf16.mxu0 0
  %6500 = vmatpush1.bf16.msra.mxu0 0
  %6501 = vmatprep.subr.bf16.mxu0 0
  %6502 = vmatpush1.bf16.msra.mxu0 0
  %6503 = vmatprep.subr.bf16.mxu0 0
  %6504 = vmatpush1.bf16.msra.mxu0 0
  %6505 = vmatprep.subr.bf16.mxu0 0
  %6506 = vmatpush1.bf16.msra.mxu0 0
  %6507 = vmatprep.mubr.bf16.mxu0 0
  %6508 = vmatmul.mubr.bf16.gmra.mrb[0].mxu0 %v6104
  %v6509 = vpop.f32.mrb[0].mxu0
  %v6510 = vadd.f32 0.0, %v6509
  %v6511 = vpop.f32.mrb[0].mxu0
  %v6512 = vadd.f32 0.0, %v6511
  %v6513 = vpop.f32.mrb[0].mxu0
  %v6514 = vpop.f32.mrb[0].mxu0
  %6515 = vdwg.mxu0
  %6516 = vmatprep.subr.bf16.mxu0 %v5868
  %6517 = vmatpush1.bf16.msra.mxu0 %v5867
  %6518 = vmatprep.subr.bf16.mxu0 %v5900
  %6519 = vmatpush1.bf16.msra.mxu0 %v5899
  %6520 = vmatprep.subr.bf16.mxu0 %v5932
  %6521 = vmatpush1.bf16.msra.mxu0 %v5931
  %6522 = vmatprep.subr.bf16.mxu0 %v5964
  %6523 = vmatpush1.bf16.msra.mxu0 %v5963
  %6524 = vmatprep.subr.bf16.mxu0 0
  %6525 = vmatpush1.bf16.msra.mxu0 0
  %6526 = vmatprep.subr.bf16.mxu0 0
  %6527 = vmatpush1.bf16.msra.mxu0 0
  %6528 = vmatprep.subr.bf16.mxu0 0
  %6529 = vmatpush1.bf16.msra.mxu0 0
  %6530 = vmatprep.subr.bf16.mxu0 0
  %6531 = vmatpush1.bf16.msra.mxu0 0
  %6532 = vmatprep.subr.bf16.mxu0 0
  %6533 = vmatpush1.bf16.msra.mxu0 0
  %6534 = vmatprep.subr.bf16.mxu0 0
  %6535 = vmatpush1.bf16.msra.mxu0 0
  %6536 = vmatprep.subr.bf16.mxu0 0
  %6537 = vmatpush1.bf16.msra.mxu0 0
  %6538 = vmatprep.subr.bf16.mxu0 0
  %6539 = vmatpush1.bf16.msra.mxu0 0
  %6540 = vmatprep.subr.bf16.mxu0 0
  %6541 = vmatpush1.bf16.msra.mxu0 0
  %6542 = vmatprep.subr.bf16.mxu0 0
  %6543 = vmatpush1.bf16.msra.mxu0 0
  %6544 = vmatprep.subr.bf16.mxu0 0
  %6545 = vmatpush1.bf16.msra.mxu0 0
  %6546 = vmatprep.subr.bf16.mxu0 0
  %6547 = vmatpush1.bf16.msra.mxu0 0
  %6548 = vmatprep.mubr.bf16.mxu0 0
  %6549 = vmatmul.mubr.bf16.gmra.mrb[0].mxu0 %v6104
  %v6550 = vpop.f32.mrb[0].mxu0
  %v6551 = vadd.f32 0.0, %v6550
  %v6552 = vpop.f32.mrb[0].mxu0
  %v6553 = vadd.f32 0.0, %v6552
  %v6554 = vpop.f32.mrb[0].mxu0
  %v6555 = vpop.f32.mrb[0].mxu0
  %6556 = vdwg.mxu0
  %6557 = vmatprep.subr.bf16.mxu0 %v5870
  %6558 = vmatpush1.bf16.msra.mxu0 %v5869
  %6559 = vmatprep.subr.bf16.mxu0 %v5902
  %6560 = vmatpush1.bf16.msra.mxu0 %v5901
  %6561 = vmatprep.subr.bf16.mxu0 %v5934
  %6562 = vmatpush1.bf16.msra.mxu0 %v5933
  %6563 = vmatprep.subr.bf16.mxu0 %v5966
  %6564 = vmatpush1.bf16.msra.mxu0 %v5965
  %6565 = vmatprep.subr.bf16.mxu0 0
  %6566 = vmatpush1.bf16.msra.mxu0 0
  %6567 = vmatprep.subr.bf16.mxu0 0
  %6568 = vmatpush1.bf16.msra.mxu0 0
  %6569 = vmatprep.subr.bf16.mxu0 0
  %6570 = vmatpush1.bf16.msra.mxu0 0
  %6571 = vmatprep.subr.bf16.mxu0 0
  %6572 = vmatpush1.bf16.msra.mxu0 0
  %6573 = vmatprep.subr.bf16.mxu0 0
  %6574 = vmatpush1.bf16.msra.mxu0 0
  %6575 = vmatprep.subr.bf16.mxu0 0
  %6576 = vmatpush1.bf16.msra.mxu0 0
  %6577 = vmatprep.subr.bf16.mxu0 0
  %6578 = vmatpush1.bf16.msra.mxu0 0
  %6579 = vmatprep.subr.bf16.mxu0 0
  %6580 = vmatpush1.bf16.msra.mxu0 0
  %6581 = vmatprep.subr.bf16.mxu0 0
  %6582 = vmatpush1.bf16.msra.mxu0 0
  %6583 = vmatprep.subr.bf16.mxu0 0
  %6584 = vmatpush1.bf16.msra.mxu0 0
  %6585 = vmatprep.subr.bf16.mxu0 0
  %6586 = vmatpush1.bf16.msra.mxu0 0
  %6587 = vmatprep.subr.bf16.mxu0 0
  %6588 = vmatpush1.bf16.msra.mxu0 0
  %6589 = vmatprep.mubr.bf16.mxu0 0
  %6590 = vmatmul.mubr.bf16.gmra.mrb[0].mxu0 %v6104
  %v6591 = vpop.f32.mrb[0].mxu0
  %v6592 = vadd.f32 0.0, %v6591
  %v6593 = vpop.f32.mrb[0].mxu0
  %v6594 = vadd.f32 0.0, %v6593
  %v6595 = vpop.f32.mrb[0].mxu0
  %v6596 = vpop.f32.mrb[0].mxu0
  %6597 = vdwg.mxu0
  %6598 = vmatprep.subr.bf16.mxu0 %v5872
  %6599 = vmatpush1.bf16.msra.mxu0 %v5871
  %6600 = vmatprep.subr.bf16.mxu0 %v5904
  %6601 = vmatpush1.bf16.msra.mxu0 %v5903
  %6602 = vmatprep.subr.bf16.mxu0 %v5936
  %6603 = vmatpush1.bf16.msra.mxu0 %v5935
  %6604 = vmatprep.subr.bf16.mxu0 %v5968
  %6605 = vmatpush1.bf16.msra.mxu0 %v5967
  %6606 = vmatprep.subr.bf16.mxu0 0
  %6607 = vmatpush1.bf16.msra.mxu0 0
  %6608 = vmatprep.subr.bf16.mxu0 0
  %6609 = vmatpush1.bf16.msra.mxu0 0
  %6610 = vmatprep.subr.bf16.mxu0 0
  %6611 = vmatpush1.bf16.msra.mxu0 0
  %6612 = vmatprep.subr.bf16.mxu0 0
  %6613 = vmatpush1.bf16.msra.mxu0 0
  %6614 = vmatprep.subr.bf16.mxu0 0
  %6615 = vmatpush1.bf16.msra.mxu0 0
  %6616 = vmatprep.subr.bf16.mxu0 0
  %6617 = vmatpush1.bf16.msra.mxu0 0
  %6618 = vmatprep.subr.bf16.mxu0 0
  %6619 = vmatpush1.bf16.msra.mxu0 0
  %6620 = vmatprep.subr.bf16.mxu0 0
  %6621 = vmatpush1.bf16.msra.mxu0 0
  %6622 = vmatprep.subr.bf16.mxu0 0
  %6623 = vmatpush1.bf16.msra.mxu0 0
  %6624 = vmatprep.subr.bf16.mxu0 0
  %6625 = vmatpush1.bf16.msra.mxu0 0
  %6626 = vmatprep.subr.bf16.mxu0 0
  %6627 = vmatpush1.bf16.msra.mxu0 0
  %6628 = vmatprep.subr.bf16.mxu0 0
  %6629 = vmatpush1.bf16.msra.mxu0 0
  %6630 = vmatprep.mubr.bf16.mxu0 0
  %6631 = vmatmul.mubr.bf16.gmra.mrb[0].mxu0 %v6104
  %v6632 = vpop.f32.mrb[0].mxu0
  %v6633 = vadd.f32 0.0, %v6632
  %v6634 = vpop.f32.mrb[0].mxu0
  %v6635 = vadd.f32 0.0, %v6634
  %v6636 = vpop.f32.mrb[0].mxu0
  %v6637 = vpop.f32.mrb[0].mxu0
  %6638 = vdwg.mxu0
  %6639 = vmatprep.subr.bf16.mxu0 %v5874
  %6640 = vmatpush1.bf16.msra.mxu0 %v5873
  %6641 = vmatprep.subr.bf16.mxu0 %v5906
  %6642 = vmatpush1.bf16.msra.mxu0 %v5905
  %6643 = vmatprep.subr.bf16.mxu0 %v5938
  %6644 = vmatpush1.bf16.msra.mxu0 %v5937
  %6645 = vmatprep.subr.bf16.mxu0 %v5970
  %6646 = vmatpush1.bf16.msra.mxu0 %v5969
  %6647 = vmatprep.subr.bf16.mxu0 0
  %6648 = vmatpush1.bf16.msra.mxu0 0
  %6649 = vmatprep.subr.bf16.mxu0 0
  %6650 = vmatpush1.bf16.msra.mxu0 0
  %6651 = vmatprep.subr.bf16.mxu0 0
  %6652 = vmatpush1.bf16.msra.mxu0 0
  %6653 = vmatprep.subr.bf16.mxu0 0
  %6654 = vmatpush1.bf16.msra.mxu0 0
  %6655 = vmatprep.subr.bf16.mxu0 0
  %6656 = vmatpush1.bf16.msra.mxu0 0
  %6657 = vmatprep.subr.bf16.mxu0 0
  %6658 = vmatpush1.bf16.msra.mxu0 0
  %6659 = vmatprep.subr.bf16.mxu0 0
  %6660 = vmatpush1.bf16.msra.mxu0 0
  %6661 = vmatprep.subr.bf16.mxu0 0
  %6662 = vmatpush1.bf16.msra.mxu0 0
  %6663 = vmatprep.subr.bf16.mxu0 0
  %6664 = vmatpush1.bf16.msra.mxu0 0
  %6665 = vmatprep.subr.bf16.mxu0 0
  %6666 = vmatpush1.bf16.msra.mxu0 0
  %6667 = vmatprep.subr.bf16.mxu0 0
  %6668 = vmatpush1.bf16.msra.mxu0 0
  %6669 = vmatprep.subr.bf16.mxu0 0
  %6670 = vmatpush1.bf16.msra.mxu0 0
  %6671 = vmatprep.mubr.bf16.mxu0 0
  %6672 = vmatmul.mubr.bf16.gmra.mrb[0].mxu0 %v6104
  %v6673 = vpop.f32.mrb[0].mxu0
  %v6674 = vadd.f32 0.0, %v6673
  %v6675 = vpop.f32.mrb[0].mxu0
  %v6676 = vadd.f32 0.0, %v6675
  %v6677 = vpop.f32.mrb[0].mxu0
  %v6678 = vpop.f32.mrb[0].mxu0
  %6679 = vdwg.mxu0
  %6680 = vmatprep.subr.bf16.mxu0 %v5876
  %6681 = vmatpush1.bf16.msra.mxu0 %v5875
  %6682 = vmatprep.subr.bf16.mxu0 %v5908
  %6683 = vmatpush1.bf16.msra.mxu0 %v5907
  %6684 = vmatprep.subr.bf16.mxu0 %v5940
  %6685 = vmatpush1.bf16.msra.mxu0 %v5939
  %6686 = vmatprep.subr.bf16.mxu0 %v5972
  %6687 = vmatpush1.bf16.msra.mxu0 %v5971
  %6688 = vmatprep.subr.bf16.mxu0 0
  %6689 = vmatpush1.bf16.msra.mxu0 0
  %6690 = vmatprep.subr.bf16.mxu0 0
  %6691 = vmatpush1.bf16.msra.mxu0 0
  %6692 = vmatprep.subr.bf16.mxu0 0
  %6693 = vmatpush1.bf16.msra.mxu0 0
  %6694 = vmatprep.subr.bf16.mxu0 0
  %6695 = vmatpush1.bf16.msra.mxu0 0
  %6696 = vmatprep.subr.bf16.mxu0 0
  %6697 = vmatpush1.bf16.msra.mxu0 0
  %6698 = vmatprep.subr.bf16.mxu0 0
  %6699 = vmatpush1.bf16.msra.mxu0 0
  %6700 = vmatprep.subr.bf16.mxu0 0
  %6701 = vmatpush1.bf16.msra.mxu0 0
  %6702 = vmatprep.subr.bf16.mxu0 0
  %6703 = vmatpush1.bf16.msra.mxu0 0
  %6704 = vmatprep.subr.bf16.mxu0 0
  %6705 = vmatpush1.bf16.msra.mxu0 0
  %6706 = vmatprep.subr.bf16.mxu0 0
  %6707 = vmatpush1.bf16.msra.mxu0 0
  %6708 = vmatprep.subr.bf16.mxu0 0
  %6709 = vmatpush1.bf16.msra.mxu0 0
  %6710 = vmatprep.subr.bf16.mxu0 0
  %6711 = vmatpush1.bf16.msra.mxu0 0
  %6712 = vmatprep.mubr.bf16.mxu0 0
  %6713 = vmatmul.mubr.bf16.gmra.mrb[0].mxu0 %v6104
  %v6714 = vpop.f32.mrb[0].mxu0
  %v6715 = vadd.f32 0.0, %v6714
  %v6716 = vpop.f32.mrb[0].mxu0
  %v6717 = vadd.f32 0.0, %v6716
  %v6718 = vpop.f32.mrb[0].mxu0
  %v6719 = vpop.f32.mrb[0].mxu0
  %6720 = vdwg.mxu0
  %6721 = vmatprep.subr.bf16.mxu0 %v5878
  %6722 = vmatpush1.bf16.msra.mxu0 %v5877
  %6723 = vmatprep.subr.bf16.mxu0 %v5910
  %6724 = vmatpush1.bf16.msra.mxu0 %v5909
  %6725 = vmatprep.subr.bf16.mxu0 %v5942
  %6726 = vmatpush1.bf16.msra.mxu0 %v5941
  %6727 = vmatprep.subr.bf16.mxu0 %v5974
  %6728 = vmatpush1.bf16.msra.mxu0 %v5973
  %6729 = vmatprep.subr.bf16.mxu0 0
  %6730 = vmatpush1.bf16.msra.mxu0 0
  %6731 = vmatprep.subr.bf16.mxu0 0
  %6732 = vmatpush1.bf16.msra.mxu0 0
  %6733 = vmatprep.subr.bf16.mxu0 0
  %6734 = vmatpush1.bf16.msra.mxu0 0
  %6735 = vmatprep.subr.bf16.mxu0 0
  %6736 = vmatpush1.bf16.msra.mxu0 0
  %6737 = vmatprep.subr.bf16.mxu0 0
  %6738 = vmatpush1.bf16.msra.mxu0 0
  %6739 = vmatprep.subr.bf16.mxu0 0
  %6740 = vmatpush1.bf16.msra.mxu0 0
  %6741 = vmatprep.subr.bf16.mxu0 0
  %6742 = vmatpush1.bf16.msra.mxu0 0
  %6743 = vmatprep.subr.bf16.mxu0 0
  %6744 = vmatpush1.bf16.msra.mxu0 0
  %6745 = vmatprep.subr.bf16.mxu0 0
  %6746 = vmatpush1.bf16.msra.mxu0 0
  %6747 = vmatprep.subr.bf16.mxu0 0
  %6748 = vmatpush1.bf16.msra.mxu0 0
  %6749 = vmatprep.subr.bf16.mxu0 0
  %6750 = vmatpush1.bf16.msra.mxu0 0
  %6751 = vmatprep.subr.bf16.mxu0 0
  %6752 = vmatpush1.bf16.msra.mxu0 0
  %6753 = vmatprep.mubr.bf16.mxu0 0
  %6754 = vmatmul.mubr.bf16.gmra.mrb[0].mxu0 %v6104
  %v6755 = vpop.f32.mrb[0].mxu0
  %v6756 = vadd.f32 0.0, %v6755
  %v6757 = vpop.f32.mrb[0].mxu0
  %v6758 = vadd.f32 0.0, %v6757
  %v6759 = vpop.f32.mrb[0].mxu0
  %v6760 = vpop.f32.mrb[0].mxu0
  %6761 = vdwg.mxu0
  %v6794 = vcombine.low %v6141, %v6143
  %v6795 = vcombine.low %v6182, %v6184
  %v6796 = vcombine.low %v6223, %v6225
  %v6797 = vcombine.low %v6264, %v6266
  %v6799 = vunpack.c.l.s4 1966171168
  %v6800 = vunpack.c.0.s8 %v6799
  %v6801 = vlaneseq
  %v6802 = vshrl.u32 %v6801, 7
  %v6803 = vsub.s32 %v6800, %v6802
  %v6804 = vrot.slane %v6794, %v6803
  %v6806 = vunpack.c.l.s4 1966171168
  %v6807 = vunpack.c.0.s8 %v6806
  %v6808 = vlaneseq
  %v6809 = vshrl.u32 %v6808, 7
  %v6810 = vsub.s32 %v6807, %v6809
  %v6811 = vrot.slane %v6795, %v6810
  %v6813 = vunpack.c.l.s4 1966171168
  %v6814 = vunpack.c.0.s8 %v6813
  %v6815 = vlaneseq
  %v6816 = vshrl.u32 %v6815, 7
  %v6817 = vsub.s32 %v6814, %v6816
  %v6818 = vrot.slane %v6796, %v6817
  %v6820 = vunpack.c.l.s4 1966171168
  %v6821 = vunpack.c.0.s8 %v6820
  %v6822 = vlaneseq
  %v6823 = vshrl.u32 %v6822, 7
  %v6824 = vsub.s32 %v6821, %v6823
  %v6825 = vrot.slane %v6797, %v6824
  %v6826 = vcombine.low %v6804, %v6811
  %v6827 = vcombine.low %v6818, %v6825
  %v6829 = vunpack.c.l.s4 1966171168
  %v6830 = vunpack.c.0.s8 %v6829
  %v6831 = vlaneseq
  %v6832 = vshrl.u32 %v6831, 7
  %v6833 = vsub.s32 %v6830, %v6832
  %v6834 = vrot.slane %v6826, %v6833
  %v6836 = vunpack.c.l.s4 1966171168
  %v6837 = vunpack.c.0.s8 %v6836
  %v6838 = vlaneseq
  %v6839 = vshrl.u32 %v6838, 7
  %v6840 = vsub.s32 %v6837, %v6839
  %v6841 = vrot.slane %v6827, %v6840
  %v6842 = vcombine.low %v6834, %v6841
  %v6843 = vcombine.low %v6305, %v6307
  %v6844 = vcombine.low %v6346, %v6348
  %v6845 = vcombine.low %v6387, %v6389
  %v6846 = vcombine.low %v6428, %v6430
  %v6848 = vunpack.c.l.s4 1966171168
  %v6849 = vunpack.c.0.s8 %v6848
  %v6850 = vlaneseq
  %v6851 = vshrl.u32 %v6850, 7
  %v6852 = vsub.s32 %v6849, %v6851
  %v6853 = vrot.slane %v6843, %v6852
  %v6855 = vunpack.c.l.s4 1966171168
  %v6856 = vunpack.c.0.s8 %v6855
  %v6857 = vlaneseq
  %v6858 = vshrl.u32 %v6857, 7
  %v6859 = vsub.s32 %v6856, %v6858
  %v6860 = vrot.slane %v6844, %v6859
  %v6862 = vunpack.c.l.s4 1966171168
  %v6863 = vunpack.c.0.s8 %v6862
  %v6864 = vlaneseq
  %v6865 = vshrl.u32 %v6864, 7
  %v6866 = vsub.s32 %v6863, %v6865
  %v6867 = vrot.slane %v6845, %v6866
  %v6869 = vunpack.c.l.s4 1966171168
  %v6870 = vunpack.c.0.s8 %v6869
  %v6871 = vlaneseq
  %v6872 = vshrl.u32 %v6871, 7
  %v6873 = vsub.s32 %v6870, %v6872
  %v6874 = vrot.slane %v6846, %v6873
  %v6875 = vcombine.low %v6853, %v6860
  %v6876 = vcombine.low %v6867, %v6874
  %v6878 = vunpack.c.l.s4 1966171168
  %v6879 = vunpack.c.0.s8 %v6878
  %v6880 = vlaneseq
  %v6881 = vshrl.u32 %v6880, 7
  %v6882 = vsub.s32 %v6879, %v6881
  %v6883 = vrot.slane %v6875, %v6882
  %v6885 = vunpack.c.l.s4 1966171168
  %v6886 = vunpack.c.0.s8 %v6885
  %v6887 = vlaneseq
  %v6888 = vshrl.u32 %v6887, 7
  %v6889 = vsub.s32 %v6886, %v6888
  %v6890 = vrot.slane %v6876, %v6889
  %v6891 = vcombine.low %v6883, %v6890
  %v6892 = vcombine.low %v6469, %v6471
  %v6893 = vcombine.low %v6510, %v6512
  %v6894 = vcombine.low %v6551, %v6553
  %v6895 = vcombine.low %v6592, %v6594
  %v6897 = vunpack.c.l.s4 1966171168
  %v6898 = vunpack.c.0.s8 %v6897
  %v6899 = vlaneseq
  %v6900 = vshrl.u32 %v6899, 7
  %v6901 = vsub.s32 %v6898, %v6900
  %v6902 = vrot.slane %v6892, %v6901
  %v6904 = vunpack.c.l.s4 1966171168
  %v6905 = vunpack.c.0.s8 %v6904
  %v6906 = vlaneseq
  %v6907 = vshrl.u32 %v6906, 7
  %v6908 = vsub.s32 %v6905, %v6907
  %v6909 = vrot.slane %v6893, %v6908
  %v6911 = vunpack.c.l.s4 1966171168
  %v6912 = vunpack.c.0.s8 %v6911
  %v6913 = vlaneseq
  %v6914 = vshrl.u32 %v6913, 7
  %v6915 = vsub.s32 %v6912, %v6914
  %v6916 = vrot.slane %v6894, %v6915
  %v6918 = vunpack.c.l.s4 1966171168
  %v6919 = vunpack.c.0.s8 %v6918
  %v6920 = vlaneseq
  %v6921 = vshrl.u32 %v6920, 7
  %v6922 = vsub.s32 %v6919, %v6921
  %v6923 = vrot.slane %v6895, %v6922
  %v6924 = vcombine.low %v6902, %v6909
  %v6925 = vcombine.low %v6916, %v6923
  %v6927 = vunpack.c.l.s4 1966171168
  %v6928 = vunpack.c.0.s8 %v6927
  %v6929 = vlaneseq
  %v6930 = vshrl.u32 %v6929, 7
  %v6931 = vsub.s32 %v6928, %v6930
  %v6932 = vrot.slane %v6924, %v6931
  %v6934 = vunpack.c.l.s4 1966171168
  %v6935 = vunpack.c.0.s8 %v6934
  %v6936 = vlaneseq
  %v6937 = vshrl.u32 %v6936, 7
  %v6938 = vsub.s32 %v6935, %v6937
  %v6939 = vrot.slane %v6925, %v6938
  %v6940 = vcombine.low %v6932, %v6939
  %v6941 = vcombine.low %v6633, %v6635
  %v6942 = vcombine.low %v6674, %v6676
  %v6943 = vcombine.low %v6715, %v6717
  %v6944 = vcombine.low %v6756, %v6758
  %v6946 = vunpack.c.l.s4 1966171168
  %v6947 = vunpack.c.0.s8 %v6946
  %v6948 = vlaneseq
  %v6949 = vshrl.u32 %v6948, 7
  %v6950 = vsub.s32 %v6947, %v6949
  %v6951 = vrot.slane %v6941, %v6950
  %v6953 = vunpack.c.l.s4 1966171168
  %v6954 = vunpack.c.0.s8 %v6953
  %v6955 = vlaneseq
  %v6956 = vshrl.u32 %v6955, 7
  %v6957 = vsub.s32 %v6954, %v6956
  %v6958 = vrot.slane %v6942, %v6957
  %v6960 = vunpack.c.l.s4 1966171168
  %v6961 = vunpack.c.0.s8 %v6960
  %v6962 = vlaneseq
  %v6963 = vshrl.u32 %v6962, 7
  %v6964 = vsub.s32 %v6961, %v6963
  %v6965 = vrot.slane %v6943, %v6964
  %v6967 = vunpack.c.l.s4 1966171168
  %v6968 = vunpack.c.0.s8 %v6967
  %v6969 = vlaneseq
  %v6970 = vshrl.u32 %v6969, 7
  %v6971 = vsub.s32 %v6968, %v6970
  %v6972 = vrot.slane %v6944, %v6971
  %v6973 = vcombine.low %v6951, %v6958
  %v6974 = vcombine.low %v6965, %v6972
  %v6976 = vunpack.c.l.s4 1966171168
  %v6977 = vunpack.c.0.s8 %v6976
  %v6978 = vlaneseq
  %v6979 = vshrl.u32 %v6978, 7
  %v6980 = vsub.s32 %v6977, %v6979
  %v6981 = vrot.slane %v6973, %v6980
  %v6983 = vunpack.c.l.s4 1966171168
  %v6984 = vunpack.c.0.s8 %v6983
  %v6985 = vlaneseq
  %v6986 = vshrl.u32 %v6985, 7
  %v6987 = vsub.s32 %v6984, %v6986
  %v6988 = vrot.slane %v6974, %v6987
  %v6989 = vcombine.low %v6981, %v6988
  %6994 = vst [vmem:[%s69] sm:$0xff] %v6842
  %6995 = vst [vmem:[%s69 + $0x8] sm:$0xff] %v6891
  %6996 = vst [vmem:[%s69 + $0x10] sm:$0xff] %v6940
  %6997 = vst [vmem:[%s69 + $0x18] sm:$0xff] %v6989
  %v6998 = vcombine.high %v6804, %v6811
  %v6999 = vcombine.high %v6818, %v6825
  %v7001 = vunpack.c.l.s4 1966171168
  %v7002 = vunpack.c.0.s8 %v7001
  %v7003 = vlaneseq
  %v7004 = vshrl.u32 %v7003, 7
  %v7005 = vsub.s32 %v7002, %v7004
  %v7006 = vrot.slane %v6998, %v7005
  %v7008 = vunpack.c.l.s4 1966171168
  %v7009 = vunpack.c.0.s8 %v7008
  %v7010 = vlaneseq
  %v7011 = vshrl.u32 %v7010, 7
  %v7012 = vsub.s32 %v7009, %v7011
  %v7013 = vrot.slane %v6999, %v7012
  %v7014 = vcombine.low %v7006, %v7013
  %v7015 = vcombine.high %v6853, %v6860
  %v7016 = vcombine.high %v6867, %v6874
  %v7018 = vunpack.c.l.s4 1966171168
  %v7019 = vunpack.c.0.s8 %v7018
  %v7020 = vlaneseq
  %v7021 = vshrl.u32 %v7020, 7
  %v7022 = vsub.s32 %v7019, %v7021
  %v7023 = vrot.slane %v7015, %v7022
  %v7025 = vunpack.c.l.s4 1966171168
  %v7026 = vunpack.c.0.s8 %v7025
  %v7027 = vlaneseq
  %v7028 = vshrl.u32 %v7027, 7
  %v7029 = vsub.s32 %v7026, %v7028
  %v7030 = vrot.slane %v7016, %v7029
  %v7031 = vcombine.low %v7023, %v7030
  %v7032 = vcombine.high %v6902, %v6909
  %v7033 = vcombine.high %v6916, %v6923
  %v7035 = vunpack.c.l.s4 1966171168
  %v7036 = vunpack.c.0.s8 %v7035
  %v7037 = vlaneseq
  %v7038 = vshrl.u32 %v7037, 7
  %v7039 = vsub.s32 %v7036, %v7038
  %v7040 = vrot.slane %v7032, %v7039
  %v7042 = vunpack.c.l.s4 1966171168
  %v7043 = vunpack.c.0.s8 %v7042
  %v7044 = vlaneseq
  %v7045 = vshrl.u32 %v7044, 7
  %v7046 = vsub.s32 %v7043, %v7045
  %v7047 = vrot.slane %v7033, %v7046
  %v7048 = vcombine.low %v7040, %v7047
  %v7049 = vcombine.high %v6951, %v6958
  %v7050 = vcombine.high %v6965, %v6972
  %v7052 = vunpack.c.l.s4 1966171168
  %v7053 = vunpack.c.0.s8 %v7052
  %v7054 = vlaneseq
  %v7055 = vshrl.u32 %v7054, 7
  %v7056 = vsub.s32 %v7053, %v7055
  %v7057 = vrot.slane %v7049, %v7056
  %v7059 = vunpack.c.l.s4 1966171168
  %v7060 = vunpack.c.0.s8 %v7059
  %v7061 = vlaneseq
  %v7062 = vshrl.u32 %v7061, 7
  %v7063 = vsub.s32 %v7060, %v7062
  %v7064 = vrot.slane %v7050, %v7063
  %v7065 = vcombine.low %v7057, %v7064
  %s7070 = scalar_lea.vmem %s69, 32
  %7071 = vst [vmem:[%s7070] sm:$0xff] %v7014
  %7072 = vst [vmem:[%s7070 + $0x8] sm:$0xff] %v7031
  %7073 = vst [vmem:[%s7070 + $0x10] sm:$0xff] %v7048
  %7074 = vst [vmem:[%s7070 + $0x18] sm:$0xff] %v7065
  // Predicated region
  $region138: #{forward.1} parent=0 // pred_check
    _
  $region139: #{forward.1} parent=0 // pred_check_branch
    %7076 = sbr.rel (0) target = $region141
  $region140: #{forward.1} parent=0 // pred_region
    _
  $region141: #{forward.1} parent=0 // pred_fallthru
    _
  // Predicated region
  $region142: #{forward.1} parent=0 // pred_check
    _
  $region143: #{forward.1} parent=0 // pred_check_branch
    %7078 = sbr.rel (0) target = $region145
  $region144: #{forward.1} parent=0 // pred_region
    _
  $region145: #{forward.1} parent=0 // pred_fallthru
    _
  // Predicated region
  $region146: #{forward.1} parent=0 // pred_check
    _
  $region147: #{forward.1} parent=0 // pred_check_branch
    %7080 = sbr.rel (0) target = $region149
  $region148: #{forward.1} parent=0 // pred_region
    _
  $region149: #{forward.1} parent=0 // pred_fallthru
    _
  // Predicated region
  $region150: #{forward.1} parent=0 // pred_check
    _
  $region151: #{forward.1} parent=0 // pred_check_branch
    %7082 = sbr.rel (0) target = $region153
  $region152: #{forward.1} parent=0 // pred_region
    _
  $region153: #{forward.1} parent=0 // pred_fallthru
    _

</llo_original>
